<compile_context>
chip_gen: v7x
topology: tpu7x:2x2x1
jax: 0.10.0
libtpu: 0.0.40
codegen_flags: <defaults>
</compile_context>

<pallas_src>
import jax
import jax.numpy as jnp
from jax.experimental import pallas as pl
from jax.experimental.pallas import tpu as pltpu

HIDDEN = 32      # hidden_size
VOCAB = 64       # output_size
MAXLEN = 16      # max_length (number of encoder outputs / attention width)
NUM_STEPS = 16   # decode steps folded into one kernel call
DTYPE = jnp.float32

GATE_OFF = 128                       # column offset of w_hh inside W_big (vreg-aligned)
WBIG_PAD = 256                       # W_big lane width (padded; 176 used)


def _attn_decoder_kernel(tok_ref,                     # SMEM (T,) int32, scalar prefetch
                         hid0_ref, enc_ref, emb_ref,
                         w_attn_e_ref, w_comb_e_ref, w_comb_a_ref,
                         w_ih_ref, w_big_ref, bias_ref,
                         out_ref,                     # (T, 128) packed output
                         emb_s, apre_s, cpre_s):      # VMEM scratch
    H, L, V = HIDDEN, MAXLEN, VOCAB
    T = out_ref.shape[0]

    # ---------------- prologue (runs once, off the serial recurrence) ----------------
    # Gather the T embedding rows; token ids live in SMEM via scalar prefetch.
    for t in range(T):
        emb_s[pl.ds(t, 1), :] = emb_ref[pl.ds(tok_ref[t], 1), :]
    emb_all = emb_s[...]                                              # (T, H)
    # dropout(p=0.1) is identity in eval mode.

    # Batched (M=T) embedding-dependent halves of the two concat Linears.
    apre_s[...] = (jnp.dot(emb_all, w_attn_e_ref[...],
                           preferred_element_type=jnp.float32)
                   + bias_ref[0:1, :L])                               # (T, L)
    cpre_s[...] = (jnp.dot(emb_all, w_comb_e_ref[...],
                           preferred_element_type=jnp.float32)
                   + bias_ref[1:2, :H])                               # (T, H)

    # Loop-invariant operands hoisted into vregs once.
    enc = enc_ref[...]                                                # (L, H)
    w_comb_a = w_comb_a_ref[...]                                      # (H, H)
    w_ih = w_ih_ref[...]                                              # (H, 3H)
    w_big = w_big_ref[...]                                            # (H, 256)
    b_rz = bias_ref[2:3, :2 * H]
    b_in = bias_ref[3:4, :H]
    b_hn = bias_ref[4:5, :H]
    b_out = bias_ref[5:6, :V]
    pad = jnp.zeros((1, 128 - V - H - L), dtype=out_ref.dtype)

    hid0 = hid0_ref[...]                                              # (1, H)
    hbig0 = jnp.dot(hid0, w_big, preferred_element_type=jnp.float32)  # (1, 256)

    # ---------------- serial recurrence: hidden state carried in vregs ----------------
    def step(t, carry):
        hid, hbig = carry
        attn_hid = hbig[:, V:V + L]                    # hid half of attention logits
        h_gates = hbig[:, GATE_OFF:GATE_OFF + 3 * H]   # hid @ w_hh

        # attention weights: softmax(Linear([emb | hid])) over encoder positions
        a_logits = apre_s[pl.ds(t, 1), :] + attn_hid                  # (1, L)
        a_max = jnp.max(a_logits, axis=1, keepdims=True)
        a_exp = jnp.exp(a_logits - a_max)
        s = jnp.sum(a_exp, axis=1, keepdims=True)
        inv = pl.reciprocal(s, approx=True)
        inv = inv * (2.0 - s * inv)                    # one Newton step -> ~f32 exact
        attn_w = a_exp * inv

        # attn_applied = attn_weights @ encoder_outputs
        attn_applied = jnp.dot(attn_w, enc,
                               preferred_element_type=jnp.float32)    # (1, H)

        # attn_combine([emb | attn_applied]) + ReLU  (emb half precomputed)
        x = jnp.maximum(
            cpre_s[pl.ds(t, 1), :]
            + jnp.dot(attn_applied, w_comb_a, preferred_element_type=jnp.float32),
            0.0)                                                      # (1, H)

        # GRU step (PyTorch gate order r, z, n); hid@w_hh came from the previous W_big dot
        i_all = jnp.dot(x, w_ih, preferred_element_type=jnp.float32)  # (1, 3H)
        rz = jax.nn.sigmoid(i_all[:, :2 * H] + h_gates[:, :2 * H] + b_rz)
        r = rz[:, :H]
        z = rz[:, H:]
        n = jnp.tanh(i_all[:, 2 * H:] + b_in + r * (h_gates[:, 2 * H:] + b_hn))
        h_new = (1.0 - z) * n + z * hid                               # (1, H)

        # ONE fused dot for every consumer of h_new:
        # [logits (this step) | attn hid-part (next step) | GRU h-gates (next step)].
        hbig_new = jnp.dot(h_new, w_big,
                           preferred_element_type=jnp.float32)        # (1, 256)

        # output projection + log_softmax
        logits = hbig_new[:, :V] + b_out
        o_max = jnp.max(logits, axis=1, keepdims=True)
        shifted = logits - o_max
        logp = shifted - jnp.log(jnp.sum(jnp.exp(shifted), axis=1, keepdims=True))

        # one lane-dense 128-wide output row: [logp | h_new | attn_w | 0]
        out_ref[pl.ds(t, 1), :] = jnp.concatenate([logp, h_new, attn_w, pad], axis=1)
        return (h_new, hbig_new)

    jax.lax.fori_loop(0, T, step, (hid0, hbig0), unroll=True)


def attn_decoder_decode(tokens, hidden0, encoder_outputs, params):
    """Teacher-forced multi-step decode; the whole loop is ONE pallas_call, grid=(1,).

    tokens: int32 (T,); hidden0: (1, 1, H); encoder_outputs: (L, H).
    Returns (log_probs (T, V), hiddens (T, H), attn_weights (T, L)).
    """
    T = tokens.shape[0]
    H, V, L = HIDDEN, VOCAB, MAXLEN

    def cmap(rank):
        return lambda i, tok, _r=rank: (0,) * _r

    in_specs = [
        pl.BlockSpec((1, H), cmap(2)),              # initial hidden
        pl.BlockSpec((L, H), cmap(2)),              # encoder outputs
        pl.BlockSpec((V, H), cmap(2)),              # embedding table
        pl.BlockSpec((H, L), cmap(2)),              # attn weight, emb half
        pl.BlockSpec((H, H), cmap(2)),              # attn_combine weight, emb half
        pl.BlockSpec((H, H), cmap(2)),              # attn_combine weight, attn half
        pl.BlockSpec((H, 3 * H), cmap(2)),          # GRU w_ih (gates fused r,z,n)
        pl.BlockSpec((H, WBIG_PAD), cmap(2)),       # fused [w_out | w_attn_hid | w_hh]
        pl.BlockSpec((8, 128), cmap(2)),            # merged bias slab
    ]

    packed = pl.pallas_call(
        _attn_decoder_kernel,
        out_shape=jax.ShapeDtypeStruct((T, 128), DTYPE),
        grid_spec=pltpu.PrefetchScalarGridSpec(
            num_scalar_prefetch=1,
            grid=(1,),
            in_specs=in_specs,
            out_specs=pl.BlockSpec((T, 128), cmap(2)),
            scratch_shapes=[pltpu.VMEM((T, H), DTYPE),   # gathered embeddings
                            pltpu.VMEM((T, L), DTYPE),   # emb part of attn logits
                            pltpu.VMEM((T, H), DTYPE)],  # emb part of attn_combine
        ),
        compiler_params=pltpu.CompilerParams(
            dimension_semantics=("arbitrary",)),
    )(tokens.astype(jnp.int32),
      hidden0.reshape(1, H).astype(DTYPE),
      encoder_outputs.astype(DTYPE),
      params["emb"], params["w_attn_e"], params["w_comb_e"], params["w_comb_a"],
      params["w_ih"], params["w_big"], params["biases"])

    logp = packed[:, :V]
    hiddens = packed[:, V:V + H]
    attn_w = packed[:, V + H:V + H + L]
    return logp, hiddens, attn_w


def attn_decoder_forward(token, hidden, encoder_outputs, params):
    """Single step, same signature/semantics as AttnDecoderRNN.forward."""
    logp, hid, attn_w = attn_decoder_decode(token.reshape(1), hidden,
                                            encoder_outputs, params)
    return logp, hid.reshape(1, 1, HIDDEN), attn_w


def init_params(key):
    """Deterministic init.  Returns (kernel_params, reference_params).

    reference_params hold per-layer weights already transposed to (in, out) so every
    Linear is x @ W (PyTorch weight.T); kernel_params are the fused/packed layouts.
    """
    H, V, L = HIDDEN, VOCAB, MAXLEN
    ks = jax.random.split(key, 11)
    s = 0.1
    ref = {
        "embedding": jax.random.normal(ks[0], (V, H), DTYPE) * s,
        "w_attn": jax.random.normal(ks[1], (2 * H, L), DTYPE) * s,   # attn.weight.T
        "b_attn": jax.random.normal(ks[2], (L,), DTYPE) * s,
        "w_comb": jax.random.normal(ks[3], (2 * H, H), DTYPE) * s,   # attn_combine.weight.T
        "b_comb": jax.random.normal(ks[4], (H,), DTYPE) * s,
        "w_ih": jax.random.normal(ks[5], (H, 3 * H), DTYPE) * s,     # gru.weight_ih_l0.T (r,z,n)
        "w_hh": jax.random.normal(ks[6], (H, 3 * H), DTYPE) * s,     # gru.weight_hh_l0.T (r,z,n)
        "b_ih": jax.random.normal(ks[7], (3 * H,), DTYPE) * s,
        "b_hh": jax.random.normal(ks[8], (3 * H,), DTYPE) * s,
        "w_out": jax.random.normal(ks[9], (H, V), DTYPE) * s,        # out.weight.T
        "b_out": jax.random.normal(ks[10], (V,), DTYPE) * s,
    }

    biases = jnp.zeros((8, 128), DTYPE)
    biases = biases.at[0, :L].set(ref["b_attn"])
    biases = biases.at[1, :H].set(ref["b_comb"])
    biases = biases.at[2, :2 * H].set(ref["b_ih"][:2 * H] + ref["b_hh"][:2 * H])  # r,z pre-sum
    biases = biases.at[3, :H].set(ref["b_ih"][2 * H:])                            # n, input side
    biases = biases.at[4, :H].set(ref["b_hh"][2 * H:])                            # n, hidden side
    biases = biases.at[5, :V].set(ref["b_out"])

    # Fused weight for every consumer of the hidden state; sections vreg-friendly:
    #   cols [0, V)                 -> w_out          (logits of this step)
    #   cols [V, V+L)               -> w_attn[H:, :]  (hid half of next attention logits)
    #   cols [GATE_OFF, GATE_OFF+3H)-> w_hh           (next step's GRU h-gates)
    w_big = jnp.zeros((H, WBIG_PAD), DTYPE)
    w_big = w_big.at[:, :V].set(ref["w_out"])
    w_big = w_big.at[:, V:V + L].set(ref["w_attn"][H:])
    w_big = w_big.at[:, GATE_OFF:GATE_OFF + 3 * H].set(ref["w_hh"])

    kern = {
        "emb": ref["embedding"],
        "w_attn_e": ref["w_attn"][:H],    # (H, L) emb half
        "w_comb_e": ref["w_comb"][:H],    # (H, H) emb half
        "w_comb_a": ref["w_comb"][H:],    # (H, H) attn_applied half
        "w_ih": ref["w_ih"],              # (H, 3H)
        "w_big": w_big,                   # (H, 256)
        "biases": biases,
    }
    return kern, ref


def reference_step(tok, hid, enc, rp):
    """Pure-JAX mirror of one AttnDecoderRNN.forward step (dropout in eval mode)."""
    H = HIDDEN
    emb = rp["embedding"][tok].reshape(1, H)
    cat1 = jnp.concatenate([emb, hid], axis=1)
    attn_w = jax.nn.softmax(cat1 @ rp["w_attn"] + rp["b_attn"], axis=1)
    attn_applied = attn_w @ enc
    cat2 = jnp.concatenate([emb, attn_applied], axis=1)
    x = jax.nn.relu(cat2 @ rp["w_comb"] + rp["b_comb"])
    i_all = x @ rp["w_ih"] + rp["b_ih"]
    h_all = hid @ rp["w_hh"] + rp["b_hh"]
    r = jax.nn.sigmoid(i_all[:, :H] + h_all[:, :H])
    z = jax.nn.sigmoid(i_all[:, H:2 * H] + h_all[:, H:2 * H])
    n = jnp.tanh(i_all[:, 2 * H:] + r * h_all[:, 2 * H:])
    h_new = (1.0 - z) * n + z * hid
    logp = jax.nn.log_softmax(h_new @ rp["w_out"] + rp["b_out"], axis=1)
    return logp, h_new, attn_w


def reference_decode(tokens, hidden0, enc, rp):
    hid = hidden0.reshape(1, HIDDEN)
    logps, hids, aws = [], [], []
    for t in range(tokens.shape[0]):
        lp, hid, aw = reference_step(tokens[t], hid, enc, rp)
        logps.append(lp); hids.append(hid); aws.append(aw)
    return (jnp.concatenate(logps, 0), jnp.concatenate(hids, 0),
            jnp.concatenate(aws, 0))


if __name__ == "__main__":
    key = jax.random.PRNGKey(0)
    k_param, k_hid, k_enc, k_tok = jax.random.split(key, 4)

    kern_params, ref_params = init_params(k_param)
    tokens = jax.random.randint(k_tok, (NUM_STEPS,), 0, VOCAB, dtype=jnp.int32)
    hidden0 = jax.random.normal(k_hid, (1, 1, HIDDEN), DTYPE) * 0.5
    encoder_outputs = jax.random.normal(k_enc, (MAXLEN, HIDDEN), DTYPE) * 0.5

    # Multi-step decode: the entire 16-step loop lives inside one pallas_call.
    logp, hiddens, attn_w = attn_decoder_decode(tokens, hidden0,
                                                encoder_outputs, kern_params)
    jax.block_until_ready((logp, hiddens, attn_w))

    ref_logp, ref_hid, ref_aw = reference_decode(tokens, hidden0,
                                                 encoder_outputs, ref_params)
    assert logp.shape == (NUM_STEPS, VOCAB)
    assert hiddens.shape == (NUM_STEPS, HIDDEN)
    assert attn_w.shape == (NUM_STEPS, MAXLEN)
    assert jnp.allclose(logp, ref_logp, atol=5e-4, rtol=5e-4)
    assert jnp.allclose(hiddens, ref_hid, atol=5e-4, rtol=5e-4)
    assert jnp.allclose(attn_w, ref_aw, atol=5e-4, rtol=5e-4)

    # Single-step API parity with AttnDecoderRNN.forward.
    lp1, h1, aw1 = attn_decoder_forward(tokens[:1].reshape(1, 1), hidden0,
                                        encoder_outputs, kern_params)
    jax.block_until_ready((lp1, h1, aw1))
    assert lp1.shape == (1, VOCAB)
    assert h1.shape == (1, 1, HIDDEN)
    assert aw1.shape == (1, MAXLEN)
    assert jnp.allclose(lp1, ref_logp[:1], atol=5e-4, rtol=5e-4)

    print("KERNEL_OK")
</pallas_src>

<mosaic_0001>
module attributes {stable_mosaic.version = 11 : i64} {
  func.func @_attn_decoder_kernel(%arg0: i32, %arg1: memref<16xi32, #tpu.memory_space<smem>>, %arg2: memref<1x32xf32, #tpu.memory_space<vmem>>, %arg3: memref<16x32xf32, #tpu.memory_space<vmem>>, %arg4: memref<64x32xf32, #tpu.memory_space<vmem>>, %arg5: memref<32x16xf32, #tpu.memory_space<vmem>>, %arg6: memref<32x32xf32, #tpu.memory_space<vmem>>, %arg7: memref<32x32xf32, #tpu.memory_space<vmem>>, %arg8: memref<32x96xf32, #tpu.memory_space<vmem>>, %arg9: memref<32x256xf32, #tpu.memory_space<vmem>>, %arg10: memref<8x128xf32, #tpu.memory_space<vmem>>, %arg11: memref<16x128xf32, #tpu.memory_space<vmem>>, %arg12: memref<16x32xf32, #tpu.memory_space<vmem>>, %arg13: memref<16x16xf32, #tpu.memory_space<vmem>>, %arg14: memref<16x32xf32, #tpu.memory_space<vmem>>) attributes {dimension_semantics = [#tpu.dimension_semantics<arbitrary>], iteration_bounds = array<i64: 1>, scalar_prefetch = 1 : i64, scratch_operands = 3 : i64, tpu.core_type = #tpu.core_type<tc>, window_params = [{pipeline_mode = #tpu.pipeline_mode<synchronous>, transform_indices = @transform_0, window_bounds = array<i64: 1, 32>}, {pipeline_mode = #tpu.pipeline_mode<synchronous>, transform_indices = @transform_1, window_bounds = array<i64: 16, 32>}, {pipeline_mode = #tpu.pipeline_mode<synchronous>, transform_indices = @transform_2, window_bounds = array<i64: 64, 32>}, {pipeline_mode = #tpu.pipeline_mode<synchronous>, transform_indices = @transform_3, window_bounds = array<i64: 32, 16>}, {pipeline_mode = #tpu.pipeline_mode<synchronous>, transform_indices = @transform_4, window_bounds = array<i64: 32, 32>}, {pipeline_mode = #tpu.pipeline_mode<synchronous>, transform_indices = @transform_5, window_bounds = array<i64: 32, 32>}, {pipeline_mode = #tpu.pipeline_mode<synchronous>, transform_indices = @transform_6, window_bounds = array<i64: 32, 96>}, {pipeline_mode = #tpu.pipeline_mode<synchronous>, transform_indices = @transform_7, window_bounds = array<i64: 32, 256>}, {pipeline_mode = #tpu.pipeline_mode<synchronous>, transform_indices = @transform_8, window_bounds = array<i64: 8, 128>}, {pipeline_mode = #tpu.pipeline_mode<synchronous>, transform_indices = @transform_9, window_bounds = array<i64: 16, 128>}]} {
    %c0 = arith.constant 0 : index
    %0 = memref.load %arg1[%c0] : memref<16xi32, #tpu.memory_space<smem>>
    %1 = arith.index_cast %0 : i32 to index
    %c0_0 = arith.constant 0 : index
    %2 = vector.load %arg4[%1, %c0_0] : memref<64x32xf32, #tpu.memory_space<vmem>>, vector<1x32xf32>
    %c0_1 = arith.constant 0 : index
    %c0_2 = arith.constant 0 : index
    %3 = vector.load %arg12[%c0_1, %c0_2] : memref<16x32xf32, #tpu.memory_space<vmem>>, vector<1x32xf32>
    tpu.vector_store %arg12[%c0_1, %c0_2], %2 {strides = array<i32>} : memref<16x32xf32, #tpu.memory_space<vmem>>, vector<1x32xf32>,
    %c1 = arith.constant 1 : index
    %4 = memref.load %arg1[%c1] : memref<16xi32, #tpu.memory_space<smem>>
    %5 = arith.index_cast %4 : i32 to index
    %c0_3 = arith.constant 0 : index
    %6 = vector.load %arg4[%5, %c0_3] : memref<64x32xf32, #tpu.memory_space<vmem>>, vector<1x32xf32>
    %c1_4 = arith.constant 1 : index
    %c0_5 = arith.constant 0 : index
    %7 = vector.load %arg12[%c1_4, %c0_5] : memref<16x32xf32, #tpu.memory_space<vmem>>, vector<1x32xf32>
    tpu.vector_store %arg12[%c1_4, %c0_5], %6 {strides = array<i32>} : memref<16x32xf32, #tpu.memory_space<vmem>>, vector<1x32xf32>,
    %c2 = arith.constant 2 : index
    %8 = memref.load %arg1[%c2] : memref<16xi32, #tpu.memory_space<smem>>
    %9 = arith.index_cast %8 : i32 to index
    %c0_6 = arith.constant 0 : index
    %10 = vector.load %arg4[%9, %c0_6] : memref<64x32xf32, #tpu.memory_space<vmem>>, vector<1x32xf32>
    %c2_7 = arith.constant 2 : index
    %c0_8 = arith.constant 0 : index
    %11 = vector.load %arg12[%c2_7, %c0_8] : memref<16x32xf32, #tpu.memory_space<vmem>>, vector<1x32xf32>
    tpu.vector_store %arg12[%c2_7, %c0_8], %10 {strides = array<i32>} : memref<16x32xf32, #tpu.memory_space<vmem>>, vector<1x32xf32>,
    %c3 = arith.constant 3 : index
    %12 = memref.load %arg1[%c3] : memref<16xi32, #tpu.memory_space<smem>>
    %13 = arith.index_cast %12 : i32 to index
    %c0_9 = arith.constant 0 : index
    %14 = vector.load %arg4[%13, %c0_9] : memref<64x32xf32, #tpu.memory_space<vmem>>, vector<1x32xf32>
    %c3_10 = arith.constant 3 : index
    %c0_11 = arith.constant 0 : index
    %15 = vector.load %arg12[%c3_10, %c0_11] : memref<16x32xf32, #tpu.memory_space<vmem>>, vector<1x32xf32>
    tpu.vector_store %arg12[%c3_10, %c0_11], %14 {strides = array<i32>} : memref<16x32xf32, #tpu.memory_space<vmem>>, vector<1x32xf32>,
    %c4 = arith.constant 4 : index
    %16 = memref.load %arg1[%c4] : memref<16xi32, #tpu.memory_space<smem>>
    %17 = arith.index_cast %16 : i32 to index
    %c0_12 = arith.constant 0 : index
    %18 = vector.load %arg4[%17, %c0_12] : memref<64x32xf32, #tpu.memory_space<vmem>>, vector<1x32xf32>
    %c4_13 = arith.constant 4 : index
    %c0_14 = arith.constant 0 : index
    %19 = vector.load %arg12[%c4_13, %c0_14] : memref<16x32xf32, #tpu.memory_space<vmem>>, vector<1x32xf32>
    tpu.vector_store %arg12[%c4_13, %c0_14], %18 {strides = array<i32>} : memref<16x32xf32, #tpu.memory_space<vmem>>, vector<1x32xf32>,
    %c5 = arith.constant 5 : index
    %20 = memref.load %arg1[%c5] : memref<16xi32, #tpu.memory_space<smem>>
    %21 = arith.index_cast %20 : i32 to index
    %c0_15 = arith.constant 0 : index
    %22 = vector.load %arg4[%21, %c0_15] : memref<64x32xf32, #tpu.memory_space<vmem>>, vector<1x32xf32>
    %c5_16 = arith.constant 5 : index
    %c0_17 = arith.constant 0 : index
    %23 = vector.load %arg12[%c5_16, %c0_17] : memref<16x32xf32, #tpu.memory_space<vmem>>, vector<1x32xf32>
    tpu.vector_store %arg12[%c5_16, %c0_17], %22 {strides = array<i32>} : memref<16x32xf32, #tpu.memory_space<vmem>>, vector<1x32xf32>,
    %c6 = arith.constant 6 : index
    %24 = memref.load %arg1[%c6] : memref<16xi32, #tpu.memory_space<smem>>
    %25 = arith.index_cast %24 : i32 to index
    %c0_18 = arith.constant 0 : index
    %26 = vector.load %arg4[%25, %c0_18] : memref<64x32xf32, #tpu.memory_space<vmem>>, vector<1x32xf32>
    %c6_19 = arith.constant 6 : index
    %c0_20 = arith.constant 0 : index
    %27 = vector.load %arg12[%c6_19, %c0_20] : memref<16x32xf32, #tpu.memory_space<vmem>>, vector<1x32xf32>
    tpu.vector_store %arg12[%c6_19, %c0_20], %26 {strides = array<i32>} : memref<16x32xf32, #tpu.memory_space<vmem>>, vector<1x32xf32>,
    %c7 = arith.constant 7 : index
    %28 = memref.load %arg1[%c7] : memref<16xi32, #tpu.memory_space<smem>>
    %29 = arith.index_cast %28 : i32 to index
    %c0_21 = arith.constant 0 : index
    %30 = vector.load %arg4[%29, %c0_21] : memref<64x32xf32, #tpu.memory_space<vmem>>, vector<1x32xf32>
    %c7_22 = arith.constant 7 : index
    %c0_23 = arith.constant 0 : index
    %31 = vector.load %arg12[%c7_22, %c0_23] : memref<16x32xf32, #tpu.memory_space<vmem>>, vector<1x32xf32>
    tpu.vector_store %arg12[%c7_22, %c0_23], %30 {strides = array<i32>} : memref<16x32xf32, #tpu.memory_space<vmem>>, vector<1x32xf32>,
    %c8 = arith.constant 8 : index
    %32 = memref.load %arg1[%c8] : memref<16xi32, #tpu.memory_space<smem>>
    %33 = arith.index_cast %32 : i32 to index
    %c0_24 = arith.constant 0 : index
    %34 = vector.load %arg4[%33, %c0_24] : memref<64x32xf32, #tpu.memory_space<vmem>>, vector<1x32xf32>
    %c8_25 = arith.constant 8 : index
    %c0_26 = arith.constant 0 : index
    %35 = vector.load %arg12[%c8_25, %c0_26] : memref<16x32xf32, #tpu.memory_space<vmem>>, vector<1x32xf32>
    tpu.vector_store %arg12[%c8_25, %c0_26], %34 {strides = array<i32>} : memref<16x32xf32, #tpu.memory_space<vmem>>, vector<1x32xf32>,
    %c9 = arith.constant 9 : index
    %36 = memref.load %arg1[%c9] : memref<16xi32, #tpu.memory_space<smem>>
    %37 = arith.index_cast %36 : i32 to index
    %c0_27 = arith.constant 0 : index
    %38 = vector.load %arg4[%37, %c0_27] : memref<64x32xf32, #tpu.memory_space<vmem>>, vector<1x32xf32>
    %c9_28 = arith.constant 9 : index
    %c0_29 = arith.constant 0 : index
    %39 = vector.load %arg12[%c9_28, %c0_29] : memref<16x32xf32, #tpu.memory_space<vmem>>, vector<1x32xf32>
    tpu.vector_store %arg12[%c9_28, %c0_29], %38 {strides = array<i32>} : memref<16x32xf32, #tpu.memory_space<vmem>>, vector<1x32xf32>,
    %c10 = arith.constant 10 : index
    %40 = memref.load %arg1[%c10] : memref<16xi32, #tpu.memory_space<smem>>
    %41 = arith.index_cast %40 : i32 to index
    %c0_30 = arith.constant 0 : index
    %42 = vector.load %arg4[%41, %c0_30] : memref<64x32xf32, #tpu.memory_space<vmem>>, vector<1x32xf32>
    %c10_31 = arith.constant 10 : index
    %c0_32 = arith.constant 0 : index
    %43 = vector.load %arg12[%c10_31, %c0_32] : memref<16x32xf32, #tpu.memory_space<vmem>>, vector<1x32xf32>
    tpu.vector_store %arg12[%c10_31, %c0_32], %42 {strides = array<i32>} : memref<16x32xf32, #tpu.memory_space<vmem>>, vector<1x32xf32>,
    %c11 = arith.constant 11 : index
    %44 = memref.load %arg1[%c11] : memref<16xi32, #tpu.memory_space<smem>>
    %45 = arith.index_cast %44 : i32 to index
    %c0_33 = arith.constant 0 : index
    %46 = vector.load %arg4[%45, %c0_33] : memref<64x32xf32, #tpu.memory_space<vmem>>, vector<1x32xf32>
    %c11_34 = arith.constant 11 : index
    %c0_35 = arith.constant 0 : index
    %47 = vector.load %arg12[%c11_34, %c0_35] : memref<16x32xf32, #tpu.memory_space<vmem>>, vector<1x32xf32>
    tpu.vector_store %arg12[%c11_34, %c0_35], %46 {strides = array<i32>} : memref<16x32xf32, #tpu.memory_space<vmem>>, vector<1x32xf32>,
    %c12 = arith.constant 12 : index
    %48 = memref.load %arg1[%c12] : memref<16xi32, #tpu.memory_space<smem>>
    %49 = arith.index_cast %48 : i32 to index
    %c0_36 = arith.constant 0 : index
    %50 = vector.load %arg4[%49, %c0_36] : memref<64x32xf32, #tpu.memory_space<vmem>>, vector<1x32xf32>
    %c12_37 = arith.constant 12 : index
    %c0_38 = arith.constant 0 : index
    %51 = vector.load %arg12[%c12_37, %c0_38] : memref<16x32xf32, #tpu.memory_space<vmem>>, vector<1x32xf32>
    tpu.vector_store %arg12[%c12_37, %c0_38], %50 {strides = array<i32>} : memref<16x32xf32, #tpu.memory_space<vmem>>, vector<1x32xf32>,
    %c13 = arith.constant 13 : index
    %52 = memref.load %arg1[%c13] : memref<16xi32, #tpu.memory_space<smem>>
    %53 = arith.index_cast %52 : i32 to index
    %c0_39 = arith.constant 0 : index
    %54 = vector.load %arg4[%53, %c0_39] : memref<64x32xf32, #tpu.memory_space<vmem>>, vector<1x32xf32>
    %c13_40 = arith.constant 13 : index
    %c0_41 = arith.constant 0 : index
    %55 = vector.load %arg12[%c13_40, %c0_41] : memref<16x32xf32, #tpu.memory_space<vmem>>, vector<1x32xf32>
    tpu.vector_store %arg12[%c13_40, %c0_41], %54 {strides = array<i32>} : memref<16x32xf32, #tpu.memory_space<vmem>>, vector<1x32xf32>,
    %c14 = arith.constant 14 : index
    %56 = memref.load %arg1[%c14] : memref<16xi32, #tpu.memory_space<smem>>
    %57 = arith.index_cast %56 : i32 to index
    %c0_42 = arith.constant 0 : index
    %58 = vector.load %arg4[%57, %c0_42] : memref<64x32xf32, #tpu.memory_space<vmem>>, vector<1x32xf32>
    %c14_43 = arith.constant 14 : index
    %c0_44 = arith.constant 0 : index
    %59 = vector.load %arg12[%c14_43, %c0_44] : memref<16x32xf32, #tpu.memory_space<vmem>>, vector<1x32xf32>
    tpu.vector_store %arg12[%c14_43, %c0_44], %58 {strides = array<i32>} : memref<16x32xf32, #tpu.memory_space<vmem>>, vector<1x32xf32>,
    %c15 = arith.constant 15 : index
    %60 = memref.load %arg1[%c15] : memref<16xi32, #tpu.memory_space<smem>>
    %61 = arith.index_cast %60 : i32 to index
    %c0_45 = arith.constant 0 : index
    %62 = vector.load %arg4[%61, %c0_45] : memref<64x32xf32, #tpu.memory_space<vmem>>, vector<1x32xf32>
    %c15_46 = arith.constant 15 : index
    %c0_47 = arith.constant 0 : index
    %63 = vector.load %arg12[%c15_46, %c0_47] : memref<16x32xf32, #tpu.memory_space<vmem>>, vector<1x32xf32>
    tpu.vector_store %arg12[%c15_46, %c0_47], %62 {strides = array<i32>} : memref<16x32xf32, #tpu.memory_space<vmem>>, vector<1x32xf32>,
    %c0_48 = arith.constant 0 : index
    %c0_49 = arith.constant 0 : index
    %64 = vector.load %arg12[%c0_48, %c0_49] : memref<16x32xf32, #tpu.memory_space<vmem>>, vector<16x32xf32>
    %c0_50 = arith.constant 0 : index
    %c0_51 = arith.constant 0 : index
    %65 = vector.load %arg5[%c0_50, %c0_51] : memref<32x16xf32, #tpu.memory_space<vmem>>, vector<32x16xf32>
    %cst = arith.constant dense<0.000000e+00> : vector<16x16xf32>
    %66 = tpu.matmul %64, %65, %cst {dimension_numbers = #tpu.dot_dimension_numbers<[1], [0], [0], [1], [0, 0, 1, 1], [], []>} : vector<16x32xf32>, vector<32x16xf32>, vector<16x16xf32> -> vector<16x16xf32>
    %c0_52 = arith.constant 0 : index
    %c0_53 = arith.constant 0 : index
    %67 = vector.load %arg10[%c0_52, %c0_53] : memref<8x128xf32, #tpu.memory_space<vmem>>, vector<1x16xf32>
    %68 = vector.broadcast %67 : vector<1x16xf32> to vector<16x16xf32>
    %69 = arith.addf %66, %68 : vector<16x16xf32>
    %c0_54 = arith.constant 0 : index
    %c0_55 = arith.constant 0 : index
    %70 = vector.load %arg13[%c0_54, %c0_55] : memref<16x16xf32, #tpu.memory_space<vmem>>, vector<16x16xf32>
    tpu.vector_store %arg13[%c0_54, %c0_55], %69 {strides = array<i32>} : memref<16x16xf32, #tpu.memory_space<vmem>>, vector<16x16xf32>,
    %c0_56 = arith.constant 0 : index
    %c0_57 = arith.constant 0 : index
    %71 = vector.load %arg6[%c0_56, %c0_57] : memref<32x32xf32, #tpu.memory_space<vmem>>, vector<32x32xf32>
    %cst_58 = arith.constant dense<0.000000e+00> : vector<16x32xf32>
    %72 = tpu.matmul %64, %71, %cst_58 {dimension_numbers = #tpu.dot_dimension_numbers<[1], [0], [0], [1], [0, 0, 1, 1], [], []>} : vector<16x32xf32>, vector<32x32xf32>, vector<16x32xf32> -> vector<16x32xf32>
    %c1_59 = arith.constant 1 : index
    %c0_60 = arith.constant 0 : index
    %73 = vector.load %arg10[%c1_59, %c0_60] : memref<8x128xf32, #tpu.memory_space<vmem>>, vector<1x32xf32>
    %74 = vector.broadcast %73 : vector<1x32xf32> to vector<16x32xf32>
    %75 = arith.addf %72, %74 : vector<16x32xf32>
    %c0_61 = arith.constant 0 : index
    %c0_62 = arith.constant 0 : index
    %76 = vector.load %arg14[%c0_61, %c0_62] : memref<16x32xf32, #tpu.memory_space<vmem>>, vector<16x32xf32>
    tpu.vector_store %arg14[%c0_61, %c0_62], %75 {strides = array<i32>} : memref<16x32xf32, #tpu.memory_space<vmem>>, vector<16x32xf32>,
    %c0_63 = arith.constant 0 : index
    %c0_64 = arith.constant 0 : index
    %77 = vector.load %arg3[%c0_63, %c0_64] : memref<16x32xf32, #tpu.memory_space<vmem>>, vector<16x32xf32>
    %c0_65 = arith.constant 0 : index
    %c0_66 = arith.constant 0 : index
    %78 = vector.load %arg7[%c0_65, %c0_66] : memref<32x32xf32, #tpu.memory_space<vmem>>, vector<32x32xf32>
    %c0_67 = arith.constant 0 : index
    %c0_68 = arith.constant 0 : index
    %79 = vector.load %arg8[%c0_67, %c0_68] : memref<32x96xf32, #tpu.memory_space<vmem>>, vector<32x96xf32>
    %c0_69 = arith.constant 0 : index
    %c0_70 = arith.constant 0 : index
    %80 = vector.load %arg9[%c0_69, %c0_70] : memref<32x256xf32, #tpu.memory_space<vmem>>, vector<32x256xf32>
    %c2_71 = arith.constant 2 : index
    %c0_72 = arith.constant 0 : index
    %81 = vector.load %arg10[%c2_71, %c0_72] : memref<8x128xf32, #tpu.memory_space<vmem>>, vector<1x64xf32>
    %c3_73 = arith.constant 3 : index
    %c0_74 = arith.constant 0 : index
    %82 = vector.load %arg10[%c3_73, %c0_74] : memref<8x128xf32, #tpu.memory_space<vmem>>, vector<1x32xf32>
    %c4_75 = arith.constant 4 : index
    %c0_76 = arith.constant 0 : index
    %83 = vector.load %arg10[%c4_75, %c0_76] : memref<8x128xf32, #tpu.memory_space<vmem>>, vector<1x32xf32>
    %c5_77 = arith.constant 5 : index
    %c0_78 = arith.constant 0 : index
    %84 = vector.load %arg10[%c5_77, %c0_78] : memref<8x128xf32, #tpu.memory_space<vmem>>, vector<1x64xf32>
    %cst_79 = arith.constant 0.000000e+00 : f32
    %85 = vector.broadcast %cst_79 : f32 to vector<1x16xf32>
    %c0_80 = arith.constant 0 : index
    %c0_81 = arith.constant 0 : index
    %86 = vector.load %arg2[%c0_80, %c0_81] : memref<1x32xf32, #tpu.memory_space<vmem>>, vector<1x32xf32>
    %cst_82 = arith.constant dense<0.000000e+00> : vector<1x256xf32>
    %87 = tpu.matmul %86, %80, %cst_82 {dimension_numbers = #tpu.dot_dimension_numbers<[1], [0], [0], [1], [0, 0, 1, 1], [], []>} : vector<1x32xf32>, vector<32x256xf32>, vector<1x256xf32> -> vector<1x256xf32>
    %c0_i32 = arith.constant 0 : i32
    %88 = vector.extract_strided_slice %87 {offsets = [0, 64], sizes = [1, 16], strides = [1, 1]} : vector<1x256xf32> to vector<1x16xf32>
    %89 = vector.extract_strided_slice %87 {offsets = [0, 128], sizes = [1, 96], strides = [1, 1]} : vector<1x256xf32> to vector<1x96xf32>
    %90 = arith.index_cast %c0_i32 : i32 to index
    %c0_83 = arith.constant 0 : index
    %91 = vector.load %arg13[%90, %c0_83] : memref<16x16xf32, #tpu.memory_space<vmem>>, vector<1x16xf32>
    %92 = arith.addf %91, %88 : vector<1x16xf32>
    %cst_84 = arith.constant dense<0xFF800000> : vector<1xf32>
    %93 = vector.multi_reduction <maximumf>, %92, %cst_84 [1] : vector<1x16xf32> to vector<1xf32>
    %94 = vector.shape_cast %93 : vector<1xf32> to vector<1x1xf32>
    %95 = vector.broadcast %94 : vector<1x1xf32> to vector<1x16xf32>
    %96 = arith.subf %92, %95 : vector<1x16xf32>
    %97 = math.exp %96 : vector<1x16xf32>
    %cst_85 = arith.constant dense<0.000000e+00> : vector<1xf32>
    %98 = vector.multi_reduction <add>, %97, %cst_85 [1] : vector<1x16xf32> to vector<1xf32>
    %99 = vector.shape_cast %98 : vector<1xf32> to vector<1x1xf32>
    %100 = tpu.reciprocal %99 {approx = true} : vector<1x1xf32> -> vector<1x1xf32>
    %101 = arith.mulf %99, %100 : vector<1x1xf32>
    %cst_86 = arith.constant 2.000000e+00 : f32
    %102 = vector.broadcast %cst_86 : f32 to vector<1x1xf32>
    %103 = arith.subf %102, %101 : vector<1x1xf32>
    %104 = arith.mulf %100, %103 : vector<1x1xf32>
    %105 = vector.broadcast %104 : vector<1x1xf32> to vector<1x16xf32>
    %106 = arith.mulf %97, %105 : vector<1x16xf32>
    %cst_87 = arith.constant dense<0.000000e+00> : vector<1x32xf32>
    %107 = tpu.matmul %106, %77, %cst_87 {dimension_numbers = #tpu.dot_dimension_numbers<[1], [0], [0], [1], [0, 0, 1, 1], [], []>} : vector<1x16xf32>, vector<16x32xf32>, vector<1x32xf32> -> vector<1x32xf32>
    %108 = arith.index_cast %c0_i32 : i32 to index
    %c0_88 = arith.constant 0 : index
    %109 = vector.load %arg14[%108, %c0_88] : memref<16x32xf32, #tpu.memory_space<vmem>>, vector<1x32xf32>
    %cst_89 = arith.constant dense<0.000000e+00> : vector<1x32xf32>
    %110 = tpu.matmul %107, %78, %cst_89 {dimension_numbers = #tpu.dot_dimension_numbers<[1], [0], [0], [1], [0, 0, 1, 1], [], []>} : vector<1x32xf32>, vector<32x32xf32>, vector<1x32xf32> -> vector<1x32xf32>
    %111 = arith.addf %109, %110 : vector<1x32xf32>
    %cst_90 = arith.constant 0.000000e+00 : f32
    %112 = vector.broadcast %cst_90 : f32 to vector<1x32xf32>
    %113 = arith.maximumf %111, %112 : vector<1x32xf32>
    %cst_91 = arith.constant dense<0.000000e+00> : vector<1x96xf32>
    %114 = tpu.matmul %113, %79, %cst_91 {dimension_numbers = #tpu.dot_dimension_numbers<[1], [0], [0], [1], [0, 0, 1, 1], [], []>} : vector<1x32xf32>, vector<32x96xf32>, vector<1x96xf32> -> vector<1x96xf32>
    %115 = vector.extract_strided_slice %114 {offsets = [0, 0], sizes = [1, 64], strides = [1, 1]} : vector<1x96xf32> to vector<1x64xf32>
    %116 = vector.extract_strided_slice %89 {offsets = [0, 0], sizes = [1, 64], strides = [1, 1]} : vector<1x96xf32> to vector<1x64xf32>
    %117 = arith.addf %115, %116 : vector<1x64xf32>
    %118 = arith.addf %117, %81 : vector<1x64xf32>
    %119 = arith.negf %118 : vector<1x64xf32>
    %120 = math.exp %119 : vector<1x64xf32>
    %cst_92 = arith.constant 1.000000e+00 : f32
    %121 = vector.broadcast %cst_92 : f32 to vector<1x64xf32>
    %122 = arith.addf %121, %120 : vector<1x64xf32>
    %123 = arith.divf %121, %122 : vector<1x64xf32>
    %124 = vector.extract_strided_slice %123 {offsets = [0, 0], sizes = [1, 32], strides = [1, 1]} : vector<1x64xf32> to vector<1x32xf32>
    %125 = vector.extract_strided_slice %123 {offsets = [0, 32], sizes = [1, 32], strides = [1, 1]} : vector<1x64xf32> to vector<1x32xf32>
    %126 = vector.extract_strided_slice %114 {offsets = [0, 64], sizes = [1, 32], strides = [1, 1]} : vector<1x96xf32> to vector<1x32xf32>
    %127 = arith.addf %126, %82 : vector<1x32xf32>
    %128 = vector.extract_strided_slice %89 {offsets = [0, 64], sizes = [1, 32], strides = [1, 1]} : vector<1x96xf32> to vector<1x32xf32>
    %129 = arith.addf %128, %83 : vector<1x32xf32>
    %130 = arith.mulf %124, %129 : vector<1x32xf32>
    %131 = arith.addf %127, %130 : vector<1x32xf32>
    %132 = math.tanh %131 : vector<1x32xf32>
    %cst_93 = arith.constant 1.000000e+00 : f32
    %133 = vector.broadcast %cst_93 : f32 to vector<1x32xf32>
    %134 = arith.subf %133, %125 : vector<1x32xf32>
    %135 = arith.mulf %134, %132 : vector<1x32xf32>
    %136 = arith.mulf %125, %86 : vector<1x32xf32>
    %137 = arith.addf %135, %136 : vector<1x32xf32>
    %cst_94 = arith.constant dense<0.000000e+00> : vector<1x256xf32>
    %138 = tpu.matmul %137, %80, %cst_94 {dimension_numbers = #tpu.dot_dimension_numbers<[1], [0], [0], [1], [0, 0, 1, 1], [], []>} : vector<1x32xf32>, vector<32x256xf32>, vector<1x256xf32> -> vector<1x256xf32>
    %139 = vector.extract_strided_slice %138 {offsets = [0, 0], sizes = [1, 64], strides = [1, 1]} : vector<1x256xf32> to vector<1x64xf32>
    %140 = arith.addf %139, %84 : vector<1x64xf32>
    %cst_95 = arith.constant dense<0xFF800000> : vector<1xf32>
    %141 = vector.multi_reduction <maximumf>, %140, %cst_95 [1] : vector<1x64xf32> to vector<1xf32>
    %142 = vector.shape_cast %141 : vector<1xf32> to vector<1x1xf32>
    %143 = vector.broadcast %142 : vector<1x1xf32> to vector<1x64xf32>
    %144 = arith.subf %140, %143 : vector<1x64xf32>
    %145 = math.exp %144 : vector<1x64xf32>
    %cst_96 = arith.constant dense<0.000000e+00> : vector<1xf32>
    %146 = vector.multi_reduction <add>, %145, %cst_96 [1] : vector<1x64xf32> to vector<1xf32>
    %147 = vector.shape_cast %146 : vector<1xf32> to vector<1x1xf32>
    %148 = math.log %147 : vector<1x1xf32>
    %149 = vector.broadcast %148 : vector<1x1xf32> to vector<1x64xf32>
    %150 = arith.subf %144, %149 : vector<1x64xf32>
    %151 = tpu.concatenate %150, %137, %106, %85 in 1 : vector<1x64xf32>, vector<1x32xf32>, vector<1x16xf32>, vector<1x16xf32> -> vector<1x128xf32>
    %152 = arith.index_cast %c0_i32 : i32 to index
    %c0_97 = arith.constant 0 : index
    %153 = vector.load %arg11[%152, %c0_97] : memref<16x128xf32, #tpu.memory_space<vmem>>, vector<1x128xf32>
    tpu.vector_store %arg11[%152, %c0_97], %151 {strides = array<i32>} : memref<16x128xf32, #tpu.memory_space<vmem>>, vector<1x128xf32>,
    %c1_i32 = arith.constant 1 : i32
    %154 = vector.extract_strided_slice %138 {offsets = [0, 64], sizes = [1, 16], strides = [1, 1]} : vector<1x256xf32> to vector<1x16xf32>
    %155 = vector.extract_strided_slice %138 {offsets = [0, 128], sizes = [1, 96], strides = [1, 1]} : vector<1x256xf32> to vector<1x96xf32>
    %156 = arith.index_cast %c1_i32 : i32 to index
    %c0_98 = arith.constant 0 : index
    %157 = vector.load %arg13[%156, %c0_98] : memref<16x16xf32, #tpu.memory_space<vmem>>, vector<1x16xf32>
    %158 = arith.addf %157, %154 : vector<1x16xf32>
    %cst_99 = arith.constant dense<0xFF800000> : vector<1xf32>
    %159 = vector.multi_reduction <maximumf>, %158, %cst_99 [1] : vector<1x16xf32> to vector<1xf32>
    %160 = vector.shape_cast %159 : vector<1xf32> to vector<1x1xf32>
    %161 = vector.broadcast %160 : vector<1x1xf32> to vector<1x16xf32>
    %162 = arith.subf %158, %161 : vector<1x16xf32>
    %163 = math.exp %162 : vector<1x16xf32>
    %cst_100 = arith.constant dense<0.000000e+00> : vector<1xf32>
    %164 = vector.multi_reduction <add>, %163, %cst_100 [1] : vector<1x16xf32> to vector<1xf32>
    %165 = vector.shape_cast %164 : vector<1xf32> to vector<1x1xf32>
    %166 = tpu.reciprocal %165 {approx = true} : vector<1x1xf32> -> vector<1x1xf32>
    %167 = arith.mulf %165, %166 : vector<1x1xf32>
    %cst_101 = arith.constant 2.000000e+00 : f32
    %168 = vector.broadcast %cst_101 : f32 to vector<1x1xf32>
    %169 = arith.subf %168, %167 : vector<1x1xf32>
    %170 = arith.mulf %166, %169 : vector<1x1xf32>
    %171 = vector.broadcast %170 : vector<1x1xf32> to vector<1x16xf32>
    %172 = arith.mulf %163, %171 : vector<1x16xf32>
    %cst_102 = arith.constant dense<0.000000e+00> : vector<1x32xf32>
    %173 = tpu.matmul %172, %77, %cst_102 {dimension_numbers = #tpu.dot_dimension_numbers<[1], [0], [0], [1], [0, 0, 1, 1], [], []>} : vector<1x16xf32>, vector<16x32xf32>, vector<1x32xf32> -> vector<1x32xf32>
    %174 = arith.index_cast %c1_i32 : i32 to index
    %c0_103 = arith.constant 0 : index
    %175 = vector.load %arg14[%174, %c0_103] : memref<16x32xf32, #tpu.memory_space<vmem>>, vector<1x32xf32>
    %cst_104 = arith.constant dense<0.000000e+00> : vector<1x32xf32>
    %176 = tpu.matmul %173, %78, %cst_104 {dimension_numbers = #tpu.dot_dimension_numbers<[1], [0], [0], [1], [0, 0, 1, 1], [], []>} : vector<1x32xf32>, vector<32x32xf32>, vector<1x32xf32> -> vector<1x32xf32>
    %177 = arith.addf %175, %176 : vector<1x32xf32>
    %cst_105 = arith.constant 0.000000e+00 : f32
    %178 = vector.broadcast %cst_105 : f32 to vector<1x32xf32>
    %179 = arith.maximumf %177, %178 : vector<1x32xf32>
    %cst_106 = arith.constant dense<0.000000e+00> : vector<1x96xf32>
    %180 = tpu.matmul %179, %79, %cst_106 {dimension_numbers = #tpu.dot_dimension_numbers<[1], [0], [0], [1], [0, 0, 1, 1], [], []>} : vector<1x32xf32>, vector<32x96xf32>, vector<1x96xf32> -> vector<1x96xf32>
    %181 = vector.extract_strided_slice %180 {offsets = [0, 0], sizes = [1, 64], strides = [1, 1]} : vector<1x96xf32> to vector<1x64xf32>
    %182 = vector.extract_strided_slice %155 {offsets = [0, 0], sizes = [1, 64], strides = [1, 1]} : vector<1x96xf32> to vector<1x64xf32>
    %183 = arith.addf %181, %182 : vector<1x64xf32>
    %184 = arith.addf %183, %81 : vector<1x64xf32>
    %185 = arith.negf %184 : vector<1x64xf32>
    %186 = math.exp %185 : vector<1x64xf32>
    %cst_107 = arith.constant 1.000000e+00 : f32
    %187 = vector.broadcast %cst_107 : f32 to vector<1x64xf32>
    %188 = arith.addf %187, %186 : vector<1x64xf32>
    %189 = arith.divf %187, %188 : vector<1x64xf32>
    %190 = vector.extract_strided_slice %189 {offsets = [0, 0], sizes = [1, 32], strides = [1, 1]} : vector<1x64xf32> to vector<1x32xf32>
    %191 = vector.extract_strided_slice %189 {offsets = [0, 32], sizes = [1, 32], strides = [1, 1]} : vector<1x64xf32> to vector<1x32xf32>
    %192 = vector.extract_strided_slice %180 {offsets = [0, 64], sizes = [1, 32], strides = [1, 1]} : vector<1x96xf32> to vector<1x32xf32>
    %193 = arith.addf %192, %82 : vector<1x32xf32>
    %194 = vector.extract_strided_slice %155 {offsets = [0, 64], sizes = [1, 32], strides = [1, 1]} : vector<1x96xf32> to vector<1x32xf32>
    %195 = arith.addf %194, %83 : vector<1x32xf32>
    %196 = arith.mulf %190, %195 : vector<1x32xf32>
    %197 = arith.addf %193, %196 : vector<1x32xf32>
    %198 = math.tanh %197 : vector<1x32xf32>
    %cst_108 = arith.constant 1.000000e+00 : f32
    %199 = vector.broadcast %cst_108 : f32 to vector<1x32xf32>
    %200 = arith.subf %199, %191 : vector<1x32xf32>
    %201 = arith.mulf %200, %198 : vector<1x32xf32>
    %202 = arith.mulf %191, %137 : vector<1x32xf32>
    %203 = arith.addf %201, %202 : vector<1x32xf32>
    %cst_109 = arith.constant dense<0.000000e+00> : vector<1x256xf32>
    %204 = tpu.matmul %203, %80, %cst_109 {dimension_numbers = #tpu.dot_dimension_numbers<[1], [0], [0], [1], [0, 0, 1, 1], [], []>} : vector<1x32xf32>, vector<32x256xf32>, vector<1x256xf32> -> vector<1x256xf32>
    %205 = vector.extract_strided_slice %204 {offsets = [0, 0], sizes = [1, 64], strides = [1, 1]} : vector<1x256xf32> to vector<1x64xf32>
    %206 = arith.addf %205, %84 : vector<1x64xf32>
    %cst_110 = arith.constant dense<0xFF800000> : vector<1xf32>
    %207 = vector.multi_reduction <maximumf>, %206, %cst_110 [1] : vector<1x64xf32> to vector<1xf32>
    %208 = vector.shape_cast %207 : vector<1xf32> to vector<1x1xf32>
    %209 = vector.broadcast %208 : vector<1x1xf32> to vector<1x64xf32>
    %210 = arith.subf %206, %209 : vector<1x64xf32>
    %211 = math.exp %210 : vector<1x64xf32>
    %cst_111 = arith.constant dense<0.000000e+00> : vector<1xf32>
    %212 = vector.multi_reduction <add>, %211, %cst_111 [1] : vector<1x64xf32> to vector<1xf32>
    %213 = vector.shape_cast %212 : vector<1xf32> to vector<1x1xf32>
    %214 = math.log %213 : vector<1x1xf32>
    %215 = vector.broadcast %214 : vector<1x1xf32> to vector<1x64xf32>
    %216 = arith.subf %210, %215 : vector<1x64xf32>
    %217 = tpu.concatenate %216, %203, %172, %85 in 1 : vector<1x64xf32>, vector<1x32xf32>, vector<1x16xf32>, vector<1x16xf32> -> vector<1x128xf32>
    %218 = arith.index_cast %c1_i32 : i32 to index
    %c0_112 = arith.constant 0 : index
    %219 = vector.load %arg11[%218, %c0_112] : memref<16x128xf32, #tpu.memory_space<vmem>>, vector<1x128xf32>
    tpu.vector_store %arg11[%218, %c0_112], %217 {strides = array<i32>} : memref<16x128xf32, #tpu.memory_space<vmem>>, vector<1x128xf32>,
    %c2_i32 = arith.constant 2 : i32
    %220 = vector.extract_strided_slice %204 {offsets = [0, 64], sizes = [1, 16], strides = [1, 1]} : vector<1x256xf32> to vector<1x16xf32>
    %221 = vector.extract_strided_slice %204 {offsets = [0, 128], sizes = [1, 96], strides = [1, 1]} : vector<1x256xf32> to vector<1x96xf32>
    %222 = arith.index_cast %c2_i32 : i32 to index
    %c0_113 = arith.constant 0 : index
    %223 = vector.load %arg13[%222, %c0_113] : memref<16x16xf32, #tpu.memory_space<vmem>>, vector<1x16xf32>
    %224 = arith.addf %223, %220 : vector<1x16xf32>
    %cst_114 = arith.constant dense<0xFF800000> : vector<1xf32>
    %225 = vector.multi_reduction <maximumf>, %224, %cst_114 [1] : vector<1x16xf32> to vector<1xf32>
    %226 = vector.shape_cast %225 : vector<1xf32> to vector<1x1xf32>
    %227 = vector.broadcast %226 : vector<1x1xf32> to vector<1x16xf32>
    %228 = arith.subf %224, %227 : vector<1x16xf32>
    %229 = math.exp %228 : vector<1x16xf32>
    %cst_115 = arith.constant dense<0.000000e+00> : vector<1xf32>
    %230 = vector.multi_reduction <add>, %229, %cst_115 [1] : vector<1x16xf32> to vector<1xf32>
    %231 = vector.shape_cast %230 : vector<1xf32> to vector<1x1xf32>
    %232 = tpu.reciprocal %231 {approx = true} : vector<1x1xf32> -> vector<1x1xf32>
    %233 = arith.mulf %231, %232 : vector<1x1xf32>
    %cst_116 = arith.constant 2.000000e+00 : f32
    %234 = vector.broadcast %cst_116 : f32 to vector<1x1xf32>
    %235 = arith.subf %234, %233 : vector<1x1xf32>
    %236 = arith.mulf %232, %235 : vector<1x1xf32>
    %237 = vector.broadcast %236 : vector<1x1xf32> to vector<1x16xf32>
    %238 = arith.mulf %229, %237 : vector<1x16xf32>
    %cst_117 = arith.constant dense<0.000000e+00> : vector<1x32xf32>
    %239 = tpu.matmul %238, %77, %cst_117 {dimension_numbers = #tpu.dot_dimension_numbers<[1], [0], [0], [1], [0, 0, 1, 1], [], []>} : vector<1x16xf32>, vector<16x32xf32>, vector<1x32xf32> -> vector<1x32xf32>
    %240 = arith.index_cast %c2_i32 : i32 to index
    %c0_118 = arith.constant 0 : index
    %241 = vector.load %arg14[%240, %c0_118] : memref<16x32xf32, #tpu.memory_space<vmem>>, vector<1x32xf32>
    %cst_119 = arith.constant dense<0.000000e+00> : vector<1x32xf32>
    %242 = tpu.matmul %239, %78, %cst_119 {dimension_numbers = #tpu.dot_dimension_numbers<[1], [0], [0], [1], [0, 0, 1, 1], [], []>} : vector<1x32xf32>, vector<32x32xf32>, vector<1x32xf32> -> vector<1x32xf32>
    %243 = arith.addf %241, %242 : vector<1x32xf32>
    %cst_120 = arith.constant 0.000000e+00 : f32
    %244 = vector.broadcast %cst_120 : f32 to vector<1x32xf32>
    %245 = arith.maximumf %243, %244 : vector<1x32xf32>
    %cst_121 = arith.constant dense<0.000000e+00> : vector<1x96xf32>
    %246 = tpu.matmul %245, %79, %cst_121 {dimension_numbers = #tpu.dot_dimension_numbers<[1], [0], [0], [1], [0, 0, 1, 1], [], []>} : vector<1x32xf32>, vector<32x96xf32>, vector<1x96xf32> -> vector<1x96xf32>
    %247 = vector.extract_strided_slice %246 {offsets = [0, 0], sizes = [1, 64], strides = [1, 1]} : vector<1x96xf32> to vector<1x64xf32>
    %248 = vector.extract_strided_slice %221 {offsets = [0, 0], sizes = [1, 64], strides = [1, 1]} : vector<1x96xf32> to vector<1x64xf32>
    %249 = arith.addf %247, %248 : vector<1x64xf32>
    %250 = arith.addf %249, %81 : vector<1x64xf32>
    %251 = arith.negf %250 : vector<1x64xf32>
    %252 = math.exp %251 : vector<1x64xf32>
    %cst_122 = arith.constant 1.000000e+00 : f32
    %253 = vector.broadcast %cst_122 : f32 to vector<1x64xf32>
    %254 = arith.addf %253, %252 : vector<1x64xf32>
    %255 = arith.divf %253, %254 : vector<1x64xf32>
    %256 = vector.extract_strided_slice %255 {offsets = [0, 0], sizes = [1, 32], strides = [1, 1]} : vector<1x64xf32> to vector<1x32xf32>
    %257 = vector.extract_strided_slice %255 {offsets = [0, 32], sizes = [1, 32], strides = [1, 1]} : vector<1x64xf32> to vector<1x32xf32>
    %258 = vector.extract_strided_slice %246 {offsets = [0, 64], sizes = [1, 32], strides = [1, 1]} : vector<1x96xf32> to vector<1x32xf32>
    %259 = arith.addf %258, %82 : vector<1x32xf32>
    %260 = vector.extract_strided_slice %221 {offsets = [0, 64], sizes = [1, 32], strides = [1, 1]} : vector<1x96xf32> to vector<1x32xf32>
    %261 = arith.addf %260, %83 : vector<1x32xf32>
    %262 = arith.mulf %256, %261 : vector<1x32xf32>
    %263 = arith.addf %259, %262 : vector<1x32xf32>
    %264 = math.tanh %263 : vector<1x32xf32>
    %cst_123 = arith.constant 1.000000e+00 : f32
    %265 = vector.broadcast %cst_123 : f32 to vector<1x32xf32>
    %266 = arith.subf %265, %257 : vector<1x32xf32>
    %267 = arith.mulf %266, %264 : vector<1x32xf32>
    %268 = arith.mulf %257, %203 : vector<1x32xf32>
    %269 = arith.addf %267, %268 : vector<1x32xf32>
    %cst_124 = arith.constant dense<0.000000e+00> : vector<1x256xf32>
    %270 = tpu.matmul %269, %80, %cst_124 {dimension_numbers = #tpu.dot_dimension_numbers<[1], [0], [0], [1], [0, 0, 1, 1], [], []>} : vector<1x32xf32>, vector<32x256xf32>, vector<1x256xf32> -> vector<1x256xf32>
    %271 = vector.extract_strided_slice %270 {offsets = [0, 0], sizes = [1, 64], strides = [1, 1]} : vector<1x256xf32> to vector<1x64xf32>
    %272 = arith.addf %271, %84 : vector<1x64xf32>
    %cst_125 = arith.constant dense<0xFF800000> : vector<1xf32>
    %273 = vector.multi_reduction <maximumf>, %272, %cst_125 [1] : vector<1x64xf32> to vector<1xf32>
    %274 = vector.shape_cast %273 : vector<1xf32> to vector<1x1xf32>
    %275 = vector.broadcast %274 : vector<1x1xf32> to vector<1x64xf32>
    %276 = arith.subf %272, %275 : vector<1x64xf32>
    %277 = math.exp %276 : vector<1x64xf32>
    %cst_126 = arith.constant dense<0.000000e+00> : vector<1xf32>
    %278 = vector.multi_reduction <add>, %277, %cst_126 [1] : vector<1x64xf32> to vector<1xf32>
    %279 = vector.shape_cast %278 : vector<1xf32> to vector<1x1xf32>
    %280 = math.log %279 : vector<1x1xf32>
    %281 = vector.broadcast %280 : vector<1x1xf32> to vector<1x64xf32>
    %282 = arith.subf %276, %281 : vector<1x64xf32>
    %283 = tpu.concatenate %282, %269, %238, %85 in 1 : vector<1x64xf32>, vector<1x32xf32>, vector<1x16xf32>, vector<1x16xf32> -> vector<1x128xf32>
    %284 = arith.index_cast %c2_i32 : i32 to index
    %c0_127 = arith.constant 0 : index
    %285 = vector.load %arg11[%284, %c0_127] : memref<16x128xf32, #tpu.memory_space<vmem>>, vector<1x128xf32>
    tpu.vector_store %arg11[%284, %c0_127], %283 {strides = array<i32>} : memref<16x128xf32, #tpu.memory_space<vmem>>, vector<1x128xf32>,
    %c3_i32 = arith.constant 3 : i32
    %286 = vector.extract_strided_slice %270 {offsets = [0, 64], sizes = [1, 16], strides = [1, 1]} : vector<1x256xf32> to vector<1x16xf32>
    %287 = vector.extract_strided_slice %270 {offsets = [0, 128], sizes = [1, 96], strides = [1, 1]} : vector<1x256xf32> to vector<1x96xf32>
    %288 = arith.index_cast %c3_i32 : i32 to index
    %c0_128 = arith.constant 0 : index
    %289 = vector.load %arg13[%288, %c0_128] : memref<16x16xf32, #tpu.memory_space<vmem>>, vector<1x16xf32>
    %290 = arith.addf %289, %286 : vector<1x16xf32>
    %cst_129 = arith.constant dense<0xFF800000> : vector<1xf32>
    %291 = vector.multi_reduction <maximumf>, %290, %cst_129 [1] : vector<1x16xf32> to vector<1xf32>
    %292 = vector.shape_cast %291 : vector<1xf32> to vector<1x1xf32>
    %293 = vector.broadcast %292 : vector<1x1xf32> to vector<1x16xf32>
    %294 = arith.subf %290, %293 : vector<1x16xf32>
    %295 = math.exp %294 : vector<1x16xf32>
    %cst_130 = arith.constant dense<0.000000e+00> : vector<1xf32>
    %296 = vector.multi_reduction <add>, %295, %cst_130 [1] : vector<1x16xf32> to vector<1xf32>
    %297 = vector.shape_cast %296 : vector<1xf32> to vector<1x1xf32>
    %298 = tpu.reciprocal %297 {approx = true} : vector<1x1xf32> -> vector<1x1xf32>
    %299 = arith.mulf %297, %298 : vector<1x1xf32>
    %cst_131 = arith.constant 2.000000e+00 : f32
    %300 = vector.broadcast %cst_131 : f32 to vector<1x1xf32>
    %301 = arith.subf %300, %299 : vector<1x1xf32>
    %302 = arith.mulf %298, %301 : vector<1x1xf32>
    %303 = vector.broadcast %302 : vector<1x1xf32> to vector<1x16xf32>
    %304 = arith.mulf %295, %303 : vector<1x16xf32>
    %cst_132 = arith.constant dense<0.000000e+00> : vector<1x32xf32>
    %305 = tpu.matmul %304, %77, %cst_132 {dimension_numbers = #tpu.dot_dimension_numbers<[1], [0], [0], [1], [0, 0, 1, 1], [], []>} : vector<1x16xf32>, vector<16x32xf32>, vector<1x32xf32> -> vector<1x32xf32>
    %306 = arith.index_cast %c3_i32 : i32 to index
    %c0_133 = arith.constant 0 : index
    %307 = vector.load %arg14[%306, %c0_133] : memref<16x32xf32, #tpu.memory_space<vmem>>, vector<1x32xf32>
    %cst_134 = arith.constant dense<0.000000e+00> : vector<1x32xf32>
    %308 = tpu.matmul %305, %78, %cst_134 {dimension_numbers = #tpu.dot_dimension_numbers<[1], [0], [0], [1], [0, 0, 1, 1], [], []>} : vector<1x32xf32>, vector<32x32xf32>, vector<1x32xf32> -> vector<1x32xf32>
    %309 = arith.addf %307, %308 : vector<1x32xf32>
    %cst_135 = arith.constant 0.000000e+00 : f32
    %310 = vector.broadcast %cst_135 : f32 to vector<1x32xf32>
    %311 = arith.maximumf %309, %310 : vector<1x32xf32>
    %cst_136 = arith.constant dense<0.000000e+00> : vector<1x96xf32>
    %312 = tpu.matmul %311, %79, %cst_136 {dimension_numbers = #tpu.dot_dimension_numbers<[1], [0], [0], [1], [0, 0, 1, 1], [], []>} : vector<1x32xf32>, vector<32x96xf32>, vector<1x96xf32> -> vector<1x96xf32>
    %313 = vector.extract_strided_slice %312 {offsets = [0, 0], sizes = [1, 64], strides = [1, 1]} : vector<1x96xf32> to vector<1x64xf32>
    %314 = vector.extract_strided_slice %287 {offsets = [0, 0], sizes = [1, 64], strides = [1, 1]} : vector<1x96xf32> to vector<1x64xf32>
    %315 = arith.addf %313, %314 : vector<1x64xf32>
    %316 = arith.addf %315, %81 : vector<1x64xf32>
    %317 = arith.negf %316 : vector<1x64xf32>
    %318 = math.exp %317 : vector<1x64xf32>
    %cst_137 = arith.constant 1.000000e+00 : f32
    %319 = vector.broadcast %cst_137 : f32 to vector<1x64xf32>
    %320 = arith.addf %319, %318 : vector<1x64xf32>
    %321 = arith.divf %319, %320 : vector<1x64xf32>
    %322 = vector.extract_strided_slice %321 {offsets = [0, 0], sizes = [1, 32], strides = [1, 1]} : vector<1x64xf32> to vector<1x32xf32>
    %323 = vector.extract_strided_slice %321 {offsets = [0, 32], sizes = [1, 32], strides = [1, 1]} : vector<1x64xf32> to vector<1x32xf32>
    %324 = vector.extract_strided_slice %312 {offsets = [0, 64], sizes = [1, 32], strides = [1, 1]} : vector<1x96xf32> to vector<1x32xf32>
    %325 = arith.addf %324, %82 : vector<1x32xf32>
    %326 = vector.extract_strided_slice %287 {offsets = [0, 64], sizes = [1, 32], strides = [1, 1]} : vector<1x96xf32> to vector<1x32xf32>
    %327 = arith.addf %326, %83 : vector<1x32xf32>
    %328 = arith.mulf %322, %327 : vector<1x32xf32>
    %329 = arith.addf %325, %328 : vector<1x32xf32>
    %330 = math.tanh %329 : vector<1x32xf32>
    %cst_138 = arith.constant 1.000000e+00 : f32
    %331 = vector.broadcast %cst_138 : f32 to vector<1x32xf32>
    %332 = arith.subf %331, %323 : vector<1x32xf32>
    %333 = arith.mulf %332, %330 : vector<1x32xf32>
    %334 = arith.mulf %323, %269 : vector<1x32xf32>
    %335 = arith.addf %333, %334 : vector<1x32xf32>
    %cst_139 = arith.constant dense<0.000000e+00> : vector<1x256xf32>
    %336 = tpu.matmul %335, %80, %cst_139 {dimension_numbers = #tpu.dot_dimension_numbers<[1], [0], [0], [1], [0, 0, 1, 1], [], []>} : vector<1x32xf32>, vector<32x256xf32>, vector<1x256xf32> -> vector<1x256xf32>
    %337 = vector.extract_strided_slice %336 {offsets = [0, 0], sizes = [1, 64], strides = [1, 1]} : vector<1x256xf32> to vector<1x64xf32>
    %338 = arith.addf %337, %84 : vector<1x64xf32>
    %cst_140 = arith.constant dense<0xFF800000> : vector<1xf32>
    %339 = vector.multi_reduction <maximumf>, %338, %cst_140 [1] : vector<1x64xf32> to vector<1xf32>
    %340 = vector.shape_cast %339 : vector<1xf32> to vector<1x1xf32>
    %341 = vector.broadcast %340 : vector<1x1xf32> to vector<1x64xf32>
    %342 = arith.subf %338, %341 : vector<1x64xf32>
    %343 = math.exp %342 : vector<1x64xf32>
    %cst_141 = arith.constant dense<0.000000e+00> : vector<1xf32>
    %344 = vector.multi_reduction <add>, %343, %cst_141 [1] : vector<1x64xf32> to vector<1xf32>
    %345 = vector.shape_cast %344 : vector<1xf32> to vector<1x1xf32>
    %346 = math.log %345 : vector<1x1xf32>
    %347 = vector.broadcast %346 : vector<1x1xf32> to vector<1x64xf32>
    %348 = arith.subf %342, %347 : vector<1x64xf32>
    %349 = tpu.concatenate %348, %335, %304, %85 in 1 : vector<1x64xf32>, vector<1x32xf32>, vector<1x16xf32>, vector<1x16xf32> -> vector<1x128xf32>
    %350 = arith.index_cast %c3_i32 : i32 to index
    %c0_142 = arith.constant 0 : index
    %351 = vector.load %arg11[%350, %c0_142] : memref<16x128xf32, #tpu.memory_space<vmem>>, vector<1x128xf32>
    tpu.vector_store %arg11[%350, %c0_142], %349 {strides = array<i32>} : memref<16x128xf32, #tpu.memory_space<vmem>>, vector<1x128xf32>,
    %c4_i32 = arith.constant 4 : i32
    %352 = vector.extract_strided_slice %336 {offsets = [0, 64], sizes = [1, 16], strides = [1, 1]} : vector<1x256xf32> to vector<1x16xf32>
    %353 = vector.extract_strided_slice %336 {offsets = [0, 128], sizes = [1, 96], strides = [1, 1]} : vector<1x256xf32> to vector<1x96xf32>
    %354 = arith.index_cast %c4_i32 : i32 to index
    %c0_143 = arith.constant 0 : index
    %355 = vector.load %arg13[%354, %c0_143] : memref<16x16xf32, #tpu.memory_space<vmem>>, vector<1x16xf32>
    %356 = arith.addf %355, %352 : vector<1x16xf32>
    %cst_144 = arith.constant dense<0xFF800000> : vector<1xf32>
    %357 = vector.multi_reduction <maximumf>, %356, %cst_144 [1] : vector<1x16xf32> to vector<1xf32>
    %358 = vector.shape_cast %357 : vector<1xf32> to vector<1x1xf32>
    %359 = vector.broadcast %358 : vector<1x1xf32> to vector<1x16xf32>
    %360 = arith.subf %356, %359 : vector<1x16xf32>
    %361 = math.exp %360 : vector<1x16xf32>
    %cst_145 = arith.constant dense<0.000000e+00> : vector<1xf32>
    %362 = vector.multi_reduction <add>, %361, %cst_145 [1] : vector<1x16xf32> to vector<1xf32>
    %363 = vector.shape_cast %362 : vector<1xf32> to vector<1x1xf32>
    %364 = tpu.reciprocal %363 {approx = true} : vector<1x1xf32> -> vector<1x1xf32>
    %365 = arith.mulf %363, %364 : vector<1x1xf32>
    %cst_146 = arith.constant 2.000000e+00 : f32
    %366 = vector.broadcast %cst_146 : f32 to vector<1x1xf32>
    %367 = arith.subf %366, %365 : vector<1x1xf32>
    %368 = arith.mulf %364, %367 : vector<1x1xf32>
    %369 = vector.broadcast %368 : vector<1x1xf32> to vector<1x16xf32>
    %370 = arith.mulf %361, %369 : vector<1x16xf32>
    %cst_147 = arith.constant dense<0.000000e+00> : vector<1x32xf32>
    %371 = tpu.matmul %370, %77, %cst_147 {dimension_numbers = #tpu.dot_dimension_numbers<[1], [0], [0], [1], [0, 0, 1, 1], [], []>} : vector<1x16xf32>, vector<16x32xf32>, vector<1x32xf32> -> vector<1x32xf32>
    %372 = arith.index_cast %c4_i32 : i32 to index
    %c0_148 = arith.constant 0 : index
    %373 = vector.load %arg14[%372, %c0_148] : memref<16x32xf32, #tpu.memory_space<vmem>>, vector<1x32xf32>
    %cst_149 = arith.constant dense<0.000000e+00> : vector<1x32xf32>
    %374 = tpu.matmul %371, %78, %cst_149 {dimension_numbers = #tpu.dot_dimension_numbers<[1], [0], [0], [1], [0, 0, 1, 1], [], []>} : vector<1x32xf32>, vector<32x32xf32>, vector<1x32xf32> -> vector<1x32xf32>
    %375 = arith.addf %373, %374 : vector<1x32xf32>
    %cst_150 = arith.constant 0.000000e+00 : f32
    %376 = vector.broadcast %cst_150 : f32 to vector<1x32xf32>
    %377 = arith.maximumf %375, %376 : vector<1x32xf32>
    %cst_151 = arith.constant dense<0.000000e+00> : vector<1x96xf32>
    %378 = tpu.matmul %377, %79, %cst_151 {dimension_numbers = #tpu.dot_dimension_numbers<[1], [0], [0], [1], [0, 0, 1, 1], [], []>} : vector<1x32xf32>, vector<32x96xf32>, vector<1x96xf32> -> vector<1x96xf32>
    %379 = vector.extract_strided_slice %378 {offsets = [0, 0], sizes = [1, 64], strides = [1, 1]} : vector<1x96xf32> to vector<1x64xf32>
    %380 = vector.extract_strided_slice %353 {offsets = [0, 0], sizes = [1, 64], strides = [1, 1]} : vector<1x96xf32> to vector<1x64xf32>
    %381 = arith.addf %379, %380 : vector<1x64xf32>
    %382 = arith.addf %381, %81 : vector<1x64xf32>
    %383 = arith.negf %382 : vector<1x64xf32>
    %384 = math.exp %383 : vector<1x64xf32>
    %cst_152 = arith.constant 1.000000e+00 : f32
    %385 = vector.broadcast %cst_152 : f32 to vector<1x64xf32>
    %386 = arith.addf %385, %384 : vector<1x64xf32>
    %387 = arith.divf %385, %386 : vector<1x64xf32>
    %388 = vector.extract_strided_slice %387 {offsets = [0, 0], sizes = [1, 32], strides = [1, 1]} : vector<1x64xf32> to vector<1x32xf32>
    %389 = vector.extract_strided_slice %387 {offsets = [0, 32], sizes = [1, 32], strides = [1, 1]} : vector<1x64xf32> to vector<1x32xf32>
    %390 = vector.extract_strided_slice %378 {offsets = [0, 64], sizes = [1, 32], strides = [1, 1]} : vector<1x96xf32> to vector<1x32xf32>
    %391 = arith.addf %390, %82 : vector<1x32xf32>
    %392 = vector.extract_strided_slice %353 {offsets = [0, 64], sizes = [1, 32], strides = [1, 1]} : vector<1x96xf32> to vector<1x32xf32>
    %393 = arith.addf %392, %83 : vector<1x32xf32>
    %394 = arith.mulf %388, %393 : vector<1x32xf32>
    %395 = arith.addf %391, %394 : vector<1x32xf32>
    %396 = math.tanh %395 : vector<1x32xf32>
    %cst_153 = arith.constant 1.000000e+00 : f32
    %397 = vector.broadcast %cst_153 : f32 to vector<1x32xf32>
    %398 = arith.subf %397, %389 : vector<1x32xf32>
    %399 = arith.mulf %398, %396 : vector<1x32xf32>
    %400 = arith.mulf %389, %335 : vector<1x32xf32>
    %401 = arith.addf %399, %400 : vector<1x32xf32>
    %cst_154 = arith.constant dense<0.000000e+00> : vector<1x256xf32>
    %402 = tpu.matmul %401, %80, %cst_154 {dimension_numbers = #tpu.dot_dimension_numbers<[1], [0], [0], [1], [0, 0, 1, 1], [], []>} : vector<1x32xf32>, vector<32x256xf32>, vector<1x256xf32> -> vector<1x256xf32>
    %403 = vector.extract_strided_slice %402 {offsets = [0, 0], sizes = [1, 64], strides = [1, 1]} : vector<1x256xf32> to vector<1x64xf32>
    %404 = arith.addf %403, %84 : vector<1x64xf32>
    %cst_155 = arith.constant dense<0xFF800000> : vector<1xf32>
    %405 = vector.multi_reduction <maximumf>, %404, %cst_155 [1] : vector<1x64xf32> to vector<1xf32>
    %406 = vector.shape_cast %405 : vector<1xf32> to vector<1x1xf32>
    %407 = vector.broadcast %406 : vector<1x1xf32> to vector<1x64xf32>
    %408 = arith.subf %404, %407 : vector<1x64xf32>
    %409 = math.exp %408 : vector<1x64xf32>
    %cst_156 = arith.constant dense<0.000000e+00> : vector<1xf32>
    %410 = vector.multi_reduction <add>, %409, %cst_156 [1] : vector<1x64xf32> to vector<1xf32>
    %411 = vector.shape_cast %410 : vector<1xf32> to vector<1x1xf32>
    %412 = math.log %411 : vector<1x1xf32>
    %413 = vector.broadcast %412 : vector<1x1xf32> to vector<1x64xf32>
    %414 = arith.subf %408, %413 : vector<1x64xf32>
    %415 = tpu.concatenate %414, %401, %370, %85 in 1 : vector<1x64xf32>, vector<1x32xf32>, vector<1x16xf32>, vector<1x16xf32> -> vector<1x128xf32>
    %416 = arith.index_cast %c4_i32 : i32 to index
    %c0_157 = arith.constant 0 : index
    %417 = vector.load %arg11[%416, %c0_157] : memref<16x128xf32, #tpu.memory_space<vmem>>, vector<1x128xf32>
    tpu.vector_store %arg11[%416, %c0_157], %415 {strides = array<i32>} : memref<16x128xf32, #tpu.memory_space<vmem>>, vector<1x128xf32>,
    %c5_i32 = arith.constant 5 : i32
    %418 = vector.extract_strided_slice %402 {offsets = [0, 64], sizes = [1, 16], strides = [1, 1]} : vector<1x256xf32> to vector<1x16xf32>
    %419 = vector.extract_strided_slice %402 {offsets = [0, 128], sizes = [1, 96], strides = [1, 1]} : vector<1x256xf32> to vector<1x96xf32>
    %420 = arith.index_cast %c5_i32 : i32 to index
    %c0_158 = arith.constant 0 : index
    %421 = vector.load %arg13[%420, %c0_158] : memref<16x16xf32, #tpu.memory_space<vmem>>, vector<1x16xf32>
    %422 = arith.addf %421, %418 : vector<1x16xf32>
    %cst_159 = arith.constant dense<0xFF800000> : vector<1xf32>
    %423 = vector.multi_reduction <maximumf>, %422, %cst_159 [1] : vector<1x16xf32> to vector<1xf32>
    %424 = vector.shape_cast %423 : vector<1xf32> to vector<1x1xf32>
    %425 = vector.broadcast %424 : vector<1x1xf32> to vector<1x16xf32>
    %426 = arith.subf %422, %425 : vector<1x16xf32>
    %427 = math.exp %426 : vector<1x16xf32>
    %cst_160 = arith.constant dense<0.000000e+00> : vector<1xf32>
    %428 = vector.multi_reduction <add>, %427, %cst_160 [1] : vector<1x16xf32> to vector<1xf32>
    %429 = vector.shape_cast %428 : vector<1xf32> to vector<1x1xf32>
    %430 = tpu.reciprocal %429 {approx = true} : vector<1x1xf32> -> vector<1x1xf32>
    %431 = arith.mulf %429, %430 : vector<1x1xf32>
    %cst_161 = arith.constant 2.000000e+00 : f32
    %432 = vector.broadcast %cst_161 : f32 to vector<1x1xf32>
    %433 = arith.subf %432, %431 : vector<1x1xf32>
    %434 = arith.mulf %430, %433 : vector<1x1xf32>
    %435 = vector.broadcast %434 : vector<1x1xf32> to vector<1x16xf32>
    %436 = arith.mulf %427, %435 : vector<1x16xf32>
    %cst_162 = arith.constant dense<0.000000e+00> : vector<1x32xf32>
    %437 = tpu.matmul %436, %77, %cst_162 {dimension_numbers = #tpu.dot_dimension_numbers<[1], [0], [0], [1], [0, 0, 1, 1], [], []>} : vector<1x16xf32>, vector<16x32xf32>, vector<1x32xf32> -> vector<1x32xf32>
    %438 = arith.index_cast %c5_i32 : i32 to index
    %c0_163 = arith.constant 0 : index
    %439 = vector.load %arg14[%438, %c0_163] : memref<16x32xf32, #tpu.memory_space<vmem>>, vector<1x32xf32>
    %cst_164 = arith.constant dense<0.000000e+00> : vector<1x32xf32>
    %440 = tpu.matmul %437, %78, %cst_164 {dimension_numbers = #tpu.dot_dimension_numbers<[1], [0], [0], [1], [0, 0, 1, 1], [], []>} : vector<1x32xf32>, vector<32x32xf32>, vector<1x32xf32> -> vector<1x32xf32>
    %441 = arith.addf %439, %440 : vector<1x32xf32>
    %cst_165 = arith.constant 0.000000e+00 : f32
    %442 = vector.broadcast %cst_165 : f32 to vector<1x32xf32>
    %443 = arith.maximumf %441, %442 : vector<1x32xf32>
    %cst_166 = arith.constant dense<0.000000e+00> : vector<1x96xf32>
    %444 = tpu.matmul %443, %79, %cst_166 {dimension_numbers = #tpu.dot_dimension_numbers<[1], [0], [0], [1], [0, 0, 1, 1], [], []>} : vector<1x32xf32>, vector<32x96xf32>, vector<1x96xf32> -> vector<1x96xf32>
    %445 = vector.extract_strided_slice %444 {offsets = [0, 0], sizes = [1, 64], strides = [1, 1]} : vector<1x96xf32> to vector<1x64xf32>
    %446 = vector.extract_strided_slice %419 {offsets = [0, 0], sizes = [1, 64], strides = [1, 1]} : vector<1x96xf32> to vector<1x64xf32>
    %447 = arith.addf %445, %446 : vector<1x64xf32>
    %448 = arith.addf %447, %81 : vector<1x64xf32>
    %449 = arith.negf %448 : vector<1x64xf32>
    %450 = math.exp %449 : vector<1x64xf32>
    %cst_167 = arith.constant 1.000000e+00 : f32
    %451 = vector.broadcast %cst_167 : f32 to vector<1x64xf32>
    %452 = arith.addf %451, %450 : vector<1x64xf32>
    %453 = arith.divf %451, %452 : vector<1x64xf32>
    %454 = vector.extract_strided_slice %453 {offsets = [0, 0], sizes = [1, 32], strides = [1, 1]} : vector<1x64xf32> to vector<1x32xf32>
    %455 = vector.extract_strided_slice %453 {offsets = [0, 32], sizes = [1, 32], strides = [1, 1]} : vector<1x64xf32> to vector<1x32xf32>
    %456 = vector.extract_strided_slice %444 {offsets = [0, 64], sizes = [1, 32], strides = [1, 1]} : vector<1x96xf32> to vector<1x32xf32>
    %457 = arith.addf %456, %82 : vector<1x32xf32>
    %458 = vector.extract_strided_slice %419 {offsets = [0, 64], sizes = [1, 32], strides = [1, 1]} : vector<1x96xf32> to vector<1x32xf32>
    %459 = arith.addf %458, %83 : vector<1x32xf32>
    %460 = arith.mulf %454, %459 : vector<1x32xf32>
    %461 = arith.addf %457, %460 : vector<1x32xf32>
    %462 = math.tanh %461 : vector<1x32xf32>
    %cst_168 = arith.constant 1.000000e+00 : f32
    %463 = vector.broadcast %cst_168 : f32 to vector<1x32xf32>
    %464 = arith.subf %463, %455 : vector<1x32xf32>
    %465 = arith.mulf %464, %462 : vector<1x32xf32>
    %466 = arith.mulf %455, %401 : vector<1x32xf32>
    %467 = arith.addf %465, %466 : vector<1x32xf32>
    %cst_169 = arith.constant dense<0.000000e+00> : vector<1x256xf32>
    %468 = tpu.matmul %467, %80, %cst_169 {dimension_numbers = #tpu.dot_dimension_numbers<[1], [0], [0], [1], [0, 0, 1, 1], [], []>} : vector<1x32xf32>, vector<32x256xf32>, vector<1x256xf32> -> vector<1x256xf32>
    %469 = vector.extract_strided_slice %468 {offsets = [0, 0], sizes = [1, 64], strides = [1, 1]} : vector<1x256xf32> to vector<1x64xf32>
    %470 = arith.addf %469, %84 : vector<1x64xf32>
    %cst_170 = arith.constant dense<0xFF800000> : vector<1xf32>
    %471 = vector.multi_reduction <maximumf>, %470, %cst_170 [1] : vector<1x64xf32> to vector<1xf32>
    %472 = vector.shape_cast %471 : vector<1xf32> to vector<1x1xf32>
    %473 = vector.broadcast %472 : vector<1x1xf32> to vector<1x64xf32>
    %474 = arith.subf %470, %473 : vector<1x64xf32>
    %475 = math.exp %474 : vector<1x64xf32>
    %cst_171 = arith.constant dense<0.000000e+00> : vector<1xf32>
    %476 = vector.multi_reduction <add>, %475, %cst_171 [1] : vector<1x64xf32> to vector<1xf32>
    %477 = vector.shape_cast %476 : vector<1xf32> to vector<1x1xf32>
    %478 = math.log %477 : vector<1x1xf32>
    %479 = vector.broadcast %478 : vector<1x1xf32> to vector<1x64xf32>
    %480 = arith.subf %474, %479 : vector<1x64xf32>
    %481 = tpu.concatenate %480, %467, %436, %85 in 1 : vector<1x64xf32>, vector<1x32xf32>, vector<1x16xf32>, vector<1x16xf32> -> vector<1x128xf32>
    %482 = arith.index_cast %c5_i32 : i32 to index
    %c0_172 = arith.constant 0 : index
    %483 = vector.load %arg11[%482, %c0_172] : memref<16x128xf32, #tpu.memory_space<vmem>>, vector<1x128xf32>
    tpu.vector_store %arg11[%482, %c0_172], %481 {strides = array<i32>} : memref<16x128xf32, #tpu.memory_space<vmem>>, vector<1x128xf32>,
    %c6_i32 = arith.constant 6 : i32
    %484 = vector.extract_strided_slice %468 {offsets = [0, 64], sizes = [1, 16], strides = [1, 1]} : vector<1x256xf32> to vector<1x16xf32>
    %485 = vector.extract_strided_slice %468 {offsets = [0, 128], sizes = [1, 96], strides = [1, 1]} : vector<1x256xf32> to vector<1x96xf32>
    %486 = arith.index_cast %c6_i32 : i32 to index
    %c0_173 = arith.constant 0 : index
    %487 = vector.load %arg13[%486, %c0_173] : memref<16x16xf32, #tpu.memory_space<vmem>>, vector<1x16xf32>
    %488 = arith.addf %487, %484 : vector<1x16xf32>
    %cst_174 = arith.constant dense<0xFF800000> : vector<1xf32>
    %489 = vector.multi_reduction <maximumf>, %488, %cst_174 [1] : vector<1x16xf32> to vector<1xf32>
    %490 = vector.shape_cast %489 : vector<1xf32> to vector<1x1xf32>
    %491 = vector.broadcast %490 : vector<1x1xf32> to vector<1x16xf32>
    %492 = arith.subf %488, %491 : vector<1x16xf32>
    %493 = math.exp %492 : vector<1x16xf32>
    %cst_175 = arith.constant dense<0.000000e+00> : vector<1xf32>
    %494 = vector.multi_reduction <add>, %493, %cst_175 [1] : vector<1x16xf32> to vector<1xf32>
    %495 = vector.shape_cast %494 : vector<1xf32> to vector<1x1xf32>
    %496 = tpu.reciprocal %495 {approx = true} : vector<1x1xf32> -> vector<1x1xf32>
    %497 = arith.mulf %495, %496 : vector<1x1xf32>
    %cst_176 = arith.constant 2.000000e+00 : f32
    %498 = vector.broadcast %cst_176 : f32 to vector<1x1xf32>
    %499 = arith.subf %498, %497 : vector<1x1xf32>
    %500 = arith.mulf %496, %499 : vector<1x1xf32>
    %501 = vector.broadcast %500 : vector<1x1xf32> to vector<1x16xf32>
    %502 = arith.mulf %493, %501 : vector<1x16xf32>
    %cst_177 = arith.constant dense<0.000000e+00> : vector<1x32xf32>
    %503 = tpu.matmul %502, %77, %cst_177 {dimension_numbers = #tpu.dot_dimension_numbers<[1], [0], [0], [1], [0, 0, 1, 1], [], []>} : vector<1x16xf32>, vector<16x32xf32>, vector<1x32xf32> -> vector<1x32xf32>
    %504 = arith.index_cast %c6_i32 : i32 to index
    %c0_178 = arith.constant 0 : index
    %505 = vector.load %arg14[%504, %c0_178] : memref<16x32xf32, #tpu.memory_space<vmem>>, vector<1x32xf32>
    %cst_179 = arith.constant dense<0.000000e+00> : vector<1x32xf32>
    %506 = tpu.matmul %503, %78, %cst_179 {dimension_numbers = #tpu.dot_dimension_numbers<[1], [0], [0], [1], [0, 0, 1, 1], [], []>} : vector<1x32xf32>, vector<32x32xf32>, vector<1x32xf32> -> vector<1x32xf32>
    %507 = arith.addf %505, %506 : vector<1x32xf32>
    %cst_180 = arith.constant 0.000000e+00 : f32
    %508 = vector.broadcast %cst_180 : f32 to vector<1x32xf32>
    %509 = arith.maximumf %507, %508 : vector<1x32xf32>
    %cst_181 = arith.constant dense<0.000000e+00> : vector<1x96xf32>
    %510 = tpu.matmul %509, %79, %cst_181 {dimension_numbers = #tpu.dot_dimension_numbers<[1], [0], [0], [1], [0, 0, 1, 1], [], []>} : vector<1x32xf32>, vector<32x96xf32>, vector<1x96xf32> -> vector<1x96xf32>
    %511 = vector.extract_strided_slice %510 {offsets = [0, 0], sizes = [1, 64], strides = [1, 1]} : vector<1x96xf32> to vector<1x64xf32>
    %512 = vector.extract_strided_slice %485 {offsets = [0, 0], sizes = [1, 64], strides = [1, 1]} : vector<1x96xf32> to vector<1x64xf32>
    %513 = arith.addf %511, %512 : vector<1x64xf32>
    %514 = arith.addf %513, %81 : vector<1x64xf32>
    %515 = arith.negf %514 : vector<1x64xf32>
    %516 = math.exp %515 : vector<1x64xf32>
    %cst_182 = arith.constant 1.000000e+00 : f32
    %517 = vector.broadcast %cst_182 : f32 to vector<1x64xf32>
    %518 = arith.addf %517, %516 : vector<1x64xf32>
    %519 = arith.divf %517, %518 : vector<1x64xf32>
    %520 = vector.extract_strided_slice %519 {offsets = [0, 0], sizes = [1, 32], strides = [1, 1]} : vector<1x64xf32> to vector<1x32xf32>
    %521 = vector.extract_strided_slice %519 {offsets = [0, 32], sizes = [1, 32], strides = [1, 1]} : vector<1x64xf32> to vector<1x32xf32>
    %522 = vector.extract_strided_slice %510 {offsets = [0, 64], sizes = [1, 32], strides = [1, 1]} : vector<1x96xf32> to vector<1x32xf32>
    %523 = arith.addf %522, %82 : vector<1x32xf32>
    %524 = vector.extract_strided_slice %485 {offsets = [0, 64], sizes = [1, 32], strides = [1, 1]} : vector<1x96xf32> to vector<1x32xf32>
    %525 = arith.addf %524, %83 : vector<1x32xf32>
    %526 = arith.mulf %520, %525 : vector<1x32xf32>
    %527 = arith.addf %523, %526 : vector<1x32xf32>
    %528 = math.tanh %527 : vector<1x32xf32>
    %cst_183 = arith.constant 1.000000e+00 : f32
    %529 = vector.broadcast %cst_183 : f32 to vector<1x32xf32>
    %530 = arith.subf %529, %521 : vector<1x32xf32>
    %531 = arith.mulf %530, %528 : vector<1x32xf32>
    %532 = arith.mulf %521, %467 : vector<1x32xf32>
    %533 = arith.addf %531, %532 : vector<1x32xf32>
    %cst_184 = arith.constant dense<0.000000e+00> : vector<1x256xf32>
    %534 = tpu.matmul %533, %80, %cst_184 {dimension_numbers = #tpu.dot_dimension_numbers<[1], [0], [0], [1], [0, 0, 1, 1], [], []>} : vector<1x32xf32>, vector<32x256xf32>, vector<1x256xf32> -> vector<1x256xf32>
    %535 = vector.extract_strided_slice %534 {offsets = [0, 0], sizes = [1, 64], strides = [1, 1]} : vector<1x256xf32> to vector<1x64xf32>
    %536 = arith.addf %535, %84 : vector<1x64xf32>
    %cst_185 = arith.constant dense<0xFF800000> : vector<1xf32>
    %537 = vector.multi_reduction <maximumf>, %536, %cst_185 [1] : vector<1x64xf32> to vector<1xf32>
    %538 = vector.shape_cast %537 : vector<1xf32> to vector<1x1xf32>
    %539 = vector.broadcast %538 : vector<1x1xf32> to vector<1x64xf32>
    %540 = arith.subf %536, %539 : vector<1x64xf32>
    %541 = math.exp %540 : vector<1x64xf32>
    %cst_186 = arith.constant dense<0.000000e+00> : vector<1xf32>
    %542 = vector.multi_reduction <add>, %541, %cst_186 [1] : vector<1x64xf32> to vector<1xf32>
    %543 = vector.shape_cast %542 : vector<1xf32> to vector<1x1xf32>
    %544 = math.log %543 : vector<1x1xf32>
    %545 = vector.broadcast %544 : vector<1x1xf32> to vector<1x64xf32>
    %546 = arith.subf %540, %545 : vector<1x64xf32>
    %547 = tpu.concatenate %546, %533, %502, %85 in 1 : vector<1x64xf32>, vector<1x32xf32>, vector<1x16xf32>, vector<1x16xf32> -> vector<1x128xf32>
    %548 = arith.index_cast %c6_i32 : i32 to index
    %c0_187 = arith.constant 0 : index
    %549 = vector.load %arg11[%548, %c0_187] : memref<16x128xf32, #tpu.memory_space<vmem>>, vector<1x128xf32>
    tpu.vector_store %arg11[%548, %c0_187], %547 {strides = array<i32>} : memref<16x128xf32, #tpu.memory_space<vmem>>, vector<1x128xf32>,
    %c7_i32 = arith.constant 7 : i32
    %550 = vector.extract_strided_slice %534 {offsets = [0, 64], sizes = [1, 16], strides = [1, 1]} : vector<1x256xf32> to vector<1x16xf32>
    %551 = vector.extract_strided_slice %534 {offsets = [0, 128], sizes = [1, 96], strides = [1, 1]} : vector<1x256xf32> to vector<1x96xf32>
    %552 = arith.index_cast %c7_i32 : i32 to index
    %c0_188 = arith.constant 0 : index
    %553 = vector.load %arg13[%552, %c0_188] : memref<16x16xf32, #tpu.memory_space<vmem>>, vector<1x16xf32>
    %554 = arith.addf %553, %550 : vector<1x16xf32>
    %cst_189 = arith.constant dense<0xFF800000> : vector<1xf32>
    %555 = vector.multi_reduction <maximumf>, %554, %cst_189 [1] : vector<1x16xf32> to vector<1xf32>
    %556 = vector.shape_cast %555 : vector<1xf32> to vector<1x1xf32>
    %557 = vector.broadcast %556 : vector<1x1xf32> to vector<1x16xf32>
    %558 = arith.subf %554, %557 : vector<1x16xf32>
    %559 = math.exp %558 : vector<1x16xf32>
    %cst_190 = arith.constant dense<0.000000e+00> : vector<1xf32>
    %560 = vector.multi_reduction <add>, %559, %cst_190 [1] : vector<1x16xf32> to vector<1xf32>
    %561 = vector.shape_cast %560 : vector<1xf32> to vector<1x1xf32>
    %562 = tpu.reciprocal %561 {approx = true} : vector<1x1xf32> -> vector<1x1xf32>
    %563 = arith.mulf %561, %562 : vector<1x1xf32>
    %cst_191 = arith.constant 2.000000e+00 : f32
    %564 = vector.broadcast %cst_191 : f32 to vector<1x1xf32>
    %565 = arith.subf %564, %563 : vector<1x1xf32>
    %566 = arith.mulf %562, %565 : vector<1x1xf32>
    %567 = vector.broadcast %566 : vector<1x1xf32> to vector<1x16xf32>
    %568 = arith.mulf %559, %567 : vector<1x16xf32>
    %cst_192 = arith.constant dense<0.000000e+00> : vector<1x32xf32>
    %569 = tpu.matmul %568, %77, %cst_192 {dimension_numbers = #tpu.dot_dimension_numbers<[1], [0], [0], [1], [0, 0, 1, 1], [], []>} : vector<1x16xf32>, vector<16x32xf32>, vector<1x32xf32> -> vector<1x32xf32>
    %570 = arith.index_cast %c7_i32 : i32 to index
    %c0_193 = arith.constant 0 : index
    %571 = vector.load %arg14[%570, %c0_193] : memref<16x32xf32, #tpu.memory_space<vmem>>, vector<1x32xf32>
    %cst_194 = arith.constant dense<0.000000e+00> : vector<1x32xf32>
    %572 = tpu.matmul %569, %78, %cst_194 {dimension_numbers = #tpu.dot_dimension_numbers<[1], [0], [0], [1], [0, 0, 1, 1], [], []>} : vector<1x32xf32>, vector<32x32xf32>, vector<1x32xf32> -> vector<1x32xf32>
    %573 = arith.addf %571, %572 : vector<1x32xf32>
    %cst_195 = arith.constant 0.000000e+00 : f32
    %574 = vector.broadcast %cst_195 : f32 to vector<1x32xf32>
    %575 = arith.maximumf %573, %574 : vector<1x32xf32>
    %cst_196 = arith.constant dense<0.000000e+00> : vector<1x96xf32>
    %576 = tpu.matmul %575, %79, %cst_196 {dimension_numbers = #tpu.dot_dimension_numbers<[1], [0], [0], [1], [0, 0, 1, 1], [], []>} : vector<1x32xf32>, vector<32x96xf32>, vector<1x96xf32> -> vector<1x96xf32>
    %577 = vector.extract_strided_slice %576 {offsets = [0, 0], sizes = [1, 64], strides = [1, 1]} : vector<1x96xf32> to vector<1x64xf32>
    %578 = vector.extract_strided_slice %551 {offsets = [0, 0], sizes = [1, 64], strides = [1, 1]} : vector<1x96xf32> to vector<1x64xf32>
    %579 = arith.addf %577, %578 : vector<1x64xf32>
    %580 = arith.addf %579, %81 : vector<1x64xf32>
    %581 = arith.negf %580 : vector<1x64xf32>
    %582 = math.exp %581 : vector<1x64xf32>
    %cst_197 = arith.constant 1.000000e+00 : f32
    %583 = vector.broadcast %cst_197 : f32 to vector<1x64xf32>
    %584 = arith.addf %583, %582 : vector<1x64xf32>
    %585 = arith.divf %583, %584 : vector<1x64xf32>
    %586 = vector.extract_strided_slice %585 {offsets = [0, 0], sizes = [1, 32], strides = [1, 1]} : vector<1x64xf32> to vector<1x32xf32>
    %587 = vector.extract_strided_slice %585 {offsets = [0, 32], sizes = [1, 32], strides = [1, 1]} : vector<1x64xf32> to vector<1x32xf32>
    %588 = vector.extract_strided_slice %576 {offsets = [0, 64], sizes = [1, 32], strides = [1, 1]} : vector<1x96xf32> to vector<1x32xf32>
    %589 = arith.addf %588, %82 : vector<1x32xf32>
    %590 = vector.extract_strided_slice %551 {offsets = [0, 64], sizes = [1, 32], strides = [1, 1]} : vector<1x96xf32> to vector<1x32xf32>
    %591 = arith.addf %590, %83 : vector<1x32xf32>
    %592 = arith.mulf %586, %591 : vector<1x32xf32>
    %593 = arith.addf %589, %592 : vector<1x32xf32>
    %594 = math.tanh %593 : vector<1x32xf32>
    %cst_198 = arith.constant 1.000000e+00 : f32
    %595 = vector.broadcast %cst_198 : f32 to vector<1x32xf32>
    %596 = arith.subf %595, %587 : vector<1x32xf32>
    %597 = arith.mulf %596, %594 : vector<1x32xf32>
    %598 = arith.mulf %587, %533 : vector<1x32xf32>
    %599 = arith.addf %597, %598 : vector<1x32xf32>
    %cst_199 = arith.constant dense<0.000000e+00> : vector<1x256xf32>
    %600 = tpu.matmul %599, %80, %cst_199 {dimension_numbers = #tpu.dot_dimension_numbers<[1], [0], [0], [1], [0, 0, 1, 1], [], []>} : vector<1x32xf32>, vector<32x256xf32>, vector<1x256xf32> -> vector<1x256xf32>
    %601 = vector.extract_strided_slice %600 {offsets = [0, 0], sizes = [1, 64], strides = [1, 1]} : vector<1x256xf32> to vector<1x64xf32>
    %602 = arith.addf %601, %84 : vector<1x64xf32>
    %cst_200 = arith.constant dense<0xFF800000> : vector<1xf32>
    %603 = vector.multi_reduction <maximumf>, %602, %cst_200 [1] : vector<1x64xf32> to vector<1xf32>
    %604 = vector.shape_cast %603 : vector<1xf32> to vector<1x1xf32>
    %605 = vector.broadcast %604 : vector<1x1xf32> to vector<1x64xf32>
    %606 = arith.subf %602, %605 : vector<1x64xf32>
    %607 = math.exp %606 : vector<1x64xf32>
    %cst_201 = arith.constant dense<0.000000e+00> : vector<1xf32>
    %608 = vector.multi_reduction <add>, %607, %cst_201 [1] : vector<1x64xf32> to vector<1xf32>
    %609 = vector.shape_cast %608 : vector<1xf32> to vector<1x1xf32>
    %610 = math.log %609 : vector<1x1xf32>
    %611 = vector.broadcast %610 : vector<1x1xf32> to vector<1x64xf32>
    %612 = arith.subf %606, %611 : vector<1x64xf32>
    %613 = tpu.concatenate %612, %599, %568, %85 in 1 : vector<1x64xf32>, vector<1x32xf32>, vector<1x16xf32>, vector<1x16xf32> -> vector<1x128xf32>
    %614 = arith.index_cast %c7_i32 : i32 to index
    %c0_202 = arith.constant 0 : index
    %615 = vector.load %arg11[%614, %c0_202] : memref<16x128xf32, #tpu.memory_space<vmem>>, vector<1x128xf32>
    tpu.vector_store %arg11[%614, %c0_202], %613 {strides = array<i32>} : memref<16x128xf32, #tpu.memory_space<vmem>>, vector<1x128xf32>,
    %c8_i32 = arith.constant 8 : i32
    %616 = vector.extract_strided_slice %600 {offsets = [0, 64], sizes = [1, 16], strides = [1, 1]} : vector<1x256xf32> to vector<1x16xf32>
    %617 = vector.extract_strided_slice %600 {offsets = [0, 128], sizes = [1, 96], strides = [1, 1]} : vector<1x256xf32> to vector<1x96xf32>
    %618 = arith.index_cast %c8_i32 : i32 to index
    %c0_203 = arith.constant 0 : index
    %619 = vector.load %arg13[%618, %c0_203] : memref<16x16xf32, #tpu.memory_space<vmem>>, vector<1x16xf32>
    %620 = arith.addf %619, %616 : vector<1x16xf32>
    %cst_204 = arith.constant dense<0xFF800000> : vector<1xf32>
    %621 = vector.multi_reduction <maximumf>, %620, %cst_204 [1] : vector<1x16xf32> to vector<1xf32>
    %622 = vector.shape_cast %621 : vector<1xf32> to vector<1x1xf32>
    %623 = vector.broadcast %622 : vector<1x1xf32> to vector<1x16xf32>
    %624 = arith.subf %620, %623 : vector<1x16xf32>
    %625 = math.exp %624 : vector<1x16xf32>
    %cst_205 = arith.constant dense<0.000000e+00> : vector<1xf32>
    %626 = vector.multi_reduction <add>, %625, %cst_205 [1] : vector<1x16xf32> to vector<1xf32>
    %627 = vector.shape_cast %626 : vector<1xf32> to vector<1x1xf32>
    %628 = tpu.reciprocal %627 {approx = true} : vector<1x1xf32> -> vector<1x1xf32>
    %629 = arith.mulf %627, %628 : vector<1x1xf32>
    %cst_206 = arith.constant 2.000000e+00 : f32
    %630 = vector.broadcast %cst_206 : f32 to vector<1x1xf32>
    %631 = arith.subf %630, %629 : vector<1x1xf32>
    %632 = arith.mulf %628, %631 : vector<1x1xf32>
    %633 = vector.broadcast %632 : vector<1x1xf32> to vector<1x16xf32>
    %634 = arith.mulf %625, %633 : vector<1x16xf32>
    %cst_207 = arith.constant dense<0.000000e+00> : vector<1x32xf32>
    %635 = tpu.matmul %634, %77, %cst_207 {dimension_numbers = #tpu.dot_dimension_numbers<[1], [0], [0], [1], [0, 0, 1, 1], [], []>} : vector<1x16xf32>, vector<16x32xf32>, vector<1x32xf32> -> vector<1x32xf32>
    %636 = arith.index_cast %c8_i32 : i32 to index
    %c0_208 = arith.constant 0 : index
    %637 = vector.load %arg14[%636, %c0_208] : memref<16x32xf32, #tpu.memory_space<vmem>>, vector<1x32xf32>
    %cst_209 = arith.constant dense<0.000000e+00> : vector<1x32xf32>
    %638 = tpu.matmul %635, %78, %cst_209 {dimension_numbers = #tpu.dot_dimension_numbers<[1], [0], [0], [1], [0, 0, 1, 1], [], []>} : vector<1x32xf32>, vector<32x32xf32>, vector<1x32xf32> -> vector<1x32xf32>
    %639 = arith.addf %637, %638 : vector<1x32xf32>
    %cst_210 = arith.constant 0.000000e+00 : f32
    %640 = vector.broadcast %cst_210 : f32 to vector<1x32xf32>
    %641 = arith.maximumf %639, %640 : vector<1x32xf32>
    %cst_211 = arith.constant dense<0.000000e+00> : vector<1x96xf32>
    %642 = tpu.matmul %641, %79, %cst_211 {dimension_numbers = #tpu.dot_dimension_numbers<[1], [0], [0], [1], [0, 0, 1, 1], [], []>} : vector<1x32xf32>, vector<32x96xf32>, vector<1x96xf32> -> vector<1x96xf32>
    %643 = vector.extract_strided_slice %642 {offsets = [0, 0], sizes = [1, 64], strides = [1, 1]} : vector<1x96xf32> to vector<1x64xf32>
    %644 = vector.extract_strided_slice %617 {offsets = [0, 0], sizes = [1, 64], strides = [1, 1]} : vector<1x96xf32> to vector<1x64xf32>
    %645 = arith.addf %643, %644 : vector<1x64xf32>
    %646 = arith.addf %645, %81 : vector<1x64xf32>
    %647 = arith.negf %646 : vector<1x64xf32>
    %648 = math.exp %647 : vector<1x64xf32>
    %cst_212 = arith.constant 1.000000e+00 : f32
    %649 = vector.broadcast %cst_212 : f32 to vector<1x64xf32>
    %650 = arith.addf %649, %648 : vector<1x64xf32>
    %651 = arith.divf %649, %650 : vector<1x64xf32>
    %652 = vector.extract_strided_slice %651 {offsets = [0, 0], sizes = [1, 32], strides = [1, 1]} : vector<1x64xf32> to vector<1x32xf32>
    %653 = vector.extract_strided_slice %651 {offsets = [0, 32], sizes = [1, 32], strides = [1, 1]} : vector<1x64xf32> to vector<1x32xf32>
    %654 = vector.extract_strided_slice %642 {offsets = [0, 64], sizes = [1, 32], strides = [1, 1]} : vector<1x96xf32> to vector<1x32xf32>
    %655 = arith.addf %654, %82 : vector<1x32xf32>
    %656 = vector.extract_strided_slice %617 {offsets = [0, 64], sizes = [1, 32], strides = [1, 1]} : vector<1x96xf32> to vector<1x32xf32>
    %657 = arith.addf %656, %83 : vector<1x32xf32>
    %658 = arith.mulf %652, %657 : vector<1x32xf32>
    %659 = arith.addf %655, %658 : vector<1x32xf32>
    %660 = math.tanh %659 : vector<1x32xf32>
    %cst_213 = arith.constant 1.000000e+00 : f32
    %661 = vector.broadcast %cst_213 : f32 to vector<1x32xf32>
    %662 = arith.subf %661, %653 : vector<1x32xf32>
    %663 = arith.mulf %662, %660 : vector<1x32xf32>
    %664 = arith.mulf %653, %599 : vector<1x32xf32>
    %665 = arith.addf %663, %664 : vector<1x32xf32>
    %cst_214 = arith.constant dense<0.000000e+00> : vector<1x256xf32>
    %666 = tpu.matmul %665, %80, %cst_214 {dimension_numbers = #tpu.dot_dimension_numbers<[1], [0], [0], [1], [0, 0, 1, 1], [], []>} : vector<1x32xf32>, vector<32x256xf32>, vector<1x256xf32> -> vector<1x256xf32>
    %667 = vector.extract_strided_slice %666 {offsets = [0, 0], sizes = [1, 64], strides = [1, 1]} : vector<1x256xf32> to vector<1x64xf32>
    %668 = arith.addf %667, %84 : vector<1x64xf32>
    %cst_215 = arith.constant dense<0xFF800000> : vector<1xf32>
    %669 = vector.multi_reduction <maximumf>, %668, %cst_215 [1] : vector<1x64xf32> to vector<1xf32>
    %670 = vector.shape_cast %669 : vector<1xf32> to vector<1x1xf32>
    %671 = vector.broadcast %670 : vector<1x1xf32> to vector<1x64xf32>
    %672 = arith.subf %668, %671 : vector<1x64xf32>
    %673 = math.exp %672 : vector<1x64xf32>
    %cst_216 = arith.constant dense<0.000000e+00> : vector<1xf32>
    %674 = vector.multi_reduction <add>, %673, %cst_216 [1] : vector<1x64xf32> to vector<1xf32>
    %675 = vector.shape_cast %674 : vector<1xf32> to vector<1x1xf32>
    %676 = math.log %675 : vector<1x1xf32>
    %677 = vector.broadcast %676 : vector<1x1xf32> to vector<1x64xf32>
    %678 = arith.subf %672, %677 : vector<1x64xf32>
    %679 = tpu.concatenate %678, %665, %634, %85 in 1 : vector<1x64xf32>, vector<1x32xf32>, vector<1x16xf32>, vector<1x16xf32> -> vector<1x128xf32>
    %680 = arith.index_cast %c8_i32 : i32 to index
    %c0_217 = arith.constant 0 : index
    %681 = vector.load %arg11[%680, %c0_217] : memref<16x128xf32, #tpu.memory_space<vmem>>, vector<1x128xf32>
    tpu.vector_store %arg11[%680, %c0_217], %679 {strides = array<i32>} : memref<16x128xf32, #tpu.memory_space<vmem>>, vector<1x128xf32>,
    %c9_i32 = arith.constant 9 : i32
    %682 = vector.extract_strided_slice %666 {offsets = [0, 64], sizes = [1, 16], strides = [1, 1]} : vector<1x256xf32> to vector<1x16xf32>
    %683 = vector.extract_strided_slice %666 {offsets = [0, 128], sizes = [1, 96], strides = [1, 1]} : vector<1x256xf32> to vector<1x96xf32>
    %684 = arith.index_cast %c9_i32 : i32 to index
    %c0_218 = arith.constant 0 : index
    %685 = vector.load %arg13[%684, %c0_218] : memref<16x16xf32, #tpu.memory_space<vmem>>, vector<1x16xf32>
    %686 = arith.addf %685, %682 : vector<1x16xf32>
    %cst_219 = arith.constant dense<0xFF800000> : vector<1xf32>
    %687 = vector.multi_reduction <maximumf>, %686, %cst_219 [1] : vector<1x16xf32> to vector<1xf32>
    %688 = vector.shape_cast %687 : vector<1xf32> to vector<1x1xf32>
    %689 = vector.broadcast %688 : vector<1x1xf32> to vector<1x16xf32>
    %690 = arith.subf %686, %689 : vector<1x16xf32>
    %691 = math.exp %690 : vector<1x16xf32>
    %cst_220 = arith.constant dense<0.000000e+00> : vector<1xf32>
    %692 = vector.multi_reduction <add>, %691, %cst_220 [1] : vector<1x16xf32> to vector<1xf32>
    %693 = vector.shape_cast %692 : vector<1xf32> to vector<1x1xf32>
    %694 = tpu.reciprocal %693 {approx = true} : vector<1x1xf32> -> vector<1x1xf32>
    %695 = arith.mulf %693, %694 : vector<1x1xf32>
    %cst_221 = arith.constant 2.000000e+00 : f32
    %696 = vector.broadcast %cst_221 : f32 to vector<1x1xf32>
    %697 = arith.subf %696, %695 : vector<1x1xf32>
    %698 = arith.mulf %694, %697 : vector<1x1xf32>
    %699 = vector.broadcast %698 : vector<1x1xf32> to vector<1x16xf32>
    %700 = arith.mulf %691, %699 : vector<1x16xf32>
    %cst_222 = arith.constant dense<0.000000e+00> : vector<1x32xf32>
    %701 = tpu.matmul %700, %77, %cst_222 {dimension_numbers = #tpu.dot_dimension_numbers<[1], [0], [0], [1], [0, 0, 1, 1], [], []>} : vector<1x16xf32>, vector<16x32xf32>, vector<1x32xf32> -> vector<1x32xf32>
    %702 = arith.index_cast %c9_i32 : i32 to index
    %c0_223 = arith.constant 0 : index
    %703 = vector.load %arg14[%702, %c0_223] : memref<16x32xf32, #tpu.memory_space<vmem>>, vector<1x32xf32>
    %cst_224 = arith.constant dense<0.000000e+00> : vector<1x32xf32>
    %704 = tpu.matmul %701, %78, %cst_224 {dimension_numbers = #tpu.dot_dimension_numbers<[1], [0], [0], [1], [0, 0, 1, 1], [], []>} : vector<1x32xf32>, vector<32x32xf32>, vector<1x32xf32> -> vector<1x32xf32>
    %705 = arith.addf %703, %704 : vector<1x32xf32>
    %cst_225 = arith.constant 0.000000e+00 : f32
    %706 = vector.broadcast %cst_225 : f32 to vector<1x32xf32>
    %707 = arith.maximumf %705, %706 : vector<1x32xf32>
    %cst_226 = arith.constant dense<0.000000e+00> : vector<1x96xf32>
    %708 = tpu.matmul %707, %79, %cst_226 {dimension_numbers = #tpu.dot_dimension_numbers<[1], [0], [0], [1], [0, 0, 1, 1], [], []>} : vector<1x32xf32>, vector<32x96xf32>, vector<1x96xf32> -> vector<1x96xf32>
    %709 = vector.extract_strided_slice %708 {offsets = [0, 0], sizes = [1, 64], strides = [1, 1]} : vector<1x96xf32> to vector<1x64xf32>
    %710 = vector.extract_strided_slice %683 {offsets = [0, 0], sizes = [1, 64], strides = [1, 1]} : vector<1x96xf32> to vector<1x64xf32>
    %711 = arith.addf %709, %710 : vector<1x64xf32>
    %712 = arith.addf %711, %81 : vector<1x64xf32>
    %713 = arith.negf %712 : vector<1x64xf32>
    %714 = math.exp %713 : vector<1x64xf32>
    %cst_227 = arith.constant 1.000000e+00 : f32
    %715 = vector.broadcast %cst_227 : f32 to vector<1x64xf32>
    %716 = arith.addf %715, %714 : vector<1x64xf32>
    %717 = arith.divf %715, %716 : vector<1x64xf32>
    %718 = vector.extract_strided_slice %717 {offsets = [0, 0], sizes = [1, 32], strides = [1, 1]} : vector<1x64xf32> to vector<1x32xf32>
    %719 = vector.extract_strided_slice %717 {offsets = [0, 32], sizes = [1, 32], strides = [1, 1]} : vector<1x64xf32> to vector<1x32xf32>
    %720 = vector.extract_strided_slice %708 {offsets = [0, 64], sizes = [1, 32], strides = [1, 1]} : vector<1x96xf32> to vector<1x32xf32>
    %721 = arith.addf %720, %82 : vector<1x32xf32>
    %722 = vector.extract_strided_slice %683 {offsets = [0, 64], sizes = [1, 32], strides = [1, 1]} : vector<1x96xf32> to vector<1x32xf32>
    %723 = arith.addf %722, %83 : vector<1x32xf32>
    %724 = arith.mulf %718, %723 : vector<1x32xf32>
    %725 = arith.addf %721, %724 : vector<1x32xf32>
    %726 = math.tanh %725 : vector<1x32xf32>
    %cst_228 = arith.constant 1.000000e+00 : f32
    %727 = vector.broadcast %cst_228 : f32 to vector<1x32xf32>
    %728 = arith.subf %727, %719 : vector<1x32xf32>
    %729 = arith.mulf %728, %726 : vector<1x32xf32>
    %730 = arith.mulf %719, %665 : vector<1x32xf32>
    %731 = arith.addf %729, %730 : vector<1x32xf32>
    %cst_229 = arith.constant dense<0.000000e+00> : vector<1x256xf32>
    %732 = tpu.matmul %731, %80, %cst_229 {dimension_numbers = #tpu.dot_dimension_numbers<[1], [0], [0], [1], [0, 0, 1, 1], [], []>} : vector<1x32xf32>, vector<32x256xf32>, vector<1x256xf32> -> vector<1x256xf32>
    %733 = vector.extract_strided_slice %732 {offsets = [0, 0], sizes = [1, 64], strides = [1, 1]} : vector<1x256xf32> to vector<1x64xf32>
    %734 = arith.addf %733, %84 : vector<1x64xf32>
    %cst_230 = arith.constant dense<0xFF800000> : vector<1xf32>
    %735 = vector.multi_reduction <maximumf>, %734, %cst_230 [1] : vector<1x64xf32> to vector<1xf32>
    %736 = vector.shape_cast %735 : vector<1xf32> to vector<1x1xf32>
    %737 = vector.broadcast %736 : vector<1x1xf32> to vector<1x64xf32>
    %738 = arith.subf %734, %737 : vector<1x64xf32>
    %739 = math.exp %738 : vector<1x64xf32>
    %cst_231 = arith.constant dense<0.000000e+00> : vector<1xf32>
    %740 = vector.multi_reduction <add>, %739, %cst_231 [1] : vector<1x64xf32> to vector<1xf32>
    %741 = vector.shape_cast %740 : vector<1xf32> to vector<1x1xf32>
    %742 = math.log %741 : vector<1x1xf32>
    %743 = vector.broadcast %742 : vector<1x1xf32> to vector<1x64xf32>
    %744 = arith.subf %738, %743 : vector<1x64xf32>
    %745 = tpu.concatenate %744, %731, %700, %85 in 1 : vector<1x64xf32>, vector<1x32xf32>, vector<1x16xf32>, vector<1x16xf32> -> vector<1x128xf32>
    %746 = arith.index_cast %c9_i32 : i32 to index
    %c0_232 = arith.constant 0 : index
    %747 = vector.load %arg11[%746, %c0_232] : memref<16x128xf32, #tpu.memory_space<vmem>>, vector<1x128xf32>
    tpu.vector_store %arg11[%746, %c0_232], %745 {strides = array<i32>} : memref<16x128xf32, #tpu.memory_space<vmem>>, vector<1x128xf32>,
    %c10_i32 = arith.constant 10 : i32
    %748 = vector.extract_strided_slice %732 {offsets = [0, 64], sizes = [1, 16], strides = [1, 1]} : vector<1x256xf32> to vector<1x16xf32>
    %749 = vector.extract_strided_slice %732 {offsets = [0, 128], sizes = [1, 96], strides = [1, 1]} : vector<1x256xf32> to vector<1x96xf32>
    %750 = arith.index_cast %c10_i32 : i32 to index
    %c0_233 = arith.constant 0 : index
    %751 = vector.load %arg13[%750, %c0_233] : memref<16x16xf32, #tpu.memory_space<vmem>>, vector<1x16xf32>
    %752 = arith.addf %751, %748 : vector<1x16xf32>
    %cst_234 = arith.constant dense<0xFF800000> : vector<1xf32>
    %753 = vector.multi_reduction <maximumf>, %752, %cst_234 [1] : vector<1x16xf32> to vector<1xf32>
    %754 = vector.shape_cast %753 : vector<1xf32> to vector<1x1xf32>
    %755 = vector.broadcast %754 : vector<1x1xf32> to vector<1x16xf32>
    %756 = arith.subf %752, %755 : vector<1x16xf32>
    %757 = math.exp %756 : vector<1x16xf32>
    %cst_235 = arith.constant dense<0.000000e+00> : vector<1xf32>
    %758 = vector.multi_reduction <add>, %757, %cst_235 [1] : vector<1x16xf32> to vector<1xf32>
    %759 = vector.shape_cast %758 : vector<1xf32> to vector<1x1xf32>
    %760 = tpu.reciprocal %759 {approx = true} : vector<1x1xf32> -> vector<1x1xf32>
    %761 = arith.mulf %759, %760 : vector<1x1xf32>
    %cst_236 = arith.constant 2.000000e+00 : f32
    %762 = vector.broadcast %cst_236 : f32 to vector<1x1xf32>
    %763 = arith.subf %762, %761 : vector<1x1xf32>
    %764 = arith.mulf %760, %763 : vector<1x1xf32>
    %765 = vector.broadcast %764 : vector<1x1xf32> to vector<1x16xf32>
    %766 = arith.mulf %757, %765 : vector<1x16xf32>
    %cst_237 = arith.constant dense<0.000000e+00> : vector<1x32xf32>
    %767 = tpu.matmul %766, %77, %cst_237 {dimension_numbers = #tpu.dot_dimension_numbers<[1], [0], [0], [1], [0, 0, 1, 1], [], []>} : vector<1x16xf32>, vector<16x32xf32>, vector<1x32xf32> -> vector<1x32xf32>
    %768 = arith.index_cast %c10_i32 : i32 to index
    %c0_238 = arith.constant 0 : index
    %769 = vector.load %arg14[%768, %c0_238] : memref<16x32xf32, #tpu.memory_space<vmem>>, vector<1x32xf32>
    %cst_239 = arith.constant dense<0.000000e+00> : vector<1x32xf32>
    %770 = tpu.matmul %767, %78, %cst_239 {dimension_numbers = #tpu.dot_dimension_numbers<[1], [0], [0], [1], [0, 0, 1, 1], [], []>} : vector<1x32xf32>, vector<32x32xf32>, vector<1x32xf32> -> vector<1x32xf32>
    %771 = arith.addf %769, %770 : vector<1x32xf32>
    %cst_240 = arith.constant 0.000000e+00 : f32
    %772 = vector.broadcast %cst_240 : f32 to vector<1x32xf32>
    %773 = arith.maximumf %771, %772 : vector<1x32xf32>
    %cst_241 = arith.constant dense<0.000000e+00> : vector<1x96xf32>
    %774 = tpu.matmul %773, %79, %cst_241 {dimension_numbers = #tpu.dot_dimension_numbers<[1], [0], [0], [1], [0, 0, 1, 1], [], []>} : vector<1x32xf32>, vector<32x96xf32>, vector<1x96xf32> -> vector<1x96xf32>
    %775 = vector.extract_strided_slice %774 {offsets = [0, 0], sizes = [1, 64], strides = [1, 1]} : vector<1x96xf32> to vector<1x64xf32>
    %776 = vector.extract_strided_slice %749 {offsets = [0, 0], sizes = [1, 64], strides = [1, 1]} : vector<1x96xf32> to vector<1x64xf32>
    %777 = arith.addf %775, %776 : vector<1x64xf32>
    %778 = arith.addf %777, %81 : vector<1x64xf32>
    %779 = arith.negf %778 : vector<1x64xf32>
    %780 = math.exp %779 : vector<1x64xf32>
    %cst_242 = arith.constant 1.000000e+00 : f32
    %781 = vector.broadcast %cst_242 : f32 to vector<1x64xf32>
    %782 = arith.addf %781, %780 : vector<1x64xf32>
    %783 = arith.divf %781, %782 : vector<1x64xf32>
    %784 = vector.extract_strided_slice %783 {offsets = [0, 0], sizes = [1, 32], strides = [1, 1]} : vector<1x64xf32> to vector<1x32xf32>
    %785 = vector.extract_strided_slice %783 {offsets = [0, 32], sizes = [1, 32], strides = [1, 1]} : vector<1x64xf32> to vector<1x32xf32>
    %786 = vector.extract_strided_slice %774 {offsets = [0, 64], sizes = [1, 32], strides = [1, 1]} : vector<1x96xf32> to vector<1x32xf32>
    %787 = arith.addf %786, %82 : vector<1x32xf32>
    %788 = vector.extract_strided_slice %749 {offsets = [0, 64], sizes = [1, 32], strides = [1, 1]} : vector<1x96xf32> to vector<1x32xf32>
    %789 = arith.addf %788, %83 : vector<1x32xf32>
    %790 = arith.mulf %784, %789 : vector<1x32xf32>
    %791 = arith.addf %787, %790 : vector<1x32xf32>
    %792 = math.tanh %791 : vector<1x32xf32>
    %cst_243 = arith.constant 1.000000e+00 : f32
    %793 = vector.broadcast %cst_243 : f32 to vector<1x32xf32>
    %794 = arith.subf %793, %785 : vector<1x32xf32>
    %795 = arith.mulf %794, %792 : vector<1x32xf32>
    %796 = arith.mulf %785, %731 : vector<1x32xf32>
    %797 = arith.addf %795, %796 : vector<1x32xf32>
    %cst_244 = arith.constant dense<0.000000e+00> : vector<1x256xf32>
    %798 = tpu.matmul %797, %80, %cst_244 {dimension_numbers = #tpu.dot_dimension_numbers<[1], [0], [0], [1], [0, 0, 1, 1], [], []>} : vector<1x32xf32>, vector<32x256xf32>, vector<1x256xf32> -> vector<1x256xf32>
    %799 = vector.extract_strided_slice %798 {offsets = [0, 0], sizes = [1, 64], strides = [1, 1]} : vector<1x256xf32> to vector<1x64xf32>
    %800 = arith.addf %799, %84 : vector<1x64xf32>
    %cst_245 = arith.constant dense<0xFF800000> : vector<1xf32>
    %801 = vector.multi_reduction <maximumf>, %800, %cst_245 [1] : vector<1x64xf32> to vector<1xf32>
    %802 = vector.shape_cast %801 : vector<1xf32> to vector<1x1xf32>
    %803 = vector.broadcast %802 : vector<1x1xf32> to vector<1x64xf32>
    %804 = arith.subf %800, %803 : vector<1x64xf32>
    %805 = math.exp %804 : vector<1x64xf32>
    %cst_246 = arith.constant dense<0.000000e+00> : vector<1xf32>
    %806 = vector.multi_reduction <add>, %805, %cst_246 [1] : vector<1x64xf32> to vector<1xf32>
    %807 = vector.shape_cast %806 : vector<1xf32> to vector<1x1xf32>
    %808 = math.log %807 : vector<1x1xf32>
    %809 = vector.broadcast %808 : vector<1x1xf32> to vector<1x64xf32>
    %810 = arith.subf %804, %809 : vector<1x64xf32>
    %811 = tpu.concatenate %810, %797, %766, %85 in 1 : vector<1x64xf32>, vector<1x32xf32>, vector<1x16xf32>, vector<1x16xf32> -> vector<1x128xf32>
    %812 = arith.index_cast %c10_i32 : i32 to index
    %c0_247 = arith.constant 0 : index
    %813 = vector.load %arg11[%812, %c0_247] : memref<16x128xf32, #tpu.memory_space<vmem>>, vector<1x128xf32>
    tpu.vector_store %arg11[%812, %c0_247], %811 {strides = array<i32>} : memref<16x128xf32, #tpu.memory_space<vmem>>, vector<1x128xf32>,
    %c11_i32 = arith.constant 11 : i32
    %814 = vector.extract_strided_slice %798 {offsets = [0, 64], sizes = [1, 16], strides = [1, 1]} : vector<1x256xf32> to vector<1x16xf32>
    %815 = vector.extract_strided_slice %798 {offsets = [0, 128], sizes = [1, 96], strides = [1, 1]} : vector<1x256xf32> to vector<1x96xf32>
    %816 = arith.index_cast %c11_i32 : i32 to index
    %c0_248 = arith.constant 0 : index
    %817 = vector.load %arg13[%816, %c0_248] : memref<16x16xf32, #tpu.memory_space<vmem>>, vector<1x16xf32>
    %818 = arith.addf %817, %814 : vector<1x16xf32>
    %cst_249 = arith.constant dense<0xFF800000> : vector<1xf32>
    %819 = vector.multi_reduction <maximumf>, %818, %cst_249 [1] : vector<1x16xf32> to vector<1xf32>
    %820 = vector.shape_cast %819 : vector<1xf32> to vector<1x1xf32>
    %821 = vector.broadcast %820 : vector<1x1xf32> to vector<1x16xf32>
    %822 = arith.subf %818, %821 : vector<1x16xf32>
    %823 = math.exp %822 : vector<1x16xf32>
    %cst_250 = arith.constant dense<0.000000e+00> : vector<1xf32>
    %824 = vector.multi_reduction <add>, %823, %cst_250 [1] : vector<1x16xf32> to vector<1xf32>
    %825 = vector.shape_cast %824 : vector<1xf32> to vector<1x1xf32>
    %826 = tpu.reciprocal %825 {approx = true} : vector<1x1xf32> -> vector<1x1xf32>
    %827 = arith.mulf %825, %826 : vector<1x1xf32>
    %cst_251 = arith.constant 2.000000e+00 : f32
    %828 = vector.broadcast %cst_251 : f32 to vector<1x1xf32>
    %829 = arith.subf %828, %827 : vector<1x1xf32>
    %830 = arith.mulf %826, %829 : vector<1x1xf32>
    %831 = vector.broadcast %830 : vector<1x1xf32> to vector<1x16xf32>
    %832 = arith.mulf %823, %831 : vector<1x16xf32>
    %cst_252 = arith.constant dense<0.000000e+00> : vector<1x32xf32>
    %833 = tpu.matmul %832, %77, %cst_252 {dimension_numbers = #tpu.dot_dimension_numbers<[1], [0], [0], [1], [0, 0, 1, 1], [], []>} : vector<1x16xf32>, vector<16x32xf32>, vector<1x32xf32> -> vector<1x32xf32>
    %834 = arith.index_cast %c11_i32 : i32 to index
    %c0_253 = arith.constant 0 : index
    %835 = vector.load %arg14[%834, %c0_253] : memref<16x32xf32, #tpu.memory_space<vmem>>, vector<1x32xf32>
    %cst_254 = arith.constant dense<0.000000e+00> : vector<1x32xf32>
    %836 = tpu.matmul %833, %78, %cst_254 {dimension_numbers = #tpu.dot_dimension_numbers<[1], [0], [0], [1], [0, 0, 1, 1], [], []>} : vector<1x32xf32>, vector<32x32xf32>, vector<1x32xf32> -> vector<1x32xf32>
    %837 = arith.addf %835, %836 : vector<1x32xf32>
    %cst_255 = arith.constant 0.000000e+00 : f32
    %838 = vector.broadcast %cst_255 : f32 to vector<1x32xf32>
    %839 = arith.maximumf %837, %838 : vector<1x32xf32>
    %cst_256 = arith.constant dense<0.000000e+00> : vector<1x96xf32>
    %840 = tpu.matmul %839, %79, %cst_256 {dimension_numbers = #tpu.dot_dimension_numbers<[1], [0], [0], [1], [0, 0, 1, 1], [], []>} : vector<1x32xf32>, vector<32x96xf32>, vector<1x96xf32> -> vector<1x96xf32>
    %841 = vector.extract_strided_slice %840 {offsets = [0, 0], sizes = [1, 64], strides = [1, 1]} : vector<1x96xf32> to vector<1x64xf32>
    %842 = vector.extract_strided_slice %815 {offsets = [0, 0], sizes = [1, 64], strides = [1, 1]} : vector<1x96xf32> to vector<1x64xf32>
    %843 = arith.addf %841, %842 : vector<1x64xf32>
    %844 = arith.addf %843, %81 : vector<1x64xf32>
    %845 = arith.negf %844 : vector<1x64xf32>
    %846 = math.exp %845 : vector<1x64xf32>
    %cst_257 = arith.constant 1.000000e+00 : f32
    %847 = vector.broadcast %cst_257 : f32 to vector<1x64xf32>
    %848 = arith.addf %847, %846 : vector<1x64xf32>
    %849 = arith.divf %847, %848 : vector<1x64xf32>
    %850 = vector.extract_strided_slice %849 {offsets = [0, 0], sizes = [1, 32], strides = [1, 1]} : vector<1x64xf32> to vector<1x32xf32>
    %851 = vector.extract_strided_slice %849 {offsets = [0, 32], sizes = [1, 32], strides = [1, 1]} : vector<1x64xf32> to vector<1x32xf32>
    %852 = vector.extract_strided_slice %840 {offsets = [0, 64], sizes = [1, 32], strides = [1, 1]} : vector<1x96xf32> to vector<1x32xf32>
    %853 = arith.addf %852, %82 : vector<1x32xf32>
    %854 = vector.extract_strided_slice %815 {offsets = [0, 64], sizes = [1, 32], strides = [1, 1]} : vector<1x96xf32> to vector<1x32xf32>
    %855 = arith.addf %854, %83 : vector<1x32xf32>
    %856 = arith.mulf %850, %855 : vector<1x32xf32>
    %857 = arith.addf %853, %856 : vector<1x32xf32>
    %858 = math.tanh %857 : vector<1x32xf32>
    %cst_258 = arith.constant 1.000000e+00 : f32
    %859 = vector.broadcast %cst_258 : f32 to vector<1x32xf32>
    %860 = arith.subf %859, %851 : vector<1x32xf32>
    %861 = arith.mulf %860, %858 : vector<1x32xf32>
    %862 = arith.mulf %851, %797 : vector<1x32xf32>
    %863 = arith.addf %861, %862 : vector<1x32xf32>
    %cst_259 = arith.constant dense<0.000000e+00> : vector<1x256xf32>
    %864 = tpu.matmul %863, %80, %cst_259 {dimension_numbers = #tpu.dot_dimension_numbers<[1], [0], [0], [1], [0, 0, 1, 1], [], []>} : vector<1x32xf32>, vector<32x256xf32>, vector<1x256xf32> -> vector<1x256xf32>
    %865 = vector.extract_strided_slice %864 {offsets = [0, 0], sizes = [1, 64], strides = [1, 1]} : vector<1x256xf32> to vector<1x64xf32>
    %866 = arith.addf %865, %84 : vector<1x64xf32>
    %cst_260 = arith.constant dense<0xFF800000> : vector<1xf32>
    %867 = vector.multi_reduction <maximumf>, %866, %cst_260 [1] : vector<1x64xf32> to vector<1xf32>
    %868 = vector.shape_cast %867 : vector<1xf32> to vector<1x1xf32>
    %869 = vector.broadcast %868 : vector<1x1xf32> to vector<1x64xf32>
    %870 = arith.subf %866, %869 : vector<1x64xf32>
    %871 = math.exp %870 : vector<1x64xf32>
    %cst_261 = arith.constant dense<0.000000e+00> : vector<1xf32>
    %872 = vector.multi_reduction <add>, %871, %cst_261 [1] : vector<1x64xf32> to vector<1xf32>
    %873 = vector.shape_cast %872 : vector<1xf32> to vector<1x1xf32>
    %874 = math.log %873 : vector<1x1xf32>
    %875 = vector.broadcast %874 : vector<1x1xf32> to vector<1x64xf32>
    %876 = arith.subf %870, %875 : vector<1x64xf32>
    %877 = tpu.concatenate %876, %863, %832, %85 in 1 : vector<1x64xf32>, vector<1x32xf32>, vector<1x16xf32>, vector<1x16xf32> -> vector<1x128xf32>
    %878 = arith.index_cast %c11_i32 : i32 to index
    %c0_262 = arith.constant 0 : index
    %879 = vector.load %arg11[%878, %c0_262] : memref<16x128xf32, #tpu.memory_space<vmem>>, vector<1x128xf32>
    tpu.vector_store %arg11[%878, %c0_262], %877 {strides = array<i32>} : memref<16x128xf32, #tpu.memory_space<vmem>>, vector<1x128xf32>,
    %c12_i32 = arith.constant 12 : i32
    %880 = vector.extract_strided_slice %864 {offsets = [0, 64], sizes = [1, 16], strides = [1, 1]} : vector<1x256xf32> to vector<1x16xf32>
    %881 = vector.extract_strided_slice %864 {offsets = [0, 128], sizes = [1, 96], strides = [1, 1]} : vector<1x256xf32> to vector<1x96xf32>
    %882 = arith.index_cast %c12_i32 : i32 to index
    %c0_263 = arith.constant 0 : index
    %883 = vector.load %arg13[%882, %c0_263] : memref<16x16xf32, #tpu.memory_space<vmem>>, vector<1x16xf32>
    %884 = arith.addf %883, %880 : vector<1x16xf32>
    %cst_264 = arith.constant dense<0xFF800000> : vector<1xf32>
    %885 = vector.multi_reduction <maximumf>, %884, %cst_264 [1] : vector<1x16xf32> to vector<1xf32>
    %886 = vector.shape_cast %885 : vector<1xf32> to vector<1x1xf32>
    %887 = vector.broadcast %886 : vector<1x1xf32> to vector<1x16xf32>
    %888 = arith.subf %884, %887 : vector<1x16xf32>
    %889 = math.exp %888 : vector<1x16xf32>
    %cst_265 = arith.constant dense<0.000000e+00> : vector<1xf32>
    %890 = vector.multi_reduction <add>, %889, %cst_265 [1] : vector<1x16xf32> to vector<1xf32>
    %891 = vector.shape_cast %890 : vector<1xf32> to vector<1x1xf32>
    %892 = tpu.reciprocal %891 {approx = true} : vector<1x1xf32> -> vector<1x1xf32>
    %893 = arith.mulf %891, %892 : vector<1x1xf32>
    %cst_266 = arith.constant 2.000000e+00 : f32
    %894 = vector.broadcast %cst_266 : f32 to vector<1x1xf32>
    %895 = arith.subf %894, %893 : vector<1x1xf32>
    %896 = arith.mulf %892, %895 : vector<1x1xf32>
    %897 = vector.broadcast %896 : vector<1x1xf32> to vector<1x16xf32>
    %898 = arith.mulf %889, %897 : vector<1x16xf32>
    %cst_267 = arith.constant dense<0.000000e+00> : vector<1x32xf32>
    %899 = tpu.matmul %898, %77, %cst_267 {dimension_numbers = #tpu.dot_dimension_numbers<[1], [0], [0], [1], [0, 0, 1, 1], [], []>} : vector<1x16xf32>, vector<16x32xf32>, vector<1x32xf32> -> vector<1x32xf32>
    %900 = arith.index_cast %c12_i32 : i32 to index
    %c0_268 = arith.constant 0 : index
    %901 = vector.load %arg14[%900, %c0_268] : memref<16x32xf32, #tpu.memory_space<vmem>>, vector<1x32xf32>
    %cst_269 = arith.constant dense<0.000000e+00> : vector<1x32xf32>
    %902 = tpu.matmul %899, %78, %cst_269 {dimension_numbers = #tpu.dot_dimension_numbers<[1], [0], [0], [1], [0, 0, 1, 1], [], []>} : vector<1x32xf32>, vector<32x32xf32>, vector<1x32xf32> -> vector<1x32xf32>
    %903 = arith.addf %901, %902 : vector<1x32xf32>
    %cst_270 = arith.constant 0.000000e+00 : f32
    %904 = vector.broadcast %cst_270 : f32 to vector<1x32xf32>
    %905 = arith.maximumf %903, %904 : vector<1x32xf32>
    %cst_271 = arith.constant dense<0.000000e+00> : vector<1x96xf32>
    %906 = tpu.matmul %905, %79, %cst_271 {dimension_numbers = #tpu.dot_dimension_numbers<[1], [0], [0], [1], [0, 0, 1, 1], [], []>} : vector<1x32xf32>, vector<32x96xf32>, vector<1x96xf32> -> vector<1x96xf32>
    %907 = vector.extract_strided_slice %906 {offsets = [0, 0], sizes = [1, 64], strides = [1, 1]} : vector<1x96xf32> to vector<1x64xf32>
    %908 = vector.extract_strided_slice %881 {offsets = [0, 0], sizes = [1, 64], strides = [1, 1]} : vector<1x96xf32> to vector<1x64xf32>
    %909 = arith.addf %907, %908 : vector<1x64xf32>
    %910 = arith.addf %909, %81 : vector<1x64xf32>
    %911 = arith.negf %910 : vector<1x64xf32>
    %912 = math.exp %911 : vector<1x64xf32>
    %cst_272 = arith.constant 1.000000e+00 : f32
    %913 = vector.broadcast %cst_272 : f32 to vector<1x64xf32>
    %914 = arith.addf %913, %912 : vector<1x64xf32>
    %915 = arith.divf %913, %914 : vector<1x64xf32>
    %916 = vector.extract_strided_slice %915 {offsets = [0, 0], sizes = [1, 32], strides = [1, 1]} : vector<1x64xf32> to vector<1x32xf32>
    %917 = vector.extract_strided_slice %915 {offsets = [0, 32], sizes = [1, 32], strides = [1, 1]} : vector<1x64xf32> to vector<1x32xf32>
    %918 = vector.extract_strided_slice %906 {offsets = [0, 64], sizes = [1, 32], strides = [1, 1]} : vector<1x96xf32> to vector<1x32xf32>
    %919 = arith.addf %918, %82 : vector<1x32xf32>
    %920 = vector.extract_strided_slice %881 {offsets = [0, 64], sizes = [1, 32], strides = [1, 1]} : vector<1x96xf32> to vector<1x32xf32>
    %921 = arith.addf %920, %83 : vector<1x32xf32>
    %922 = arith.mulf %916, %921 : vector<1x32xf32>
    %923 = arith.addf %919, %922 : vector<1x32xf32>
    %924 = math.tanh %923 : vector<1x32xf32>
    %cst_273 = arith.constant 1.000000e+00 : f32
    %925 = vector.broadcast %cst_273 : f32 to vector<1x32xf32>
    %926 = arith.subf %925, %917 : vector<1x32xf32>
    %927 = arith.mulf %926, %924 : vector<1x32xf32>
    %928 = arith.mulf %917, %863 : vector<1x32xf32>
    %929 = arith.addf %927, %928 : vector<1x32xf32>
    %cst_274 = arith.constant dense<0.000000e+00> : vector<1x256xf32>
    %930 = tpu.matmul %929, %80, %cst_274 {dimension_numbers = #tpu.dot_dimension_numbers<[1], [0], [0], [1], [0, 0, 1, 1], [], []>} : vector<1x32xf32>, vector<32x256xf32>, vector<1x256xf32> -> vector<1x256xf32>
    %931 = vector.extract_strided_slice %930 {offsets = [0, 0], sizes = [1, 64], strides = [1, 1]} : vector<1x256xf32> to vector<1x64xf32>
    %932 = arith.addf %931, %84 : vector<1x64xf32>
    %cst_275 = arith.constant dense<0xFF800000> : vector<1xf32>
    %933 = vector.multi_reduction <maximumf>, %932, %cst_275 [1] : vector<1x64xf32> to vector<1xf32>
    %934 = vector.shape_cast %933 : vector<1xf32> to vector<1x1xf32>
    %935 = vector.broadcast %934 : vector<1x1xf32> to vector<1x64xf32>
    %936 = arith.subf %932, %935 : vector<1x64xf32>
    %937 = math.exp %936 : vector<1x64xf32>
    %cst_276 = arith.constant dense<0.000000e+00> : vector<1xf32>
    %938 = vector.multi_reduction <add>, %937, %cst_276 [1] : vector<1x64xf32> to vector<1xf32>
    %939 = vector.shape_cast %938 : vector<1xf32> to vector<1x1xf32>
    %940 = math.log %939 : vector<1x1xf32>
    %941 = vector.broadcast %940 : vector<1x1xf32> to vector<1x64xf32>
    %942 = arith.subf %936, %941 : vector<1x64xf32>
    %943 = tpu.concatenate %942, %929, %898, %85 in 1 : vector<1x64xf32>, vector<1x32xf32>, vector<1x16xf32>, vector<1x16xf32> -> vector<1x128xf32>
    %944 = arith.index_cast %c12_i32 : i32 to index
    %c0_277 = arith.constant 0 : index
    %945 = vector.load %arg11[%944, %c0_277] : memref<16x128xf32, #tpu.memory_space<vmem>>, vector<1x128xf32>
    tpu.vector_store %arg11[%944, %c0_277], %943 {strides = array<i32>} : memref<16x128xf32, #tpu.memory_space<vmem>>, vector<1x128xf32>,
    %c13_i32 = arith.constant 13 : i32
    %946 = vector.extract_strided_slice %930 {offsets = [0, 64], sizes = [1, 16], strides = [1, 1]} : vector<1x256xf32> to vector<1x16xf32>
    %947 = vector.extract_strided_slice %930 {offsets = [0, 128], sizes = [1, 96], strides = [1, 1]} : vector<1x256xf32> to vector<1x96xf32>
    %948 = arith.index_cast %c13_i32 : i32 to index
    %c0_278 = arith.constant 0 : index
    %949 = vector.load %arg13[%948, %c0_278] : memref<16x16xf32, #tpu.memory_space<vmem>>, vector<1x16xf32>
    %950 = arith.addf %949, %946 : vector<1x16xf32>
    %cst_279 = arith.constant dense<0xFF800000> : vector<1xf32>
    %951 = vector.multi_reduction <maximumf>, %950, %cst_279 [1] : vector<1x16xf32> to vector<1xf32>
    %952 = vector.shape_cast %951 : vector<1xf32> to vector<1x1xf32>
    %953 = vector.broadcast %952 : vector<1x1xf32> to vector<1x16xf32>
    %954 = arith.subf %950, %953 : vector<1x16xf32>
    %955 = math.exp %954 : vector<1x16xf32>
    %cst_280 = arith.constant dense<0.000000e+00> : vector<1xf32>
    %956 = vector.multi_reduction <add>, %955, %cst_280 [1] : vector<1x16xf32> to vector<1xf32>
    %957 = vector.shape_cast %956 : vector<1xf32> to vector<1x1xf32>
    %958 = tpu.reciprocal %957 {approx = true} : vector<1x1xf32> -> vector<1x1xf32>
    %959 = arith.mulf %957, %958 : vector<1x1xf32>
    %cst_281 = arith.constant 2.000000e+00 : f32
    %960 = vector.broadcast %cst_281 : f32 to vector<1x1xf32>
    %961 = arith.subf %960, %959 : vector<1x1xf32>
    %962 = arith.mulf %958, %961 : vector<1x1xf32>
    %963 = vector.broadcast %962 : vector<1x1xf32> to vector<1x16xf32>
    %964 = arith.mulf %955, %963 : vector<1x16xf32>
    %cst_282 = arith.constant dense<0.000000e+00> : vector<1x32xf32>
    %965 = tpu.matmul %964, %77, %cst_282 {dimension_numbers = #tpu.dot_dimension_numbers<[1], [0], [0], [1], [0, 0, 1, 1], [], []>} : vector<1x16xf32>, vector<16x32xf32>, vector<1x32xf32> -> vector<1x32xf32>
    %966 = arith.index_cast %c13_i32 : i32 to index
    %c0_283 = arith.constant 0 : index
    %967 = vector.load %arg14[%966, %c0_283] : memref<16x32xf32, #tpu.memory_space<vmem>>, vector<1x32xf32>
    %cst_284 = arith.constant dense<0.000000e+00> : vector<1x32xf32>
    %968 = tpu.matmul %965, %78, %cst_284 {dimension_numbers = #tpu.dot_dimension_numbers<[1], [0], [0], [1], [0, 0, 1, 1], [], []>} : vector<1x32xf32>, vector<32x32xf32>, vector<1x32xf32> -> vector<1x32xf32>
    %969 = arith.addf %967, %968 : vector<1x32xf32>
    %cst_285 = arith.constant 0.000000e+00 : f32
    %970 = vector.broadcast %cst_285 : f32 to vector<1x32xf32>
    %971 = arith.maximumf %969, %970 : vector<1x32xf32>
    %cst_286 = arith.constant dense<0.000000e+00> : vector<1x96xf32>
    %972 = tpu.matmul %971, %79, %cst_286 {dimension_numbers = #tpu.dot_dimension_numbers<[1], [0], [0], [1], [0, 0, 1, 1], [], []>} : vector<1x32xf32>, vector<32x96xf32>, vector<1x96xf32> -> vector<1x96xf32>
    %973 = vector.extract_strided_slice %972 {offsets = [0, 0], sizes = [1, 64], strides = [1, 1]} : vector<1x96xf32> to vector<1x64xf32>
    %974 = vector.extract_strided_slice %947 {offsets = [0, 0], sizes = [1, 64], strides = [1, 1]} : vector<1x96xf32> to vector<1x64xf32>
    %975 = arith.addf %973, %974 : vector<1x64xf32>
    %976 = arith.addf %975, %81 : vector<1x64xf32>
    %977 = arith.negf %976 : vector<1x64xf32>
    %978 = math.exp %977 : vector<1x64xf32>
    %cst_287 = arith.constant 1.000000e+00 : f32
    %979 = vector.broadcast %cst_287 : f32 to vector<1x64xf32>
    %980 = arith.addf %979, %978 : vector<1x64xf32>
    %981 = arith.divf %979, %980 : vector<1x64xf32>
    %982 = vector.extract_strided_slice %981 {offsets = [0, 0], sizes = [1, 32], strides = [1, 1]} : vector<1x64xf32> to vector<1x32xf32>
    %983 = vector.extract_strided_slice %981 {offsets = [0, 32], sizes = [1, 32], strides = [1, 1]} : vector<1x64xf32> to vector<1x32xf32>
    %984 = vector.extract_strided_slice %972 {offsets = [0, 64], sizes = [1, 32], strides = [1, 1]} : vector<1x96xf32> to vector<1x32xf32>
    %985 = arith.addf %984, %82 : vector<1x32xf32>
    %986 = vector.extract_strided_slice %947 {offsets = [0, 64], sizes = [1, 32], strides = [1, 1]} : vector<1x96xf32> to vector<1x32xf32>
    %987 = arith.addf %986, %83 : vector<1x32xf32>
    %988 = arith.mulf %982, %987 : vector<1x32xf32>
    %989 = arith.addf %985, %988 : vector<1x32xf32>
    %990 = math.tanh %989 : vector<1x32xf32>
    %cst_288 = arith.constant 1.000000e+00 : f32
    %991 = vector.broadcast %cst_288 : f32 to vector<1x32xf32>
    %992 = arith.subf %991, %983 : vector<1x32xf32>
    %993 = arith.mulf %992, %990 : vector<1x32xf32>
    %994 = arith.mulf %983, %929 : vector<1x32xf32>
    %995 = arith.addf %993, %994 : vector<1x32xf32>
    %cst_289 = arith.constant dense<0.000000e+00> : vector<1x256xf32>
    %996 = tpu.matmul %995, %80, %cst_289 {dimension_numbers = #tpu.dot_dimension_numbers<[1], [0], [0], [1], [0, 0, 1, 1], [], []>} : vector<1x32xf32>, vector<32x256xf32>, vector<1x256xf32> -> vector<1x256xf32>
    %997 = vector.extract_strided_slice %996 {offsets = [0, 0], sizes = [1, 64], strides = [1, 1]} : vector<1x256xf32> to vector<1x64xf32>
    %998 = arith.addf %997, %84 : vector<1x64xf32>
    %cst_290 = arith.constant dense<0xFF800000> : vector<1xf32>
    %999 = vector.multi_reduction <maximumf>, %998, %cst_290 [1] : vector<1x64xf32> to vector<1xf32>
    %1000 = vector.shape_cast %999 : vector<1xf32> to vector<1x1xf32>
    %1001 = vector.broadcast %1000 : vector<1x1xf32> to vector<1x64xf32>
    %1002 = arith.subf %998, %1001 : vector<1x64xf32>
    %1003 = math.exp %1002 : vector<1x64xf32>
    %cst_291 = arith.constant dense<0.000000e+00> : vector<1xf32>
    %1004 = vector.multi_reduction <add>, %1003, %cst_291 [1] : vector<1x64xf32> to vector<1xf32>
    %1005 = vector.shape_cast %1004 : vector<1xf32> to vector<1x1xf32>
    %1006 = math.log %1005 : vector<1x1xf32>
    %1007 = vector.broadcast %1006 : vector<1x1xf32> to vector<1x64xf32>
    %1008 = arith.subf %1002, %1007 : vector<1x64xf32>
    %1009 = tpu.concatenate %1008, %995, %964, %85 in 1 : vector<1x64xf32>, vector<1x32xf32>, vector<1x16xf32>, vector<1x16xf32> -> vector<1x128xf32>
    %1010 = arith.index_cast %c13_i32 : i32 to index
    %c0_292 = arith.constant 0 : index
    %1011 = vector.load %arg11[%1010, %c0_292] : memref<16x128xf32, #tpu.memory_space<vmem>>, vector<1x128xf32>
    tpu.vector_store %arg11[%1010, %c0_292], %1009 {strides = array<i32>} : memref<16x128xf32, #tpu.memory_space<vmem>>, vector<1x128xf32>,
    %c14_i32 = arith.constant 14 : i32
    %1012 = vector.extract_strided_slice %996 {offsets = [0, 64], sizes = [1, 16], strides = [1, 1]} : vector<1x256xf32> to vector<1x16xf32>
    %1013 = vector.extract_strided_slice %996 {offsets = [0, 128], sizes = [1, 96], strides = [1, 1]} : vector<1x256xf32> to vector<1x96xf32>
    %1014 = arith.index_cast %c14_i32 : i32 to index
    %c0_293 = arith.constant 0 : index
    %1015 = vector.load %arg13[%1014, %c0_293] : memref<16x16xf32, #tpu.memory_space<vmem>>, vector<1x16xf32>
    %1016 = arith.addf %1015, %1012 : vector<1x16xf32>
    %cst_294 = arith.constant dense<0xFF800000> : vector<1xf32>
    %1017 = vector.multi_reduction <maximumf>, %1016, %cst_294 [1] : vector<1x16xf32> to vector<1xf32>
    %1018 = vector.shape_cast %1017 : vector<1xf32> to vector<1x1xf32>
    %1019 = vector.broadcast %1018 : vector<1x1xf32> to vector<1x16xf32>
    %1020 = arith.subf %1016, %1019 : vector<1x16xf32>
    %1021 = math.exp %1020 : vector<1x16xf32>
    %cst_295 = arith.constant dense<0.000000e+00> : vector<1xf32>
    %1022 = vector.multi_reduction <add>, %1021, %cst_295 [1] : vector<1x16xf32> to vector<1xf32>
    %1023 = vector.shape_cast %1022 : vector<1xf32> to vector<1x1xf32>
    %1024 = tpu.reciprocal %1023 {approx = true} : vector<1x1xf32> -> vector<1x1xf32>
    %1025 = arith.mulf %1023, %1024 : vector<1x1xf32>
    %cst_296 = arith.constant 2.000000e+00 : f32
    %1026 = vector.broadcast %cst_296 : f32 to vector<1x1xf32>
    %1027 = arith.subf %1026, %1025 : vector<1x1xf32>
    %1028 = arith.mulf %1024, %1027 : vector<1x1xf32>
    %1029 = vector.broadcast %1028 : vector<1x1xf32> to vector<1x16xf32>
    %1030 = arith.mulf %1021, %1029 : vector<1x16xf32>
    %cst_297 = arith.constant dense<0.000000e+00> : vector<1x32xf32>
    %1031 = tpu.matmul %1030, %77, %cst_297 {dimension_numbers = #tpu.dot_dimension_numbers<[1], [0], [0], [1], [0, 0, 1, 1], [], []>} : vector<1x16xf32>, vector<16x32xf32>, vector<1x32xf32> -> vector<1x32xf32>
    %1032 = arith.index_cast %c14_i32 : i32 to index
    %c0_298 = arith.constant 0 : index
    %1033 = vector.load %arg14[%1032, %c0_298] : memref<16x32xf32, #tpu.memory_space<vmem>>, vector<1x32xf32>
    %cst_299 = arith.constant dense<0.000000e+00> : vector<1x32xf32>
    %1034 = tpu.matmul %1031, %78, %cst_299 {dimension_numbers = #tpu.dot_dimension_numbers<[1], [0], [0], [1], [0, 0, 1, 1], [], []>} : vector<1x32xf32>, vector<32x32xf32>, vector<1x32xf32> -> vector<1x32xf32>
    %1035 = arith.addf %1033, %1034 : vector<1x32xf32>
    %cst_300 = arith.constant 0.000000e+00 : f32
    %1036 = vector.broadcast %cst_300 : f32 to vector<1x32xf32>
    %1037 = arith.maximumf %1035, %1036 : vector<1x32xf32>
    %cst_301 = arith.constant dense<0.000000e+00> : vector<1x96xf32>
    %1038 = tpu.matmul %1037, %79, %cst_301 {dimension_numbers = #tpu.dot_dimension_numbers<[1], [0], [0], [1], [0, 0, 1, 1], [], []>} : vector<1x32xf32>, vector<32x96xf32>, vector<1x96xf32> -> vector<1x96xf32>
    %1039 = vector.extract_strided_slice %1038 {offsets = [0, 0], sizes = [1, 64], strides = [1, 1]} : vector<1x96xf32> to vector<1x64xf32>
    %1040 = vector.extract_strided_slice %1013 {offsets = [0, 0], sizes = [1, 64], strides = [1, 1]} : vector<1x96xf32> to vector<1x64xf32>
    %1041 = arith.addf %1039, %1040 : vector<1x64xf32>
    %1042 = arith.addf %1041, %81 : vector<1x64xf32>
    %1043 = arith.negf %1042 : vector<1x64xf32>
    %1044 = math.exp %1043 : vector<1x64xf32>
    %cst_302 = arith.constant 1.000000e+00 : f32
    %1045 = vector.broadcast %cst_302 : f32 to vector<1x64xf32>
    %1046 = arith.addf %1045, %1044 : vector<1x64xf32>
    %1047 = arith.divf %1045, %1046 : vector<1x64xf32>
    %1048 = vector.extract_strided_slice %1047 {offsets = [0, 0], sizes = [1, 32], strides = [1, 1]} : vector<1x64xf32> to vector<1x32xf32>
    %1049 = vector.extract_strided_slice %1047 {offsets = [0, 32], sizes = [1, 32], strides = [1, 1]} : vector<1x64xf32> to vector<1x32xf32>
    %1050 = vector.extract_strided_slice %1038 {offsets = [0, 64], sizes = [1, 32], strides = [1, 1]} : vector<1x96xf32> to vector<1x32xf32>
    %1051 = arith.addf %1050, %82 : vector<1x32xf32>
    %1052 = vector.extract_strided_slice %1013 {offsets = [0, 64], sizes = [1, 32], strides = [1, 1]} : vector<1x96xf32> to vector<1x32xf32>
    %1053 = arith.addf %1052, %83 : vector<1x32xf32>
    %1054 = arith.mulf %1048, %1053 : vector<1x32xf32>
    %1055 = arith.addf %1051, %1054 : vector<1x32xf32>
    %1056 = math.tanh %1055 : vector<1x32xf32>
    %cst_303 = arith.constant 1.000000e+00 : f32
    %1057 = vector.broadcast %cst_303 : f32 to vector<1x32xf32>
    %1058 = arith.subf %1057, %1049 : vector<1x32xf32>
    %1059 = arith.mulf %1058, %1056 : vector<1x32xf32>
    %1060 = arith.mulf %1049, %995 : vector<1x32xf32>
    %1061 = arith.addf %1059, %1060 : vector<1x32xf32>
    %cst_304 = arith.constant dense<0.000000e+00> : vector<1x256xf32>
    %1062 = tpu.matmul %1061, %80, %cst_304 {dimension_numbers = #tpu.dot_dimension_numbers<[1], [0], [0], [1], [0, 0, 1, 1], [], []>} : vector<1x32xf32>, vector<32x256xf32>, vector<1x256xf32> -> vector<1x256xf32>
    %1063 = vector.extract_strided_slice %1062 {offsets = [0, 0], sizes = [1, 64], strides = [1, 1]} : vector<1x256xf32> to vector<1x64xf32>
    %1064 = arith.addf %1063, %84 : vector<1x64xf32>
    %cst_305 = arith.constant dense<0xFF800000> : vector<1xf32>
    %1065 = vector.multi_reduction <maximumf>, %1064, %cst_305 [1] : vector<1x64xf32> to vector<1xf32>
    %1066 = vector.shape_cast %1065 : vector<1xf32> to vector<1x1xf32>
    %1067 = vector.broadcast %1066 : vector<1x1xf32> to vector<1x64xf32>
    %1068 = arith.subf %1064, %1067 : vector<1x64xf32>
    %1069 = math.exp %1068 : vector<1x64xf32>
    %cst_306 = arith.constant dense<0.000000e+00> : vector<1xf32>
    %1070 = vector.multi_reduction <add>, %1069, %cst_306 [1] : vector<1x64xf32> to vector<1xf32>
    %1071 = vector.shape_cast %1070 : vector<1xf32> to vector<1x1xf32>
    %1072 = math.log %1071 : vector<1x1xf32>
    %1073 = vector.broadcast %1072 : vector<1x1xf32> to vector<1x64xf32>
    %1074 = arith.subf %1068, %1073 : vector<1x64xf32>
    %1075 = tpu.concatenate %1074, %1061, %1030, %85 in 1 : vector<1x64xf32>, vector<1x32xf32>, vector<1x16xf32>, vector<1x16xf32> -> vector<1x128xf32>
    %1076 = arith.index_cast %c14_i32 : i32 to index
    %c0_307 = arith.constant 0 : index
    %1077 = vector.load %arg11[%1076, %c0_307] : memref<16x128xf32, #tpu.memory_space<vmem>>, vector<1x128xf32>
    tpu.vector_store %arg11[%1076, %c0_307], %1075 {strides = array<i32>} : memref<16x128xf32, #tpu.memory_space<vmem>>, vector<1x128xf32>,
    %c15_i32 = arith.constant 15 : i32
    %1078 = vector.extract_strided_slice %1062 {offsets = [0, 64], sizes = [1, 16], strides = [1, 1]} : vector<1x256xf32> to vector<1x16xf32>
    %1079 = vector.extract_strided_slice %1062 {offsets = [0, 128], sizes = [1, 96], strides = [1, 1]} : vector<1x256xf32> to vector<1x96xf32>
    %1080 = arith.index_cast %c15_i32 : i32 to index
    %c0_308 = arith.constant 0 : index
    %1081 = vector.load %arg13[%1080, %c0_308] : memref<16x16xf32, #tpu.memory_space<vmem>>, vector<1x16xf32>
    %1082 = arith.addf %1081, %1078 : vector<1x16xf32>
    %cst_309 = arith.constant dense<0xFF800000> : vector<1xf32>
    %1083 = vector.multi_reduction <maximumf>, %1082, %cst_309 [1] : vector<1x16xf32> to vector<1xf32>
    %1084 = vector.shape_cast %1083 : vector<1xf32> to vector<1x1xf32>
    %1085 = vector.broadcast %1084 : vector<1x1xf32> to vector<1x16xf32>
    %1086 = arith.subf %1082, %1085 : vector<1x16xf32>
    %1087 = math.exp %1086 : vector<1x16xf32>
    %cst_310 = arith.constant dense<0.000000e+00> : vector<1xf32>
    %1088 = vector.multi_reduction <add>, %1087, %cst_310 [1] : vector<1x16xf32> to vector<1xf32>
    %1089 = vector.shape_cast %1088 : vector<1xf32> to vector<1x1xf32>
    %1090 = tpu.reciprocal %1089 {approx = true} : vector<1x1xf32> -> vector<1x1xf32>
    %1091 = arith.mulf %1089, %1090 : vector<1x1xf32>
    %cst_311 = arith.constant 2.000000e+00 : f32
    %1092 = vector.broadcast %cst_311 : f32 to vector<1x1xf32>
    %1093 = arith.subf %1092, %1091 : vector<1x1xf32>
    %1094 = arith.mulf %1090, %1093 : vector<1x1xf32>
    %1095 = vector.broadcast %1094 : vector<1x1xf32> to vector<1x16xf32>
    %1096 = arith.mulf %1087, %1095 : vector<1x16xf32>
    %cst_312 = arith.constant dense<0.000000e+00> : vector<1x32xf32>
    %1097 = tpu.matmul %1096, %77, %cst_312 {dimension_numbers = #tpu.dot_dimension_numbers<[1], [0], [0], [1], [0, 0, 1, 1], [], []>} : vector<1x16xf32>, vector<16x32xf32>, vector<1x32xf32> -> vector<1x32xf32>
    %1098 = arith.index_cast %c15_i32 : i32 to index
    %c0_313 = arith.constant 0 : index
    %1099 = vector.load %arg14[%1098, %c0_313] : memref<16x32xf32, #tpu.memory_space<vmem>>, vector<1x32xf32>
    %cst_314 = arith.constant dense<0.000000e+00> : vector<1x32xf32>
    %1100 = tpu.matmul %1097, %78, %cst_314 {dimension_numbers = #tpu.dot_dimension_numbers<[1], [0], [0], [1], [0, 0, 1, 1], [], []>} : vector<1x32xf32>, vector<32x32xf32>, vector<1x32xf32> -> vector<1x32xf32>
    %1101 = arith.addf %1099, %1100 : vector<1x32xf32>
    %cst_315 = arith.constant 0.000000e+00 : f32
    %1102 = vector.broadcast %cst_315 : f32 to vector<1x32xf32>
    %1103 = arith.maximumf %1101, %1102 : vector<1x32xf32>
    %cst_316 = arith.constant dense<0.000000e+00> : vector<1x96xf32>
    %1104 = tpu.matmul %1103, %79, %cst_316 {dimension_numbers = #tpu.dot_dimension_numbers<[1], [0], [0], [1], [0, 0, 1, 1], [], []>} : vector<1x32xf32>, vector<32x96xf32>, vector<1x96xf32> -> vector<1x96xf32>
    %1105 = vector.extract_strided_slice %1104 {offsets = [0, 0], sizes = [1, 64], strides = [1, 1]} : vector<1x96xf32> to vector<1x64xf32>
    %1106 = vector.extract_strided_slice %1079 {offsets = [0, 0], sizes = [1, 64], strides = [1, 1]} : vector<1x96xf32> to vector<1x64xf32>
    %1107 = arith.addf %1105, %1106 : vector<1x64xf32>
    %1108 = arith.addf %1107, %81 : vector<1x64xf32>
    %1109 = arith.negf %1108 : vector<1x64xf32>
    %1110 = math.exp %1109 : vector<1x64xf32>
    %cst_317 = arith.constant 1.000000e+00 : f32
    %1111 = vector.broadcast %cst_317 : f32 to vector<1x64xf32>
    %1112 = arith.addf %1111, %1110 : vector<1x64xf32>
    %1113 = arith.divf %1111, %1112 : vector<1x64xf32>
    %1114 = vector.extract_strided_slice %1113 {offsets = [0, 0], sizes = [1, 32], strides = [1, 1]} : vector<1x64xf32> to vector<1x32xf32>
    %1115 = vector.extract_strided_slice %1113 {offsets = [0, 32], sizes = [1, 32], strides = [1, 1]} : vector<1x64xf32> to vector<1x32xf32>
    %1116 = vector.extract_strided_slice %1104 {offsets = [0, 64], sizes = [1, 32], strides = [1, 1]} : vector<1x96xf32> to vector<1x32xf32>
    %1117 = arith.addf %1116, %82 : vector<1x32xf32>
    %1118 = vector.extract_strided_slice %1079 {offsets = [0, 64], sizes = [1, 32], strides = [1, 1]} : vector<1x96xf32> to vector<1x32xf32>
    %1119 = arith.addf %1118, %83 : vector<1x32xf32>
    %1120 = arith.mulf %1114, %1119 : vector<1x32xf32>
    %1121 = arith.addf %1117, %1120 : vector<1x32xf32>
    %1122 = math.tanh %1121 : vector<1x32xf32>
    %cst_318 = arith.constant 1.000000e+00 : f32
    %1123 = vector.broadcast %cst_318 : f32 to vector<1x32xf32>
    %1124 = arith.subf %1123, %1115 : vector<1x32xf32>
    %1125 = arith.mulf %1124, %1122 : vector<1x32xf32>
    %1126 = arith.mulf %1115, %1061 : vector<1x32xf32>
    %1127 = arith.addf %1125, %1126 : vector<1x32xf32>
    %cst_319 = arith.constant dense<0.000000e+00> : vector<1x256xf32>
    %1128 = tpu.matmul %1127, %80, %cst_319 {dimension_numbers = #tpu.dot_dimension_numbers<[1], [0], [0], [1], [0, 0, 1, 1], [], []>} : vector<1x32xf32>, vector<32x256xf32>, vector<1x256xf32> -> vector<1x256xf32>
    %1129 = vector.extract_strided_slice %1128 {offsets = [0, 0], sizes = [1, 64], strides = [1, 1]} : vector<1x256xf32> to vector<1x64xf32>
    %1130 = arith.addf %1129, %84 : vector<1x64xf32>
    %cst_320 = arith.constant dense<0xFF800000> : vector<1xf32>
    %1131 = vector.multi_reduction <maximumf>, %1130, %cst_320 [1] : vector<1x64xf32> to vector<1xf32>
    %1132 = vector.shape_cast %1131 : vector<1xf32> to vector<1x1xf32>
    %1133 = vector.broadcast %1132 : vector<1x1xf32> to vector<1x64xf32>
    %1134 = arith.subf %1130, %1133 : vector<1x64xf32>
    %1135 = math.exp %1134 : vector<1x64xf32>
    %cst_321 = arith.constant dense<0.000000e+00> : vector<1xf32>
    %1136 = vector.multi_reduction <add>, %1135, %cst_321 [1] : vector<1x64xf32> to vector<1xf32>
    %1137 = vector.shape_cast %1136 : vector<1xf32> to vector<1x1xf32>
    %1138 = math.log %1137 : vector<1x1xf32>
    %1139 = vector.broadcast %1138 : vector<1x1xf32> to vector<1x64xf32>
    %1140 = arith.subf %1134, %1139 : vector<1x64xf32>
    %1141 = tpu.concatenate %1140, %1127, %1096, %85 in 1 : vector<1x64xf32>, vector<1x32xf32>, vector<1x16xf32>, vector<1x16xf32> -> vector<1x128xf32>
    %1142 = arith.index_cast %c15_i32 : i32 to index
    %c0_322 = arith.constant 0 : index
    %1143 = vector.load %arg11[%1142, %c0_322] : memref<16x128xf32, #tpu.memory_space<vmem>>, vector<1x128xf32>
    tpu.vector_store %arg11[%1142, %c0_322], %1141 {strides = array<i32>} : memref<16x128xf32, #tpu.memory_space<vmem>>, vector<1x128xf32>,
    %c16_i32 = arith.constant 16 : i32
    return
  }
  func.func @transform_0(%arg0: i32, %arg1: memref<16xi32, #tpu.memory_space<smem>>) -> (i32, i32) {
    %c0_i32 = arith.constant 0 : i32
    %c0_i32_0 = arith.constant 0 : i32
    %c0_i32_1 = arith.constant 0 : i32
    return %c0_i32, %c0_i32_0 : i32, i32
  }
  func.func @transform_1(%arg0: i32, %arg1: memref<16xi32, #tpu.memory_space<smem>>) -> (i32, i32) {
    %c0_i32 = arith.constant 0 : i32
    %c0_i32_0 = arith.constant 0 : i32
    %c0_i32_1 = arith.constant 0 : i32
    return %c0_i32, %c0_i32_0 : i32, i32
  }
  func.func @transform_2(%arg0: i32, %arg1: memref<16xi32, #tpu.memory_space<smem>>) -> (i32, i32) {
    %c0_i32 = arith.constant 0 : i32
    %c0_i32_0 = arith.constant 0 : i32
    %c0_i32_1 = arith.constant 0 : i32
    return %c0_i32, %c0_i32_0 : i32, i32
  }
  func.func @transform_3(%arg0: i32, %arg1: memref<16xi32, #tpu.memory_space<smem>>) -> (i32, i32) {
    %c0_i32 = arith.constant 0 : i32
    %c0_i32_0 = arith.constant 0 : i32
    %c0_i32_1 = arith.constant 0 : i32
    return %c0_i32, %c0_i32_0 : i32, i32
  }
  func.func @transform_4(%arg0: i32, %arg1: memref<16xi32, #tpu.memory_space<smem>>) -> (i32, i32) {
    %c0_i32 = arith.constant 0 : i32
    %c0_i32_0 = arith.constant 0 : i32
    %c0_i32_1 = arith.constant 0 : i32
    return %c0_i32, %c0_i32_0 : i32, i32
  }
  func.func @transform_5(%arg0: i32, %arg1: memref<16xi32, #tpu.memory_space<smem>>) -> (i32, i32) {
    %c0_i32 = arith.constant 0 : i32
    %c0_i32_0 = arith.constant 0 : i32
    %c0_i32_1 = arith.constant 0 : i32
    return %c0_i32, %c0_i32_0 : i32, i32
  }
  func.func @transform_6(%arg0: i32, %arg1: memref<16xi32, #tpu.memory_space<smem>>) -> (i32, i32) {
    %c0_i32 = arith.constant 0 : i32
    %c0_i32_0 = arith.constant 0 : i32
    %c0_i32_1 = arith.constant 0 : i32
    return %c0_i32, %c0_i32_0 : i32, i32
  }
  func.func @transform_7(%arg0: i32, %arg1: memref<16xi32, #tpu.memory_space<smem>>) -> (i32, i32) {
    %c0_i32 = arith.constant 0 : i32
    %c0_i32_0 = arith.constant 0 : i32
    %c0_i32_1 = arith.constant 0 : i32
    return %c0_i32, %c0_i32_0 : i32, i32
  }
  func.func @transform_8(%arg0: i32, %arg1: memref<16xi32, #tpu.memory_space<smem>>) -> (i32, i32) {
    %c0_i32 = arith.constant 0 : i32
    %c0_i32_0 = arith.constant 0 : i32
    %c0_i32_1 = arith.constant 0 : i32
    return %c0_i32, %c0_i32_0 : i32, i32
  }
  func.func @transform_9(%arg0: i32, %arg1: memref<16xi32, #tpu.memory_space<smem>>) -> (i32, i32) {
    %c0_i32 = arith.constant 0 : i32
    %c0_i32_0 = arith.constant 0 : i32
    %c0_i32_1 = arith.constant 0 : i32
    return %c0_i32, %c0_i32_0 : i32, i32
  }
}

</mosaic_0001>

<llo_original>
// kernel: tpu_custom_call.1
$region0: #{tpu_custom_call.1}
  #allocation0 [shape = 'u32[]', space=smem, size = 0x4, offset = 0x4, fixed_abs, tag = 'smem constant byte address 0x4 - core index']
  #allocation1 [shape = 'u32[144,128]{1,0:T(1,128)}', space=vmem, size = 0x12000, scoped, tag = 'internal scratch']
  #allocation2 [shape = 'f32[16,32]{1,0:T(8,128)}', space=vmem, size = 0x2000, scoped, tag = 'scratch operand']
  #allocation3 [shape = 'f32[16,16]{1,0:T(8,128)}', space=vmem, size = 0x2000, scoped, tag = 'scratch operand']
  #allocation4 [shape = 'f32[16,32]{1,0:T(8,128)}', space=vmem, size = 0x2000, scoped, tag = 'scratch operand']
  #allocation5 [shape = 's32[1]{0}', space=sflag, size = 0x4, scoped, tag = 'scoped memory for tpu_custom_call.1']
  #allocation6 [shape = 'u8[512]{0}', space=smem, size = 0x200, scoped, tag = 'prefetched SMEM operand 0']
  %s0 = inlined_call_operand.vmem [shape: s32[16], index: 0, kind: input, shape index: {}]
  %s1 = inlined_call_operand.vmem [shape: f32[1,32], index: 1, kind: input, shape index: {}]
  %s2 = inlined_call_operand.hbm [shape: f32[16,32], index: 2, kind: input, shape index: {}]
  %s3 = inlined_call_operand.vmem [shape: f32[64,32], index: 3, kind: input, shape index: {}]
  %s4 = inlined_call_operand.vmem [shape: f32[32,16], index: 4, kind: input, shape index: {}]
  %s5 = inlined_call_operand.vmem [shape: f32[32,32], index: 5, kind: input, shape index: {}]
  %s6 = inlined_call_operand.vmem [shape: f32[32,32], index: 6, kind: input, shape index: {}]
  %s7 = inlined_call_operand.hbm [shape: f32[32,96], index: 7, kind: input, shape index: {}]
  %s8 = inlined_call_operand.vmem [shape: f32[32,256], index: 8, kind: input, shape index: {}]
  %s9 = inlined_call_operand.vmem [shape: f32[8,128], index: 9, kind: input, shape index: {}]
  %s10 = inlined_call_operand.hbm [shape: f32[16,128], index: 10, kind: output, shape index: {}]
  %s11 = sld [smem:[#allocation0]]
  $region54: #{tpu_custom_call.1} parent=0
    _
  %s13 = ssub.s32 1, %s11
  %s14 = scalar_select 0, %s13, %s11
  %s15 = sshll.u32 %s0, 4
  %s16 = int_to_ptr.vmem [resolvable:$true] %s15
  %18 = dma.vmem_to_smem %s16, 16, [#allocation6], [#allocation5]
  %19 = dma.done [#allocation5], 16
  %20 = sfence
  $region1: #{tpu_custom_call.1} parent=0
    #allocation7 [shape = 'u8[8192]{0}', space=vmem, size = 0x2000, scoped, tag = 'input window, operand 2, single buffered']
    #allocation8 [shape = 's32[1]{0}', space=sflag, size = 0x4, scoped, tag = 'scoped memory for tpu_custom_call.1']
    #allocation9 [shape = 's32[1]{0}', space=sflag, size = 0x4, scoped, tag = 'scoped memory for tpu_custom_call.1']
    #allocation10 [shape = 'u8[16384]{0}', space=vmem, size = 0x4000, scoped, tag = 'input window, operand 7, single buffered']
    #allocation11 [shape = 's32[1]{0}', space=sflag, size = 0x4, scoped, tag = 'scoped memory for tpu_custom_call.1']
    #allocation12 [shape = 'u8[8192]{0}', space=vmem, size = 0x2000, scoped, tag = 'output window, operand 0, single buffered']
    %21 = vsyncpa [#allocation8], 0
    %22 = vsyncpa [#allocation11], 0
    %23 = vsyncpa [#allocation9], 0
    // Predicated region
    $region2: #{tpu_custom_call.1} parent=1 // pred_check
      _
    $region3: #{tpu_custom_call.1} parent=1 // pred_check_branch
      %25 = sbr.rel (0) target = $region5
    $region4: #{tpu_custom_call.1} parent=1 // pred_region
      _
    $region5: #{tpu_custom_call.1} parent=1 // pred_fallthru
      _
    // Predicated region
    $region6: #{tpu_custom_call.1} parent=1 // pred_check
      _
    $region7: #{tpu_custom_call.1} parent=1 // pred_check_branch
      %27 = sbr.rel (0) target = $region9
    $region8: #{tpu_custom_call.1} parent=1 // pred_region
      %s29 = ssub.s32 256, 256
      %30 = vsyncadd [#allocation8], %s29
      %s31 = sshll.u32 [#allocation7], 4
      %s32 = int_to_ptr.vmem [resolvable:$true] %s31
      %37 = dma.hbm_to_vmem [thread:$0]  %s2, 256, %s32, [#allocation8], 128, 128, 8
    $region9: #{tpu_custom_call.1} parent=1 // pred_fallthru
      _
    // Predicated region
    $region10: #{tpu_custom_call.1} parent=1 // pred_check
      _
    $region11: #{tpu_custom_call.1} parent=1 // pred_check_branch
      %39 = sbr.rel (0) target = $region13
    $region12: #{tpu_custom_call.1} parent=1 // pred_region
      _
    $region13: #{tpu_custom_call.1} parent=1 // pred_fallthru
      _
    // Predicated region
    $region14: #{tpu_custom_call.1} parent=1 // pred_check
      _
    $region15: #{tpu_custom_call.1} parent=1 // pred_check_branch
      %41 = sbr.rel (0) target = $region17
    $region16: #{tpu_custom_call.1} parent=1 // pred_region
      _
    $region17: #{tpu_custom_call.1} parent=1 // pred_fallthru
      _
    // Predicated region
    $region18: #{tpu_custom_call.1} parent=1 // pred_check
      _
    $region19: #{tpu_custom_call.1} parent=1 // pred_check_branch
      %43 = sbr.rel (0) target = $region21
    $region20: #{tpu_custom_call.1} parent=1 // pred_region
      _
    $region21: #{tpu_custom_call.1} parent=1 // pred_fallthru
      _
    // Predicated region
    $region22: #{tpu_custom_call.1} parent=1 // pred_check
      _
    $region23: #{tpu_custom_call.1} parent=1 // pred_check_branch
      %45 = sbr.rel (0) target = $region25
    $region24: #{tpu_custom_call.1} parent=1 // pred_region
      _
    $region25: #{tpu_custom_call.1} parent=1 // pred_fallthru
      _
    // Predicated region
    $region26: #{tpu_custom_call.1} parent=1 // pred_check
      _
    $region27: #{tpu_custom_call.1} parent=1 // pred_check_branch
      %47 = sbr.rel (0) target = $region29
    $region28: #{tpu_custom_call.1} parent=1 // pred_region
      %s49 = ssub.s32 512, 512
      %50 = vsyncadd [#allocation11], %s49
      %s51 = sshll.u32 [#allocation10], 4
      %s52 = int_to_ptr.vmem [resolvable:$true] %s51
      %57 = dma.hbm_to_vmem [thread:$0]  %s7, 512, %s52, [#allocation11], 128, 128, 8
    $region29: #{tpu_custom_call.1} parent=1 // pred_fallthru
      _
    // Predicated region
    $region30: #{tpu_custom_call.1} parent=1 // pred_check
      _
    $region31: #{tpu_custom_call.1} parent=1 // pred_check_branch
      %59 = sbr.rel (0) target = $region33
    $region32: #{tpu_custom_call.1} parent=1 // pred_region
      _
    $region33: #{tpu_custom_call.1} parent=1 // pred_fallthru
      _
    // Predicated region
    $region34: #{tpu_custom_call.1} parent=1 // pred_check
      _
    $region35: #{tpu_custom_call.1} parent=1 // pred_check_branch
      %61 = sbr.rel (0) target = $region37
    $region36: #{tpu_custom_call.1} parent=1 // pred_region
      _
    $region37: #{tpu_custom_call.1} parent=1 // pred_fallthru
      _
    // Predicated region
    $region38: #{tpu_custom_call.1} parent=1 // pred_check
      _
    $region39: #{tpu_custom_call.1} parent=1 // pred_check_branch
      %63 = sbr.rel (0) target = $region41
    $region40: #{tpu_custom_call.1} parent=1 // pred_region
      %64 = dma.done [#allocation8], 256
    $region41: #{tpu_custom_call.1} parent=1 // pred_fallthru
      _
    // Predicated region
    $region42: #{tpu_custom_call.1} parent=1 // pred_check
      _
    $region43: #{tpu_custom_call.1} parent=1 // pred_check_branch
      %66 = sbr.rel (0) target = $region45
    $region44: #{tpu_custom_call.1} parent=1 // pred_region
      %67 = dma.done [#allocation11], 512
    $region45: #{tpu_custom_call.1} parent=1 // pred_fallthru
      _
    %s68 = sld [smem:[#allocation6]]
    %s69 = scalar_lea.vmem %s3, %s68
    %v70 = vld [vmem:[%s69] sm:$0x1]
    %vm71 = vcmask 253952
    %72 = vst.msk [vmem:[#allocation2] sm:$0x1] %vm71, %v70
    %s73 = sld [smem:[#allocation6 + $0x1]]
    %s74 = scalar_lea.vmem %s3, %s73
    %v75 = vld [vmem:[%s74] sm:$0x1]
    %76 = vst.msk [vmem:[#allocation2 + $0x1] sm:$0x1] %vm71, %v75
    %s77 = sld [smem:[#allocation6 + $0x2]]
    %s78 = scalar_lea.vmem %s3, %s77
    %v79 = vld [vmem:[%s78] sm:$0x1]
    %80 = vst.msk [vmem:[#allocation2 + $0x2] sm:$0x1] %vm71, %v79
    %s81 = sld [smem:[#allocation6 + $0x3]]
    %s82 = scalar_lea.vmem %s3, %s81
    %v83 = vld [vmem:[%s82] sm:$0x1]
    %84 = vst.msk [vmem:[#allocation2 + $0x3] sm:$0x1] %vm71, %v83
    %s85 = sld [smem:[#allocation6 + $0x4]]
    %s86 = scalar_lea.vmem %s3, %s85
    %v87 = vld [vmem:[%s86] sm:$0x1]
    %88 = vst.msk [vmem:[#allocation2 + $0x4] sm:$0x1] %vm71, %v87
    %s89 = sld [smem:[#allocation6 + $0x5]]
    %s90 = scalar_lea.vmem %s3, %s89
    %v91 = vld [vmem:[%s90] sm:$0x1]
    %92 = vst.msk [vmem:[#allocation2 + $0x5] sm:$0x1] %vm71, %v91
    %s93 = sld [smem:[#allocation6 + $0x6]]
    %s94 = scalar_lea.vmem %s3, %s93
    %v95 = vld [vmem:[%s94] sm:$0x1]
    %96 = vst.msk [vmem:[#allocation2 + $0x6] sm:$0x1] %vm71, %v95
    %s97 = sld [smem:[#allocation6 + $0x7]]
    %s98 = scalar_lea.vmem %s3, %s97
    %v99 = vld [vmem:[%s98] sm:$0x1]
    %100 = vst.msk [vmem:[#allocation2 + $0x7] sm:$0x1] %vm71, %v99
    %s101 = sld [smem:[#allocation6 + $0x8]]
    %s102 = scalar_lea.vmem %s3, %s101
    %v103 = vld [vmem:[%s102] sm:$0x1]
    %104 = vst.msk [vmem:[#allocation2 + $0x8] sm:$0x1] %vm71, %v103
    %s105 = sld [smem:[#allocation6 + $0x9]]
    %s106 = scalar_lea.vmem %s3, %s105
    %v107 = vld [vmem:[%s106] sm:$0x1]
    %108 = vst.msk [vmem:[#allocation2 + $0x9] sm:$0x1] %vm71, %v107
    %s109 = sld [smem:[#allocation6 + $0xa]]
    %s110 = scalar_lea.vmem %s3, %s109
    %v111 = vld [vmem:[%s110] sm:$0x1]
    %112 = vst.msk [vmem:[#allocation2 + $0xa] sm:$0x1] %vm71, %v111
    %s113 = sld [smem:[#allocation6 + $0xb]]
    %s114 = scalar_lea.vmem %s3, %s113
    %v115 = vld [vmem:[%s114] sm:$0x1]
    %116 = vst.msk [vmem:[#allocation2 + $0xb] sm:$0x1] %vm71, %v115
    %s117 = sld [smem:[#allocation6 + $0xc]]
    %s118 = scalar_lea.vmem %s3, %s117
    %v119 = vld [vmem:[%s118] sm:$0x1]
    %120 = vst.msk [vmem:[#allocation2 + $0xc] sm:$0x1] %vm71, %v119
    %s121 = sld [smem:[#allocation6 + $0xd]]
    %s122 = scalar_lea.vmem %s3, %s121
    %v123 = vld [vmem:[%s122] sm:$0x1]
    %124 = vst.msk [vmem:[#allocation2 + $0xd] sm:$0x1] %vm71, %v123
    %s125 = sld [smem:[#allocation6 + $0xe]]
    %s126 = scalar_lea.vmem %s3, %s125
    %v127 = vld [vmem:[%s126] sm:$0x1]
    %128 = vst.msk [vmem:[#allocation2 + $0xe] sm:$0x1] %vm71, %v127
    %s129 = sld [smem:[#allocation6 + $0xf]]
    %s130 = scalar_lea.vmem %s3, %s129
    %v131 = vld [vmem:[%s130] sm:$0x1]
    %132 = vst.msk [vmem:[#allocation2 + $0xf] sm:$0x1] %vm71, %v131
    %v133 = vld [vmem:[#allocation2] sm:$0xff]
    %v134 = vld [vmem:[#allocation2 + $0x8] sm:$0xff]
    %v135 = vld [vmem:[%s4] sm:$0xff]
    %v136 = vld [vmem:[%s4 + $0x8] sm:$0xff]
    %v137 = vld [vmem:[%s4 + $0x10] sm:$0xff]
    %v138 = vld [vmem:[%s4 + $0x18] sm:$0xff]
    %v139 = vld [vmem:[%s9] sm:$0x1]
    %v140 = vlaneseq
    %v141 = vshrl.u32 %v140, 7
    %v142 = vsub.s32 0, %v141
    %v143 = vrot.slane %v139, %v142
    %vm144 = vcmask 261120
    %v146 = vsel %vm144, %v133, 0
    %v149 = vsel %vm144, %v134, 0
    %151 = vmatprep.subr.mxu0 0.0
    %152 = vmatpush1.msra.mxu0 %v135
    %153 = vmatprep.subr.mxu0 0.0
    %154 = vmatpush1.msra.mxu0 %v136
    %155 = vmatprep.subr.mxu0 0.0
    %156 = vmatpush1.msra.mxu0 %v137
    %157 = vmatprep.subr.mxu0 0.0
    %158 = vmatpush1.msra.mxu0 %v138
    %159 = vmatprep.subr.mxu0 0.0
    %160 = vmatpush1.msra.mxu0 0.0
    %161 = vmatprep.subr.mxu0 0.0
    %162 = vmatpush1.msra.mxu0 0.0
    %163 = vmatprep.subr.mxu0 0.0
    %164 = vmatpush1.msra.mxu0 0.0
    %165 = vmatprep.subr.mxu0 0.0
    %166 = vmatpush1.msra.mxu0 0.0
    %167 = vmatprep.subr.mxu0 0.0
    %168 = vmatpush1.msra.mxu0 0.0
    %169 = vmatprep.subr.mxu0 0.0
    %170 = vmatpush1.msra.mxu0 0.0
    %171 = vmatprep.subr.mxu0 0.0
    %172 = vmatpush1.msra.mxu0 0.0
    %173 = vmatprep.subr.mxu0 0.0
    %174 = vmatpush1.msra.mxu0 0.0
    %175 = vmatprep.subr.mxu0 0.0
    %176 = vmatpush1.msra.mxu0 0.0
    %177 = vmatprep.subr.mxu0 0.0
    %178 = vmatpush1.msra.mxu0 0.0
    %179 = vmatprep.subr.mxu0 0.0
    %180 = vmatpush1.msra.mxu0 0.0
    %181 = vmatprep.subr.mxu0 0.0
    %182 = vmatpush1.msra.mxu0 0.0
    %183 = vmatprep.subr.mxu0 0.0
    %184 = vmatpush1.msra.mxu0 0.0
    %185 = vmatprep.subr.mxu0 0.0
    %186 = vmatpush1.msra.mxu0 0.0
    %187 = vmatprep.subr.mxu0 0.0
    %188 = vmatpush1.msra.mxu0 0.0
    %189 = vmatprep.subr.mxu0 0.0
    %190 = vmatpush1.msra.mxu0 0.0
    %191 = vmatprep.subr.mxu0 0.0
    %192 = vmatpush1.msra.mxu0 0.0
    %193 = vmatprep.subr.mxu0 0.0
    %194 = vmatpush1.msra.mxu0 0.0
    %195 = vmatprep.subr.mxu0 0.0
    %196 = vmatpush1.msra.mxu0 0.0
    %197 = vmatprep.subr.mxu0 0.0
    %198 = vmatpush1.msra.mxu0 0.0
    %199 = vmatprep.subr.mxu0 0.0
    %200 = vmatpush1.msra.mxu0 0.0
    %201 = vmatprep.subr.mxu0 0.0
    %202 = vmatpush1.msra.mxu0 0.0
    %203 = vmatprep.subr.mxu0 0.0
    %204 = vmatpush1.msra.mxu0 0.0
    %205 = vmatprep.subr.mxu0 0.0
    %206 = vmatpush1.msra.mxu0 0.0
    %207 = vmatprep.subr.mxu0 0.0
    %208 = vmatpush1.msra.mxu0 0.0
    %209 = vmatprep.subr.mxu0 0.0
    %210 = vmatpush1.msra.mxu0 0.0
    %211 = vmatprep.subr.mxu0 0.0
    %212 = vmatpush1.msra.mxu0 0.0
    %213 = vmatprep.subr.mxu0 0.0
    %214 = vmatpush1.msra.mxu0 0.0
    %215 = vmatprep.mubr.f32.mxu0 0.0
    %216 = vmatmul.mubr.f32.gmra.mrb[0].mxu0 %v146
    %v217 = vpop.f32.mrb[0].mxu0
    %v218 = vadd.f32 %v143, %v217
    %v219 = vpop.f32.mrb[0].mxu0
    %220 = vmatprep.mubr.f32.mxu0 0.0
    %221 = vmatmul.mubr.f32.gmra.mrb[0].mxu0 %v149
    %v222 = vpop.f32.mrb[0].mxu0
    %v223 = vadd.f32 %v143, %v222
    %v224 = vpop.f32.mrb[0].mxu0
    %225 = vdwg.mxu0
    %vm226 = vcmask 130048
    %227 = vst.msk [vmem:[#allocation3] sm:$0xff] %vm226, %v218
    %228 = vst.msk [vmem:[#allocation3 + $0x8] sm:$0xff] %vm226, %v223
    %v229 = vld [vmem:[%s5] sm:$0xff]
    %v230 = vld [vmem:[%s5 + $0x8] sm:$0xff]
    %v231 = vld [vmem:[%s5 + $0x10] sm:$0xff]
    %v232 = vld [vmem:[%s5 + $0x18] sm:$0xff]
    %v233 = vld [vmem:[%s9 + $0x1] sm:$0x1]
    %v234 = vlaneseq
    %v235 = vshrl.u32 %v234, 7
    %v236 = vsub.s32 0, %v235
    %v237 = vrot.slane %v233, %v236
    %238 = vmatprep.subr.mxu0 0.0
    %239 = vmatpush1.msra.mxu0 %v229
    %240 = vmatprep.subr.mxu0 0.0
    %241 = vmatpush1.msra.mxu0 %v230
    %242 = vmatprep.subr.mxu0 0.0
    %243 = vmatpush1.msra.mxu0 %v231
    %244 = vmatprep.subr.mxu0 0.0
    %245 = vmatpush1.msra.mxu0 %v232
    %246 = vmatprep.subr.mxu0 0.0
    %247 = vmatpush1.msra.mxu0 0.0
    %248 = vmatprep.subr.mxu0 0.0
    %249 = vmatpush1.msra.mxu0 0.0
    %250 = vmatprep.subr.mxu0 0.0
    %251 = vmatpush1.msra.mxu0 0.0
    %252 = vmatprep.subr.mxu0 0.0
    %253 = vmatpush1.msra.mxu0 0.0
    %254 = vmatprep.subr.mxu0 0.0
    %255 = vmatpush1.msra.mxu0 0.0
    %256 = vmatprep.subr.mxu0 0.0
    %257 = vmatpush1.msra.mxu0 0.0
    %258 = vmatprep.subr.mxu0 0.0
    %259 = vmatpush1.msra.mxu0 0.0
    %260 = vmatprep.subr.mxu0 0.0
    %261 = vmatpush1.msra.mxu0 0.0
    %262 = vmatprep.subr.mxu0 0.0
    %263 = vmatpush1.msra.mxu0 0.0
    %264 = vmatprep.subr.mxu0 0.0
    %265 = vmatpush1.msra.mxu0 0.0
    %266 = vmatprep.subr.mxu0 0.0
    %267 = vmatpush1.msra.mxu0 0.0
    %268 = vmatprep.subr.mxu0 0.0
    %269 = vmatpush1.msra.mxu0 0.0
    %270 = vmatprep.subr.mxu0 0.0
    %271 = vmatpush1.msra.mxu0 0.0
    %272 = vmatprep.subr.mxu0 0.0
    %273 = vmatpush1.msra.mxu0 0.0
    %274 = vmatprep.subr.mxu0 0.0
    %275 = vmatpush1.msra.mxu0 0.0
    %276 = vmatprep.subr.mxu0 0.0
    %277 = vmatpush1.msra.mxu0 0.0
    %278 = vmatprep.subr.mxu0 0.0
    %279 = vmatpush1.msra.mxu0 0.0
    %280 = vmatprep.subr.mxu0 0.0
    %281 = vmatpush1.msra.mxu0 0.0
    %282 = vmatprep.subr.mxu0 0.0
    %283 = vmatpush1.msra.mxu0 0.0
    %284 = vmatprep.subr.mxu0 0.0
    %285 = vmatpush1.msra.mxu0 0.0
    %286 = vmatprep.subr.mxu0 0.0
    %287 = vmatpush1.msra.mxu0 0.0
    %288 = vmatprep.subr.mxu0 0.0
    %289 = vmatpush1.msra.mxu0 0.0
    %290 = vmatprep.subr.mxu0 0.0
    %291 = vmatpush1.msra.mxu0 0.0
    %292 = vmatprep.subr.mxu0 0.0
    %293 = vmatpush1.msra.mxu0 0.0
    %294 = vmatprep.subr.mxu0 0.0
    %295 = vmatpush1.msra.mxu0 0.0
    %296 = vmatprep.subr.mxu0 0.0
    %297 = vmatpush1.msra.mxu0 0.0
    %298 = vmatprep.subr.mxu0 0.0
    %299 = vmatpush1.msra.mxu0 0.0
    %300 = vmatprep.subr.mxu0 0.0
    %301 = vmatpush1.msra.mxu0 0.0
    %302 = vmatprep.mubr.f32.mxu0 0.0
    %303 = vmatmul.mubr.f32.gmra.mrb[0].mxu0 %v146
    %v304 = vpop.f32.mrb[0].mxu0
    %v305 = vadd.f32 %v237, %v304
    %v306 = vpop.f32.mrb[0].mxu0
    %307 = vmatprep.mubr.f32.mxu0 0.0
    %308 = vmatmul.mubr.f32.gmra.mrb[0].mxu0 %v149
    %v309 = vpop.f32.mrb[0].mxu0
    %v310 = vadd.f32 %v237, %v309
    %v311 = vpop.f32.mrb[0].mxu0
    %312 = vdwg.mxu0
    %313 = vst.msk [vmem:[#allocation4] sm:$0xff] %vm144, %v305
    %314 = vst.msk [vmem:[#allocation4 + $0x8] sm:$0xff] %vm144, %v310
    %v315 = vld [vmem:[#allocation7] sm:$0xff]
    %v316 = vld [vmem:[#allocation7 + $0x8] sm:$0xff]
    %v317 = vld [vmem:[%s6] sm:$0xff]
    %v318 = vld [vmem:[%s6 + $0x8] sm:$0xff]
    %v319 = vld [vmem:[%s6 + $0x10] sm:$0xff]
    %v320 = vld [vmem:[%s6 + $0x18] sm:$0xff]
    %v321 = vld [vmem:[#allocation10] sm:$0xff]
    %v322 = vld [vmem:[#allocation10 + $0x8] sm:$0xff]
    %v323 = vld [vmem:[#allocation10 + $0x10] sm:$0xff]
    %v324 = vld [vmem:[#allocation10 + $0x18] sm:$0xff]
    %v325 = vld [vmem:[%s8] sm:$0xff]
    %v326 = vld [vmem:[%s8 + $0x8] sm:$0xff]
    %v327 = vld [vmem:[%s8 + $0x10] sm:$0xff]
    %v328 = vld [vmem:[%s8 + $0x18] sm:$0xff]
    %v329 = vld [vmem:[%s8 + $0x20] sm:$0xff]
    %v330 = vld [vmem:[%s8 + $0x28] sm:$0xff]
    %v331 = vld [vmem:[%s8 + $0x30] sm:$0xff]
    %v332 = vld [vmem:[%s8 + $0x38] sm:$0xff]
    %v333 = vld [vmem:[%s9 + $0x2] sm:$0x1]
    %v334 = vld [vmem:[%s9 + $0x3] sm:$0x1]
    %v335 = vld [vmem:[%s9 + $0x4] sm:$0x1]
    %v336 = vld [vmem:[%s9 + $0x5] sm:$0x1]
    %v337 = vld [vmem:[%s1] sm:$0x1]
    %v339 = vsel %vm144, %v337, 0
    %341 = vmatprep.subr.mxu0 %v326
    %342 = vmatpush1.msra.mxu0 %v325
    %343 = vmatprep.subr.mxu0 %v328
    %344 = vmatpush1.msra.mxu0 %v327
    %345 = vmatprep.subr.mxu0 %v330
    %346 = vmatpush1.msra.mxu0 %v329
    %347 = vmatprep.subr.mxu0 %v332
    %348 = vmatpush1.msra.mxu0 %v331
    %349 = vmatprep.subr.mxu0 0.0
    %350 = vmatpush1.msra.mxu0 0.0
    %351 = vmatprep.subr.mxu0 0.0
    %352 = vmatpush1.msra.mxu0 0.0
    %353 = vmatprep.subr.mxu0 0.0
    %354 = vmatpush1.msra.mxu0 0.0
    %355 = vmatprep.subr.mxu0 0.0
    %356 = vmatpush1.msra.mxu0 0.0
    %357 = vmatprep.subr.mxu0 0.0
    %358 = vmatpush1.msra.mxu0 0.0
    %359 = vmatprep.subr.mxu0 0.0
    %360 = vmatpush1.msra.mxu0 0.0
    %361 = vmatprep.subr.mxu0 0.0
    %362 = vmatpush1.msra.mxu0 0.0
    %363 = vmatprep.subr.mxu0 0.0
    %364 = vmatpush1.msra.mxu0 0.0
    %365 = vmatprep.subr.mxu0 0.0
    %366 = vmatpush1.msra.mxu0 0.0
    %367 = vmatprep.subr.mxu0 0.0
    %368 = vmatpush1.msra.mxu0 0.0
    %369 = vmatprep.subr.mxu0 0.0
    %370 = vmatpush1.msra.mxu0 0.0
    %371 = vmatprep.subr.mxu0 0.0
    %372 = vmatpush1.msra.mxu0 0.0
    %373 = vmatprep.subr.mxu0 0.0
    %374 = vmatpush1.msra.mxu0 0.0
    %375 = vmatprep.subr.mxu0 0.0
    %376 = vmatpush1.msra.mxu0 0.0
    %377 = vmatprep.subr.mxu0 0.0
    %378 = vmatpush1.msra.mxu0 0.0
    %379 = vmatprep.subr.mxu0 0.0
    %380 = vmatpush1.msra.mxu0 0.0
    %381 = vmatprep.subr.mxu0 0.0
    %382 = vmatpush1.msra.mxu0 0.0
    %383 = vmatprep.subr.mxu0 0.0
    %384 = vmatpush1.msra.mxu0 0.0
    %385 = vmatprep.subr.mxu0 0.0
    %386 = vmatpush1.msra.mxu0 0.0
    %387 = vmatprep.subr.mxu0 0.0
    %388 = vmatpush1.msra.mxu0 0.0
    %389 = vmatprep.subr.mxu0 0.0
    %390 = vmatpush1.msra.mxu0 0.0
    %391 = vmatprep.subr.mxu0 0.0
    %392 = vmatpush1.msra.mxu0 0.0
    %393 = vmatprep.subr.mxu0 0.0
    %394 = vmatpush1.msra.mxu0 0.0
    %395 = vmatprep.subr.mxu0 0.0
    %396 = vmatpush1.msra.mxu0 0.0
    %397 = vmatprep.subr.mxu0 0.0
    %398 = vmatpush1.msra.mxu0 0.0
    %399 = vmatprep.subr.mxu0 0.0
    %400 = vmatpush1.msra.mxu0 0.0
    %401 = vmatprep.subr.mxu0 0.0
    %402 = vmatpush1.msra.mxu0 0.0
    %403 = vmatprep.subr.mxu0 0.0
    %404 = vmatpush1.msra.mxu0 0.0
    %405 = vmatprep.mubr.f32.mxu0 0.0
    %406 = vmatmul.mubr.f32.gmra.mrb[0].mxu0 %v339
    %v407 = vpop.f32.mrb[0].mxu0
    %v408 = vadd.f32 0.0, %v407
    %v409 = vpop.f32.mrb[0].mxu0
    %v410 = vadd.f32 0.0, %v409
    %411 = vdwg.mxu0
    %v412 = vld [vmem:[#allocation3] sm:$0x1]
    %414 = vrot.lane.b32.xlu0 %v408, 64
    %v415 = vpop.permute.xlu0 %414
    %v417 = vadd.f32 %v412, %v415
    %vm418 = vcmask 122880
    %v419 = vsel %vm418, %v417, -inf
    %420 = vmax.xlane.f32.xlu0 %v419
    %v421 = vpop.xlane.xlu0 %420
    %v422 = vsub.f32 %v417, %v421
    %v423 = vmul.f32 %v422, 1.442695
    %v424 = vpow.pop %v423
    %v425 = vsel %vm418, %v424, 0.0
    %426 = vadd.xlane.f32.xlu0 %v425
    %v427 = vpop.xlane.xlu0 %426
    %v428 = vrcp.pop %v427
    %v429 = vmul.f32 %v427, %v428
    %v430 = vsub.f32 2.0, %v429
    %v431 = vmul.f32 %v428, %v430
    %v432 = vmul.f32 %v424, %v431
    %v434 = vsel %vm226, %v432, 0
    %436 = vmatprep.subr.mxu0 0.0
    %437 = vmatpush1.msra.mxu0 %v315
    %438 = vmatprep.subr.mxu0 0.0
    %439 = vmatpush1.msra.mxu0 %v316
    %440 = vmatprep.subr.mxu0 0.0
    %441 = vmatpush1.msra.mxu0 0.0
    %442 = vmatprep.subr.mxu0 0.0
    %443 = vmatpush1.msra.mxu0 0.0
    %444 = vmatprep.subr.mxu0 0.0
    %445 = vmatpush1.msra.mxu0 0.0
    %446 = vmatprep.subr.mxu0 0.0
    %447 = vmatpush1.msra.mxu0 0.0
    %448 = vmatprep.subr.mxu0 0.0
    %449 = vmatpush1.msra.mxu0 0.0
    %450 = vmatprep.subr.mxu0 0.0
    %451 = vmatpush1.msra.mxu0 0.0
    %452 = vmatprep.subr.mxu0 0.0
    %453 = vmatpush1.msra.mxu0 0.0
    %454 = vmatprep.subr.mxu0 0.0
    %455 = vmatpush1.msra.mxu0 0.0
    %456 = vmatprep.subr.mxu0 0.0
    %457 = vmatpush1.msra.mxu0 0.0
    %458 = vmatprep.subr.mxu0 0.0
    %459 = vmatpush1.msra.mxu0 0.0
    %460 = vmatprep.subr.mxu0 0.0
    %461 = vmatpush1.msra.mxu0 0.0
    %462 = vmatprep.subr.mxu0 0.0
    %463 = vmatpush1.msra.mxu0 0.0
    %464 = vmatprep.subr.mxu0 0.0
    %465 = vmatpush1.msra.mxu0 0.0
    %466 = vmatprep.subr.mxu0 0.0
    %467 = vmatpush1.msra.mxu0 0.0
    %468 = vmatprep.subr.mxu0 0.0
    %469 = vmatpush1.msra.mxu0 0.0
    %470 = vmatprep.subr.mxu0 0.0
    %471 = vmatpush1.msra.mxu0 0.0
    %472 = vmatprep.subr.mxu0 0.0
    %473 = vmatpush1.msra.mxu0 0.0
    %474 = vmatprep.subr.mxu0 0.0
    %475 = vmatpush1.msra.mxu0 0.0
    %476 = vmatprep.subr.mxu0 0.0
    %477 = vmatpush1.msra.mxu0 0.0
    %478 = vmatprep.subr.mxu0 0.0
    %479 = vmatpush1.msra.mxu0 0.0
    %480 = vmatprep.subr.mxu0 0.0
    %481 = vmatpush1.msra.mxu0 0.0
    %482 = vmatprep.subr.mxu0 0.0
    %483 = vmatpush1.msra.mxu0 0.0
    %484 = vmatprep.subr.mxu0 0.0
    %485 = vmatpush1.msra.mxu0 0.0
    %486 = vmatprep.subr.mxu0 0.0
    %487 = vmatpush1.msra.mxu0 0.0
    %488 = vmatprep.subr.mxu0 0.0
    %489 = vmatpush1.msra.mxu0 0.0
    %490 = vmatprep.subr.mxu0 0.0
    %491 = vmatpush1.msra.mxu0 0.0
    %492 = vmatprep.subr.mxu0 0.0
    %493 = vmatpush1.msra.mxu0 0.0
    %494 = vmatprep.subr.mxu0 0.0
    %495 = vmatpush1.msra.mxu0 0.0
    %496 = vmatprep.subr.mxu0 0.0
    %497 = vmatpush1.msra.mxu0 0.0
    %498 = vmatprep.subr.mxu0 0.0
    %499 = vmatpush1.msra.mxu0 0.0
    %500 = vmatprep.mubr.f32.mxu0 0.0
    %501 = vmatmul.mubr.f32.gmra.mrb[0].mxu0 %v434
    %v502 = vpop.f32.mrb[0].mxu0
    %v503 = vadd.f32 0.0, %v502
    %v504 = vpop.f32.mrb[0].mxu0
    %505 = vdwg.mxu0
    %v506 = vld [vmem:[#allocation4] sm:$0x1]
    %v508 = vsel %vm144, %v503, 0
    %510 = vmatprep.subr.mxu0 0.0
    %511 = vmatpush1.msra.mxu0 %v317
    %512 = vmatprep.subr.mxu0 0.0
    %513 = vmatpush1.msra.mxu0 %v318
    %514 = vmatprep.subr.mxu0 0.0
    %515 = vmatpush1.msra.mxu0 %v319
    %516 = vmatprep.subr.mxu0 0.0
    %517 = vmatpush1.msra.mxu0 %v320
    %518 = vmatprep.subr.mxu0 0.0
    %519 = vmatpush1.msra.mxu0 0.0
    %520 = vmatprep.subr.mxu0 0.0
    %521 = vmatpush1.msra.mxu0 0.0
    %522 = vmatprep.subr.mxu0 0.0
    %523 = vmatpush1.msra.mxu0 0.0
    %524 = vmatprep.subr.mxu0 0.0
    %525 = vmatpush1.msra.mxu0 0.0
    %526 = vmatprep.subr.mxu0 0.0
    %527 = vmatpush1.msra.mxu0 0.0
    %528 = vmatprep.subr.mxu0 0.0
    %529 = vmatpush1.msra.mxu0 0.0
    %530 = vmatprep.subr.mxu0 0.0
    %531 = vmatpush1.msra.mxu0 0.0
    %532 = vmatprep.subr.mxu0 0.0
    %533 = vmatpush1.msra.mxu0 0.0
    %534 = vmatprep.subr.mxu0 0.0
    %535 = vmatpush1.msra.mxu0 0.0
    %536 = vmatprep.subr.mxu0 0.0
    %537 = vmatpush1.msra.mxu0 0.0
    %538 = vmatprep.subr.mxu0 0.0
    %539 = vmatpush1.msra.mxu0 0.0
    %540 = vmatprep.subr.mxu0 0.0
    %541 = vmatpush1.msra.mxu0 0.0
    %542 = vmatprep.subr.mxu0 0.0
    %543 = vmatpush1.msra.mxu0 0.0
    %544 = vmatprep.subr.mxu0 0.0
    %545 = vmatpush1.msra.mxu0 0.0
    %546 = vmatprep.subr.mxu0 0.0
    %547 = vmatpush1.msra.mxu0 0.0
    %548 = vmatprep.subr.mxu0 0.0
    %549 = vmatpush1.msra.mxu0 0.0
    %550 = vmatprep.subr.mxu0 0.0
    %551 = vmatpush1.msra.mxu0 0.0
    %552 = vmatprep.subr.mxu0 0.0
    %553 = vmatpush1.msra.mxu0 0.0
    %554 = vmatprep.subr.mxu0 0.0
    %555 = vmatpush1.msra.mxu0 0.0
    %556 = vmatprep.subr.mxu0 0.0
    %557 = vmatpush1.msra.mxu0 0.0
    %558 = vmatprep.subr.mxu0 0.0
    %559 = vmatpush1.msra.mxu0 0.0
    %560 = vmatprep.subr.mxu0 0.0
    %561 = vmatpush1.msra.mxu0 0.0
    %562 = vmatprep.subr.mxu0 0.0
    %563 = vmatpush1.msra.mxu0 0.0
    %564 = vmatprep.subr.mxu0 0.0
    %565 = vmatpush1.msra.mxu0 0.0
    %566 = vmatprep.subr.mxu0 0.0
    %567 = vmatpush1.msra.mxu0 0.0
    %568 = vmatprep.subr.mxu0 0.0
    %569 = vmatpush1.msra.mxu0 0.0
    %570 = vmatprep.subr.mxu0 0.0
    %571 = vmatpush1.msra.mxu0 0.0
    %572 = vmatprep.subr.mxu0 0.0
    %573 = vmatpush1.msra.mxu0 0.0
    %574 = vmatprep.mubr.f32.mxu0 0.0
    %575 = vmatmul.mubr.f32.gmra.mrb[0].mxu0 %v508
    %v576 = vpop.f32.mrb[0].mxu0
    %v577 = vadd.f32 0.0, %v576
    %v578 = vpop.f32.mrb[0].mxu0
    %579 = vdwg.mxu0
    %v580 = vadd.f32 %v506, %v577
    %v581 = vmax.f32 %v580, 0.0
    %v583 = vsel %vm144, %v581, 0
    %585 = vmatprep.subr.mxu0 0.0
    %586 = vmatpush1.msra.mxu0 %v321
    %587 = vmatprep.subr.mxu0 0.0
    %588 = vmatpush1.msra.mxu0 %v322
    %589 = vmatprep.subr.mxu0 0.0
    %590 = vmatpush1.msra.mxu0 %v323
    %591 = vmatprep.subr.mxu0 0.0
    %592 = vmatpush1.msra.mxu0 %v324
    %593 = vmatprep.subr.mxu0 0.0
    %594 = vmatpush1.msra.mxu0 0.0
    %595 = vmatprep.subr.mxu0 0.0
    %596 = vmatpush1.msra.mxu0 0.0
    %597 = vmatprep.subr.mxu0 0.0
    %598 = vmatpush1.msra.mxu0 0.0
    %599 = vmatprep.subr.mxu0 0.0
    %600 = vmatpush1.msra.mxu0 0.0
    %601 = vmatprep.subr.mxu0 0.0
    %602 = vmatpush1.msra.mxu0 0.0
    %603 = vmatprep.subr.mxu0 0.0
    %604 = vmatpush1.msra.mxu0 0.0
    %605 = vmatprep.subr.mxu0 0.0
    %606 = vmatpush1.msra.mxu0 0.0
    %607 = vmatprep.subr.mxu0 0.0
    %608 = vmatpush1.msra.mxu0 0.0
    %609 = vmatprep.subr.mxu0 0.0
    %610 = vmatpush1.msra.mxu0 0.0
    %611 = vmatprep.subr.mxu0 0.0
    %612 = vmatpush1.msra.mxu0 0.0
    %613 = vmatprep.subr.mxu0 0.0
    %614 = vmatpush1.msra.mxu0 0.0
    %615 = vmatprep.subr.mxu0 0.0
    %616 = vmatpush1.msra.mxu0 0.0
    %617 = vmatprep.subr.mxu0 0.0
    %618 = vmatpush1.msra.mxu0 0.0
    %619 = vmatprep.subr.mxu0 0.0
    %620 = vmatpush1.msra.mxu0 0.0
    %621 = vmatprep.subr.mxu0 0.0
    %622 = vmatpush1.msra.mxu0 0.0
    %623 = vmatprep.subr.mxu0 0.0
    %624 = vmatpush1.msra.mxu0 0.0
    %625 = vmatprep.subr.mxu0 0.0
    %626 = vmatpush1.msra.mxu0 0.0
    %627 = vmatprep.subr.mxu0 0.0
    %628 = vmatpush1.msra.mxu0 0.0
    %629 = vmatprep.subr.mxu0 0.0
    %630 = vmatpush1.msra.mxu0 0.0
    %631 = vmatprep.subr.mxu0 0.0
    %632 = vmatpush1.msra.mxu0 0.0
    %633 = vmatprep.subr.mxu0 0.0
    %634 = vmatpush1.msra.mxu0 0.0
    %635 = vmatprep.subr.mxu0 0.0
    %636 = vmatpush1.msra.mxu0 0.0
    %637 = vmatprep.subr.mxu0 0.0
    %638 = vmatpush1.msra.mxu0 0.0
    %639 = vmatprep.subr.mxu0 0.0
    %640 = vmatpush1.msra.mxu0 0.0
    %641 = vmatprep.subr.mxu0 0.0
    %642 = vmatpush1.msra.mxu0 0.0
    %643 = vmatprep.subr.mxu0 0.0
    %644 = vmatpush1.msra.mxu0 0.0
    %645 = vmatprep.subr.mxu0 0.0
    %646 = vmatpush1.msra.mxu0 0.0
    %647 = vmatprep.subr.mxu0 0.0
    %648 = vmatpush1.msra.mxu0 0.0
    %649 = vmatprep.mubr.f32.mxu0 0.0
    %650 = vmatmul.mubr.f32.gmra.mrb[0].mxu0 %v583
    %v651 = vpop.f32.mrb[0].mxu0
    %v652 = vadd.f32 0.0, %v651
    %v653 = vpop.f32.mrb[0].mxu0
    %654 = vdwg.mxu0
    %v655 = vadd.f32 %v652, %v410
    %v656 = vadd.f32 %v655, %v333
    %v657 = vxor.u32 %v656, 2147483648
    %v658 = vmul.f32 %v657, 1.442695
    %v659 = vpow.pop %v658
    %v660 = vadd.f32 %v659, 1.0
    %v661 = vrcp.pop %v660
    %v662 = vmul.f32 1.0, %v661
    %664 = vrot.lane.b32.xlu0 %v334, 64
    %v665 = vpop.permute.xlu0 %664
    %v667 = vadd.f32 %v652, %v665
    %669 = vrot.lane.b32.xlu0 %v335, 64
    %v670 = vpop.permute.xlu0 %669
    %v672 = vadd.f32 %v410, %v670
    %674 = vrot.lane.b32.xlu0 %v672, 64
    %v675 = vpop.permute.xlu0 %674
    %v677 = vmul.f32 %v662, %v675
    %679 = vrot.lane.b32.xlu0 %v677, 64
    %v680 = vpop.permute.xlu0 %679
    %v682 = vadd.f32 %v667, %v680
    %v683 = vtanh.pop %v682
    %v684 = vsub.f32 1.0, %v662
    %686 = vrot.lane.b32.xlu0 %v683, 96
    %v687 = vpop.permute.xlu0 %686
    %v689 = vmul.f32 %v684, %v687
    %v690 = vlaneseq
    %v691 = vshrl.u32 %v690, 7
    %v692 = vsub.s32 0, %v691
    %v693 = vrot.slane %v337, %v692
    %694 = vrot.lane.b32.xlu0 %v693, 32
    %v695 = vpop.permute.xlu0 %694
    %v697 = vmul.f32 %v662, %v695
    %v698 = vadd.f32 %v689, %v697
    %700 = vrot.lane.b32.xlu0 %v698, 96
    %v701 = vpop.permute.xlu0 %700
    %v702 = vsel %vm144, %v701, 0
    %704 = vmatprep.subr.mxu0 %v326
    %705 = vmatpush1.msra.mxu0 %v325
    %706 = vmatprep.subr.mxu0 %v328
    %707 = vmatpush1.msra.mxu0 %v327
    %708 = vmatprep.subr.mxu0 %v330
    %709 = vmatpush1.msra.mxu0 %v329
    %710 = vmatprep.subr.mxu0 %v332
    %711 = vmatpush1.msra.mxu0 %v331
    %712 = vmatprep.subr.mxu0 0.0
    %713 = vmatpush1.msra.mxu0 0.0
    %714 = vmatprep.subr.mxu0 0.0
    %715 = vmatpush1.msra.mxu0 0.0
    %716 = vmatprep.subr.mxu0 0.0
    %717 = vmatpush1.msra.mxu0 0.0
    %718 = vmatprep.subr.mxu0 0.0
    %719 = vmatpush1.msra.mxu0 0.0
    %720 = vmatprep.subr.mxu0 0.0
    %721 = vmatpush1.msra.mxu0 0.0
    %722 = vmatprep.subr.mxu0 0.0
    %723 = vmatpush1.msra.mxu0 0.0
    %724 = vmatprep.subr.mxu0 0.0
    %725 = vmatpush1.msra.mxu0 0.0
    %726 = vmatprep.subr.mxu0 0.0
    %727 = vmatpush1.msra.mxu0 0.0
    %728 = vmatprep.subr.mxu0 0.0
    %729 = vmatpush1.msra.mxu0 0.0
    %730 = vmatprep.subr.mxu0 0.0
    %731 = vmatpush1.msra.mxu0 0.0
    %732 = vmatprep.subr.mxu0 0.0
    %733 = vmatpush1.msra.mxu0 0.0
    %734 = vmatprep.subr.mxu0 0.0
    %735 = vmatpush1.msra.mxu0 0.0
    %736 = vmatprep.subr.mxu0 0.0
    %737 = vmatpush1.msra.mxu0 0.0
    %738 = vmatprep.subr.mxu0 0.0
    %739 = vmatpush1.msra.mxu0 0.0
    %740 = vmatprep.subr.mxu0 0.0
    %741 = vmatpush1.msra.mxu0 0.0
    %742 = vmatprep.subr.mxu0 0.0
    %743 = vmatpush1.msra.mxu0 0.0
    %744 = vmatprep.subr.mxu0 0.0
    %745 = vmatpush1.msra.mxu0 0.0
    %746 = vmatprep.subr.mxu0 0.0
    %747 = vmatpush1.msra.mxu0 0.0
    %748 = vmatprep.subr.mxu0 0.0
    %749 = vmatpush1.msra.mxu0 0.0
    %750 = vmatprep.subr.mxu0 0.0
    %751 = vmatpush1.msra.mxu0 0.0
    %752 = vmatprep.subr.mxu0 0.0
    %753 = vmatpush1.msra.mxu0 0.0
    %754 = vmatprep.subr.mxu0 0.0
    %755 = vmatpush1.msra.mxu0 0.0
    %756 = vmatprep.subr.mxu0 0.0
    %757 = vmatpush1.msra.mxu0 0.0
    %758 = vmatprep.subr.mxu0 0.0
    %759 = vmatpush1.msra.mxu0 0.0
    %760 = vmatprep.subr.mxu0 0.0
    %761 = vmatpush1.msra.mxu0 0.0
    %762 = vmatprep.subr.mxu0 0.0
    %763 = vmatpush1.msra.mxu0 0.0
    %764 = vmatprep.subr.mxu0 0.0
    %765 = vmatpush1.msra.mxu0 0.0
    %766 = vmatprep.subr.mxu0 0.0
    %767 = vmatpush1.msra.mxu0 0.0
    %768 = vmatprep.mubr.f32.mxu0 0.0
    %769 = vmatmul.mubr.f32.gmra.mrb[0].mxu0 %v702
    %v770 = vpop.f32.mrb[0].mxu0
    %v771 = vadd.f32 0.0, %v770
    %v772 = vpop.f32.mrb[0].mxu0
    %v773 = vadd.f32 0.0, %v772
    %774 = vdwg.mxu0
    %v775 = vadd.f32 %v771, %v336
    %vm776 = vcmask 516096
    %v777 = vsel %vm776, %v775, -inf
    %778 = vmax.xlane.f32.xlu0 %v777
    %v779 = vpop.xlane.xlu0 %778
    %v780 = vsub.f32 %v775, %v779
    %v781 = vmul.f32 %v780, 1.442695
    %v782 = vpow.pop %v781
    %v783 = vsel %vm776, %v782, 0.0
    %784 = vadd.xlane.f32.xlu0 %v783
    %v785 = vpop.xlane.xlu0 %784
    %v786 = vlog2.pop %v785
    %v787 = vmul.f32 %v786, 0.6931472
    %v788 = vsub.f32 %v780, %v787
    %789 = vrot.lane.b32.xlu0 %v698, 32
    %v790 = vpop.permute.xlu0 %789
    %792 = vrot.lane.b32.xlu0 %v432, 96
    %v793 = vpop.permute.xlu0 %792
    %vm795 = vcmask 523264
    %v796 = vsel %vm795, %v788, %v790
    %vm797 = vcmask 785408
    %v798 = vsel %vm797, %v796, %v793
    %vm799 = vcmask 916480
    %v800 = vsel %vm799, %v798, 0.0
    %801 = vst [vmem:[#allocation12] sm:$0x1] %v800
    %v802 = vld [vmem:[#allocation3 + $0x1] sm:$0x1]
    %804 = vrot.lane.b32.xlu0 %v771, 64
    %v805 = vpop.permute.xlu0 %804
    %v807 = vadd.f32 %v802, %v805
    %v808 = vsel %vm418, %v807, -inf
    %809 = vmax.xlane.f32.xlu0 %v808
    %v810 = vpop.xlane.xlu0 %809
    %v811 = vsub.f32 %v807, %v810
    %v812 = vmul.f32 %v811, 1.442695
    %v813 = vpow.pop %v812
    %v814 = vsel %vm418, %v813, 0.0
    %815 = vadd.xlane.f32.xlu0 %v814
    %v816 = vpop.xlane.xlu0 %815
    %v817 = vrcp.pop %v816
    %v818 = vmul.f32 %v816, %v817
    %v819 = vsub.f32 2.0, %v818
    %v820 = vmul.f32 %v817, %v819
    %v821 = vmul.f32 %v813, %v820
    %v823 = vsel %vm226, %v821, 0
    %825 = vmatprep.subr.mxu0 0.0
    %826 = vmatpush1.msra.mxu0 %v315
    %827 = vmatprep.subr.mxu0 0.0
    %828 = vmatpush1.msra.mxu0 %v316
    %829 = vmatprep.subr.mxu0 0.0
    %830 = vmatpush1.msra.mxu0 0.0
    %831 = vmatprep.subr.mxu0 0.0
    %832 = vmatpush1.msra.mxu0 0.0
    %833 = vmatprep.subr.mxu0 0.0
    %834 = vmatpush1.msra.mxu0 0.0
    %835 = vmatprep.subr.mxu0 0.0
    %836 = vmatpush1.msra.mxu0 0.0
    %837 = vmatprep.subr.mxu0 0.0
    %838 = vmatpush1.msra.mxu0 0.0
    %839 = vmatprep.subr.mxu0 0.0
    %840 = vmatpush1.msra.mxu0 0.0
    %841 = vmatprep.subr.mxu0 0.0
    %842 = vmatpush1.msra.mxu0 0.0
    %843 = vmatprep.subr.mxu0 0.0
    %844 = vmatpush1.msra.mxu0 0.0
    %845 = vmatprep.subr.mxu0 0.0
    %846 = vmatpush1.msra.mxu0 0.0
    %847 = vmatprep.subr.mxu0 0.0
    %848 = vmatpush1.msra.mxu0 0.0
    %849 = vmatprep.subr.mxu0 0.0
    %850 = vmatpush1.msra.mxu0 0.0
    %851 = vmatprep.subr.mxu0 0.0
    %852 = vmatpush1.msra.mxu0 0.0
    %853 = vmatprep.subr.mxu0 0.0
    %854 = vmatpush1.msra.mxu0 0.0
    %855 = vmatprep.subr.mxu0 0.0
    %856 = vmatpush1.msra.mxu0 0.0
    %857 = vmatprep.subr.mxu0 0.0
    %858 = vmatpush1.msra.mxu0 0.0
    %859 = vmatprep.subr.mxu0 0.0
    %860 = vmatpush1.msra.mxu0 0.0
    %861 = vmatprep.subr.mxu0 0.0
    %862 = vmatpush1.msra.mxu0 0.0
    %863 = vmatprep.subr.mxu0 0.0
    %864 = vmatpush1.msra.mxu0 0.0
    %865 = vmatprep.subr.mxu0 0.0
    %866 = vmatpush1.msra.mxu0 0.0
    %867 = vmatprep.subr.mxu0 0.0
    %868 = vmatpush1.msra.mxu0 0.0
    %869 = vmatprep.subr.mxu0 0.0
    %870 = vmatpush1.msra.mxu0 0.0
    %871 = vmatprep.subr.mxu0 0.0
    %872 = vmatpush1.msra.mxu0 0.0
    %873 = vmatprep.subr.mxu0 0.0
    %874 = vmatpush1.msra.mxu0 0.0
    %875 = vmatprep.subr.mxu0 0.0
    %876 = vmatpush1.msra.mxu0 0.0
    %877 = vmatprep.subr.mxu0 0.0
    %878 = vmatpush1.msra.mxu0 0.0
    %879 = vmatprep.subr.mxu0 0.0
    %880 = vmatpush1.msra.mxu0 0.0
    %881 = vmatprep.subr.mxu0 0.0
    %882 = vmatpush1.msra.mxu0 0.0
    %883 = vmatprep.subr.mxu0 0.0
    %884 = vmatpush1.msra.mxu0 0.0
    %885 = vmatprep.subr.mxu0 0.0
    %886 = vmatpush1.msra.mxu0 0.0
    %887 = vmatprep.subr.mxu0 0.0
    %888 = vmatpush1.msra.mxu0 0.0
    %889 = vmatprep.mubr.f32.mxu0 0.0
    %890 = vmatmul.mubr.f32.gmra.mrb[0].mxu0 %v823
    %v891 = vpop.f32.mrb[0].mxu0
    %v892 = vadd.f32 0.0, %v891
    %v893 = vpop.f32.mrb[0].mxu0
    %894 = vdwg.mxu0
    %v895 = vld [vmem:[#allocation4 + $0x1] sm:$0x1]
    %v897 = vsel %vm144, %v892, 0
    %899 = vmatprep.subr.mxu0 0.0
    %900 = vmatpush1.msra.mxu0 %v317
    %901 = vmatprep.subr.mxu0 0.0
    %902 = vmatpush1.msra.mxu0 %v318
    %903 = vmatprep.subr.mxu0 0.0
    %904 = vmatpush1.msra.mxu0 %v319
    %905 = vmatprep.subr.mxu0 0.0
    %906 = vmatpush1.msra.mxu0 %v320
    %907 = vmatprep.subr.mxu0 0.0
    %908 = vmatpush1.msra.mxu0 0.0
    %909 = vmatprep.subr.mxu0 0.0
    %910 = vmatpush1.msra.mxu0 0.0
    %911 = vmatprep.subr.mxu0 0.0
    %912 = vmatpush1.msra.mxu0 0.0
    %913 = vmatprep.subr.mxu0 0.0
    %914 = vmatpush1.msra.mxu0 0.0
    %915 = vmatprep.subr.mxu0 0.0
    %916 = vmatpush1.msra.mxu0 0.0
    %917 = vmatprep.subr.mxu0 0.0
    %918 = vmatpush1.msra.mxu0 0.0
    %919 = vmatprep.subr.mxu0 0.0
    %920 = vmatpush1.msra.mxu0 0.0
    %921 = vmatprep.subr.mxu0 0.0
    %922 = vmatpush1.msra.mxu0 0.0
    %923 = vmatprep.subr.mxu0 0.0
    %924 = vmatpush1.msra.mxu0 0.0
    %925 = vmatprep.subr.mxu0 0.0
    %926 = vmatpush1.msra.mxu0 0.0
    %927 = vmatprep.subr.mxu0 0.0
    %928 = vmatpush1.msra.mxu0 0.0
    %929 = vmatprep.subr.mxu0 0.0
    %930 = vmatpush1.msra.mxu0 0.0
    %931 = vmatprep.subr.mxu0 0.0
    %932 = vmatpush1.msra.mxu0 0.0
    %933 = vmatprep.subr.mxu0 0.0
    %934 = vmatpush1.msra.mxu0 0.0
    %935 = vmatprep.subr.mxu0 0.0
    %936 = vmatpush1.msra.mxu0 0.0
    %937 = vmatprep.subr.mxu0 0.0
    %938 = vmatpush1.msra.mxu0 0.0
    %939 = vmatprep.subr.mxu0 0.0
    %940 = vmatpush1.msra.mxu0 0.0
    %941 = vmatprep.subr.mxu0 0.0
    %942 = vmatpush1.msra.mxu0 0.0
    %943 = vmatprep.subr.mxu0 0.0
    %944 = vmatpush1.msra.mxu0 0.0
    %945 = vmatprep.subr.mxu0 0.0
    %946 = vmatpush1.msra.mxu0 0.0
    %947 = vmatprep.subr.mxu0 0.0
    %948 = vmatpush1.msra.mxu0 0.0
    %949 = vmatprep.subr.mxu0 0.0
    %950 = vmatpush1.msra.mxu0 0.0
    %951 = vmatprep.subr.mxu0 0.0
    %952 = vmatpush1.msra.mxu0 0.0
    %953 = vmatprep.subr.mxu0 0.0
    %954 = vmatpush1.msra.mxu0 0.0
    %955 = vmatprep.subr.mxu0 0.0
    %956 = vmatpush1.msra.mxu0 0.0
    %957 = vmatprep.subr.mxu0 0.0
    %958 = vmatpush1.msra.mxu0 0.0
    %959 = vmatprep.subr.mxu0 0.0
    %960 = vmatpush1.msra.mxu0 0.0
    %961 = vmatprep.subr.mxu0 0.0
    %962 = vmatpush1.msra.mxu0 0.0
    %963 = vmatprep.mubr.f32.mxu0 0.0
    %964 = vmatmul.mubr.f32.gmra.mrb[0].mxu0 %v897
    %v965 = vpop.f32.mrb[0].mxu0
    %v966 = vadd.f32 0.0, %v965
    %v967 = vpop.f32.mrb[0].mxu0
    %968 = vdwg.mxu0
    %v969 = vadd.f32 %v895, %v966
    %v970 = vmax.f32 %v969, 0.0
    %v972 = vsel %vm144, %v970, 0
    %974 = vmatprep.subr.mxu0 0.0
    %975 = vmatpush1.msra.mxu0 %v321
    %976 = vmatprep.subr.mxu0 0.0
    %977 = vmatpush1.msra.mxu0 %v322
    %978 = vmatprep.subr.mxu0 0.0
    %979 = vmatpush1.msra.mxu0 %v323
    %980 = vmatprep.subr.mxu0 0.0
    %981 = vmatpush1.msra.mxu0 %v324
    %982 = vmatprep.subr.mxu0 0.0
    %983 = vmatpush1.msra.mxu0 0.0
    %984 = vmatprep.subr.mxu0 0.0
    %985 = vmatpush1.msra.mxu0 0.0
    %986 = vmatprep.subr.mxu0 0.0
    %987 = vmatpush1.msra.mxu0 0.0
    %988 = vmatprep.subr.mxu0 0.0
    %989 = vmatpush1.msra.mxu0 0.0
    %990 = vmatprep.subr.mxu0 0.0
    %991 = vmatpush1.msra.mxu0 0.0
    %992 = vmatprep.subr.mxu0 0.0
    %993 = vmatpush1.msra.mxu0 0.0
    %994 = vmatprep.subr.mxu0 0.0
    %995 = vmatpush1.msra.mxu0 0.0
    %996 = vmatprep.subr.mxu0 0.0
    %997 = vmatpush1.msra.mxu0 0.0
    %998 = vmatprep.subr.mxu0 0.0
    %999 = vmatpush1.msra.mxu0 0.0
    %1000 = vmatprep.subr.mxu0 0.0
    %1001 = vmatpush1.msra.mxu0 0.0
    %1002 = vmatprep.subr.mxu0 0.0
    %1003 = vmatpush1.msra.mxu0 0.0
    %1004 = vmatprep.subr.mxu0 0.0
    %1005 = vmatpush1.msra.mxu0 0.0
    %1006 = vmatprep.subr.mxu0 0.0
    %1007 = vmatpush1.msra.mxu0 0.0
    %1008 = vmatprep.subr.mxu0 0.0
    %1009 = vmatpush1.msra.mxu0 0.0
    %1010 = vmatprep.subr.mxu0 0.0
    %1011 = vmatpush1.msra.mxu0 0.0
    %1012 = vmatprep.subr.mxu0 0.0
    %1013 = vmatpush1.msra.mxu0 0.0
    %1014 = vmatprep.subr.mxu0 0.0
    %1015 = vmatpush1.msra.mxu0 0.0
    %1016 = vmatprep.subr.mxu0 0.0
    %1017 = vmatpush1.msra.mxu0 0.0
    %1018 = vmatprep.subr.mxu0 0.0
    %1019 = vmatpush1.msra.mxu0 0.0
    %1020 = vmatprep.subr.mxu0 0.0
    %1021 = vmatpush1.msra.mxu0 0.0
    %1022 = vmatprep.subr.mxu0 0.0
    %1023 = vmatpush1.msra.mxu0 0.0
    %1024 = vmatprep.subr.mxu0 0.0
    %1025 = vmatpush1.msra.mxu0 0.0
    %1026 = vmatprep.subr.mxu0 0.0
    %1027 = vmatpush1.msra.mxu0 0.0
    %1028 = vmatprep.subr.mxu0 0.0
    %1029 = vmatpush1.msra.mxu0 0.0
    %1030 = vmatprep.subr.mxu0 0.0
    %1031 = vmatpush1.msra.mxu0 0.0
    %1032 = vmatprep.subr.mxu0 0.0
    %1033 = vmatpush1.msra.mxu0 0.0
    %1034 = vmatprep.subr.mxu0 0.0
    %1035 = vmatpush1.msra.mxu0 0.0
    %1036 = vmatprep.subr.mxu0 0.0
    %1037 = vmatpush1.msra.mxu0 0.0
    %1038 = vmatprep.mubr.f32.mxu0 0.0
    %1039 = vmatmul.mubr.f32.gmra.mrb[0].mxu0 %v972
    %v1040 = vpop.f32.mrb[0].mxu0
    %v1041 = vadd.f32 0.0, %v1040
    %v1042 = vpop.f32.mrb[0].mxu0
    %1043 = vdwg.mxu0
    %v1044 = vadd.f32 %v1041, %v773
    %v1045 = vadd.f32 %v1044, %v333
    %v1046 = vxor.u32 %v1045, 2147483648
    %v1047 = vmul.f32 %v1046, 1.442695
    %v1048 = vpow.pop %v1047
    %v1049 = vadd.f32 %v1048, 1.0
    %v1050 = vrcp.pop %v1049
    %v1051 = vmul.f32 1.0, %v1050
    %v1052 = vadd.f32 %v1041, %v665
    %v1053 = vadd.f32 %v773, %v670
    %1055 = vrot.lane.b32.xlu0 %v1053, 64
    %v1056 = vpop.permute.xlu0 %1055
    %v1058 = vmul.f32 %v1051, %v1056
    %1060 = vrot.lane.b32.xlu0 %v1058, 64
    %v1061 = vpop.permute.xlu0 %1060
    %v1063 = vadd.f32 %v1052, %v1061
    %v1064 = vtanh.pop %v1063
    %v1065 = vsub.f32 1.0, %v1051
    %1067 = vrot.lane.b32.xlu0 %v1064, 96
    %v1068 = vpop.permute.xlu0 %1067
    %v1070 = vmul.f32 %v1065, %v1068
    %v1071 = vmul.f32 %v1051, %v698
    %v1072 = vadd.f32 %v1070, %v1071
    %1074 = vrot.lane.b32.xlu0 %v1072, 96
    %v1075 = vpop.permute.xlu0 %1074
    %v1076 = vsel %vm144, %v1075, 0
    %1078 = vmatprep.subr.mxu0 %v326
    %1079 = vmatpush1.msra.mxu0 %v325
    %1080 = vmatprep.subr.mxu0 %v328
    %1081 = vmatpush1.msra.mxu0 %v327
    %1082 = vmatprep.subr.mxu0 %v330
    %1083 = vmatpush1.msra.mxu0 %v329
    %1084 = vmatprep.subr.mxu0 %v332
    %1085 = vmatpush1.msra.mxu0 %v331
    %1086 = vmatprep.subr.mxu0 0.0
    %1087 = vmatpush1.msra.mxu0 0.0
    %1088 = vmatprep.subr.mxu0 0.0
    %1089 = vmatpush1.msra.mxu0 0.0
    %1090 = vmatprep.subr.mxu0 0.0
    %1091 = vmatpush1.msra.mxu0 0.0
    %1092 = vmatprep.subr.mxu0 0.0
    %1093 = vmatpush1.msra.mxu0 0.0
    %1094 = vmatprep.subr.mxu0 0.0
    %1095 = vmatpush1.msra.mxu0 0.0
    %1096 = vmatprep.subr.mxu0 0.0
    %1097 = vmatpush1.msra.mxu0 0.0
    %1098 = vmatprep.subr.mxu0 0.0
    %1099 = vmatpush1.msra.mxu0 0.0
    %1100 = vmatprep.subr.mxu0 0.0
    %1101 = vmatpush1.msra.mxu0 0.0
    %1102 = vmatprep.subr.mxu0 0.0
    %1103 = vmatpush1.msra.mxu0 0.0
    %1104 = vmatprep.subr.mxu0 0.0
    %1105 = vmatpush1.msra.mxu0 0.0
    %1106 = vmatprep.subr.mxu0 0.0
    %1107 = vmatpush1.msra.mxu0 0.0
    %1108 = vmatprep.subr.mxu0 0.0
    %1109 = vmatpush1.msra.mxu0 0.0
    %1110 = vmatprep.subr.mxu0 0.0
    %1111 = vmatpush1.msra.mxu0 0.0
    %1112 = vmatprep.subr.mxu0 0.0
    %1113 = vmatpush1.msra.mxu0 0.0
    %1114 = vmatprep.subr.mxu0 0.0
    %1115 = vmatpush1.msra.mxu0 0.0
    %1116 = vmatprep.subr.mxu0 0.0
    %1117 = vmatpush1.msra.mxu0 0.0
    %1118 = vmatprep.subr.mxu0 0.0
    %1119 = vmatpush1.msra.mxu0 0.0
    %1120 = vmatprep.subr.mxu0 0.0
    %1121 = vmatpush1.msra.mxu0 0.0
    %1122 = vmatprep.subr.mxu0 0.0
    %1123 = vmatpush1.msra.mxu0 0.0
    %1124 = vmatprep.subr.mxu0 0.0
    %1125 = vmatpush1.msra.mxu0 0.0
    %1126 = vmatprep.subr.mxu0 0.0
    %1127 = vmatpush1.msra.mxu0 0.0
    %1128 = vmatprep.subr.mxu0 0.0
    %1129 = vmatpush1.msra.mxu0 0.0
    %1130 = vmatprep.subr.mxu0 0.0
    %1131 = vmatpush1.msra.mxu0 0.0
    %1132 = vmatprep.subr.mxu0 0.0
    %1133 = vmatpush1.msra.mxu0 0.0
    %1134 = vmatprep.subr.mxu0 0.0
    %1135 = vmatpush1.msra.mxu0 0.0
    %1136 = vmatprep.subr.mxu0 0.0
    %1137 = vmatpush1.msra.mxu0 0.0
    %1138 = vmatprep.subr.mxu0 0.0
    %1139 = vmatpush1.msra.mxu0 0.0
    %1140 = vmatprep.subr.mxu0 0.0
    %1141 = vmatpush1.msra.mxu0 0.0
    %1142 = vmatprep.mubr.f32.mxu0 0.0
    %1143 = vmatmul.mubr.f32.gmra.mrb[0].mxu0 %v1076
    %v1144 = vpop.f32.mrb[0].mxu0
    %v1145 = vadd.f32 0.0, %v1144
    %v1146 = vpop.f32.mrb[0].mxu0
    %v1147 = vadd.f32 0.0, %v1146
    %1148 = vdwg.mxu0
    %v1149 = vadd.f32 %v1145, %v336
    %v1150 = vsel %vm776, %v1149, -inf
    %1151 = vmax.xlane.f32.xlu0 %v1150
    %v1152 = vpop.xlane.xlu0 %1151
    %v1153 = vsub.f32 %v1149, %v1152
    %v1154 = vmul.f32 %v1153, 1.442695
    %v1155 = vpow.pop %v1154
    %v1156 = vsel %vm776, %v1155, 0.0
    %1157 = vadd.xlane.f32.xlu0 %v1156
    %v1158 = vpop.xlane.xlu0 %1157
    %v1159 = vlog2.pop %v1158
    %v1160 = vmul.f32 %v1159, 0.6931472
    %v1161 = vsub.f32 %v1153, %v1160
    %1162 = vrot.lane.b32.xlu0 %v1072, 32
    %v1163 = vpop.permute.xlu0 %1162
    %1165 = vrot.lane.b32.xlu0 %v821, 96
    %v1166 = vpop.permute.xlu0 %1165
    %v1168 = vsel %vm795, %v1161, %v1163
    %v1169 = vsel %vm797, %v1168, %v1166
    %v1170 = vsel %vm799, %v1169, 0.0
    %1171 = vst [vmem:[#allocation12 + $0x1] sm:$0x1] %v1170
    %v1172 = vld [vmem:[#allocation3 + $0x2] sm:$0x1]
    %1174 = vrot.lane.b32.xlu0 %v1145, 64
    %v1175 = vpop.permute.xlu0 %1174
    %v1177 = vadd.f32 %v1172, %v1175
    %v1178 = vsel %vm418, %v1177, -inf
    %1179 = vmax.xlane.f32.xlu0 %v1178
    %v1180 = vpop.xlane.xlu0 %1179
    %v1181 = vsub.f32 %v1177, %v1180
    %v1182 = vmul.f32 %v1181, 1.442695
    %v1183 = vpow.pop %v1182
    %v1184 = vsel %vm418, %v1183, 0.0
    %1185 = vadd.xlane.f32.xlu0 %v1184
    %v1186 = vpop.xlane.xlu0 %1185
    %v1187 = vrcp.pop %v1186
    %v1188 = vmul.f32 %v1186, %v1187
    %v1189 = vsub.f32 2.0, %v1188
    %v1190 = vmul.f32 %v1187, %v1189
    %v1191 = vmul.f32 %v1183, %v1190
    %v1193 = vsel %vm226, %v1191, 0
    %1195 = vmatprep.subr.mxu0 0.0
    %1196 = vmatpush1.msra.mxu0 %v315
    %1197 = vmatprep.subr.mxu0 0.0
    %1198 = vmatpush1.msra.mxu0 %v316
    %1199 = vmatprep.subr.mxu0 0.0
    %1200 = vmatpush1.msra.mxu0 0.0
    %1201 = vmatprep.subr.mxu0 0.0
    %1202 = vmatpush1.msra.mxu0 0.0
    %1203 = vmatprep.subr.mxu0 0.0
    %1204 = vmatpush1.msra.mxu0 0.0
    %1205 = vmatprep.subr.mxu0 0.0
    %1206 = vmatpush1.msra.mxu0 0.0
    %1207 = vmatprep.subr.mxu0 0.0
    %1208 = vmatpush1.msra.mxu0 0.0
    %1209 = vmatprep.subr.mxu0 0.0
    %1210 = vmatpush1.msra.mxu0 0.0
    %1211 = vmatprep.subr.mxu0 0.0
    %1212 = vmatpush1.msra.mxu0 0.0
    %1213 = vmatprep.subr.mxu0 0.0
    %1214 = vmatpush1.msra.mxu0 0.0
    %1215 = vmatprep.subr.mxu0 0.0
    %1216 = vmatpush1.msra.mxu0 0.0
    %1217 = vmatprep.subr.mxu0 0.0
    %1218 = vmatpush1.msra.mxu0 0.0
    %1219 = vmatprep.subr.mxu0 0.0
    %1220 = vmatpush1.msra.mxu0 0.0
    %1221 = vmatprep.subr.mxu0 0.0
    %1222 = vmatpush1.msra.mxu0 0.0
    %1223 = vmatprep.subr.mxu0 0.0
    %1224 = vmatpush1.msra.mxu0 0.0
    %1225 = vmatprep.subr.mxu0 0.0
    %1226 = vmatpush1.msra.mxu0 0.0
    %1227 = vmatprep.subr.mxu0 0.0
    %1228 = vmatpush1.msra.mxu0 0.0
    %1229 = vmatprep.subr.mxu0 0.0
    %1230 = vmatpush1.msra.mxu0 0.0
    %1231 = vmatprep.subr.mxu0 0.0
    %1232 = vmatpush1.msra.mxu0 0.0
    %1233 = vmatprep.subr.mxu0 0.0
    %1234 = vmatpush1.msra.mxu0 0.0
    %1235 = vmatprep.subr.mxu0 0.0
    %1236 = vmatpush1.msra.mxu0 0.0
    %1237 = vmatprep.subr.mxu0 0.0
    %1238 = vmatpush1.msra.mxu0 0.0
    %1239 = vmatprep.subr.mxu0 0.0
    %1240 = vmatpush1.msra.mxu0 0.0
    %1241 = vmatprep.subr.mxu0 0.0
    %1242 = vmatpush1.msra.mxu0 0.0
    %1243 = vmatprep.subr.mxu0 0.0
    %1244 = vmatpush1.msra.mxu0 0.0
    %1245 = vmatprep.subr.mxu0 0.0
    %1246 = vmatpush1.msra.mxu0 0.0
    %1247 = vmatprep.subr.mxu0 0.0
    %1248 = vmatpush1.msra.mxu0 0.0
    %1249 = vmatprep.subr.mxu0 0.0
    %1250 = vmatpush1.msra.mxu0 0.0
    %1251 = vmatprep.subr.mxu0 0.0
    %1252 = vmatpush1.msra.mxu0 0.0
    %1253 = vmatprep.subr.mxu0 0.0
    %1254 = vmatpush1.msra.mxu0 0.0
    %1255 = vmatprep.subr.mxu0 0.0
    %1256 = vmatpush1.msra.mxu0 0.0
    %1257 = vmatprep.subr.mxu0 0.0
    %1258 = vmatpush1.msra.mxu0 0.0
    %1259 = vmatprep.mubr.f32.mxu0 0.0
    %1260 = vmatmul.mubr.f32.gmra.mrb[0].mxu0 %v1193
    %v1261 = vpop.f32.mrb[0].mxu0
    %v1262 = vadd.f32 0.0, %v1261
    %v1263 = vpop.f32.mrb[0].mxu0
    %1264 = vdwg.mxu0
    %v1265 = vld [vmem:[#allocation4 + $0x2] sm:$0x1]
    %v1267 = vsel %vm144, %v1262, 0
    %1269 = vmatprep.subr.mxu0 0.0
    %1270 = vmatpush1.msra.mxu0 %v317
    %1271 = vmatprep.subr.mxu0 0.0
    %1272 = vmatpush1.msra.mxu0 %v318
    %1273 = vmatprep.subr.mxu0 0.0
    %1274 = vmatpush1.msra.mxu0 %v319
    %1275 = vmatprep.subr.mxu0 0.0
    %1276 = vmatpush1.msra.mxu0 %v320
    %1277 = vmatprep.subr.mxu0 0.0
    %1278 = vmatpush1.msra.mxu0 0.0
    %1279 = vmatprep.subr.mxu0 0.0
    %1280 = vmatpush1.msra.mxu0 0.0
    %1281 = vmatprep.subr.mxu0 0.0
    %1282 = vmatpush1.msra.mxu0 0.0
    %1283 = vmatprep.subr.mxu0 0.0
    %1284 = vmatpush1.msra.mxu0 0.0
    %1285 = vmatprep.subr.mxu0 0.0
    %1286 = vmatpush1.msra.mxu0 0.0
    %1287 = vmatprep.subr.mxu0 0.0
    %1288 = vmatpush1.msra.mxu0 0.0
    %1289 = vmatprep.subr.mxu0 0.0
    %1290 = vmatpush1.msra.mxu0 0.0
    %1291 = vmatprep.subr.mxu0 0.0
    %1292 = vmatpush1.msra.mxu0 0.0
    %1293 = vmatprep.subr.mxu0 0.0
    %1294 = vmatpush1.msra.mxu0 0.0
    %1295 = vmatprep.subr.mxu0 0.0
    %1296 = vmatpush1.msra.mxu0 0.0
    %1297 = vmatprep.subr.mxu0 0.0
    %1298 = vmatpush1.msra.mxu0 0.0
    %1299 = vmatprep.subr.mxu0 0.0
    %1300 = vmatpush1.msra.mxu0 0.0
    %1301 = vmatprep.subr.mxu0 0.0
    %1302 = vmatpush1.msra.mxu0 0.0
    %1303 = vmatprep.subr.mxu0 0.0
    %1304 = vmatpush1.msra.mxu0 0.0
    %1305 = vmatprep.subr.mxu0 0.0
    %1306 = vmatpush1.msra.mxu0 0.0
    %1307 = vmatprep.subr.mxu0 0.0
    %1308 = vmatpush1.msra.mxu0 0.0
    %1309 = vmatprep.subr.mxu0 0.0
    %1310 = vmatpush1.msra.mxu0 0.0
    %1311 = vmatprep.subr.mxu0 0.0
    %1312 = vmatpush1.msra.mxu0 0.0
    %1313 = vmatprep.subr.mxu0 0.0
    %1314 = vmatpush1.msra.mxu0 0.0
    %1315 = vmatprep.subr.mxu0 0.0
    %1316 = vmatpush1.msra.mxu0 0.0
    %1317 = vmatprep.subr.mxu0 0.0
    %1318 = vmatpush1.msra.mxu0 0.0
    %1319 = vmatprep.subr.mxu0 0.0
    %1320 = vmatpush1.msra.mxu0 0.0
    %1321 = vmatprep.subr.mxu0 0.0
    %1322 = vmatpush1.msra.mxu0 0.0
    %1323 = vmatprep.subr.mxu0 0.0
    %1324 = vmatpush1.msra.mxu0 0.0
    %1325 = vmatprep.subr.mxu0 0.0
    %1326 = vmatpush1.msra.mxu0 0.0
    %1327 = vmatprep.subr.mxu0 0.0
    %1328 = vmatpush1.msra.mxu0 0.0
    %1329 = vmatprep.subr.mxu0 0.0
    %1330 = vmatpush1.msra.mxu0 0.0
    %1331 = vmatprep.subr.mxu0 0.0
    %1332 = vmatpush1.msra.mxu0 0.0
    %1333 = vmatprep.mubr.f32.mxu0 0.0
    %1334 = vmatmul.mubr.f32.gmra.mrb[0].mxu0 %v1267
    %v1335 = vpop.f32.mrb[0].mxu0
    %v1336 = vadd.f32 0.0, %v1335
    %v1337 = vpop.f32.mrb[0].mxu0
    %1338 = vdwg.mxu0
    %v1339 = vadd.f32 %v1265, %v1336
    %v1340 = vmax.f32 %v1339, 0.0
    %v1342 = vsel %vm144, %v1340, 0
    %1344 = vmatprep.subr.mxu0 0.0
    %1345 = vmatpush1.msra.mxu0 %v321
    %1346 = vmatprep.subr.mxu0 0.0
    %1347 = vmatpush1.msra.mxu0 %v322
    %1348 = vmatprep.subr.mxu0 0.0
    %1349 = vmatpush1.msra.mxu0 %v323
    %1350 = vmatprep.subr.mxu0 0.0
    %1351 = vmatpush1.msra.mxu0 %v324
    %1352 = vmatprep.subr.mxu0 0.0
    %1353 = vmatpush1.msra.mxu0 0.0
    %1354 = vmatprep.subr.mxu0 0.0
    %1355 = vmatpush1.msra.mxu0 0.0
    %1356 = vmatprep.subr.mxu0 0.0
    %1357 = vmatpush1.msra.mxu0 0.0
    %1358 = vmatprep.subr.mxu0 0.0
    %1359 = vmatpush1.msra.mxu0 0.0
    %1360 = vmatprep.subr.mxu0 0.0
    %1361 = vmatpush1.msra.mxu0 0.0
    %1362 = vmatprep.subr.mxu0 0.0
    %1363 = vmatpush1.msra.mxu0 0.0
    %1364 = vmatprep.subr.mxu0 0.0
    %1365 = vmatpush1.msra.mxu0 0.0
    %1366 = vmatprep.subr.mxu0 0.0
    %1367 = vmatpush1.msra.mxu0 0.0
    %1368 = vmatprep.subr.mxu0 0.0
    %1369 = vmatpush1.msra.mxu0 0.0
    %1370 = vmatprep.subr.mxu0 0.0
    %1371 = vmatpush1.msra.mxu0 0.0
    %1372 = vmatprep.subr.mxu0 0.0
    %1373 = vmatpush1.msra.mxu0 0.0
    %1374 = vmatprep.subr.mxu0 0.0
    %1375 = vmatpush1.msra.mxu0 0.0
    %1376 = vmatprep.subr.mxu0 0.0
    %1377 = vmatpush1.msra.mxu0 0.0
    %1378 = vmatprep.subr.mxu0 0.0
    %1379 = vmatpush1.msra.mxu0 0.0
    %1380 = vmatprep.subr.mxu0 0.0
    %1381 = vmatpush1.msra.mxu0 0.0
    %1382 = vmatprep.subr.mxu0 0.0
    %1383 = vmatpush1.msra.mxu0 0.0
    %1384 = vmatprep.subr.mxu0 0.0
    %1385 = vmatpush1.msra.mxu0 0.0
    %1386 = vmatprep.subr.mxu0 0.0
    %1387 = vmatpush1.msra.mxu0 0.0
    %1388 = vmatprep.subr.mxu0 0.0
    %1389 = vmatpush1.msra.mxu0 0.0
    %1390 = vmatprep.subr.mxu0 0.0
    %1391 = vmatpush1.msra.mxu0 0.0
    %1392 = vmatprep.subr.mxu0 0.0
    %1393 = vmatpush1.msra.mxu0 0.0
    %1394 = vmatprep.subr.mxu0 0.0
    %1395 = vmatpush1.msra.mxu0 0.0
    %1396 = vmatprep.subr.mxu0 0.0
    %1397 = vmatpush1.msra.mxu0 0.0
    %1398 = vmatprep.subr.mxu0 0.0
    %1399 = vmatpush1.msra.mxu0 0.0
    %1400 = vmatprep.subr.mxu0 0.0
    %1401 = vmatpush1.msra.mxu0 0.0
    %1402 = vmatprep.subr.mxu0 0.0
    %1403 = vmatpush1.msra.mxu0 0.0
    %1404 = vmatprep.subr.mxu0 0.0
    %1405 = vmatpush1.msra.mxu0 0.0
    %1406 = vmatprep.subr.mxu0 0.0
    %1407 = vmatpush1.msra.mxu0 0.0
    %1408 = vmatprep.mubr.f32.mxu0 0.0
    %1409 = vmatmul.mubr.f32.gmra.mrb[0].mxu0 %v1342
    %v1410 = vpop.f32.mrb[0].mxu0
    %v1411 = vadd.f32 0.0, %v1410
    %v1412 = vpop.f32.mrb[0].mxu0
    %1413 = vdwg.mxu0
    %v1414 = vadd.f32 %v1411, %v1147
    %v1415 = vadd.f32 %v1414, %v333
    %v1416 = vxor.u32 %v1415, 2147483648
    %v1417 = vmul.f32 %v1416, 1.442695
    %v1418 = vpow.pop %v1417
    %v1419 = vadd.f32 %v1418, 1.0
    %v1420 = vrcp.pop %v1419
    %v1421 = vmul.f32 1.0, %v1420
    %v1422 = vadd.f32 %v1411, %v665
    %v1423 = vadd.f32 %v1147, %v670
    %1425 = vrot.lane.b32.xlu0 %v1423, 64
    %v1426 = vpop.permute.xlu0 %1425
    %v1428 = vmul.f32 %v1421, %v1426
    %1430 = vrot.lane.b32.xlu0 %v1428, 64
    %v1431 = vpop.permute.xlu0 %1430
    %v1433 = vadd.f32 %v1422, %v1431
    %v1434 = vtanh.pop %v1433
    %v1435 = vsub.f32 1.0, %v1421
    %1437 = vrot.lane.b32.xlu0 %v1434, 96
    %v1438 = vpop.permute.xlu0 %1437
    %v1440 = vmul.f32 %v1435, %v1438
    %v1441 = vmul.f32 %v1421, %v1072
    %v1442 = vadd.f32 %v1440, %v1441
    %1444 = vrot.lane.b32.xlu0 %v1442, 96
    %v1445 = vpop.permute.xlu0 %1444
    %v1446 = vsel %vm144, %v1445, 0
    %1448 = vmatprep.subr.mxu0 %v326
    %1449 = vmatpush1.msra.mxu0 %v325
    %1450 = vmatprep.subr.mxu0 %v328
    %1451 = vmatpush1.msra.mxu0 %v327
    %1452 = vmatprep.subr.mxu0 %v330
    %1453 = vmatpush1.msra.mxu0 %v329
    %1454 = vmatprep.subr.mxu0 %v332
    %1455 = vmatpush1.msra.mxu0 %v331
    %1456 = vmatprep.subr.mxu0 0.0
    %1457 = vmatpush1.msra.mxu0 0.0
    %1458 = vmatprep.subr.mxu0 0.0
    %1459 = vmatpush1.msra.mxu0 0.0
    %1460 = vmatprep.subr.mxu0 0.0
    %1461 = vmatpush1.msra.mxu0 0.0
    %1462 = vmatprep.subr.mxu0 0.0
    %1463 = vmatpush1.msra.mxu0 0.0
    %1464 = vmatprep.subr.mxu0 0.0
    %1465 = vmatpush1.msra.mxu0 0.0
    %1466 = vmatprep.subr.mxu0 0.0
    %1467 = vmatpush1.msra.mxu0 0.0
    %1468 = vmatprep.subr.mxu0 0.0
    %1469 = vmatpush1.msra.mxu0 0.0
    %1470 = vmatprep.subr.mxu0 0.0
    %1471 = vmatpush1.msra.mxu0 0.0
    %1472 = vmatprep.subr.mxu0 0.0
    %1473 = vmatpush1.msra.mxu0 0.0
    %1474 = vmatprep.subr.mxu0 0.0
    %1475 = vmatpush1.msra.mxu0 0.0
    %1476 = vmatprep.subr.mxu0 0.0
    %1477 = vmatpush1.msra.mxu0 0.0
    %1478 = vmatprep.subr.mxu0 0.0
    %1479 = vmatpush1.msra.mxu0 0.0
    %1480 = vmatprep.subr.mxu0 0.0
    %1481 = vmatpush1.msra.mxu0 0.0
    %1482 = vmatprep.subr.mxu0 0.0
    %1483 = vmatpush1.msra.mxu0 0.0
    %1484 = vmatprep.subr.mxu0 0.0
    %1485 = vmatpush1.msra.mxu0 0.0
    %1486 = vmatprep.subr.mxu0 0.0
    %1487 = vmatpush1.msra.mxu0 0.0
    %1488 = vmatprep.subr.mxu0 0.0
    %1489 = vmatpush1.msra.mxu0 0.0
    %1490 = vmatprep.subr.mxu0 0.0
    %1491 = vmatpush1.msra.mxu0 0.0
    %1492 = vmatprep.subr.mxu0 0.0
    %1493 = vmatpush1.msra.mxu0 0.0
    %1494 = vmatprep.subr.mxu0 0.0
    %1495 = vmatpush1.msra.mxu0 0.0
    %1496 = vmatprep.subr.mxu0 0.0
    %1497 = vmatpush1.msra.mxu0 0.0
    %1498 = vmatprep.subr.mxu0 0.0
    %1499 = vmatpush1.msra.mxu0 0.0
    %1500 = vmatprep.subr.mxu0 0.0
    %1501 = vmatpush1.msra.mxu0 0.0
    %1502 = vmatprep.subr.mxu0 0.0
    %1503 = vmatpush1.msra.mxu0 0.0
    %1504 = vmatprep.subr.mxu0 0.0
    %1505 = vmatpush1.msra.mxu0 0.0
    %1506 = vmatprep.subr.mxu0 0.0
    %1507 = vmatpush1.msra.mxu0 0.0
    %1508 = vmatprep.subr.mxu0 0.0
    %1509 = vmatpush1.msra.mxu0 0.0
    %1510 = vmatprep.subr.mxu0 0.0
    %1511 = vmatpush1.msra.mxu0 0.0
    %1512 = vmatprep.mubr.f32.mxu0 0.0
    %1513 = vmatmul.mubr.f32.gmra.mrb[0].mxu0 %v1446
    %v1514 = vpop.f32.mrb[0].mxu0
    %v1515 = vadd.f32 0.0, %v1514
    %v1516 = vpop.f32.mrb[0].mxu0
    %v1517 = vadd.f32 0.0, %v1516
    %1518 = vdwg.mxu0
    %v1519 = vadd.f32 %v1515, %v336
    %v1520 = vsel %vm776, %v1519, -inf
    %1521 = vmax.xlane.f32.xlu0 %v1520
    %v1522 = vpop.xlane.xlu0 %1521
    %v1523 = vsub.f32 %v1519, %v1522
    %v1524 = vmul.f32 %v1523, 1.442695
    %v1525 = vpow.pop %v1524
    %v1526 = vsel %vm776, %v1525, 0.0
    %1527 = vadd.xlane.f32.xlu0 %v1526
    %v1528 = vpop.xlane.xlu0 %1527
    %v1529 = vlog2.pop %v1528
    %v1530 = vmul.f32 %v1529, 0.6931472
    %v1531 = vsub.f32 %v1523, %v1530
    %1532 = vrot.lane.b32.xlu0 %v1442, 32
    %v1533 = vpop.permute.xlu0 %1532
    %1535 = vrot.lane.b32.xlu0 %v1191, 96
    %v1536 = vpop.permute.xlu0 %1535
    %v1538 = vsel %vm795, %v1531, %v1533
    %v1539 = vsel %vm797, %v1538, %v1536
    %v1540 = vsel %vm799, %v1539, 0.0
    %1541 = vst [vmem:[#allocation12 + $0x2] sm:$0x1] %v1540
    %v1542 = vld [vmem:[#allocation3 + $0x3] sm:$0x1]
    %1544 = vrot.lane.b32.xlu0 %v1515, 64
    %v1545 = vpop.permute.xlu0 %1544
    %v1547 = vadd.f32 %v1542, %v1545
    %v1548 = vsel %vm418, %v1547, -inf
    %1549 = vmax.xlane.f32.xlu0 %v1548
    %v1550 = vpop.xlane.xlu0 %1549
    %v1551 = vsub.f32 %v1547, %v1550
    %v1552 = vmul.f32 %v1551, 1.442695
    %v1553 = vpow.pop %v1552
    %v1554 = vsel %vm418, %v1553, 0.0
    %1555 = vadd.xlane.f32.xlu0 %v1554
    %v1556 = vpop.xlane.xlu0 %1555
    %v1557 = vrcp.pop %v1556
    %v1558 = vmul.f32 %v1556, %v1557
    %v1559 = vsub.f32 2.0, %v1558
    %v1560 = vmul.f32 %v1557, %v1559
    %v1561 = vmul.f32 %v1553, %v1560
    %v1563 = vsel %vm226, %v1561, 0
    %1565 = vmatprep.subr.mxu0 0.0
    %1566 = vmatpush1.msra.mxu0 %v315
    %1567 = vmatprep.subr.mxu0 0.0
    %1568 = vmatpush1.msra.mxu0 %v316
    %1569 = vmatprep.subr.mxu0 0.0
    %1570 = vmatpush1.msra.mxu0 0.0
    %1571 = vmatprep.subr.mxu0 0.0
    %1572 = vmatpush1.msra.mxu0 0.0
    %1573 = vmatprep.subr.mxu0 0.0
    %1574 = vmatpush1.msra.mxu0 0.0
    %1575 = vmatprep.subr.mxu0 0.0
    %1576 = vmatpush1.msra.mxu0 0.0
    %1577 = vmatprep.subr.mxu0 0.0
    %1578 = vmatpush1.msra.mxu0 0.0
    %1579 = vmatprep.subr.mxu0 0.0
    %1580 = vmatpush1.msra.mxu0 0.0
    %1581 = vmatprep.subr.mxu0 0.0
    %1582 = vmatpush1.msra.mxu0 0.0
    %1583 = vmatprep.subr.mxu0 0.0
    %1584 = vmatpush1.msra.mxu0 0.0
    %1585 = vmatprep.subr.mxu0 0.0
    %1586 = vmatpush1.msra.mxu0 0.0
    %1587 = vmatprep.subr.mxu0 0.0
    %1588 = vmatpush1.msra.mxu0 0.0
    %1589 = vmatprep.subr.mxu0 0.0
    %1590 = vmatpush1.msra.mxu0 0.0
    %1591 = vmatprep.subr.mxu0 0.0
    %1592 = vmatpush1.msra.mxu0 0.0
    %1593 = vmatprep.subr.mxu0 0.0
    %1594 = vmatpush1.msra.mxu0 0.0
    %1595 = vmatprep.subr.mxu0 0.0
    %1596 = vmatpush1.msra.mxu0 0.0
    %1597 = vmatprep.subr.mxu0 0.0
    %1598 = vmatpush1.msra.mxu0 0.0
    %1599 = vmatprep.subr.mxu0 0.0
    %1600 = vmatpush1.msra.mxu0 0.0
    %1601 = vmatprep.subr.mxu0 0.0
    %1602 = vmatpush1.msra.mxu0 0.0
    %1603 = vmatprep.subr.mxu0 0.0
    %1604 = vmatpush1.msra.mxu0 0.0
    %1605 = vmatprep.subr.mxu0 0.0
    %1606 = vmatpush1.msra.mxu0 0.0
    %1607 = vmatprep.subr.mxu0 0.0
    %1608 = vmatpush1.msra.mxu0 0.0
    %1609 = vmatprep.subr.mxu0 0.0
    %1610 = vmatpush1.msra.mxu0 0.0
    %1611 = vmatprep.subr.mxu0 0.0
    %1612 = vmatpush1.msra.mxu0 0.0
    %1613 = vmatprep.subr.mxu0 0.0
    %1614 = vmatpush1.msra.mxu0 0.0
    %1615 = vmatprep.subr.mxu0 0.0
    %1616 = vmatpush1.msra.mxu0 0.0
    %1617 = vmatprep.subr.mxu0 0.0
    %1618 = vmatpush1.msra.mxu0 0.0
    %1619 = vmatprep.subr.mxu0 0.0
    %1620 = vmatpush1.msra.mxu0 0.0
    %1621 = vmatprep.subr.mxu0 0.0
    %1622 = vmatpush1.msra.mxu0 0.0
    %1623 = vmatprep.subr.mxu0 0.0
    %1624 = vmatpush1.msra.mxu0 0.0
    %1625 = vmatprep.subr.mxu0 0.0
    %1626 = vmatpush1.msra.mxu0 0.0
    %1627 = vmatprep.subr.mxu0 0.0
    %1628 = vmatpush1.msra.mxu0 0.0
    %1629 = vmatprep.mubr.f32.mxu0 0.0
    %1630 = vmatmul.mubr.f32.gmra.mrb[0].mxu0 %v1563
    %v1631 = vpop.f32.mrb[0].mxu0
    %v1632 = vadd.f32 0.0, %v1631
    %v1633 = vpop.f32.mrb[0].mxu0
    %1634 = vdwg.mxu0
    %v1635 = vld [vmem:[#allocation4 + $0x3] sm:$0x1]
    %v1637 = vsel %vm144, %v1632, 0
    %1639 = vmatprep.subr.mxu0 0.0
    %1640 = vmatpush1.msra.mxu0 %v317
    %1641 = vmatprep.subr.mxu0 0.0
    %1642 = vmatpush1.msra.mxu0 %v318
    %1643 = vmatprep.subr.mxu0 0.0
    %1644 = vmatpush1.msra.mxu0 %v319
    %1645 = vmatprep.subr.mxu0 0.0
    %1646 = vmatpush1.msra.mxu0 %v320
    %1647 = vmatprep.subr.mxu0 0.0
    %1648 = vmatpush1.msra.mxu0 0.0
    %1649 = vmatprep.subr.mxu0 0.0
    %1650 = vmatpush1.msra.mxu0 0.0
    %1651 = vmatprep.subr.mxu0 0.0
    %1652 = vmatpush1.msra.mxu0 0.0
    %1653 = vmatprep.subr.mxu0 0.0
    %1654 = vmatpush1.msra.mxu0 0.0
    %1655 = vmatprep.subr.mxu0 0.0
    %1656 = vmatpush1.msra.mxu0 0.0
    %1657 = vmatprep.subr.mxu0 0.0
    %1658 = vmatpush1.msra.mxu0 0.0
    %1659 = vmatprep.subr.mxu0 0.0
    %1660 = vmatpush1.msra.mxu0 0.0
    %1661 = vmatprep.subr.mxu0 0.0
    %1662 = vmatpush1.msra.mxu0 0.0
    %1663 = vmatprep.subr.mxu0 0.0
    %1664 = vmatpush1.msra.mxu0 0.0
    %1665 = vmatprep.subr.mxu0 0.0
    %1666 = vmatpush1.msra.mxu0 0.0
    %1667 = vmatprep.subr.mxu0 0.0
    %1668 = vmatpush1.msra.mxu0 0.0
    %1669 = vmatprep.subr.mxu0 0.0
    %1670 = vmatpush1.msra.mxu0 0.0
    %1671 = vmatprep.subr.mxu0 0.0
    %1672 = vmatpush1.msra.mxu0 0.0
    %1673 = vmatprep.subr.mxu0 0.0
    %1674 = vmatpush1.msra.mxu0 0.0
    %1675 = vmatprep.subr.mxu0 0.0
    %1676 = vmatpush1.msra.mxu0 0.0
    %1677 = vmatprep.subr.mxu0 0.0
    %1678 = vmatpush1.msra.mxu0 0.0
    %1679 = vmatprep.subr.mxu0 0.0
    %1680 = vmatpush1.msra.mxu0 0.0
    %1681 = vmatprep.subr.mxu0 0.0
    %1682 = vmatpush1.msra.mxu0 0.0
    %1683 = vmatprep.subr.mxu0 0.0
    %1684 = vmatpush1.msra.mxu0 0.0
    %1685 = vmatprep.subr.mxu0 0.0
    %1686 = vmatpush1.msra.mxu0 0.0
    %1687 = vmatprep.subr.mxu0 0.0
    %1688 = vmatpush1.msra.mxu0 0.0
    %1689 = vmatprep.subr.mxu0 0.0
    %1690 = vmatpush1.msra.mxu0 0.0
    %1691 = vmatprep.subr.mxu0 0.0
    %1692 = vmatpush1.msra.mxu0 0.0
    %1693 = vmatprep.subr.mxu0 0.0
    %1694 = vmatpush1.msra.mxu0 0.0
    %1695 = vmatprep.subr.mxu0 0.0
    %1696 = vmatpush1.msra.mxu0 0.0
    %1697 = vmatprep.subr.mxu0 0.0
    %1698 = vmatpush1.msra.mxu0 0.0
    %1699 = vmatprep.subr.mxu0 0.0
    %1700 = vmatpush1.msra.mxu0 0.0
    %1701 = vmatprep.subr.mxu0 0.0
    %1702 = vmatpush1.msra.mxu0 0.0
    %1703 = vmatprep.mubr.f32.mxu0 0.0
    %1704 = vmatmul.mubr.f32.gmra.mrb[0].mxu0 %v1637
    %v1705 = vpop.f32.mrb[0].mxu0
    %v1706 = vadd.f32 0.0, %v1705
    %v1707 = vpop.f32.mrb[0].mxu0
    %1708 = vdwg.mxu0
    %v1709 = vadd.f32 %v1635, %v1706
    %v1710 = vmax.f32 %v1709, 0.0
    %v1712 = vsel %vm144, %v1710, 0
    %1714 = vmatprep.subr.mxu0 0.0
    %1715 = vmatpush1.msra.mxu0 %v321
    %1716 = vmatprep.subr.mxu0 0.0
    %1717 = vmatpush1.msra.mxu0 %v322
    %1718 = vmatprep.subr.mxu0 0.0
    %1719 = vmatpush1.msra.mxu0 %v323
    %1720 = vmatprep.subr.mxu0 0.0
    %1721 = vmatpush1.msra.mxu0 %v324
    %1722 = vmatprep.subr.mxu0 0.0
    %1723 = vmatpush1.msra.mxu0 0.0
    %1724 = vmatprep.subr.mxu0 0.0
    %1725 = vmatpush1.msra.mxu0 0.0
    %1726 = vmatprep.subr.mxu0 0.0
    %1727 = vmatpush1.msra.mxu0 0.0
    %1728 = vmatprep.subr.mxu0 0.0
    %1729 = vmatpush1.msra.mxu0 0.0
    %1730 = vmatprep.subr.mxu0 0.0
    %1731 = vmatpush1.msra.mxu0 0.0
    %1732 = vmatprep.subr.mxu0 0.0
    %1733 = vmatpush1.msra.mxu0 0.0
    %1734 = vmatprep.subr.mxu0 0.0
    %1735 = vmatpush1.msra.mxu0 0.0
    %1736 = vmatprep.subr.mxu0 0.0
    %1737 = vmatpush1.msra.mxu0 0.0
    %1738 = vmatprep.subr.mxu0 0.0
    %1739 = vmatpush1.msra.mxu0 0.0
    %1740 = vmatprep.subr.mxu0 0.0
    %1741 = vmatpush1.msra.mxu0 0.0
    %1742 = vmatprep.subr.mxu0 0.0
    %1743 = vmatpush1.msra.mxu0 0.0
    %1744 = vmatprep.subr.mxu0 0.0
    %1745 = vmatpush1.msra.mxu0 0.0
    %1746 = vmatprep.subr.mxu0 0.0
    %1747 = vmatpush1.msra.mxu0 0.0
    %1748 = vmatprep.subr.mxu0 0.0
    %1749 = vmatpush1.msra.mxu0 0.0
    %1750 = vmatprep.subr.mxu0 0.0
    %1751 = vmatpush1.msra.mxu0 0.0
    %1752 = vmatprep.subr.mxu0 0.0
    %1753 = vmatpush1.msra.mxu0 0.0
    %1754 = vmatprep.subr.mxu0 0.0
    %1755 = vmatpush1.msra.mxu0 0.0
    %1756 = vmatprep.subr.mxu0 0.0
    %1757 = vmatpush1.msra.mxu0 0.0
    %1758 = vmatprep.subr.mxu0 0.0
    %1759 = vmatpush1.msra.mxu0 0.0
    %1760 = vmatprep.subr.mxu0 0.0
    %1761 = vmatpush1.msra.mxu0 0.0
    %1762 = vmatprep.subr.mxu0 0.0
    %1763 = vmatpush1.msra.mxu0 0.0
    %1764 = vmatprep.subr.mxu0 0.0
    %1765 = vmatpush1.msra.mxu0 0.0
    %1766 = vmatprep.subr.mxu0 0.0
    %1767 = vmatpush1.msra.mxu0 0.0
    %1768 = vmatprep.subr.mxu0 0.0
    %1769 = vmatpush1.msra.mxu0 0.0
    %1770 = vmatprep.subr.mxu0 0.0
    %1771 = vmatpush1.msra.mxu0 0.0
    %1772 = vmatprep.subr.mxu0 0.0
    %1773 = vmatpush1.msra.mxu0 0.0
    %1774 = vmatprep.subr.mxu0 0.0
    %1775 = vmatpush1.msra.mxu0 0.0
    %1776 = vmatprep.subr.mxu0 0.0
    %1777 = vmatpush1.msra.mxu0 0.0
    %1778 = vmatprep.mubr.f32.mxu0 0.0
    %1779 = vmatmul.mubr.f32.gmra.mrb[0].mxu0 %v1712
    %v1780 = vpop.f32.mrb[0].mxu0
    %v1781 = vadd.f32 0.0, %v1780
    %v1782 = vpop.f32.mrb[0].mxu0
    %1783 = vdwg.mxu0
    %v1784 = vadd.f32 %v1781, %v1517
    %v1785 = vadd.f32 %v1784, %v333
    %v1786 = vxor.u32 %v1785, 2147483648
    %v1787 = vmul.f32 %v1786, 1.442695
    %v1788 = vpow.pop %v1787
    %v1789 = vadd.f32 %v1788, 1.0
    %v1790 = vrcp.pop %v1789
    %v1791 = vmul.f32 1.0, %v1790
    %v1792 = vadd.f32 %v1781, %v665
    %v1793 = vadd.f32 %v1517, %v670
    %1795 = vrot.lane.b32.xlu0 %v1793, 64
    %v1796 = vpop.permute.xlu0 %1795
    %v1798 = vmul.f32 %v1791, %v1796
    %1800 = vrot.lane.b32.xlu0 %v1798, 64
    %v1801 = vpop.permute.xlu0 %1800
    %v1803 = vadd.f32 %v1792, %v1801
    %v1804 = vtanh.pop %v1803
    %v1805 = vsub.f32 1.0, %v1791
    %1807 = vrot.lane.b32.xlu0 %v1804, 96
    %v1808 = vpop.permute.xlu0 %1807
    %v1810 = vmul.f32 %v1805, %v1808
    %v1811 = vmul.f32 %v1791, %v1442
    %v1812 = vadd.f32 %v1810, %v1811
    %1814 = vrot.lane.b32.xlu0 %v1812, 96
    %v1815 = vpop.permute.xlu0 %1814
    %v1816 = vsel %vm144, %v1815, 0
    %1818 = vmatprep.subr.mxu0 %v326
    %1819 = vmatpush1.msra.mxu0 %v325
    %1820 = vmatprep.subr.mxu0 %v328
    %1821 = vmatpush1.msra.mxu0 %v327
    %1822 = vmatprep.subr.mxu0 %v330
    %1823 = vmatpush1.msra.mxu0 %v329
    %1824 = vmatprep.subr.mxu0 %v332
    %1825 = vmatpush1.msra.mxu0 %v331
    %1826 = vmatprep.subr.mxu0 0.0
    %1827 = vmatpush1.msra.mxu0 0.0
    %1828 = vmatprep.subr.mxu0 0.0
    %1829 = vmatpush1.msra.mxu0 0.0
    %1830 = vmatprep.subr.mxu0 0.0
    %1831 = vmatpush1.msra.mxu0 0.0
    %1832 = vmatprep.subr.mxu0 0.0
    %1833 = vmatpush1.msra.mxu0 0.0
    %1834 = vmatprep.subr.mxu0 0.0
    %1835 = vmatpush1.msra.mxu0 0.0
    %1836 = vmatprep.subr.mxu0 0.0
    %1837 = vmatpush1.msra.mxu0 0.0
    %1838 = vmatprep.subr.mxu0 0.0
    %1839 = vmatpush1.msra.mxu0 0.0
    %1840 = vmatprep.subr.mxu0 0.0
    %1841 = vmatpush1.msra.mxu0 0.0
    %1842 = vmatprep.subr.mxu0 0.0
    %1843 = vmatpush1.msra.mxu0 0.0
    %1844 = vmatprep.subr.mxu0 0.0
    %1845 = vmatpush1.msra.mxu0 0.0
    %1846 = vmatprep.subr.mxu0 0.0
    %1847 = vmatpush1.msra.mxu0 0.0
    %1848 = vmatprep.subr.mxu0 0.0
    %1849 = vmatpush1.msra.mxu0 0.0
    %1850 = vmatprep.subr.mxu0 0.0
    %1851 = vmatpush1.msra.mxu0 0.0
    %1852 = vmatprep.subr.mxu0 0.0
    %1853 = vmatpush1.msra.mxu0 0.0
    %1854 = vmatprep.subr.mxu0 0.0
    %1855 = vmatpush1.msra.mxu0 0.0
    %1856 = vmatprep.subr.mxu0 0.0
    %1857 = vmatpush1.msra.mxu0 0.0
    %1858 = vmatprep.subr.mxu0 0.0
    %1859 = vmatpush1.msra.mxu0 0.0
    %1860 = vmatprep.subr.mxu0 0.0
    %1861 = vmatpush1.msra.mxu0 0.0
    %1862 = vmatprep.subr.mxu0 0.0
    %1863 = vmatpush1.msra.mxu0 0.0
    %1864 = vmatprep.subr.mxu0 0.0
    %1865 = vmatpush1.msra.mxu0 0.0
    %1866 = vmatprep.subr.mxu0 0.0
    %1867 = vmatpush1.msra.mxu0 0.0
    %1868 = vmatprep.subr.mxu0 0.0
    %1869 = vmatpush1.msra.mxu0 0.0
    %1870 = vmatprep.subr.mxu0 0.0
    %1871 = vmatpush1.msra.mxu0 0.0
    %1872 = vmatprep.subr.mxu0 0.0
    %1873 = vmatpush1.msra.mxu0 0.0
    %1874 = vmatprep.subr.mxu0 0.0
    %1875 = vmatpush1.msra.mxu0 0.0
    %1876 = vmatprep.subr.mxu0 0.0
    %1877 = vmatpush1.msra.mxu0 0.0
    %1878 = vmatprep.subr.mxu0 0.0
    %1879 = vmatpush1.msra.mxu0 0.0
    %1880 = vmatprep.subr.mxu0 0.0
    %1881 = vmatpush1.msra.mxu0 0.0
    %1882 = vmatprep.mubr.f32.mxu0 0.0
    %1883 = vmatmul.mubr.f32.gmra.mrb[0].mxu0 %v1816
    %v1884 = vpop.f32.mrb[0].mxu0
    %v1885 = vadd.f32 0.0, %v1884
    %v1886 = vpop.f32.mrb[0].mxu0
    %v1887 = vadd.f32 0.0, %v1886
    %1888 = vdwg.mxu0
    %v1889 = vadd.f32 %v1885, %v336
    %v1890 = vsel %vm776, %v1889, -inf
    %1891 = vmax.xlane.f32.xlu0 %v1890
    %v1892 = vpop.xlane.xlu0 %1891
    %v1893 = vsub.f32 %v1889, %v1892
    %v1894 = vmul.f32 %v1893, 1.442695
    %v1895 = vpow.pop %v1894
    %v1896 = vsel %vm776, %v1895, 0.0
    %1897 = vadd.xlane.f32.xlu0 %v1896
    %v1898 = vpop.xlane.xlu0 %1897
    %v1899 = vlog2.pop %v1898
    %v1900 = vmul.f32 %v1899, 0.6931472
    %v1901 = vsub.f32 %v1893, %v1900
    %1902 = vrot.lane.b32.xlu0 %v1812, 32
    %v1903 = vpop.permute.xlu0 %1902
    %1905 = vrot.lane.b32.xlu0 %v1561, 96
    %v1906 = vpop.permute.xlu0 %1905
    %v1908 = vsel %vm795, %v1901, %v1903
    %v1909 = vsel %vm797, %v1908, %v1906
    %v1910 = vsel %vm799, %v1909, 0.0
    %1911 = vst [vmem:[#allocation12 + $0x3] sm:$0x1] %v1910
    %v1912 = vld [vmem:[#allocation3 + $0x4] sm:$0x1]
    %1914 = vrot.lane.b32.xlu0 %v1885, 64
    %v1915 = vpop.permute.xlu0 %1914
    %v1917 = vadd.f32 %v1912, %v1915
    %v1918 = vsel %vm418, %v1917, -inf
    %1919 = vmax.xlane.f32.xlu0 %v1918
    %v1920 = vpop.xlane.xlu0 %1919
    %v1921 = vsub.f32 %v1917, %v1920
    %v1922 = vmul.f32 %v1921, 1.442695
    %v1923 = vpow.pop %v1922
    %v1924 = vsel %vm418, %v1923, 0.0
    %1925 = vadd.xlane.f32.xlu0 %v1924
    %v1926 = vpop.xlane.xlu0 %1925
    %v1927 = vrcp.pop %v1926
    %v1928 = vmul.f32 %v1926, %v1927
    %v1929 = vsub.f32 2.0, %v1928
    %v1930 = vmul.f32 %v1927, %v1929
    %v1931 = vmul.f32 %v1923, %v1930
    %v1933 = vsel %vm226, %v1931, 0
    %1935 = vmatprep.subr.mxu0 0.0
    %1936 = vmatpush1.msra.mxu0 %v315
    %1937 = vmatprep.subr.mxu0 0.0
    %1938 = vmatpush1.msra.mxu0 %v316
    %1939 = vmatprep.subr.mxu0 0.0
    %1940 = vmatpush1.msra.mxu0 0.0
    %1941 = vmatprep.subr.mxu0 0.0
    %1942 = vmatpush1.msra.mxu0 0.0
    %1943 = vmatprep.subr.mxu0 0.0
    %1944 = vmatpush1.msra.mxu0 0.0
    %1945 = vmatprep.subr.mxu0 0.0
    %1946 = vmatpush1.msra.mxu0 0.0
    %1947 = vmatprep.subr.mxu0 0.0
    %1948 = vmatpush1.msra.mxu0 0.0
    %1949 = vmatprep.subr.mxu0 0.0
    %1950 = vmatpush1.msra.mxu0 0.0
    %1951 = vmatprep.subr.mxu0 0.0
    %1952 = vmatpush1.msra.mxu0 0.0
    %1953 = vmatprep.subr.mxu0 0.0
    %1954 = vmatpush1.msra.mxu0 0.0
    %1955 = vmatprep.subr.mxu0 0.0
    %1956 = vmatpush1.msra.mxu0 0.0
    %1957 = vmatprep.subr.mxu0 0.0
    %1958 = vmatpush1.msra.mxu0 0.0
    %1959 = vmatprep.subr.mxu0 0.0
    %1960 = vmatpush1.msra.mxu0 0.0
    %1961 = vmatprep.subr.mxu0 0.0
    %1962 = vmatpush1.msra.mxu0 0.0
    %1963 = vmatprep.subr.mxu0 0.0
    %1964 = vmatpush1.msra.mxu0 0.0
    %1965 = vmatprep.subr.mxu0 0.0
    %1966 = vmatpush1.msra.mxu0 0.0
    %1967 = vmatprep.subr.mxu0 0.0
    %1968 = vmatpush1.msra.mxu0 0.0
    %1969 = vmatprep.subr.mxu0 0.0
    %1970 = vmatpush1.msra.mxu0 0.0
    %1971 = vmatprep.subr.mxu0 0.0
    %1972 = vmatpush1.msra.mxu0 0.0
    %1973 = vmatprep.subr.mxu0 0.0
    %1974 = vmatpush1.msra.mxu0 0.0
    %1975 = vmatprep.subr.mxu0 0.0
    %1976 = vmatpush1.msra.mxu0 0.0
    %1977 = vmatprep.subr.mxu0 0.0
    %1978 = vmatpush1.msra.mxu0 0.0
    %1979 = vmatprep.subr.mxu0 0.0
    %1980 = vmatpush1.msra.mxu0 0.0
    %1981 = vmatprep.subr.mxu0 0.0
    %1982 = vmatpush1.msra.mxu0 0.0
    %1983 = vmatprep.subr.mxu0 0.0
    %1984 = vmatpush1.msra.mxu0 0.0
    %1985 = vmatprep.subr.mxu0 0.0
    %1986 = vmatpush1.msra.mxu0 0.0
    %1987 = vmatprep.subr.mxu0 0.0
    %1988 = vmatpush1.msra.mxu0 0.0
    %1989 = vmatprep.subr.mxu0 0.0
    %1990 = vmatpush1.msra.mxu0 0.0
    %1991 = vmatprep.subr.mxu0 0.0
    %1992 = vmatpush1.msra.mxu0 0.0
    %1993 = vmatprep.subr.mxu0 0.0
    %1994 = vmatpush1.msra.mxu0 0.0
    %1995 = vmatprep.subr.mxu0 0.0
    %1996 = vmatpush1.msra.mxu0 0.0
    %1997 = vmatprep.subr.mxu0 0.0
    %1998 = vmatpush1.msra.mxu0 0.0
    %1999 = vmatprep.mubr.f32.mxu0 0.0
    %2000 = vmatmul.mubr.f32.gmra.mrb[0].mxu0 %v1933
    %v2001 = vpop.f32.mrb[0].mxu0
    %v2002 = vadd.f32 0.0, %v2001
    %v2003 = vpop.f32.mrb[0].mxu0
    %2004 = vdwg.mxu0
    %v2005 = vld [vmem:[#allocation4 + $0x4] sm:$0x1]
    %v2007 = vsel %vm144, %v2002, 0
    %2009 = vmatprep.subr.mxu0 0.0
    %2010 = vmatpush1.msra.mxu0 %v317
    %2011 = vmatprep.subr.mxu0 0.0
    %2012 = vmatpush1.msra.mxu0 %v318
    %2013 = vmatprep.subr.mxu0 0.0
    %2014 = vmatpush1.msra.mxu0 %v319
    %2015 = vmatprep.subr.mxu0 0.0
    %2016 = vmatpush1.msra.mxu0 %v320
    %2017 = vmatprep.subr.mxu0 0.0
    %2018 = vmatpush1.msra.mxu0 0.0
    %2019 = vmatprep.subr.mxu0 0.0
    %2020 = vmatpush1.msra.mxu0 0.0
    %2021 = vmatprep.subr.mxu0 0.0
    %2022 = vmatpush1.msra.mxu0 0.0
    %2023 = vmatprep.subr.mxu0 0.0
    %2024 = vmatpush1.msra.mxu0 0.0
    %2025 = vmatprep.subr.mxu0 0.0
    %2026 = vmatpush1.msra.mxu0 0.0
    %2027 = vmatprep.subr.mxu0 0.0
    %2028 = vmatpush1.msra.mxu0 0.0
    %2029 = vmatprep.subr.mxu0 0.0
    %2030 = vmatpush1.msra.mxu0 0.0
    %2031 = vmatprep.subr.mxu0 0.0
    %2032 = vmatpush1.msra.mxu0 0.0
    %2033 = vmatprep.subr.mxu0 0.0
    %2034 = vmatpush1.msra.mxu0 0.0
    %2035 = vmatprep.subr.mxu0 0.0
    %2036 = vmatpush1.msra.mxu0 0.0
    %2037 = vmatprep.subr.mxu0 0.0
    %2038 = vmatpush1.msra.mxu0 0.0
    %2039 = vmatprep.subr.mxu0 0.0
    %2040 = vmatpush1.msra.mxu0 0.0
    %2041 = vmatprep.subr.mxu0 0.0
    %2042 = vmatpush1.msra.mxu0 0.0
    %2043 = vmatprep.subr.mxu0 0.0
    %2044 = vmatpush1.msra.mxu0 0.0
    %2045 = vmatprep.subr.mxu0 0.0
    %2046 = vmatpush1.msra.mxu0 0.0
    %2047 = vmatprep.subr.mxu0 0.0
    %2048 = vmatpush1.msra.mxu0 0.0
    %2049 = vmatprep.subr.mxu0 0.0
    %2050 = vmatpush1.msra.mxu0 0.0
    %2051 = vmatprep.subr.mxu0 0.0
    %2052 = vmatpush1.msra.mxu0 0.0
    %2053 = vmatprep.subr.mxu0 0.0
    %2054 = vmatpush1.msra.mxu0 0.0
    %2055 = vmatprep.subr.mxu0 0.0
    %2056 = vmatpush1.msra.mxu0 0.0
    %2057 = vmatprep.subr.mxu0 0.0
    %2058 = vmatpush1.msra.mxu0 0.0
    %2059 = vmatprep.subr.mxu0 0.0
    %2060 = vmatpush1.msra.mxu0 0.0
    %2061 = vmatprep.subr.mxu0 0.0
    %2062 = vmatpush1.msra.mxu0 0.0
    %2063 = vmatprep.subr.mxu0 0.0
    %2064 = vmatpush1.msra.mxu0 0.0
    %2065 = vmatprep.subr.mxu0 0.0
    %2066 = vmatpush1.msra.mxu0 0.0
    %2067 = vmatprep.subr.mxu0 0.0
    %2068 = vmatpush1.msra.mxu0 0.0
    %2069 = vmatprep.subr.mxu0 0.0
    %2070 = vmatpush1.msra.mxu0 0.0
    %2071 = vmatprep.subr.mxu0 0.0
    %2072 = vmatpush1.msra.mxu0 0.0
    %2073 = vmatprep.mubr.f32.mxu0 0.0
    %2074 = vmatmul.mubr.f32.gmra.mrb[0].mxu0 %v2007
    %v2075 = vpop.f32.mrb[0].mxu0
    %v2076 = vadd.f32 0.0, %v2075
    %v2077 = vpop.f32.mrb[0].mxu0
    %2078 = vdwg.mxu0
    %v2079 = vadd.f32 %v2005, %v2076
    %v2080 = vmax.f32 %v2079, 0.0
    %v2082 = vsel %vm144, %v2080, 0
    %2084 = vmatprep.subr.mxu0 0.0
    %2085 = vmatpush1.msra.mxu0 %v321
    %2086 = vmatprep.subr.mxu0 0.0
    %2087 = vmatpush1.msra.mxu0 %v322
    %2088 = vmatprep.subr.mxu0 0.0
    %2089 = vmatpush1.msra.mxu0 %v323
    %2090 = vmatprep.subr.mxu0 0.0
    %2091 = vmatpush1.msra.mxu0 %v324
    %2092 = vmatprep.subr.mxu0 0.0
    %2093 = vmatpush1.msra.mxu0 0.0
    %2094 = vmatprep.subr.mxu0 0.0
    %2095 = vmatpush1.msra.mxu0 0.0
    %2096 = vmatprep.subr.mxu0 0.0
    %2097 = vmatpush1.msra.mxu0 0.0
    %2098 = vmatprep.subr.mxu0 0.0
    %2099 = vmatpush1.msra.mxu0 0.0
    %2100 = vmatprep.subr.mxu0 0.0
    %2101 = vmatpush1.msra.mxu0 0.0
    %2102 = vmatprep.subr.mxu0 0.0
    %2103 = vmatpush1.msra.mxu0 0.0
    %2104 = vmatprep.subr.mxu0 0.0
    %2105 = vmatpush1.msra.mxu0 0.0
    %2106 = vmatprep.subr.mxu0 0.0
    %2107 = vmatpush1.msra.mxu0 0.0
    %2108 = vmatprep.subr.mxu0 0.0
    %2109 = vmatpush1.msra.mxu0 0.0
    %2110 = vmatprep.subr.mxu0 0.0
    %2111 = vmatpush1.msra.mxu0 0.0
    %2112 = vmatprep.subr.mxu0 0.0
    %2113 = vmatpush1.msra.mxu0 0.0
    %2114 = vmatprep.subr.mxu0 0.0
    %2115 = vmatpush1.msra.mxu0 0.0
    %2116 = vmatprep.subr.mxu0 0.0
    %2117 = vmatpush1.msra.mxu0 0.0
    %2118 = vmatprep.subr.mxu0 0.0
    %2119 = vmatpush1.msra.mxu0 0.0
    %2120 = vmatprep.subr.mxu0 0.0
    %2121 = vmatpush1.msra.mxu0 0.0
    %2122 = vmatprep.subr.mxu0 0.0
    %2123 = vmatpush1.msra.mxu0 0.0
    %2124 = vmatprep.subr.mxu0 0.0
    %2125 = vmatpush1.msra.mxu0 0.0
    %2126 = vmatprep.subr.mxu0 0.0
    %2127 = vmatpush1.msra.mxu0 0.0
    %2128 = vmatprep.subr.mxu0 0.0
    %2129 = vmatpush1.msra.mxu0 0.0
    %2130 = vmatprep.subr.mxu0 0.0
    %2131 = vmatpush1.msra.mxu0 0.0
    %2132 = vmatprep.subr.mxu0 0.0
    %2133 = vmatpush1.msra.mxu0 0.0
    %2134 = vmatprep.subr.mxu0 0.0
    %2135 = vmatpush1.msra.mxu0 0.0
    %2136 = vmatprep.subr.mxu0 0.0
    %2137 = vmatpush1.msra.mxu0 0.0
    %2138 = vmatprep.subr.mxu0 0.0
    %2139 = vmatpush1.msra.mxu0 0.0
    %2140 = vmatprep.subr.mxu0 0.0
    %2141 = vmatpush1.msra.mxu0 0.0
    %2142 = vmatprep.subr.mxu0 0.0
    %2143 = vmatpush1.msra.mxu0 0.0
    %2144 = vmatprep.subr.mxu0 0.0
    %2145 = vmatpush1.msra.mxu0 0.0
    %2146 = vmatprep.subr.mxu0 0.0
    %2147 = vmatpush1.msra.mxu0 0.0
    %2148 = vmatprep.mubr.f32.mxu0 0.0
    %2149 = vmatmul.mubr.f32.gmra.mrb[0].mxu0 %v2082
    %v2150 = vpop.f32.mrb[0].mxu0
    %v2151 = vadd.f32 0.0, %v2150
    %v2152 = vpop.f32.mrb[0].mxu0
    %2153 = vdwg.mxu0
    %v2154 = vadd.f32 %v2151, %v1887
    %v2155 = vadd.f32 %v2154, %v333
    %v2156 = vxor.u32 %v2155, 2147483648
    %v2157 = vmul.f32 %v2156, 1.442695
    %v2158 = vpow.pop %v2157
    %v2159 = vadd.f32 %v2158, 1.0
    %v2160 = vrcp.pop %v2159
    %v2161 = vmul.f32 1.0, %v2160
    %v2162 = vadd.f32 %v2151, %v665
    %v2163 = vadd.f32 %v1887, %v670
    %2165 = vrot.lane.b32.xlu0 %v2163, 64
    %v2166 = vpop.permute.xlu0 %2165
    %v2168 = vmul.f32 %v2161, %v2166
    %2170 = vrot.lane.b32.xlu0 %v2168, 64
    %v2171 = vpop.permute.xlu0 %2170
    %v2173 = vadd.f32 %v2162, %v2171
    %v2174 = vtanh.pop %v2173
    %v2175 = vsub.f32 1.0, %v2161
    %2177 = vrot.lane.b32.xlu0 %v2174, 96
    %v2178 = vpop.permute.xlu0 %2177
    %v2180 = vmul.f32 %v2175, %v2178
    %v2181 = vmul.f32 %v2161, %v1812
    %v2182 = vadd.f32 %v2180, %v2181
    %2184 = vrot.lane.b32.xlu0 %v2182, 96
    %v2185 = vpop.permute.xlu0 %2184
    %v2186 = vsel %vm144, %v2185, 0
    %2188 = vmatprep.subr.mxu0 %v326
    %2189 = vmatpush1.msra.mxu0 %v325
    %2190 = vmatprep.subr.mxu0 %v328
    %2191 = vmatpush1.msra.mxu0 %v327
    %2192 = vmatprep.subr.mxu0 %v330
    %2193 = vmatpush1.msra.mxu0 %v329
    %2194 = vmatprep.subr.mxu0 %v332
    %2195 = vmatpush1.msra.mxu0 %v331
    %2196 = vmatprep.subr.mxu0 0.0
    %2197 = vmatpush1.msra.mxu0 0.0
    %2198 = vmatprep.subr.mxu0 0.0
    %2199 = vmatpush1.msra.mxu0 0.0
    %2200 = vmatprep.subr.mxu0 0.0
    %2201 = vmatpush1.msra.mxu0 0.0
    %2202 = vmatprep.subr.mxu0 0.0
    %2203 = vmatpush1.msra.mxu0 0.0
    %2204 = vmatprep.subr.mxu0 0.0
    %2205 = vmatpush1.msra.mxu0 0.0
    %2206 = vmatprep.subr.mxu0 0.0
    %2207 = vmatpush1.msra.mxu0 0.0
    %2208 = vmatprep.subr.mxu0 0.0
    %2209 = vmatpush1.msra.mxu0 0.0
    %2210 = vmatprep.subr.mxu0 0.0
    %2211 = vmatpush1.msra.mxu0 0.0
    %2212 = vmatprep.subr.mxu0 0.0
    %2213 = vmatpush1.msra.mxu0 0.0
    %2214 = vmatprep.subr.mxu0 0.0
    %2215 = vmatpush1.msra.mxu0 0.0
    %2216 = vmatprep.subr.mxu0 0.0
    %2217 = vmatpush1.msra.mxu0 0.0
    %2218 = vmatprep.subr.mxu0 0.0
    %2219 = vmatpush1.msra.mxu0 0.0
    %2220 = vmatprep.subr.mxu0 0.0
    %2221 = vmatpush1.msra.mxu0 0.0
    %2222 = vmatprep.subr.mxu0 0.0
    %2223 = vmatpush1.msra.mxu0 0.0
    %2224 = vmatprep.subr.mxu0 0.0
    %2225 = vmatpush1.msra.mxu0 0.0
    %2226 = vmatprep.subr.mxu0 0.0
    %2227 = vmatpush1.msra.mxu0 0.0
    %2228 = vmatprep.subr.mxu0 0.0
    %2229 = vmatpush1.msra.mxu0 0.0
    %2230 = vmatprep.subr.mxu0 0.0
    %2231 = vmatpush1.msra.mxu0 0.0
    %2232 = vmatprep.subr.mxu0 0.0
    %2233 = vmatpush1.msra.mxu0 0.0
    %2234 = vmatprep.subr.mxu0 0.0
    %2235 = vmatpush1.msra.mxu0 0.0
    %2236 = vmatprep.subr.mxu0 0.0
    %2237 = vmatpush1.msra.mxu0 0.0
    %2238 = vmatprep.subr.mxu0 0.0
    %2239 = vmatpush1.msra.mxu0 0.0
    %2240 = vmatprep.subr.mxu0 0.0
    %2241 = vmatpush1.msra.mxu0 0.0
    %2242 = vmatprep.subr.mxu0 0.0
    %2243 = vmatpush1.msra.mxu0 0.0
    %2244 = vmatprep.subr.mxu0 0.0
    %2245 = vmatpush1.msra.mxu0 0.0
    %2246 = vmatprep.subr.mxu0 0.0
    %2247 = vmatpush1.msra.mxu0 0.0
    %2248 = vmatprep.subr.mxu0 0.0
    %2249 = vmatpush1.msra.mxu0 0.0
    %2250 = vmatprep.subr.mxu0 0.0
    %2251 = vmatpush1.msra.mxu0 0.0
    %2252 = vmatprep.mubr.f32.mxu0 0.0
    %2253 = vmatmul.mubr.f32.gmra.mrb[0].mxu0 %v2186
    %v2254 = vpop.f32.mrb[0].mxu0
    %v2255 = vadd.f32 0.0, %v2254
    %v2256 = vpop.f32.mrb[0].mxu0
    %v2257 = vadd.f32 0.0, %v2256
    %2258 = vdwg.mxu0
    %v2259 = vadd.f32 %v2255, %v336
    %v2260 = vsel %vm776, %v2259, -inf
    %2261 = vmax.xlane.f32.xlu0 %v2260
    %v2262 = vpop.xlane.xlu0 %2261
    %v2263 = vsub.f32 %v2259, %v2262
    %v2264 = vmul.f32 %v2263, 1.442695
    %v2265 = vpow.pop %v2264
    %v2266 = vsel %vm776, %v2265, 0.0
    %2267 = vadd.xlane.f32.xlu0 %v2266
    %v2268 = vpop.xlane.xlu0 %2267
    %v2269 = vlog2.pop %v2268
    %v2270 = vmul.f32 %v2269, 0.6931472
    %v2271 = vsub.f32 %v2263, %v2270
    %2272 = vrot.lane.b32.xlu0 %v2182, 32
    %v2273 = vpop.permute.xlu0 %2272
    %2275 = vrot.lane.b32.xlu0 %v1931, 96
    %v2276 = vpop.permute.xlu0 %2275
    %v2278 = vsel %vm795, %v2271, %v2273
    %v2279 = vsel %vm797, %v2278, %v2276
    %v2280 = vsel %vm799, %v2279, 0.0
    %2281 = vst [vmem:[#allocation12 + $0x4] sm:$0x1] %v2280
    %v2282 = vld [vmem:[#allocation3 + $0x5] sm:$0x1]
    %2284 = vrot.lane.b32.xlu0 %v2255, 64
    %v2285 = vpop.permute.xlu0 %2284
    %v2287 = vadd.f32 %v2282, %v2285
    %v2288 = vsel %vm418, %v2287, -inf
    %2289 = vmax.xlane.f32.xlu0 %v2288
    %v2290 = vpop.xlane.xlu0 %2289
    %v2291 = vsub.f32 %v2287, %v2290
    %v2292 = vmul.f32 %v2291, 1.442695
    %v2293 = vpow.pop %v2292
    %v2294 = vsel %vm418, %v2293, 0.0
    %2295 = vadd.xlane.f32.xlu0 %v2294
    %v2296 = vpop.xlane.xlu0 %2295
    %v2297 = vrcp.pop %v2296
    %v2298 = vmul.f32 %v2296, %v2297
    %v2299 = vsub.f32 2.0, %v2298
    %v2300 = vmul.f32 %v2297, %v2299
    %v2301 = vmul.f32 %v2293, %v2300
    %v2303 = vsel %vm226, %v2301, 0
    %2305 = vmatprep.subr.mxu0 0.0
    %2306 = vmatpush1.msra.mxu0 %v315
    %2307 = vmatprep.subr.mxu0 0.0
    %2308 = vmatpush1.msra.mxu0 %v316
    %2309 = vmatprep.subr.mxu0 0.0
    %2310 = vmatpush1.msra.mxu0 0.0
    %2311 = vmatprep.subr.mxu0 0.0
    %2312 = vmatpush1.msra.mxu0 0.0
    %2313 = vmatprep.subr.mxu0 0.0
    %2314 = vmatpush1.msra.mxu0 0.0
    %2315 = vmatprep.subr.mxu0 0.0
    %2316 = vmatpush1.msra.mxu0 0.0
    %2317 = vmatprep.subr.mxu0 0.0
    %2318 = vmatpush1.msra.mxu0 0.0
    %2319 = vmatprep.subr.mxu0 0.0
    %2320 = vmatpush1.msra.mxu0 0.0
    %2321 = vmatprep.subr.mxu0 0.0
    %2322 = vmatpush1.msra.mxu0 0.0
    %2323 = vmatprep.subr.mxu0 0.0
    %2324 = vmatpush1.msra.mxu0 0.0
    %2325 = vmatprep.subr.mxu0 0.0
    %2326 = vmatpush1.msra.mxu0 0.0
    %2327 = vmatprep.subr.mxu0 0.0
    %2328 = vmatpush1.msra.mxu0 0.0
    %2329 = vmatprep.subr.mxu0 0.0
    %2330 = vmatpush1.msra.mxu0 0.0
    %2331 = vmatprep.subr.mxu0 0.0
    %2332 = vmatpush1.msra.mxu0 0.0
    %2333 = vmatprep.subr.mxu0 0.0
    %2334 = vmatpush1.msra.mxu0 0.0
    %2335 = vmatprep.subr.mxu0 0.0
    %2336 = vmatpush1.msra.mxu0 0.0
    %2337 = vmatprep.subr.mxu0 0.0
    %2338 = vmatpush1.msra.mxu0 0.0
    %2339 = vmatprep.subr.mxu0 0.0
    %2340 = vmatpush1.msra.mxu0 0.0
    %2341 = vmatprep.subr.mxu0 0.0
    %2342 = vmatpush1.msra.mxu0 0.0
    %2343 = vmatprep.subr.mxu0 0.0
    %2344 = vmatpush1.msra.mxu0 0.0
    %2345 = vmatprep.subr.mxu0 0.0
    %2346 = vmatpush1.msra.mxu0 0.0
    %2347 = vmatprep.subr.mxu0 0.0
    %2348 = vmatpush1.msra.mxu0 0.0
    %2349 = vmatprep.subr.mxu0 0.0
    %2350 = vmatpush1.msra.mxu0 0.0
    %2351 = vmatprep.subr.mxu0 0.0
    %2352 = vmatpush1.msra.mxu0 0.0
    %2353 = vmatprep.subr.mxu0 0.0
    %2354 = vmatpush1.msra.mxu0 0.0
    %2355 = vmatprep.subr.mxu0 0.0
    %2356 = vmatpush1.msra.mxu0 0.0
    %2357 = vmatprep.subr.mxu0 0.0
    %2358 = vmatpush1.msra.mxu0 0.0
    %2359 = vmatprep.subr.mxu0 0.0
    %2360 = vmatpush1.msra.mxu0 0.0
    %2361 = vmatprep.subr.mxu0 0.0
    %2362 = vmatpush1.msra.mxu0 0.0
    %2363 = vmatprep.subr.mxu0 0.0
    %2364 = vmatpush1.msra.mxu0 0.0
    %2365 = vmatprep.subr.mxu0 0.0
    %2366 = vmatpush1.msra.mxu0 0.0
    %2367 = vmatprep.subr.mxu0 0.0
    %2368 = vmatpush1.msra.mxu0 0.0
    %2369 = vmatprep.mubr.f32.mxu0 0.0
    %2370 = vmatmul.mubr.f32.gmra.mrb[0].mxu0 %v2303
    %v2371 = vpop.f32.mrb[0].mxu0
    %v2372 = vadd.f32 0.0, %v2371
    %v2373 = vpop.f32.mrb[0].mxu0
    %2374 = vdwg.mxu0
    %v2375 = vld [vmem:[#allocation4 + $0x5] sm:$0x1]
    %v2377 = vsel %vm144, %v2372, 0
    %2379 = vmatprep.subr.mxu0 0.0
    %2380 = vmatpush1.msra.mxu0 %v317
    %2381 = vmatprep.subr.mxu0 0.0
    %2382 = vmatpush1.msra.mxu0 %v318
    %2383 = vmatprep.subr.mxu0 0.0
    %2384 = vmatpush1.msra.mxu0 %v319
    %2385 = vmatprep.subr.mxu0 0.0
    %2386 = vmatpush1.msra.mxu0 %v320
    %2387 = vmatprep.subr.mxu0 0.0
    %2388 = vmatpush1.msra.mxu0 0.0
    %2389 = vmatprep.subr.mxu0 0.0
    %2390 = vmatpush1.msra.mxu0 0.0
    %2391 = vmatprep.subr.mxu0 0.0
    %2392 = vmatpush1.msra.mxu0 0.0
    %2393 = vmatprep.subr.mxu0 0.0
    %2394 = vmatpush1.msra.mxu0 0.0
    %2395 = vmatprep.subr.mxu0 0.0
    %2396 = vmatpush1.msra.mxu0 0.0
    %2397 = vmatprep.subr.mxu0 0.0
    %2398 = vmatpush1.msra.mxu0 0.0
    %2399 = vmatprep.subr.mxu0 0.0
    %2400 = vmatpush1.msra.mxu0 0.0
    %2401 = vmatprep.subr.mxu0 0.0
    %2402 = vmatpush1.msra.mxu0 0.0
    %2403 = vmatprep.subr.mxu0 0.0
    %2404 = vmatpush1.msra.mxu0 0.0
    %2405 = vmatprep.subr.mxu0 0.0
    %2406 = vmatpush1.msra.mxu0 0.0
    %2407 = vmatprep.subr.mxu0 0.0
    %2408 = vmatpush1.msra.mxu0 0.0
    %2409 = vmatprep.subr.mxu0 0.0
    %2410 = vmatpush1.msra.mxu0 0.0
    %2411 = vmatprep.subr.mxu0 0.0
    %2412 = vmatpush1.msra.mxu0 0.0
    %2413 = vmatprep.subr.mxu0 0.0
    %2414 = vmatpush1.msra.mxu0 0.0
    %2415 = vmatprep.subr.mxu0 0.0
    %2416 = vmatpush1.msra.mxu0 0.0
    %2417 = vmatprep.subr.mxu0 0.0
    %2418 = vmatpush1.msra.mxu0 0.0
    %2419 = vmatprep.subr.mxu0 0.0
    %2420 = vmatpush1.msra.mxu0 0.0
    %2421 = vmatprep.subr.mxu0 0.0
    %2422 = vmatpush1.msra.mxu0 0.0
    %2423 = vmatprep.subr.mxu0 0.0
    %2424 = vmatpush1.msra.mxu0 0.0
    %2425 = vmatprep.subr.mxu0 0.0
    %2426 = vmatpush1.msra.mxu0 0.0
    %2427 = vmatprep.subr.mxu0 0.0
    %2428 = vmatpush1.msra.mxu0 0.0
    %2429 = vmatprep.subr.mxu0 0.0
    %2430 = vmatpush1.msra.mxu0 0.0
    %2431 = vmatprep.subr.mxu0 0.0
    %2432 = vmatpush1.msra.mxu0 0.0
    %2433 = vmatprep.subr.mxu0 0.0
    %2434 = vmatpush1.msra.mxu0 0.0
    %2435 = vmatprep.subr.mxu0 0.0
    %2436 = vmatpush1.msra.mxu0 0.0
    %2437 = vmatprep.subr.mxu0 0.0
    %2438 = vmatpush1.msra.mxu0 0.0
    %2439 = vmatprep.subr.mxu0 0.0
    %2440 = vmatpush1.msra.mxu0 0.0
    %2441 = vmatprep.subr.mxu0 0.0
    %2442 = vmatpush1.msra.mxu0 0.0
    %2443 = vmatprep.mubr.f32.mxu0 0.0
    %2444 = vmatmul.mubr.f32.gmra.mrb[0].mxu0 %v2377
    %v2445 = vpop.f32.mrb[0].mxu0
    %v2446 = vadd.f32 0.0, %v2445
    %v2447 = vpop.f32.mrb[0].mxu0
    %2448 = vdwg.mxu0
    %v2449 = vadd.f32 %v2375, %v2446
    %v2450 = vmax.f32 %v2449, 0.0
    %v2452 = vsel %vm144, %v2450, 0
    %2454 = vmatprep.subr.mxu0 0.0
    %2455 = vmatpush1.msra.mxu0 %v321
    %2456 = vmatprep.subr.mxu0 0.0
    %2457 = vmatpush1.msra.mxu0 %v322
    %2458 = vmatprep.subr.mxu0 0.0
    %2459 = vmatpush1.msra.mxu0 %v323
    %2460 = vmatprep.subr.mxu0 0.0
    %2461 = vmatpush1.msra.mxu0 %v324
    %2462 = vmatprep.subr.mxu0 0.0
    %2463 = vmatpush1.msra.mxu0 0.0
    %2464 = vmatprep.subr.mxu0 0.0
    %2465 = vmatpush1.msra.mxu0 0.0
    %2466 = vmatprep.subr.mxu0 0.0
    %2467 = vmatpush1.msra.mxu0 0.0
    %2468 = vmatprep.subr.mxu0 0.0
    %2469 = vmatpush1.msra.mxu0 0.0
    %2470 = vmatprep.subr.mxu0 0.0
    %2471 = vmatpush1.msra.mxu0 0.0
    %2472 = vmatprep.subr.mxu0 0.0
    %2473 = vmatpush1.msra.mxu0 0.0
    %2474 = vmatprep.subr.mxu0 0.0
    %2475 = vmatpush1.msra.mxu0 0.0
    %2476 = vmatprep.subr.mxu0 0.0
    %2477 = vmatpush1.msra.mxu0 0.0
    %2478 = vmatprep.subr.mxu0 0.0
    %2479 = vmatpush1.msra.mxu0 0.0
    %2480 = vmatprep.subr.mxu0 0.0
    %2481 = vmatpush1.msra.mxu0 0.0
    %2482 = vmatprep.subr.mxu0 0.0
    %2483 = vmatpush1.msra.mxu0 0.0
    %2484 = vmatprep.subr.mxu0 0.0
    %2485 = vmatpush1.msra.mxu0 0.0
    %2486 = vmatprep.subr.mxu0 0.0
    %2487 = vmatpush1.msra.mxu0 0.0
    %2488 = vmatprep.subr.mxu0 0.0
    %2489 = vmatpush1.msra.mxu0 0.0
    %2490 = vmatprep.subr.mxu0 0.0
    %2491 = vmatpush1.msra.mxu0 0.0
    %2492 = vmatprep.subr.mxu0 0.0
    %2493 = vmatpush1.msra.mxu0 0.0
    %2494 = vmatprep.subr.mxu0 0.0
    %2495 = vmatpush1.msra.mxu0 0.0
    %2496 = vmatprep.subr.mxu0 0.0
    %2497 = vmatpush1.msra.mxu0 0.0
    %2498 = vmatprep.subr.mxu0 0.0
    %2499 = vmatpush1.msra.mxu0 0.0
    %2500 = vmatprep.subr.mxu0 0.0
    %2501 = vmatpush1.msra.mxu0 0.0
    %2502 = vmatprep.subr.mxu0 0.0
    %2503 = vmatpush1.msra.mxu0 0.0
    %2504 = vmatprep.subr.mxu0 0.0
    %2505 = vmatpush1.msra.mxu0 0.0
    %2506 = vmatprep.subr.mxu0 0.0
    %2507 = vmatpush1.msra.mxu0 0.0
    %2508 = vmatprep.subr.mxu0 0.0
    %2509 = vmatpush1.msra.mxu0 0.0
    %2510 = vmatprep.subr.mxu0 0.0
    %2511 = vmatpush1.msra.mxu0 0.0
    %2512 = vmatprep.subr.mxu0 0.0
    %2513 = vmatpush1.msra.mxu0 0.0
    %2514 = vmatprep.subr.mxu0 0.0
    %2515 = vmatpush1.msra.mxu0 0.0
    %2516 = vmatprep.subr.mxu0 0.0
    %2517 = vmatpush1.msra.mxu0 0.0
    %2518 = vmatprep.mubr.f32.mxu0 0.0
    %2519 = vmatmul.mubr.f32.gmra.mrb[0].mxu0 %v2452
    %v2520 = vpop.f32.mrb[0].mxu0
    %v2521 = vadd.f32 0.0, %v2520
    %v2522 = vpop.f32.mrb[0].mxu0
    %2523 = vdwg.mxu0
    %v2524 = vadd.f32 %v2521, %v2257
    %v2525 = vadd.f32 %v2524, %v333
    %v2526 = vxor.u32 %v2525, 2147483648
    %v2527 = vmul.f32 %v2526, 1.442695
    %v2528 = vpow.pop %v2527
    %v2529 = vadd.f32 %v2528, 1.0
    %v2530 = vrcp.pop %v2529
    %v2531 = vmul.f32 1.0, %v2530
    %v2532 = vadd.f32 %v2521, %v665
    %v2533 = vadd.f32 %v2257, %v670
    %2535 = vrot.lane.b32.xlu0 %v2533, 64
    %v2536 = vpop.permute.xlu0 %2535
    %v2538 = vmul.f32 %v2531, %v2536
    %2540 = vrot.lane.b32.xlu0 %v2538, 64
    %v2541 = vpop.permute.xlu0 %2540
    %v2543 = vadd.f32 %v2532, %v2541
    %v2544 = vtanh.pop %v2543
    %v2545 = vsub.f32 1.0, %v2531
    %2547 = vrot.lane.b32.xlu0 %v2544, 96
    %v2548 = vpop.permute.xlu0 %2547
    %v2550 = vmul.f32 %v2545, %v2548
    %v2551 = vmul.f32 %v2531, %v2182
    %v2552 = vadd.f32 %v2550, %v2551
    %2554 = vrot.lane.b32.xlu0 %v2552, 96
    %v2555 = vpop.permute.xlu0 %2554
    %v2556 = vsel %vm144, %v2555, 0
    %2558 = vmatprep.subr.mxu0 %v326
    %2559 = vmatpush1.msra.mxu0 %v325
    %2560 = vmatprep.subr.mxu0 %v328
    %2561 = vmatpush1.msra.mxu0 %v327
    %2562 = vmatprep.subr.mxu0 %v330
    %2563 = vmatpush1.msra.mxu0 %v329
    %2564 = vmatprep.subr.mxu0 %v332
    %2565 = vmatpush1.msra.mxu0 %v331
    %2566 = vmatprep.subr.mxu0 0.0
    %2567 = vmatpush1.msra.mxu0 0.0
    %2568 = vmatprep.subr.mxu0 0.0
    %2569 = vmatpush1.msra.mxu0 0.0
    %2570 = vmatprep.subr.mxu0 0.0
    %2571 = vmatpush1.msra.mxu0 0.0
    %2572 = vmatprep.subr.mxu0 0.0
    %2573 = vmatpush1.msra.mxu0 0.0
    %2574 = vmatprep.subr.mxu0 0.0
    %2575 = vmatpush1.msra.mxu0 0.0
    %2576 = vmatprep.subr.mxu0 0.0
    %2577 = vmatpush1.msra.mxu0 0.0
    %2578 = vmatprep.subr.mxu0 0.0
    %2579 = vmatpush1.msra.mxu0 0.0
    %2580 = vmatprep.subr.mxu0 0.0
    %2581 = vmatpush1.msra.mxu0 0.0
    %2582 = vmatprep.subr.mxu0 0.0
    %2583 = vmatpush1.msra.mxu0 0.0
    %2584 = vmatprep.subr.mxu0 0.0
    %2585 = vmatpush1.msra.mxu0 0.0
    %2586 = vmatprep.subr.mxu0 0.0
    %2587 = vmatpush1.msra.mxu0 0.0
    %2588 = vmatprep.subr.mxu0 0.0
    %2589 = vmatpush1.msra.mxu0 0.0
    %2590 = vmatprep.subr.mxu0 0.0
    %2591 = vmatpush1.msra.mxu0 0.0
    %2592 = vmatprep.subr.mxu0 0.0
    %2593 = vmatpush1.msra.mxu0 0.0
    %2594 = vmatprep.subr.mxu0 0.0
    %2595 = vmatpush1.msra.mxu0 0.0
    %2596 = vmatprep.subr.mxu0 0.0
    %2597 = vmatpush1.msra.mxu0 0.0
    %2598 = vmatprep.subr.mxu0 0.0
    %2599 = vmatpush1.msra.mxu0 0.0
    %2600 = vmatprep.subr.mxu0 0.0
    %2601 = vmatpush1.msra.mxu0 0.0
    %2602 = vmatprep.subr.mxu0 0.0
    %2603 = vmatpush1.msra.mxu0 0.0
    %2604 = vmatprep.subr.mxu0 0.0
    %2605 = vmatpush1.msra.mxu0 0.0
    %2606 = vmatprep.subr.mxu0 0.0
    %2607 = vmatpush1.msra.mxu0 0.0
    %2608 = vmatprep.subr.mxu0 0.0
    %2609 = vmatpush1.msra.mxu0 0.0
    %2610 = vmatprep.subr.mxu0 0.0
    %2611 = vmatpush1.msra.mxu0 0.0
    %2612 = vmatprep.subr.mxu0 0.0
    %2613 = vmatpush1.msra.mxu0 0.0
    %2614 = vmatprep.subr.mxu0 0.0
    %2615 = vmatpush1.msra.mxu0 0.0
    %2616 = vmatprep.subr.mxu0 0.0
    %2617 = vmatpush1.msra.mxu0 0.0
    %2618 = vmatprep.subr.mxu0 0.0
    %2619 = vmatpush1.msra.mxu0 0.0
    %2620 = vmatprep.subr.mxu0 0.0
    %2621 = vmatpush1.msra.mxu0 0.0
    %2622 = vmatprep.mubr.f32.mxu0 0.0
    %2623 = vmatmul.mubr.f32.gmra.mrb[0].mxu0 %v2556
    %v2624 = vpop.f32.mrb[0].mxu0
    %v2625 = vadd.f32 0.0, %v2624
    %v2626 = vpop.f32.mrb[0].mxu0
    %v2627 = vadd.f32 0.0, %v2626
    %2628 = vdwg.mxu0
    %v2629 = vadd.f32 %v2625, %v336
    %v2630 = vsel %vm776, %v2629, -inf
    %2631 = vmax.xlane.f32.xlu0 %v2630
    %v2632 = vpop.xlane.xlu0 %2631
    %v2633 = vsub.f32 %v2629, %v2632
    %v2634 = vmul.f32 %v2633, 1.442695
    %v2635 = vpow.pop %v2634
    %v2636 = vsel %vm776, %v2635, 0.0
    %2637 = vadd.xlane.f32.xlu0 %v2636
    %v2638 = vpop.xlane.xlu0 %2637
    %v2639 = vlog2.pop %v2638
    %v2640 = vmul.f32 %v2639, 0.6931472
    %v2641 = vsub.f32 %v2633, %v2640
    %2642 = vrot.lane.b32.xlu0 %v2552, 32
    %v2643 = vpop.permute.xlu0 %2642
    %2645 = vrot.lane.b32.xlu0 %v2301, 96
    %v2646 = vpop.permute.xlu0 %2645
    %v2648 = vsel %vm795, %v2641, %v2643
    %v2649 = vsel %vm797, %v2648, %v2646
    %v2650 = vsel %vm799, %v2649, 0.0
    %2651 = vst [vmem:[#allocation12 + $0x5] sm:$0x1] %v2650
    %v2652 = vld [vmem:[#allocation3 + $0x6] sm:$0x1]
    %2654 = vrot.lane.b32.xlu0 %v2625, 64
    %v2655 = vpop.permute.xlu0 %2654
    %v2657 = vadd.f32 %v2652, %v2655
    %v2658 = vsel %vm418, %v2657, -inf
    %2659 = vmax.xlane.f32.xlu0 %v2658
    %v2660 = vpop.xlane.xlu0 %2659
    %v2661 = vsub.f32 %v2657, %v2660
    %v2662 = vmul.f32 %v2661, 1.442695
    %v2663 = vpow.pop %v2662
    %v2664 = vsel %vm418, %v2663, 0.0
    %2665 = vadd.xlane.f32.xlu0 %v2664
    %v2666 = vpop.xlane.xlu0 %2665
    %v2667 = vrcp.pop %v2666
    %v2668 = vmul.f32 %v2666, %v2667
    %v2669 = vsub.f32 2.0, %v2668
    %v2670 = vmul.f32 %v2667, %v2669
    %v2671 = vmul.f32 %v2663, %v2670
    %v2673 = vsel %vm226, %v2671, 0
    %2675 = vmatprep.subr.mxu0 0.0
    %2676 = vmatpush1.msra.mxu0 %v315
    %2677 = vmatprep.subr.mxu0 0.0
    %2678 = vmatpush1.msra.mxu0 %v316
    %2679 = vmatprep.subr.mxu0 0.0
    %2680 = vmatpush1.msra.mxu0 0.0
    %2681 = vmatprep.subr.mxu0 0.0
    %2682 = vmatpush1.msra.mxu0 0.0
    %2683 = vmatprep.subr.mxu0 0.0
    %2684 = vmatpush1.msra.mxu0 0.0
    %2685 = vmatprep.subr.mxu0 0.0
    %2686 = vmatpush1.msra.mxu0 0.0
    %2687 = vmatprep.subr.mxu0 0.0
    %2688 = vmatpush1.msra.mxu0 0.0
    %2689 = vmatprep.subr.mxu0 0.0
    %2690 = vmatpush1.msra.mxu0 0.0
    %2691 = vmatprep.subr.mxu0 0.0
    %2692 = vmatpush1.msra.mxu0 0.0
    %2693 = vmatprep.subr.mxu0 0.0
    %2694 = vmatpush1.msra.mxu0 0.0
    %2695 = vmatprep.subr.mxu0 0.0
    %2696 = vmatpush1.msra.mxu0 0.0
    %2697 = vmatprep.subr.mxu0 0.0
    %2698 = vmatpush1.msra.mxu0 0.0
    %2699 = vmatprep.subr.mxu0 0.0
    %2700 = vmatpush1.msra.mxu0 0.0
    %2701 = vmatprep.subr.mxu0 0.0
    %2702 = vmatpush1.msra.mxu0 0.0
    %2703 = vmatprep.subr.mxu0 0.0
    %2704 = vmatpush1.msra.mxu0 0.0
    %2705 = vmatprep.subr.mxu0 0.0
    %2706 = vmatpush1.msra.mxu0 0.0
    %2707 = vmatprep.subr.mxu0 0.0
    %2708 = vmatpush1.msra.mxu0 0.0
    %2709 = vmatprep.subr.mxu0 0.0
    %2710 = vmatpush1.msra.mxu0 0.0
    %2711 = vmatprep.subr.mxu0 0.0
    %2712 = vmatpush1.msra.mxu0 0.0
    %2713 = vmatprep.subr.mxu0 0.0
    %2714 = vmatpush1.msra.mxu0 0.0
    %2715 = vmatprep.subr.mxu0 0.0
    %2716 = vmatpush1.msra.mxu0 0.0
    %2717 = vmatprep.subr.mxu0 0.0
    %2718 = vmatpush1.msra.mxu0 0.0
    %2719 = vmatprep.subr.mxu0 0.0
    %2720 = vmatpush1.msra.mxu0 0.0
    %2721 = vmatprep.subr.mxu0 0.0
    %2722 = vmatpush1.msra.mxu0 0.0
    %2723 = vmatprep.subr.mxu0 0.0
    %2724 = vmatpush1.msra.mxu0 0.0
    %2725 = vmatprep.subr.mxu0 0.0
    %2726 = vmatpush1.msra.mxu0 0.0
    %2727 = vmatprep.subr.mxu0 0.0
    %2728 = vmatpush1.msra.mxu0 0.0
    %2729 = vmatprep.subr.mxu0 0.0
    %2730 = vmatpush1.msra.mxu0 0.0
    %2731 = vmatprep.subr.mxu0 0.0
    %2732 = vmatpush1.msra.mxu0 0.0
    %2733 = vmatprep.subr.mxu0 0.0
    %2734 = vmatpush1.msra.mxu0 0.0
    %2735 = vmatprep.subr.mxu0 0.0
    %2736 = vmatpush1.msra.mxu0 0.0
    %2737 = vmatprep.subr.mxu0 0.0
    %2738 = vmatpush1.msra.mxu0 0.0
    %2739 = vmatprep.mubr.f32.mxu0 0.0
    %2740 = vmatmul.mubr.f32.gmra.mrb[0].mxu0 %v2673
    %v2741 = vpop.f32.mrb[0].mxu0
    %v2742 = vadd.f32 0.0, %v2741
    %v2743 = vpop.f32.mrb[0].mxu0
    %2744 = vdwg.mxu0
    %v2745 = vld [vmem:[#allocation4 + $0x6] sm:$0x1]
    %v2747 = vsel %vm144, %v2742, 0
    %2749 = vmatprep.subr.mxu0 0.0
    %2750 = vmatpush1.msra.mxu0 %v317
    %2751 = vmatprep.subr.mxu0 0.0
    %2752 = vmatpush1.msra.mxu0 %v318
    %2753 = vmatprep.subr.mxu0 0.0
    %2754 = vmatpush1.msra.mxu0 %v319
    %2755 = vmatprep.subr.mxu0 0.0
    %2756 = vmatpush1.msra.mxu0 %v320
    %2757 = vmatprep.subr.mxu0 0.0
    %2758 = vmatpush1.msra.mxu0 0.0
    %2759 = vmatprep.subr.mxu0 0.0
    %2760 = vmatpush1.msra.mxu0 0.0
    %2761 = vmatprep.subr.mxu0 0.0
    %2762 = vmatpush1.msra.mxu0 0.0
    %2763 = vmatprep.subr.mxu0 0.0
    %2764 = vmatpush1.msra.mxu0 0.0
    %2765 = vmatprep.subr.mxu0 0.0
    %2766 = vmatpush1.msra.mxu0 0.0
    %2767 = vmatprep.subr.mxu0 0.0
    %2768 = vmatpush1.msra.mxu0 0.0
    %2769 = vmatprep.subr.mxu0 0.0
    %2770 = vmatpush1.msra.mxu0 0.0
    %2771 = vmatprep.subr.mxu0 0.0
    %2772 = vmatpush1.msra.mxu0 0.0
    %2773 = vmatprep.subr.mxu0 0.0
    %2774 = vmatpush1.msra.mxu0 0.0
    %2775 = vmatprep.subr.mxu0 0.0
    %2776 = vmatpush1.msra.mxu0 0.0
    %2777 = vmatprep.subr.mxu0 0.0
    %2778 = vmatpush1.msra.mxu0 0.0
    %2779 = vmatprep.subr.mxu0 0.0
    %2780 = vmatpush1.msra.mxu0 0.0
    %2781 = vmatprep.subr.mxu0 0.0
    %2782 = vmatpush1.msra.mxu0 0.0
    %2783 = vmatprep.subr.mxu0 0.0
    %2784 = vmatpush1.msra.mxu0 0.0
    %2785 = vmatprep.subr.mxu0 0.0
    %2786 = vmatpush1.msra.mxu0 0.0
    %2787 = vmatprep.subr.mxu0 0.0
    %2788 = vmatpush1.msra.mxu0 0.0
    %2789 = vmatprep.subr.mxu0 0.0
    %2790 = vmatpush1.msra.mxu0 0.0
    %2791 = vmatprep.subr.mxu0 0.0
    %2792 = vmatpush1.msra.mxu0 0.0
    %2793 = vmatprep.subr.mxu0 0.0
    %2794 = vmatpush1.msra.mxu0 0.0
    %2795 = vmatprep.subr.mxu0 0.0
    %2796 = vmatpush1.msra.mxu0 0.0
    %2797 = vmatprep.subr.mxu0 0.0
    %2798 = vmatpush1.msra.mxu0 0.0
    %2799 = vmatprep.subr.mxu0 0.0
    %2800 = vmatpush1.msra.mxu0 0.0
    %2801 = vmatprep.subr.mxu0 0.0
    %2802 = vmatpush1.msra.mxu0 0.0
    %2803 = vmatprep.subr.mxu0 0.0
    %2804 = vmatpush1.msra.mxu0 0.0
    %2805 = vmatprep.subr.mxu0 0.0
    %2806 = vmatpush1.msra.mxu0 0.0
    %2807 = vmatprep.subr.mxu0 0.0
    %2808 = vmatpush1.msra.mxu0 0.0
    %2809 = vmatprep.subr.mxu0 0.0
    %2810 = vmatpush1.msra.mxu0 0.0
    %2811 = vmatprep.subr.mxu0 0.0
    %2812 = vmatpush1.msra.mxu0 0.0
    %2813 = vmatprep.mubr.f32.mxu0 0.0
    %2814 = vmatmul.mubr.f32.gmra.mrb[0].mxu0 %v2747
    %v2815 = vpop.f32.mrb[0].mxu0
    %v2816 = vadd.f32 0.0, %v2815
    %v2817 = vpop.f32.mrb[0].mxu0
    %2818 = vdwg.mxu0
    %v2819 = vadd.f32 %v2745, %v2816
    %v2820 = vmax.f32 %v2819, 0.0
    %v2822 = vsel %vm144, %v2820, 0
    %2824 = vmatprep.subr.mxu0 0.0
    %2825 = vmatpush1.msra.mxu0 %v321
    %2826 = vmatprep.subr.mxu0 0.0
    %2827 = vmatpush1.msra.mxu0 %v322
    %2828 = vmatprep.subr.mxu0 0.0
    %2829 = vmatpush1.msra.mxu0 %v323
    %2830 = vmatprep.subr.mxu0 0.0
    %2831 = vmatpush1.msra.mxu0 %v324
    %2832 = vmatprep.subr.mxu0 0.0
    %2833 = vmatpush1.msra.mxu0 0.0
    %2834 = vmatprep.subr.mxu0 0.0
    %2835 = vmatpush1.msra.mxu0 0.0
    %2836 = vmatprep.subr.mxu0 0.0
    %2837 = vmatpush1.msra.mxu0 0.0
    %2838 = vmatprep.subr.mxu0 0.0
    %2839 = vmatpush1.msra.mxu0 0.0
    %2840 = vmatprep.subr.mxu0 0.0
    %2841 = vmatpush1.msra.mxu0 0.0
    %2842 = vmatprep.subr.mxu0 0.0
    %2843 = vmatpush1.msra.mxu0 0.0
    %2844 = vmatprep.subr.mxu0 0.0
    %2845 = vmatpush1.msra.mxu0 0.0
    %2846 = vmatprep.subr.mxu0 0.0
    %2847 = vmatpush1.msra.mxu0 0.0
    %2848 = vmatprep.subr.mxu0 0.0
    %2849 = vmatpush1.msra.mxu0 0.0
    %2850 = vmatprep.subr.mxu0 0.0
    %2851 = vmatpush1.msra.mxu0 0.0
    %2852 = vmatprep.subr.mxu0 0.0
    %2853 = vmatpush1.msra.mxu0 0.0
    %2854 = vmatprep.subr.mxu0 0.0
    %2855 = vmatpush1.msra.mxu0 0.0
    %2856 = vmatprep.subr.mxu0 0.0
    %2857 = vmatpush1.msra.mxu0 0.0
    %2858 = vmatprep.subr.mxu0 0.0
    %2859 = vmatpush1.msra.mxu0 0.0
    %2860 = vmatprep.subr.mxu0 0.0
    %2861 = vmatpush1.msra.mxu0 0.0
    %2862 = vmatprep.subr.mxu0 0.0
    %2863 = vmatpush1.msra.mxu0 0.0
    %2864 = vmatprep.subr.mxu0 0.0
    %2865 = vmatpush1.msra.mxu0 0.0
    %2866 = vmatprep.subr.mxu0 0.0
    %2867 = vmatpush1.msra.mxu0 0.0
    %2868 = vmatprep.subr.mxu0 0.0
    %2869 = vmatpush1.msra.mxu0 0.0
    %2870 = vmatprep.subr.mxu0 0.0
    %2871 = vmatpush1.msra.mxu0 0.0
    %2872 = vmatprep.subr.mxu0 0.0
    %2873 = vmatpush1.msra.mxu0 0.0
    %2874 = vmatprep.subr.mxu0 0.0
    %2875 = vmatpush1.msra.mxu0 0.0
    %2876 = vmatprep.subr.mxu0 0.0
    %2877 = vmatpush1.msra.mxu0 0.0
    %2878 = vmatprep.subr.mxu0 0.0
    %2879 = vmatpush1.msra.mxu0 0.0
    %2880 = vmatprep.subr.mxu0 0.0
    %2881 = vmatpush1.msra.mxu0 0.0
    %2882 = vmatprep.subr.mxu0 0.0
    %2883 = vmatpush1.msra.mxu0 0.0
    %2884 = vmatprep.subr.mxu0 0.0
    %2885 = vmatpush1.msra.mxu0 0.0
    %2886 = vmatprep.subr.mxu0 0.0
    %2887 = vmatpush1.msra.mxu0 0.0
    %2888 = vmatprep.mubr.f32.mxu0 0.0
    %2889 = vmatmul.mubr.f32.gmra.mrb[0].mxu0 %v2822
    %v2890 = vpop.f32.mrb[0].mxu0
    %v2891 = vadd.f32 0.0, %v2890
    %v2892 = vpop.f32.mrb[0].mxu0
    %2893 = vdwg.mxu0
    %v2894 = vadd.f32 %v2891, %v2627
    %v2895 = vadd.f32 %v2894, %v333
    %v2896 = vxor.u32 %v2895, 2147483648
    %v2897 = vmul.f32 %v2896, 1.442695
    %v2898 = vpow.pop %v2897
    %v2899 = vadd.f32 %v2898, 1.0
    %v2900 = vrcp.pop %v2899
    %v2901 = vmul.f32 1.0, %v2900
    %v2902 = vadd.f32 %v2891, %v665
    %v2903 = vadd.f32 %v2627, %v670
    %2905 = vrot.lane.b32.xlu0 %v2903, 64
    %v2906 = vpop.permute.xlu0 %2905
    %v2908 = vmul.f32 %v2901, %v2906
    %2910 = vrot.lane.b32.xlu0 %v2908, 64
    %v2911 = vpop.permute.xlu0 %2910
    %v2913 = vadd.f32 %v2902, %v2911
    %v2914 = vtanh.pop %v2913
    %v2915 = vsub.f32 1.0, %v2901
    %2917 = vrot.lane.b32.xlu0 %v2914, 96
    %v2918 = vpop.permute.xlu0 %2917
    %v2920 = vmul.f32 %v2915, %v2918
    %v2921 = vmul.f32 %v2901, %v2552
    %v2922 = vadd.f32 %v2920, %v2921
    %2924 = vrot.lane.b32.xlu0 %v2922, 96
    %v2925 = vpop.permute.xlu0 %2924
    %v2926 = vsel %vm144, %v2925, 0
    %2928 = vmatprep.subr.mxu0 %v326
    %2929 = vmatpush1.msra.mxu0 %v325
    %2930 = vmatprep.subr.mxu0 %v328
    %2931 = vmatpush1.msra.mxu0 %v327
    %2932 = vmatprep.subr.mxu0 %v330
    %2933 = vmatpush1.msra.mxu0 %v329
    %2934 = vmatprep.subr.mxu0 %v332
    %2935 = vmatpush1.msra.mxu0 %v331
    %2936 = vmatprep.subr.mxu0 0.0
    %2937 = vmatpush1.msra.mxu0 0.0
    %2938 = vmatprep.subr.mxu0 0.0
    %2939 = vmatpush1.msra.mxu0 0.0
    %2940 = vmatprep.subr.mxu0 0.0
    %2941 = vmatpush1.msra.mxu0 0.0
    %2942 = vmatprep.subr.mxu0 0.0
    %2943 = vmatpush1.msra.mxu0 0.0
    %2944 = vmatprep.subr.mxu0 0.0
    %2945 = vmatpush1.msra.mxu0 0.0
    %2946 = vmatprep.subr.mxu0 0.0
    %2947 = vmatpush1.msra.mxu0 0.0
    %2948 = vmatprep.subr.mxu0 0.0
    %2949 = vmatpush1.msra.mxu0 0.0
    %2950 = vmatprep.subr.mxu0 0.0
    %2951 = vmatpush1.msra.mxu0 0.0
    %2952 = vmatprep.subr.mxu0 0.0
    %2953 = vmatpush1.msra.mxu0 0.0
    %2954 = vmatprep.subr.mxu0 0.0
    %2955 = vmatpush1.msra.mxu0 0.0
    %2956 = vmatprep.subr.mxu0 0.0
    %2957 = vmatpush1.msra.mxu0 0.0
    %2958 = vmatprep.subr.mxu0 0.0
    %2959 = vmatpush1.msra.mxu0 0.0
    %2960 = vmatprep.subr.mxu0 0.0
    %2961 = vmatpush1.msra.mxu0 0.0
    %2962 = vmatprep.subr.mxu0 0.0
    %2963 = vmatpush1.msra.mxu0 0.0
    %2964 = vmatprep.subr.mxu0 0.0
    %2965 = vmatpush1.msra.mxu0 0.0
    %2966 = vmatprep.subr.mxu0 0.0
    %2967 = vmatpush1.msra.mxu0 0.0
    %2968 = vmatprep.subr.mxu0 0.0
    %2969 = vmatpush1.msra.mxu0 0.0
    %2970 = vmatprep.subr.mxu0 0.0
    %2971 = vmatpush1.msra.mxu0 0.0
    %2972 = vmatprep.subr.mxu0 0.0
    %2973 = vmatpush1.msra.mxu0 0.0
    %2974 = vmatprep.subr.mxu0 0.0
    %2975 = vmatpush1.msra.mxu0 0.0
    %2976 = vmatprep.subr.mxu0 0.0
    %2977 = vmatpush1.msra.mxu0 0.0
    %2978 = vmatprep.subr.mxu0 0.0
    %2979 = vmatpush1.msra.mxu0 0.0
    %2980 = vmatprep.subr.mxu0 0.0
    %2981 = vmatpush1.msra.mxu0 0.0
    %2982 = vmatprep.subr.mxu0 0.0
    %2983 = vmatpush1.msra.mxu0 0.0
    %2984 = vmatprep.subr.mxu0 0.0
    %2985 = vmatpush1.msra.mxu0 0.0
    %2986 = vmatprep.subr.mxu0 0.0
    %2987 = vmatpush1.msra.mxu0 0.0
    %2988 = vmatprep.subr.mxu0 0.0
    %2989 = vmatpush1.msra.mxu0 0.0
    %2990 = vmatprep.subr.mxu0 0.0
    %2991 = vmatpush1.msra.mxu0 0.0
    %2992 = vmatprep.mubr.f32.mxu0 0.0
    %2993 = vmatmul.mubr.f32.gmra.mrb[0].mxu0 %v2926
    %v2994 = vpop.f32.mrb[0].mxu0
    %v2995 = vadd.f32 0.0, %v2994
    %v2996 = vpop.f32.mrb[0].mxu0
    %v2997 = vadd.f32 0.0, %v2996
    %2998 = vdwg.mxu0
    %v2999 = vadd.f32 %v2995, %v336
    %v3000 = vsel %vm776, %v2999, -inf
    %3001 = vmax.xlane.f32.xlu0 %v3000
    %v3002 = vpop.xlane.xlu0 %3001
    %v3003 = vsub.f32 %v2999, %v3002
    %v3004 = vmul.f32 %v3003, 1.442695
    %v3005 = vpow.pop %v3004
    %v3006 = vsel %vm776, %v3005, 0.0
    %3007 = vadd.xlane.f32.xlu0 %v3006
    %v3008 = vpop.xlane.xlu0 %3007
    %v3009 = vlog2.pop %v3008
    %v3010 = vmul.f32 %v3009, 0.6931472
    %v3011 = vsub.f32 %v3003, %v3010
    %3012 = vrot.lane.b32.xlu0 %v2922, 32
    %v3013 = vpop.permute.xlu0 %3012
    %3015 = vrot.lane.b32.xlu0 %v2671, 96
    %v3016 = vpop.permute.xlu0 %3015
    %v3018 = vsel %vm795, %v3011, %v3013
    %v3019 = vsel %vm797, %v3018, %v3016
    %v3020 = vsel %vm799, %v3019, 0.0
    %3021 = vst [vmem:[#allocation12 + $0x6] sm:$0x1] %v3020
    %v3022 = vld [vmem:[#allocation3 + $0x7] sm:$0x1]
    %3024 = vrot.lane.b32.xlu0 %v2995, 64
    %v3025 = vpop.permute.xlu0 %3024
    %v3027 = vadd.f32 %v3022, %v3025
    %v3028 = vsel %vm418, %v3027, -inf
    %3029 = vmax.xlane.f32.xlu0 %v3028
    %v3030 = vpop.xlane.xlu0 %3029
    %v3031 = vsub.f32 %v3027, %v3030
    %v3032 = vmul.f32 %v3031, 1.442695
    %v3033 = vpow.pop %v3032
    %v3034 = vsel %vm418, %v3033, 0.0
    %3035 = vadd.xlane.f32.xlu0 %v3034
    %v3036 = vpop.xlane.xlu0 %3035
    %v3037 = vrcp.pop %v3036
    %v3038 = vmul.f32 %v3036, %v3037
    %v3039 = vsub.f32 2.0, %v3038
    %v3040 = vmul.f32 %v3037, %v3039
    %v3041 = vmul.f32 %v3033, %v3040
    %v3043 = vsel %vm226, %v3041, 0
    %3045 = vmatprep.subr.mxu0 0.0
    %3046 = vmatpush1.msra.mxu0 %v315
    %3047 = vmatprep.subr.mxu0 0.0
    %3048 = vmatpush1.msra.mxu0 %v316
    %3049 = vmatprep.subr.mxu0 0.0
    %3050 = vmatpush1.msra.mxu0 0.0
    %3051 = vmatprep.subr.mxu0 0.0
    %3052 = vmatpush1.msra.mxu0 0.0
    %3053 = vmatprep.subr.mxu0 0.0
    %3054 = vmatpush1.msra.mxu0 0.0
    %3055 = vmatprep.subr.mxu0 0.0
    %3056 = vmatpush1.msra.mxu0 0.0
    %3057 = vmatprep.subr.mxu0 0.0
    %3058 = vmatpush1.msra.mxu0 0.0
    %3059 = vmatprep.subr.mxu0 0.0
    %3060 = vmatpush1.msra.mxu0 0.0
    %3061 = vmatprep.subr.mxu0 0.0
    %3062 = vmatpush1.msra.mxu0 0.0
    %3063 = vmatprep.subr.mxu0 0.0
    %3064 = vmatpush1.msra.mxu0 0.0
    %3065 = vmatprep.subr.mxu0 0.0
    %3066 = vmatpush1.msra.mxu0 0.0
    %3067 = vmatprep.subr.mxu0 0.0
    %3068 = vmatpush1.msra.mxu0 0.0
    %3069 = vmatprep.subr.mxu0 0.0
    %3070 = vmatpush1.msra.mxu0 0.0
    %3071 = vmatprep.subr.mxu0 0.0
    %3072 = vmatpush1.msra.mxu0 0.0
    %3073 = vmatprep.subr.mxu0 0.0
    %3074 = vmatpush1.msra.mxu0 0.0
    %3075 = vmatprep.subr.mxu0 0.0
    %3076 = vmatpush1.msra.mxu0 0.0
    %3077 = vmatprep.subr.mxu0 0.0
    %3078 = vmatpush1.msra.mxu0 0.0
    %3079 = vmatprep.subr.mxu0 0.0
    %3080 = vmatpush1.msra.mxu0 0.0
    %3081 = vmatprep.subr.mxu0 0.0
    %3082 = vmatpush1.msra.mxu0 0.0
    %3083 = vmatprep.subr.mxu0 0.0
    %3084 = vmatpush1.msra.mxu0 0.0
    %3085 = vmatprep.subr.mxu0 0.0
    %3086 = vmatpush1.msra.mxu0 0.0
    %3087 = vmatprep.subr.mxu0 0.0
    %3088 = vmatpush1.msra.mxu0 0.0
    %3089 = vmatprep.subr.mxu0 0.0
    %3090 = vmatpush1.msra.mxu0 0.0
    %3091 = vmatprep.subr.mxu0 0.0
    %3092 = vmatpush1.msra.mxu0 0.0
    %3093 = vmatprep.subr.mxu0 0.0
    %3094 = vmatpush1.msra.mxu0 0.0
    %3095 = vmatprep.subr.mxu0 0.0
    %3096 = vmatpush1.msra.mxu0 0.0
    %3097 = vmatprep.subr.mxu0 0.0
    %3098 = vmatpush1.msra.mxu0 0.0
    %3099 = vmatprep.subr.mxu0 0.0
    %3100 = vmatpush1.msra.mxu0 0.0
    %3101 = vmatprep.subr.mxu0 0.0
    %3102 = vmatpush1.msra.mxu0 0.0
    %3103 = vmatprep.subr.mxu0 0.0
    %3104 = vmatpush1.msra.mxu0 0.0
    %3105 = vmatprep.subr.mxu0 0.0
    %3106 = vmatpush1.msra.mxu0 0.0
    %3107 = vmatprep.subr.mxu0 0.0
    %3108 = vmatpush1.msra.mxu0 0.0
    %3109 = vmatprep.mubr.f32.mxu0 0.0
    %3110 = vmatmul.mubr.f32.gmra.mrb[0].mxu0 %v3043
    %v3111 = vpop.f32.mrb[0].mxu0
    %v3112 = vadd.f32 0.0, %v3111
    %v3113 = vpop.f32.mrb[0].mxu0
    %3114 = vdwg.mxu0
    %v3115 = vld [vmem:[#allocation4 + $0x7] sm:$0x1]
    %v3117 = vsel %vm144, %v3112, 0
    %3119 = vmatprep.subr.mxu0 0.0
    %3120 = vmatpush1.msra.mxu0 %v317
    %3121 = vmatprep.subr.mxu0 0.0
    %3122 = vmatpush1.msra.mxu0 %v318
    %3123 = vmatprep.subr.mxu0 0.0
    %3124 = vmatpush1.msra.mxu0 %v319
    %3125 = vmatprep.subr.mxu0 0.0
    %3126 = vmatpush1.msra.mxu0 %v320
    %3127 = vmatprep.subr.mxu0 0.0
    %3128 = vmatpush1.msra.mxu0 0.0
    %3129 = vmatprep.subr.mxu0 0.0
    %3130 = vmatpush1.msra.mxu0 0.0
    %3131 = vmatprep.subr.mxu0 0.0
    %3132 = vmatpush1.msra.mxu0 0.0
    %3133 = vmatprep.subr.mxu0 0.0
    %3134 = vmatpush1.msra.mxu0 0.0
    %3135 = vmatprep.subr.mxu0 0.0
    %3136 = vmatpush1.msra.mxu0 0.0
    %3137 = vmatprep.subr.mxu0 0.0
    %3138 = vmatpush1.msra.mxu0 0.0
    %3139 = vmatprep.subr.mxu0 0.0
    %3140 = vmatpush1.msra.mxu0 0.0
    %3141 = vmatprep.subr.mxu0 0.0
    %3142 = vmatpush1.msra.mxu0 0.0
    %3143 = vmatprep.subr.mxu0 0.0
    %3144 = vmatpush1.msra.mxu0 0.0
    %3145 = vmatprep.subr.mxu0 0.0
    %3146 = vmatpush1.msra.mxu0 0.0
    %3147 = vmatprep.subr.mxu0 0.0
    %3148 = vmatpush1.msra.mxu0 0.0
    %3149 = vmatprep.subr.mxu0 0.0
    %3150 = vmatpush1.msra.mxu0 0.0
    %3151 = vmatprep.subr.mxu0 0.0
    %3152 = vmatpush1.msra.mxu0 0.0
    %3153 = vmatprep.subr.mxu0 0.0
    %3154 = vmatpush1.msra.mxu0 0.0
    %3155 = vmatprep.subr.mxu0 0.0
    %3156 = vmatpush1.msra.mxu0 0.0
    %3157 = vmatprep.subr.mxu0 0.0
    %3158 = vmatpush1.msra.mxu0 0.0
    %3159 = vmatprep.subr.mxu0 0.0
    %3160 = vmatpush1.msra.mxu0 0.0
    %3161 = vmatprep.subr.mxu0 0.0
    %3162 = vmatpush1.msra.mxu0 0.0
    %3163 = vmatprep.subr.mxu0 0.0
    %3164 = vmatpush1.msra.mxu0 0.0
    %3165 = vmatprep.subr.mxu0 0.0
    %3166 = vmatpush1.msra.mxu0 0.0
    %3167 = vmatprep.subr.mxu0 0.0
    %3168 = vmatpush1.msra.mxu0 0.0
    %3169 = vmatprep.subr.mxu0 0.0
    %3170 = vmatpush1.msra.mxu0 0.0
    %3171 = vmatprep.subr.mxu0 0.0
    %3172 = vmatpush1.msra.mxu0 0.0
    %3173 = vmatprep.subr.mxu0 0.0
    %3174 = vmatpush1.msra.mxu0 0.0
    %3175 = vmatprep.subr.mxu0 0.0
    %3176 = vmatpush1.msra.mxu0 0.0
    %3177 = vmatprep.subr.mxu0 0.0
    %3178 = vmatpush1.msra.mxu0 0.0
    %3179 = vmatprep.subr.mxu0 0.0
    %3180 = vmatpush1.msra.mxu0 0.0
    %3181 = vmatprep.subr.mxu0 0.0
    %3182 = vmatpush1.msra.mxu0 0.0
    %3183 = vmatprep.mubr.f32.mxu0 0.0
    %3184 = vmatmul.mubr.f32.gmra.mrb[0].mxu0 %v3117
    %v3185 = vpop.f32.mrb[0].mxu0
    %v3186 = vadd.f32 0.0, %v3185
    %v3187 = vpop.f32.mrb[0].mxu0
    %3188 = vdwg.mxu0
    %v3189 = vadd.f32 %v3115, %v3186
    %v3190 = vmax.f32 %v3189, 0.0
    %v3192 = vsel %vm144, %v3190, 0
    %3194 = vmatprep.subr.mxu0 0.0
    %3195 = vmatpush1.msra.mxu0 %v321
    %3196 = vmatprep.subr.mxu0 0.0
    %3197 = vmatpush1.msra.mxu0 %v322
    %3198 = vmatprep.subr.mxu0 0.0
    %3199 = vmatpush1.msra.mxu0 %v323
    %3200 = vmatprep.subr.mxu0 0.0
    %3201 = vmatpush1.msra.mxu0 %v324
    %3202 = vmatprep.subr.mxu0 0.0
    %3203 = vmatpush1.msra.mxu0 0.0
    %3204 = vmatprep.subr.mxu0 0.0
    %3205 = vmatpush1.msra.mxu0 0.0
    %3206 = vmatprep.subr.mxu0 0.0
    %3207 = vmatpush1.msra.mxu0 0.0
    %3208 = vmatprep.subr.mxu0 0.0
    %3209 = vmatpush1.msra.mxu0 0.0
    %3210 = vmatprep.subr.mxu0 0.0
    %3211 = vmatpush1.msra.mxu0 0.0
    %3212 = vmatprep.subr.mxu0 0.0
    %3213 = vmatpush1.msra.mxu0 0.0
    %3214 = vmatprep.subr.mxu0 0.0
    %3215 = vmatpush1.msra.mxu0 0.0
    %3216 = vmatprep.subr.mxu0 0.0
    %3217 = vmatpush1.msra.mxu0 0.0
    %3218 = vmatprep.subr.mxu0 0.0
    %3219 = vmatpush1.msra.mxu0 0.0
    %3220 = vmatprep.subr.mxu0 0.0
    %3221 = vmatpush1.msra.mxu0 0.0
    %3222 = vmatprep.subr.mxu0 0.0
    %3223 = vmatpush1.msra.mxu0 0.0
    %3224 = vmatprep.subr.mxu0 0.0
    %3225 = vmatpush1.msra.mxu0 0.0
    %3226 = vmatprep.subr.mxu0 0.0
    %3227 = vmatpush1.msra.mxu0 0.0
    %3228 = vmatprep.subr.mxu0 0.0
    %3229 = vmatpush1.msra.mxu0 0.0
    %3230 = vmatprep.subr.mxu0 0.0
    %3231 = vmatpush1.msra.mxu0 0.0
    %3232 = vmatprep.subr.mxu0 0.0
    %3233 = vmatpush1.msra.mxu0 0.0
    %3234 = vmatprep.subr.mxu0 0.0
    %3235 = vmatpush1.msra.mxu0 0.0
    %3236 = vmatprep.subr.mxu0 0.0
    %3237 = vmatpush1.msra.mxu0 0.0
    %3238 = vmatprep.subr.mxu0 0.0
    %3239 = vmatpush1.msra.mxu0 0.0
    %3240 = vmatprep.subr.mxu0 0.0
    %3241 = vmatpush1.msra.mxu0 0.0
    %3242 = vmatprep.subr.mxu0 0.0
    %3243 = vmatpush1.msra.mxu0 0.0
    %3244 = vmatprep.subr.mxu0 0.0
    %3245 = vmatpush1.msra.mxu0 0.0
    %3246 = vmatprep.subr.mxu0 0.0
    %3247 = vmatpush1.msra.mxu0 0.0
    %3248 = vmatprep.subr.mxu0 0.0
    %3249 = vmatpush1.msra.mxu0 0.0
    %3250 = vmatprep.subr.mxu0 0.0
    %3251 = vmatpush1.msra.mxu0 0.0
    %3252 = vmatprep.subr.mxu0 0.0
    %3253 = vmatpush1.msra.mxu0 0.0
    %3254 = vmatprep.subr.mxu0 0.0
    %3255 = vmatpush1.msra.mxu0 0.0
    %3256 = vmatprep.subr.mxu0 0.0
    %3257 = vmatpush1.msra.mxu0 0.0
    %3258 = vmatprep.mubr.f32.mxu0 0.0
    %3259 = vmatmul.mubr.f32.gmra.mrb[0].mxu0 %v3192
    %v3260 = vpop.f32.mrb[0].mxu0
    %v3261 = vadd.f32 0.0, %v3260
    %v3262 = vpop.f32.mrb[0].mxu0
    %3263 = vdwg.mxu0
    %v3264 = vadd.f32 %v3261, %v2997
    %v3265 = vadd.f32 %v3264, %v333
    %v3266 = vxor.u32 %v3265, 2147483648
    %v3267 = vmul.f32 %v3266, 1.442695
    %v3268 = vpow.pop %v3267
    %v3269 = vadd.f32 %v3268, 1.0
    %v3270 = vrcp.pop %v3269
    %v3271 = vmul.f32 1.0, %v3270
    %v3272 = vadd.f32 %v3261, %v665
    %v3273 = vadd.f32 %v2997, %v670
    %3275 = vrot.lane.b32.xlu0 %v3273, 64
    %v3276 = vpop.permute.xlu0 %3275
    %v3278 = vmul.f32 %v3271, %v3276
    %3280 = vrot.lane.b32.xlu0 %v3278, 64
    %v3281 = vpop.permute.xlu0 %3280
    %v3283 = vadd.f32 %v3272, %v3281
    %v3284 = vtanh.pop %v3283
    %v3285 = vsub.f32 1.0, %v3271
    %3287 = vrot.lane.b32.xlu0 %v3284, 96
    %v3288 = vpop.permute.xlu0 %3287
    %v3290 = vmul.f32 %v3285, %v3288
    %v3291 = vmul.f32 %v3271, %v2922
    %v3292 = vadd.f32 %v3290, %v3291
    %3294 = vrot.lane.b32.xlu0 %v3292, 96
    %v3295 = vpop.permute.xlu0 %3294
    %v3296 = vsel %vm144, %v3295, 0
    %3298 = vmatprep.subr.mxu0 %v326
    %3299 = vmatpush1.msra.mxu0 %v325
    %3300 = vmatprep.subr.mxu0 %v328
    %3301 = vmatpush1.msra.mxu0 %v327
    %3302 = vmatprep.subr.mxu0 %v330
    %3303 = vmatpush1.msra.mxu0 %v329
    %3304 = vmatprep.subr.mxu0 %v332
    %3305 = vmatpush1.msra.mxu0 %v331
    %3306 = vmatprep.subr.mxu0 0.0
    %3307 = vmatpush1.msra.mxu0 0.0
    %3308 = vmatprep.subr.mxu0 0.0
    %3309 = vmatpush1.msra.mxu0 0.0
    %3310 = vmatprep.subr.mxu0 0.0
    %3311 = vmatpush1.msra.mxu0 0.0
    %3312 = vmatprep.subr.mxu0 0.0
    %3313 = vmatpush1.msra.mxu0 0.0
    %3314 = vmatprep.subr.mxu0 0.0
    %3315 = vmatpush1.msra.mxu0 0.0
    %3316 = vmatprep.subr.mxu0 0.0
    %3317 = vmatpush1.msra.mxu0 0.0
    %3318 = vmatprep.subr.mxu0 0.0
    %3319 = vmatpush1.msra.mxu0 0.0
    %3320 = vmatprep.subr.mxu0 0.0
    %3321 = vmatpush1.msra.mxu0 0.0
    %3322 = vmatprep.subr.mxu0 0.0
    %3323 = vmatpush1.msra.mxu0 0.0
    %3324 = vmatprep.subr.mxu0 0.0
    %3325 = vmatpush1.msra.mxu0 0.0
    %3326 = vmatprep.subr.mxu0 0.0
    %3327 = vmatpush1.msra.mxu0 0.0
    %3328 = vmatprep.subr.mxu0 0.0
    %3329 = vmatpush1.msra.mxu0 0.0
    %3330 = vmatprep.subr.mxu0 0.0
    %3331 = vmatpush1.msra.mxu0 0.0
    %3332 = vmatprep.subr.mxu0 0.0
    %3333 = vmatpush1.msra.mxu0 0.0
    %3334 = vmatprep.subr.mxu0 0.0
    %3335 = vmatpush1.msra.mxu0 0.0
    %3336 = vmatprep.subr.mxu0 0.0
    %3337 = vmatpush1.msra.mxu0 0.0
    %3338 = vmatprep.subr.mxu0 0.0
    %3339 = vmatpush1.msra.mxu0 0.0
    %3340 = vmatprep.subr.mxu0 0.0
    %3341 = vmatpush1.msra.mxu0 0.0
    %3342 = vmatprep.subr.mxu0 0.0
    %3343 = vmatpush1.msra.mxu0 0.0
    %3344 = vmatprep.subr.mxu0 0.0
    %3345 = vmatpush1.msra.mxu0 0.0
    %3346 = vmatprep.subr.mxu0 0.0
    %3347 = vmatpush1.msra.mxu0 0.0
    %3348 = vmatprep.subr.mxu0 0.0
    %3349 = vmatpush1.msra.mxu0 0.0
    %3350 = vmatprep.subr.mxu0 0.0
    %3351 = vmatpush1.msra.mxu0 0.0
    %3352 = vmatprep.subr.mxu0 0.0
    %3353 = vmatpush1.msra.mxu0 0.0
    %3354 = vmatprep.subr.mxu0 0.0
    %3355 = vmatpush1.msra.mxu0 0.0
    %3356 = vmatprep.subr.mxu0 0.0
    %3357 = vmatpush1.msra.mxu0 0.0
    %3358 = vmatprep.subr.mxu0 0.0
    %3359 = vmatpush1.msra.mxu0 0.0
    %3360 = vmatprep.subr.mxu0 0.0
    %3361 = vmatpush1.msra.mxu0 0.0
    %3362 = vmatprep.mubr.f32.mxu0 0.0
    %3363 = vmatmul.mubr.f32.gmra.mrb[0].mxu0 %v3296
    %v3364 = vpop.f32.mrb[0].mxu0
    %v3365 = vadd.f32 0.0, %v3364
    %v3366 = vpop.f32.mrb[0].mxu0
    %v3367 = vadd.f32 0.0, %v3366
    %3368 = vdwg.mxu0
    %v3369 = vadd.f32 %v3365, %v336
    %v3370 = vsel %vm776, %v3369, -inf
    %3371 = vmax.xlane.f32.xlu0 %v3370
    %v3372 = vpop.xlane.xlu0 %3371
    %v3373 = vsub.f32 %v3369, %v3372
    %v3374 = vmul.f32 %v3373, 1.442695
    %v3375 = vpow.pop %v3374
    %v3376 = vsel %vm776, %v3375, 0.0
    %3377 = vadd.xlane.f32.xlu0 %v3376
    %v3378 = vpop.xlane.xlu0 %3377
    %v3379 = vlog2.pop %v3378
    %v3380 = vmul.f32 %v3379, 0.6931472
    %v3381 = vsub.f32 %v3373, %v3380
    %3382 = vrot.lane.b32.xlu0 %v3292, 32
    %v3383 = vpop.permute.xlu0 %3382
    %3385 = vrot.lane.b32.xlu0 %v3041, 96
    %v3386 = vpop.permute.xlu0 %3385
    %v3388 = vsel %vm795, %v3381, %v3383
    %v3389 = vsel %vm797, %v3388, %v3386
    %v3390 = vsel %vm799, %v3389, 0.0
    %3391 = vst [vmem:[#allocation12 + $0x7] sm:$0x1] %v3390
    %v3392 = vld [vmem:[#allocation3 + $0x8] sm:$0x1]
    %3394 = vrot.lane.b32.xlu0 %v3365, 64
    %v3395 = vpop.permute.xlu0 %3394
    %v3397 = vadd.f32 %v3392, %v3395
    %v3398 = vsel %vm418, %v3397, -inf
    %3399 = vmax.xlane.f32.xlu0 %v3398
    %v3400 = vpop.xlane.xlu0 %3399
    %v3401 = vsub.f32 %v3397, %v3400
    %v3402 = vmul.f32 %v3401, 1.442695
    %v3403 = vpow.pop %v3402
    %v3404 = vsel %vm418, %v3403, 0.0
    %3405 = vadd.xlane.f32.xlu0 %v3404
    %v3406 = vpop.xlane.xlu0 %3405
    %v3407 = vrcp.pop %v3406
    %v3408 = vmul.f32 %v3406, %v3407
    %v3409 = vsub.f32 2.0, %v3408
    %v3410 = vmul.f32 %v3407, %v3409
    %v3411 = vmul.f32 %v3403, %v3410
    %v3413 = vsel %vm226, %v3411, 0
    %3415 = vmatprep.subr.mxu0 0.0
    %3416 = vmatpush1.msra.mxu0 %v315
    %3417 = vmatprep.subr.mxu0 0.0
    %3418 = vmatpush1.msra.mxu0 %v316
    %3419 = vmatprep.subr.mxu0 0.0
    %3420 = vmatpush1.msra.mxu0 0.0
    %3421 = vmatprep.subr.mxu0 0.0
    %3422 = vmatpush1.msra.mxu0 0.0
    %3423 = vmatprep.subr.mxu0 0.0
    %3424 = vmatpush1.msra.mxu0 0.0
    %3425 = vmatprep.subr.mxu0 0.0
    %3426 = vmatpush1.msra.mxu0 0.0
    %3427 = vmatprep.subr.mxu0 0.0
    %3428 = vmatpush1.msra.mxu0 0.0
    %3429 = vmatprep.subr.mxu0 0.0
    %3430 = vmatpush1.msra.mxu0 0.0
    %3431 = vmatprep.subr.mxu0 0.0
    %3432 = vmatpush1.msra.mxu0 0.0
    %3433 = vmatprep.subr.mxu0 0.0
    %3434 = vmatpush1.msra.mxu0 0.0
    %3435 = vmatprep.subr.mxu0 0.0
    %3436 = vmatpush1.msra.mxu0 0.0
    %3437 = vmatprep.subr.mxu0 0.0
    %3438 = vmatpush1.msra.mxu0 0.0
    %3439 = vmatprep.subr.mxu0 0.0
    %3440 = vmatpush1.msra.mxu0 0.0
    %3441 = vmatprep.subr.mxu0 0.0
    %3442 = vmatpush1.msra.mxu0 0.0
    %3443 = vmatprep.subr.mxu0 0.0
    %3444 = vmatpush1.msra.mxu0 0.0
    %3445 = vmatprep.subr.mxu0 0.0
    %3446 = vmatpush1.msra.mxu0 0.0
    %3447 = vmatprep.subr.mxu0 0.0
    %3448 = vmatpush1.msra.mxu0 0.0
    %3449 = vmatprep.subr.mxu0 0.0
    %3450 = vmatpush1.msra.mxu0 0.0
    %3451 = vmatprep.subr.mxu0 0.0
    %3452 = vmatpush1.msra.mxu0 0.0
    %3453 = vmatprep.subr.mxu0 0.0
    %3454 = vmatpush1.msra.mxu0 0.0
    %3455 = vmatprep.subr.mxu0 0.0
    %3456 = vmatpush1.msra.mxu0 0.0
    %3457 = vmatprep.subr.mxu0 0.0
    %3458 = vmatpush1.msra.mxu0 0.0
    %3459 = vmatprep.subr.mxu0 0.0
    %3460 = vmatpush1.msra.mxu0 0.0
    %3461 = vmatprep.subr.mxu0 0.0
    %3462 = vmatpush1.msra.mxu0 0.0
    %3463 = vmatprep.subr.mxu0 0.0
    %3464 = vmatpush1.msra.mxu0 0.0
    %3465 = vmatprep.subr.mxu0 0.0
    %3466 = vmatpush1.msra.mxu0 0.0
    %3467 = vmatprep.subr.mxu0 0.0
    %3468 = vmatpush1.msra.mxu0 0.0
    %3469 = vmatprep.subr.mxu0 0.0
    %3470 = vmatpush1.msra.mxu0 0.0
    %3471 = vmatprep.subr.mxu0 0.0
    %3472 = vmatpush1.msra.mxu0 0.0
    %3473 = vmatprep.subr.mxu0 0.0
    %3474 = vmatpush1.msra.mxu0 0.0
    %3475 = vmatprep.subr.mxu0 0.0
    %3476 = vmatpush1.msra.mxu0 0.0
    %3477 = vmatprep.subr.mxu0 0.0
    %3478 = vmatpush1.msra.mxu0 0.0
    %3479 = vmatprep.mubr.f32.mxu0 0.0
    %3480 = vmatmul.mubr.f32.gmra.mrb[0].mxu0 %v3413
    %v3481 = vpop.f32.mrb[0].mxu0
    %v3482 = vadd.f32 0.0, %v3481
    %v3483 = vpop.f32.mrb[0].mxu0
    %3484 = vdwg.mxu0
    %v3485 = vld [vmem:[#allocation4 + $0x8] sm:$0x1]
    %v3487 = vsel %vm144, %v3482, 0
    %3489 = vmatprep.subr.mxu0 0.0
    %3490 = vmatpush1.msra.mxu0 %v317
    %3491 = vmatprep.subr.mxu0 0.0
    %3492 = vmatpush1.msra.mxu0 %v318
    %3493 = vmatprep.subr.mxu0 0.0
    %3494 = vmatpush1.msra.mxu0 %v319
    %3495 = vmatprep.subr.mxu0 0.0
    %3496 = vmatpush1.msra.mxu0 %v320
    %3497 = vmatprep.subr.mxu0 0.0
    %3498 = vmatpush1.msra.mxu0 0.0
    %3499 = vmatprep.subr.mxu0 0.0
    %3500 = vmatpush1.msra.mxu0 0.0
    %3501 = vmatprep.subr.mxu0 0.0
    %3502 = vmatpush1.msra.mxu0 0.0
    %3503 = vmatprep.subr.mxu0 0.0
    %3504 = vmatpush1.msra.mxu0 0.0
    %3505 = vmatprep.subr.mxu0 0.0
    %3506 = vmatpush1.msra.mxu0 0.0
    %3507 = vmatprep.subr.mxu0 0.0
    %3508 = vmatpush1.msra.mxu0 0.0
    %3509 = vmatprep.subr.mxu0 0.0
    %3510 = vmatpush1.msra.mxu0 0.0
    %3511 = vmatprep.subr.mxu0 0.0
    %3512 = vmatpush1.msra.mxu0 0.0
    %3513 = vmatprep.subr.mxu0 0.0
    %3514 = vmatpush1.msra.mxu0 0.0
    %3515 = vmatprep.subr.mxu0 0.0
    %3516 = vmatpush1.msra.mxu0 0.0
    %3517 = vmatprep.subr.mxu0 0.0
    %3518 = vmatpush1.msra.mxu0 0.0
    %3519 = vmatprep.subr.mxu0 0.0
    %3520 = vmatpush1.msra.mxu0 0.0
    %3521 = vmatprep.subr.mxu0 0.0
    %3522 = vmatpush1.msra.mxu0 0.0
    %3523 = vmatprep.subr.mxu0 0.0
    %3524 = vmatpush1.msra.mxu0 0.0
    %3525 = vmatprep.subr.mxu0 0.0
    %3526 = vmatpush1.msra.mxu0 0.0
    %3527 = vmatprep.subr.mxu0 0.0
    %3528 = vmatpush1.msra.mxu0 0.0
    %3529 = vmatprep.subr.mxu0 0.0
    %3530 = vmatpush1.msra.mxu0 0.0
    %3531 = vmatprep.subr.mxu0 0.0
    %3532 = vmatpush1.msra.mxu0 0.0
    %3533 = vmatprep.subr.mxu0 0.0
    %3534 = vmatpush1.msra.mxu0 0.0
    %3535 = vmatprep.subr.mxu0 0.0
    %3536 = vmatpush1.msra.mxu0 0.0
    %3537 = vmatprep.subr.mxu0 0.0
    %3538 = vmatpush1.msra.mxu0 0.0
    %3539 = vmatprep.subr.mxu0 0.0
    %3540 = vmatpush1.msra.mxu0 0.0
    %3541 = vmatprep.subr.mxu0 0.0
    %3542 = vmatpush1.msra.mxu0 0.0
    %3543 = vmatprep.subr.mxu0 0.0
    %3544 = vmatpush1.msra.mxu0 0.0
    %3545 = vmatprep.subr.mxu0 0.0
    %3546 = vmatpush1.msra.mxu0 0.0
    %3547 = vmatprep.subr.mxu0 0.0
    %3548 = vmatpush1.msra.mxu0 0.0
    %3549 = vmatprep.subr.mxu0 0.0
    %3550 = vmatpush1.msra.mxu0 0.0
    %3551 = vmatprep.subr.mxu0 0.0
    %3552 = vmatpush1.msra.mxu0 0.0
    %3553 = vmatprep.mubr.f32.mxu0 0.0
    %3554 = vmatmul.mubr.f32.gmra.mrb[0].mxu0 %v3487
    %v3555 = vpop.f32.mrb[0].mxu0
    %v3556 = vadd.f32 0.0, %v3555
    %v3557 = vpop.f32.mrb[0].mxu0
    %3558 = vdwg.mxu0
    %v3559 = vadd.f32 %v3485, %v3556
    %v3560 = vmax.f32 %v3559, 0.0
    %v3562 = vsel %vm144, %v3560, 0
    %3564 = vmatprep.subr.mxu0 0.0
    %3565 = vmatpush1.msra.mxu0 %v321
    %3566 = vmatprep.subr.mxu0 0.0
    %3567 = vmatpush1.msra.mxu0 %v322
    %3568 = vmatprep.subr.mxu0 0.0
    %3569 = vmatpush1.msra.mxu0 %v323
    %3570 = vmatprep.subr.mxu0 0.0
    %3571 = vmatpush1.msra.mxu0 %v324
    %3572 = vmatprep.subr.mxu0 0.0
    %3573 = vmatpush1.msra.mxu0 0.0
    %3574 = vmatprep.subr.mxu0 0.0
    %3575 = vmatpush1.msra.mxu0 0.0
    %3576 = vmatprep.subr.mxu0 0.0
    %3577 = vmatpush1.msra.mxu0 0.0
    %3578 = vmatprep.subr.mxu0 0.0
    %3579 = vmatpush1.msra.mxu0 0.0
    %3580 = vmatprep.subr.mxu0 0.0
    %3581 = vmatpush1.msra.mxu0 0.0
    %3582 = vmatprep.subr.mxu0 0.0
    %3583 = vmatpush1.msra.mxu0 0.0
    %3584 = vmatprep.subr.mxu0 0.0
    %3585 = vmatpush1.msra.mxu0 0.0
    %3586 = vmatprep.subr.mxu0 0.0
    %3587 = vmatpush1.msra.mxu0 0.0
    %3588 = vmatprep.subr.mxu0 0.0
    %3589 = vmatpush1.msra.mxu0 0.0
    %3590 = vmatprep.subr.mxu0 0.0
    %3591 = vmatpush1.msra.mxu0 0.0
    %3592 = vmatprep.subr.mxu0 0.0
    %3593 = vmatpush1.msra.mxu0 0.0
    %3594 = vmatprep.subr.mxu0 0.0
    %3595 = vmatpush1.msra.mxu0 0.0
    %3596 = vmatprep.subr.mxu0 0.0
    %3597 = vmatpush1.msra.mxu0 0.0
    %3598 = vmatprep.subr.mxu0 0.0
    %3599 = vmatpush1.msra.mxu0 0.0
    %3600 = vmatprep.subr.mxu0 0.0
    %3601 = vmatpush1.msra.mxu0 0.0
    %3602 = vmatprep.subr.mxu0 0.0
    %3603 = vmatpush1.msra.mxu0 0.0
    %3604 = vmatprep.subr.mxu0 0.0
    %3605 = vmatpush1.msra.mxu0 0.0
    %3606 = vmatprep.subr.mxu0 0.0
    %3607 = vmatpush1.msra.mxu0 0.0
    %3608 = vmatprep.subr.mxu0 0.0
    %3609 = vmatpush1.msra.mxu0 0.0
    %3610 = vmatprep.subr.mxu0 0.0
    %3611 = vmatpush1.msra.mxu0 0.0
    %3612 = vmatprep.subr.mxu0 0.0
    %3613 = vmatpush1.msra.mxu0 0.0
    %3614 = vmatprep.subr.mxu0 0.0
    %3615 = vmatpush1.msra.mxu0 0.0
    %3616 = vmatprep.subr.mxu0 0.0
    %3617 = vmatpush1.msra.mxu0 0.0
    %3618 = vmatprep.subr.mxu0 0.0
    %3619 = vmatpush1.msra.mxu0 0.0
    %3620 = vmatprep.subr.mxu0 0.0
    %3621 = vmatpush1.msra.mxu0 0.0
    %3622 = vmatprep.subr.mxu0 0.0
    %3623 = vmatpush1.msra.mxu0 0.0
    %3624 = vmatprep.subr.mxu0 0.0
    %3625 = vmatpush1.msra.mxu0 0.0
    %3626 = vmatprep.subr.mxu0 0.0
    %3627 = vmatpush1.msra.mxu0 0.0
    %3628 = vmatprep.mubr.f32.mxu0 0.0
    %3629 = vmatmul.mubr.f32.gmra.mrb[0].mxu0 %v3562
    %v3630 = vpop.f32.mrb[0].mxu0
    %v3631 = vadd.f32 0.0, %v3630
    %v3632 = vpop.f32.mrb[0].mxu0
    %3633 = vdwg.mxu0
    %v3634 = vadd.f32 %v3631, %v3367
    %v3635 = vadd.f32 %v3634, %v333
    %v3636 = vxor.u32 %v3635, 2147483648
    %v3637 = vmul.f32 %v3636, 1.442695
    %v3638 = vpow.pop %v3637
    %v3639 = vadd.f32 %v3638, 1.0
    %v3640 = vrcp.pop %v3639
    %v3641 = vmul.f32 1.0, %v3640
    %v3642 = vadd.f32 %v3631, %v665
    %v3643 = vadd.f32 %v3367, %v670
    %3645 = vrot.lane.b32.xlu0 %v3643, 64
    %v3646 = vpop.permute.xlu0 %3645
    %v3648 = vmul.f32 %v3641, %v3646
    %3650 = vrot.lane.b32.xlu0 %v3648, 64
    %v3651 = vpop.permute.xlu0 %3650
    %v3653 = vadd.f32 %v3642, %v3651
    %v3654 = vtanh.pop %v3653
    %v3655 = vsub.f32 1.0, %v3641
    %3657 = vrot.lane.b32.xlu0 %v3654, 96
    %v3658 = vpop.permute.xlu0 %3657
    %v3660 = vmul.f32 %v3655, %v3658
    %v3661 = vmul.f32 %v3641, %v3292
    %v3662 = vadd.f32 %v3660, %v3661
    %3664 = vrot.lane.b32.xlu0 %v3662, 96
    %v3665 = vpop.permute.xlu0 %3664
    %v3666 = vsel %vm144, %v3665, 0
    %3668 = vmatprep.subr.mxu0 %v326
    %3669 = vmatpush1.msra.mxu0 %v325
    %3670 = vmatprep.subr.mxu0 %v328
    %3671 = vmatpush1.msra.mxu0 %v327
    %3672 = vmatprep.subr.mxu0 %v330
    %3673 = vmatpush1.msra.mxu0 %v329
    %3674 = vmatprep.subr.mxu0 %v332
    %3675 = vmatpush1.msra.mxu0 %v331
    %3676 = vmatprep.subr.mxu0 0.0
    %3677 = vmatpush1.msra.mxu0 0.0
    %3678 = vmatprep.subr.mxu0 0.0
    %3679 = vmatpush1.msra.mxu0 0.0
    %3680 = vmatprep.subr.mxu0 0.0
    %3681 = vmatpush1.msra.mxu0 0.0
    %3682 = vmatprep.subr.mxu0 0.0
    %3683 = vmatpush1.msra.mxu0 0.0
    %3684 = vmatprep.subr.mxu0 0.0
    %3685 = vmatpush1.msra.mxu0 0.0
    %3686 = vmatprep.subr.mxu0 0.0
    %3687 = vmatpush1.msra.mxu0 0.0
    %3688 = vmatprep.subr.mxu0 0.0
    %3689 = vmatpush1.msra.mxu0 0.0
    %3690 = vmatprep.subr.mxu0 0.0
    %3691 = vmatpush1.msra.mxu0 0.0
    %3692 = vmatprep.subr.mxu0 0.0
    %3693 = vmatpush1.msra.mxu0 0.0
    %3694 = vmatprep.subr.mxu0 0.0
    %3695 = vmatpush1.msra.mxu0 0.0
    %3696 = vmatprep.subr.mxu0 0.0
    %3697 = vmatpush1.msra.mxu0 0.0
    %3698 = vmatprep.subr.mxu0 0.0
    %3699 = vmatpush1.msra.mxu0 0.0
    %3700 = vmatprep.subr.mxu0 0.0
    %3701 = vmatpush1.msra.mxu0 0.0
    %3702 = vmatprep.subr.mxu0 0.0
    %3703 = vmatpush1.msra.mxu0 0.0
    %3704 = vmatprep.subr.mxu0 0.0
    %3705 = vmatpush1.msra.mxu0 0.0
    %3706 = vmatprep.subr.mxu0 0.0
    %3707 = vmatpush1.msra.mxu0 0.0
    %3708 = vmatprep.subr.mxu0 0.0
    %3709 = vmatpush1.msra.mxu0 0.0
    %3710 = vmatprep.subr.mxu0 0.0
    %3711 = vmatpush1.msra.mxu0 0.0
    %3712 = vmatprep.subr.mxu0 0.0
    %3713 = vmatpush1.msra.mxu0 0.0
    %3714 = vmatprep.subr.mxu0 0.0
    %3715 = vmatpush1.msra.mxu0 0.0
    %3716 = vmatprep.subr.mxu0 0.0
    %3717 = vmatpush1.msra.mxu0 0.0
    %3718 = vmatprep.subr.mxu0 0.0
    %3719 = vmatpush1.msra.mxu0 0.0
    %3720 = vmatprep.subr.mxu0 0.0
    %3721 = vmatpush1.msra.mxu0 0.0
    %3722 = vmatprep.subr.mxu0 0.0
    %3723 = vmatpush1.msra.mxu0 0.0
    %3724 = vmatprep.subr.mxu0 0.0
    %3725 = vmatpush1.msra.mxu0 0.0
    %3726 = vmatprep.subr.mxu0 0.0
    %3727 = vmatpush1.msra.mxu0 0.0
    %3728 = vmatprep.subr.mxu0 0.0
    %3729 = vmatpush1.msra.mxu0 0.0
    %3730 = vmatprep.subr.mxu0 0.0
    %3731 = vmatpush1.msra.mxu0 0.0
    %3732 = vmatprep.mubr.f32.mxu0 0.0
    %3733 = vmatmul.mubr.f32.gmra.mrb[0].mxu0 %v3666
    %v3734 = vpop.f32.mrb[0].mxu0
    %v3735 = vadd.f32 0.0, %v3734
    %v3736 = vpop.f32.mrb[0].mxu0
    %v3737 = vadd.f32 0.0, %v3736
    %3738 = vdwg.mxu0
    %v3739 = vadd.f32 %v3735, %v336
    %v3740 = vsel %vm776, %v3739, -inf
    %3741 = vmax.xlane.f32.xlu0 %v3740
    %v3742 = vpop.xlane.xlu0 %3741
    %v3743 = vsub.f32 %v3739, %v3742
    %v3744 = vmul.f32 %v3743, 1.442695
    %v3745 = vpow.pop %v3744
    %v3746 = vsel %vm776, %v3745, 0.0
    %3747 = vadd.xlane.f32.xlu0 %v3746
    %v3748 = vpop.xlane.xlu0 %3747
    %v3749 = vlog2.pop %v3748
    %v3750 = vmul.f32 %v3749, 0.6931472
    %v3751 = vsub.f32 %v3743, %v3750
    %3752 = vrot.lane.b32.xlu0 %v3662, 32
    %v3753 = vpop.permute.xlu0 %3752
    %3755 = vrot.lane.b32.xlu0 %v3411, 96
    %v3756 = vpop.permute.xlu0 %3755
    %v3758 = vsel %vm795, %v3751, %v3753
    %v3759 = vsel %vm797, %v3758, %v3756
    %v3760 = vsel %vm799, %v3759, 0.0
    %3761 = vst [vmem:[#allocation12 + $0x8] sm:$0x1] %v3760
    %v3762 = vld [vmem:[#allocation3 + $0x9] sm:$0x1]
    %3764 = vrot.lane.b32.xlu0 %v3735, 64
    %v3765 = vpop.permute.xlu0 %3764
    %v3767 = vadd.f32 %v3762, %v3765
    %v3768 = vsel %vm418, %v3767, -inf
    %3769 = vmax.xlane.f32.xlu0 %v3768
    %v3770 = vpop.xlane.xlu0 %3769
    %v3771 = vsub.f32 %v3767, %v3770
    %v3772 = vmul.f32 %v3771, 1.442695
    %v3773 = vpow.pop %v3772
    %v3774 = vsel %vm418, %v3773, 0.0
    %3775 = vadd.xlane.f32.xlu0 %v3774
    %v3776 = vpop.xlane.xlu0 %3775
    %v3777 = vrcp.pop %v3776
    %v3778 = vmul.f32 %v3776, %v3777
    %v3779 = vsub.f32 2.0, %v3778
    %v3780 = vmul.f32 %v3777, %v3779
    %v3781 = vmul.f32 %v3773, %v3780
    %v3783 = vsel %vm226, %v3781, 0
    %3785 = vmatprep.subr.mxu0 0.0
    %3786 = vmatpush1.msra.mxu0 %v315
    %3787 = vmatprep.subr.mxu0 0.0
    %3788 = vmatpush1.msra.mxu0 %v316
    %3789 = vmatprep.subr.mxu0 0.0
    %3790 = vmatpush1.msra.mxu0 0.0
    %3791 = vmatprep.subr.mxu0 0.0
    %3792 = vmatpush1.msra.mxu0 0.0
    %3793 = vmatprep.subr.mxu0 0.0
    %3794 = vmatpush1.msra.mxu0 0.0
    %3795 = vmatprep.subr.mxu0 0.0
    %3796 = vmatpush1.msra.mxu0 0.0
    %3797 = vmatprep.subr.mxu0 0.0
    %3798 = vmatpush1.msra.mxu0 0.0
    %3799 = vmatprep.subr.mxu0 0.0
    %3800 = vmatpush1.msra.mxu0 0.0
    %3801 = vmatprep.subr.mxu0 0.0
    %3802 = vmatpush1.msra.mxu0 0.0
    %3803 = vmatprep.subr.mxu0 0.0
    %3804 = vmatpush1.msra.mxu0 0.0
    %3805 = vmatprep.subr.mxu0 0.0
    %3806 = vmatpush1.msra.mxu0 0.0
    %3807 = vmatprep.subr.mxu0 0.0
    %3808 = vmatpush1.msra.mxu0 0.0
    %3809 = vmatprep.subr.mxu0 0.0
    %3810 = vmatpush1.msra.mxu0 0.0
    %3811 = vmatprep.subr.mxu0 0.0
    %3812 = vmatpush1.msra.mxu0 0.0
    %3813 = vmatprep.subr.mxu0 0.0
    %3814 = vmatpush1.msra.mxu0 0.0
    %3815 = vmatprep.subr.mxu0 0.0
    %3816 = vmatpush1.msra.mxu0 0.0
    %3817 = vmatprep.subr.mxu0 0.0
    %3818 = vmatpush1.msra.mxu0 0.0
    %3819 = vmatprep.subr.mxu0 0.0
    %3820 = vmatpush1.msra.mxu0 0.0
    %3821 = vmatprep.subr.mxu0 0.0
    %3822 = vmatpush1.msra.mxu0 0.0
    %3823 = vmatprep.subr.mxu0 0.0
    %3824 = vmatpush1.msra.mxu0 0.0
    %3825 = vmatprep.subr.mxu0 0.0
    %3826 = vmatpush1.msra.mxu0 0.0
    %3827 = vmatprep.subr.mxu0 0.0
    %3828 = vmatpush1.msra.mxu0 0.0
    %3829 = vmatprep.subr.mxu0 0.0
    %3830 = vmatpush1.msra.mxu0 0.0
    %3831 = vmatprep.subr.mxu0 0.0
    %3832 = vmatpush1.msra.mxu0 0.0
    %3833 = vmatprep.subr.mxu0 0.0
    %3834 = vmatpush1.msra.mxu0 0.0
    %3835 = vmatprep.subr.mxu0 0.0
    %3836 = vmatpush1.msra.mxu0 0.0
    %3837 = vmatprep.subr.mxu0 0.0
    %3838 = vmatpush1.msra.mxu0 0.0
    %3839 = vmatprep.subr.mxu0 0.0
    %3840 = vmatpush1.msra.mxu0 0.0
    %3841 = vmatprep.subr.mxu0 0.0
    %3842 = vmatpush1.msra.mxu0 0.0
    %3843 = vmatprep.subr.mxu0 0.0
    %3844 = vmatpush1.msra.mxu0 0.0
    %3845 = vmatprep.subr.mxu0 0.0
    %3846 = vmatpush1.msra.mxu0 0.0
    %3847 = vmatprep.subr.mxu0 0.0
    %3848 = vmatpush1.msra.mxu0 0.0
    %3849 = vmatprep.mubr.f32.mxu0 0.0
    %3850 = vmatmul.mubr.f32.gmra.mrb[0].mxu0 %v3783
    %v3851 = vpop.f32.mrb[0].mxu0
    %v3852 = vadd.f32 0.0, %v3851
    %v3853 = vpop.f32.mrb[0].mxu0
    %3854 = vdwg.mxu0
    %v3855 = vld [vmem:[#allocation4 + $0x9] sm:$0x1]
    %v3857 = vsel %vm144, %v3852, 0
    %3859 = vmatprep.subr.mxu0 0.0
    %3860 = vmatpush1.msra.mxu0 %v317
    %3861 = vmatprep.subr.mxu0 0.0
    %3862 = vmatpush1.msra.mxu0 %v318
    %3863 = vmatprep.subr.mxu0 0.0
    %3864 = vmatpush1.msra.mxu0 %v319
    %3865 = vmatprep.subr.mxu0 0.0
    %3866 = vmatpush1.msra.mxu0 %v320
    %3867 = vmatprep.subr.mxu0 0.0
    %3868 = vmatpush1.msra.mxu0 0.0
    %3869 = vmatprep.subr.mxu0 0.0
    %3870 = vmatpush1.msra.mxu0 0.0
    %3871 = vmatprep.subr.mxu0 0.0
    %3872 = vmatpush1.msra.mxu0 0.0
    %3873 = vmatprep.subr.mxu0 0.0
    %3874 = vmatpush1.msra.mxu0 0.0
    %3875 = vmatprep.subr.mxu0 0.0
    %3876 = vmatpush1.msra.mxu0 0.0
    %3877 = vmatprep.subr.mxu0 0.0
    %3878 = vmatpush1.msra.mxu0 0.0
    %3879 = vmatprep.subr.mxu0 0.0
    %3880 = vmatpush1.msra.mxu0 0.0
    %3881 = vmatprep.subr.mxu0 0.0
    %3882 = vmatpush1.msra.mxu0 0.0
    %3883 = vmatprep.subr.mxu0 0.0
    %3884 = vmatpush1.msra.mxu0 0.0
    %3885 = vmatprep.subr.mxu0 0.0
    %3886 = vmatpush1.msra.mxu0 0.0
    %3887 = vmatprep.subr.mxu0 0.0
    %3888 = vmatpush1.msra.mxu0 0.0
    %3889 = vmatprep.subr.mxu0 0.0
    %3890 = vmatpush1.msra.mxu0 0.0
    %3891 = vmatprep.subr.mxu0 0.0
    %3892 = vmatpush1.msra.mxu0 0.0
    %3893 = vmatprep.subr.mxu0 0.0
    %3894 = vmatpush1.msra.mxu0 0.0
    %3895 = vmatprep.subr.mxu0 0.0
    %3896 = vmatpush1.msra.mxu0 0.0
    %3897 = vmatprep.subr.mxu0 0.0
    %3898 = vmatpush1.msra.mxu0 0.0
    %3899 = vmatprep.subr.mxu0 0.0
    %3900 = vmatpush1.msra.mxu0 0.0
    %3901 = vmatprep.subr.mxu0 0.0
    %3902 = vmatpush1.msra.mxu0 0.0
    %3903 = vmatprep.subr.mxu0 0.0
    %3904 = vmatpush1.msra.mxu0 0.0
    %3905 = vmatprep.subr.mxu0 0.0
    %3906 = vmatpush1.msra.mxu0 0.0
    %3907 = vmatprep.subr.mxu0 0.0
    %3908 = vmatpush1.msra.mxu0 0.0
    %3909 = vmatprep.subr.mxu0 0.0
    %3910 = vmatpush1.msra.mxu0 0.0
    %3911 = vmatprep.subr.mxu0 0.0
    %3912 = vmatpush1.msra.mxu0 0.0
    %3913 = vmatprep.subr.mxu0 0.0
    %3914 = vmatpush1.msra.mxu0 0.0
    %3915 = vmatprep.subr.mxu0 0.0
    %3916 = vmatpush1.msra.mxu0 0.0
    %3917 = vmatprep.subr.mxu0 0.0
    %3918 = vmatpush1.msra.mxu0 0.0
    %3919 = vmatprep.subr.mxu0 0.0
    %3920 = vmatpush1.msra.mxu0 0.0
    %3921 = vmatprep.subr.mxu0 0.0
    %3922 = vmatpush1.msra.mxu0 0.0
    %3923 = vmatprep.mubr.f32.mxu0 0.0
    %3924 = vmatmul.mubr.f32.gmra.mrb[0].mxu0 %v3857
    %v3925 = vpop.f32.mrb[0].mxu0
    %v3926 = vadd.f32 0.0, %v3925
    %v3927 = vpop.f32.mrb[0].mxu0
    %3928 = vdwg.mxu0
    %v3929 = vadd.f32 %v3855, %v3926
    %v3930 = vmax.f32 %v3929, 0.0
    %v3932 = vsel %vm144, %v3930, 0
    %3934 = vmatprep.subr.mxu0 0.0
    %3935 = vmatpush1.msra.mxu0 %v321
    %3936 = vmatprep.subr.mxu0 0.0
    %3937 = vmatpush1.msra.mxu0 %v322
    %3938 = vmatprep.subr.mxu0 0.0
    %3939 = vmatpush1.msra.mxu0 %v323
    %3940 = vmatprep.subr.mxu0 0.0
    %3941 = vmatpush1.msra.mxu0 %v324
    %3942 = vmatprep.subr.mxu0 0.0
    %3943 = vmatpush1.msra.mxu0 0.0
    %3944 = vmatprep.subr.mxu0 0.0
    %3945 = vmatpush1.msra.mxu0 0.0
    %3946 = vmatprep.subr.mxu0 0.0
    %3947 = vmatpush1.msra.mxu0 0.0
    %3948 = vmatprep.subr.mxu0 0.0
    %3949 = vmatpush1.msra.mxu0 0.0
    %3950 = vmatprep.subr.mxu0 0.0
    %3951 = vmatpush1.msra.mxu0 0.0
    %3952 = vmatprep.subr.mxu0 0.0
    %3953 = vmatpush1.msra.mxu0 0.0
    %3954 = vmatprep.subr.mxu0 0.0
    %3955 = vmatpush1.msra.mxu0 0.0
    %3956 = vmatprep.subr.mxu0 0.0
    %3957 = vmatpush1.msra.mxu0 0.0
    %3958 = vmatprep.subr.mxu0 0.0
    %3959 = vmatpush1.msra.mxu0 0.0
    %3960 = vmatprep.subr.mxu0 0.0
    %3961 = vmatpush1.msra.mxu0 0.0
    %3962 = vmatprep.subr.mxu0 0.0
    %3963 = vmatpush1.msra.mxu0 0.0
    %3964 = vmatprep.subr.mxu0 0.0
    %3965 = vmatpush1.msra.mxu0 0.0
    %3966 = vmatprep.subr.mxu0 0.0
    %3967 = vmatpush1.msra.mxu0 0.0
    %3968 = vmatprep.subr.mxu0 0.0
    %3969 = vmatpush1.msra.mxu0 0.0
    %3970 = vmatprep.subr.mxu0 0.0
    %3971 = vmatpush1.msra.mxu0 0.0
    %3972 = vmatprep.subr.mxu0 0.0
    %3973 = vmatpush1.msra.mxu0 0.0
    %3974 = vmatprep.subr.mxu0 0.0
    %3975 = vmatpush1.msra.mxu0 0.0
    %3976 = vmatprep.subr.mxu0 0.0
    %3977 = vmatpush1.msra.mxu0 0.0
    %3978 = vmatprep.subr.mxu0 0.0
    %3979 = vmatpush1.msra.mxu0 0.0
    %3980 = vmatprep.subr.mxu0 0.0
    %3981 = vmatpush1.msra.mxu0 0.0
    %3982 = vmatprep.subr.mxu0 0.0
    %3983 = vmatpush1.msra.mxu0 0.0
    %3984 = vmatprep.subr.mxu0 0.0
    %3985 = vmatpush1.msra.mxu0 0.0
    %3986 = vmatprep.subr.mxu0 0.0
    %3987 = vmatpush1.msra.mxu0 0.0
    %3988 = vmatprep.subr.mxu0 0.0
    %3989 = vmatpush1.msra.mxu0 0.0
    %3990 = vmatprep.subr.mxu0 0.0
    %3991 = vmatpush1.msra.mxu0 0.0
    %3992 = vmatprep.subr.mxu0 0.0
    %3993 = vmatpush1.msra.mxu0 0.0
    %3994 = vmatprep.subr.mxu0 0.0
    %3995 = vmatpush1.msra.mxu0 0.0
    %3996 = vmatprep.subr.mxu0 0.0
    %3997 = vmatpush1.msra.mxu0 0.0
    %3998 = vmatprep.mubr.f32.mxu0 0.0
    %3999 = vmatmul.mubr.f32.gmra.mrb[0].mxu0 %v3932
    %v4000 = vpop.f32.mrb[0].mxu0
    %v4001 = vadd.f32 0.0, %v4000
    %v4002 = vpop.f32.mrb[0].mxu0
    %4003 = vdwg.mxu0
    %v4004 = vadd.f32 %v4001, %v3737
    %v4005 = vadd.f32 %v4004, %v333
    %v4006 = vxor.u32 %v4005, 2147483648
    %v4007 = vmul.f32 %v4006, 1.442695
    %v4008 = vpow.pop %v4007
    %v4009 = vadd.f32 %v4008, 1.0
    %v4010 = vrcp.pop %v4009
    %v4011 = vmul.f32 1.0, %v4010
    %v4012 = vadd.f32 %v4001, %v665
    %v4013 = vadd.f32 %v3737, %v670
    %4015 = vrot.lane.b32.xlu0 %v4013, 64
    %v4016 = vpop.permute.xlu0 %4015
    %v4018 = vmul.f32 %v4011, %v4016
    %4020 = vrot.lane.b32.xlu0 %v4018, 64
    %v4021 = vpop.permute.xlu0 %4020
    %v4023 = vadd.f32 %v4012, %v4021
    %v4024 = vtanh.pop %v4023
    %v4025 = vsub.f32 1.0, %v4011
    %4027 = vrot.lane.b32.xlu0 %v4024, 96
    %v4028 = vpop.permute.xlu0 %4027
    %v4030 = vmul.f32 %v4025, %v4028
    %v4031 = vmul.f32 %v4011, %v3662
    %v4032 = vadd.f32 %v4030, %v4031
    %4034 = vrot.lane.b32.xlu0 %v4032, 96
    %v4035 = vpop.permute.xlu0 %4034
    %v4036 = vsel %vm144, %v4035, 0
    %4038 = vmatprep.subr.mxu0 %v326
    %4039 = vmatpush1.msra.mxu0 %v325
    %4040 = vmatprep.subr.mxu0 %v328
    %4041 = vmatpush1.msra.mxu0 %v327
    %4042 = vmatprep.subr.mxu0 %v330
    %4043 = vmatpush1.msra.mxu0 %v329
    %4044 = vmatprep.subr.mxu0 %v332
    %4045 = vmatpush1.msra.mxu0 %v331
    %4046 = vmatprep.subr.mxu0 0.0
    %4047 = vmatpush1.msra.mxu0 0.0
    %4048 = vmatprep.subr.mxu0 0.0
    %4049 = vmatpush1.msra.mxu0 0.0
    %4050 = vmatprep.subr.mxu0 0.0
    %4051 = vmatpush1.msra.mxu0 0.0
    %4052 = vmatprep.subr.mxu0 0.0
    %4053 = vmatpush1.msra.mxu0 0.0
    %4054 = vmatprep.subr.mxu0 0.0
    %4055 = vmatpush1.msra.mxu0 0.0
    %4056 = vmatprep.subr.mxu0 0.0
    %4057 = vmatpush1.msra.mxu0 0.0
    %4058 = vmatprep.subr.mxu0 0.0
    %4059 = vmatpush1.msra.mxu0 0.0
    %4060 = vmatprep.subr.mxu0 0.0
    %4061 = vmatpush1.msra.mxu0 0.0
    %4062 = vmatprep.subr.mxu0 0.0
    %4063 = vmatpush1.msra.mxu0 0.0
    %4064 = vmatprep.subr.mxu0 0.0
    %4065 = vmatpush1.msra.mxu0 0.0
    %4066 = vmatprep.subr.mxu0 0.0
    %4067 = vmatpush1.msra.mxu0 0.0
    %4068 = vmatprep.subr.mxu0 0.0
    %4069 = vmatpush1.msra.mxu0 0.0
    %4070 = vmatprep.subr.mxu0 0.0
    %4071 = vmatpush1.msra.mxu0 0.0
    %4072 = vmatprep.subr.mxu0 0.0
    %4073 = vmatpush1.msra.mxu0 0.0
    %4074 = vmatprep.subr.mxu0 0.0
    %4075 = vmatpush1.msra.mxu0 0.0
    %4076 = vmatprep.subr.mxu0 0.0
    %4077 = vmatpush1.msra.mxu0 0.0
    %4078 = vmatprep.subr.mxu0 0.0
    %4079 = vmatpush1.msra.mxu0 0.0
    %4080 = vmatprep.subr.mxu0 0.0
    %4081 = vmatpush1.msra.mxu0 0.0
    %4082 = vmatprep.subr.mxu0 0.0
    %4083 = vmatpush1.msra.mxu0 0.0
    %4084 = vmatprep.subr.mxu0 0.0
    %4085 = vmatpush1.msra.mxu0 0.0
    %4086 = vmatprep.subr.mxu0 0.0
    %4087 = vmatpush1.msra.mxu0 0.0
    %4088 = vmatprep.subr.mxu0 0.0
    %4089 = vmatpush1.msra.mxu0 0.0
    %4090 = vmatprep.subr.mxu0 0.0
    %4091 = vmatpush1.msra.mxu0 0.0
    %4092 = vmatprep.subr.mxu0 0.0
    %4093 = vmatpush1.msra.mxu0 0.0
    %4094 = vmatprep.subr.mxu0 0.0
    %4095 = vmatpush1.msra.mxu0 0.0
    %4096 = vmatprep.subr.mxu0 0.0
    %4097 = vmatpush1.msra.mxu0 0.0
    %4098 = vmatprep.subr.mxu0 0.0
    %4099 = vmatpush1.msra.mxu0 0.0
    %4100 = vmatprep.subr.mxu0 0.0
    %4101 = vmatpush1.msra.mxu0 0.0
    %4102 = vmatprep.mubr.f32.mxu0 0.0
    %4103 = vmatmul.mubr.f32.gmra.mrb[0].mxu0 %v4036
    %v4104 = vpop.f32.mrb[0].mxu0
    %v4105 = vadd.f32 0.0, %v4104
    %v4106 = vpop.f32.mrb[0].mxu0
    %v4107 = vadd.f32 0.0, %v4106
    %4108 = vdwg.mxu0
    %v4109 = vadd.f32 %v4105, %v336
    %v4110 = vsel %vm776, %v4109, -inf
    %4111 = vmax.xlane.f32.xlu0 %v4110
    %v4112 = vpop.xlane.xlu0 %4111
    %v4113 = vsub.f32 %v4109, %v4112
    %v4114 = vmul.f32 %v4113, 1.442695
    %v4115 = vpow.pop %v4114
    %v4116 = vsel %vm776, %v4115, 0.0
    %4117 = vadd.xlane.f32.xlu0 %v4116
    %v4118 = vpop.xlane.xlu0 %4117
    %v4119 = vlog2.pop %v4118
    %v4120 = vmul.f32 %v4119, 0.6931472
    %v4121 = vsub.f32 %v4113, %v4120
    %4122 = vrot.lane.b32.xlu0 %v4032, 32
    %v4123 = vpop.permute.xlu0 %4122
    %4125 = vrot.lane.b32.xlu0 %v3781, 96
    %v4126 = vpop.permute.xlu0 %4125
    %v4128 = vsel %vm795, %v4121, %v4123
    %v4129 = vsel %vm797, %v4128, %v4126
    %v4130 = vsel %vm799, %v4129, 0.0
    %4131 = vst [vmem:[#allocation12 + $0x9] sm:$0x1] %v4130
    %v4132 = vld [vmem:[#allocation3 + $0xa] sm:$0x1]
    %4134 = vrot.lane.b32.xlu0 %v4105, 64
    %v4135 = vpop.permute.xlu0 %4134
    %v4137 = vadd.f32 %v4132, %v4135
    %v4138 = vsel %vm418, %v4137, -inf
    %4139 = vmax.xlane.f32.xlu0 %v4138
    %v4140 = vpop.xlane.xlu0 %4139
    %v4141 = vsub.f32 %v4137, %v4140
    %v4142 = vmul.f32 %v4141, 1.442695
    %v4143 = vpow.pop %v4142
    %v4144 = vsel %vm418, %v4143, 0.0
    %4145 = vadd.xlane.f32.xlu0 %v4144
    %v4146 = vpop.xlane.xlu0 %4145
    %v4147 = vrcp.pop %v4146
    %v4148 = vmul.f32 %v4146, %v4147
    %v4149 = vsub.f32 2.0, %v4148
    %v4150 = vmul.f32 %v4147, %v4149
    %v4151 = vmul.f32 %v4143, %v4150
    %v4153 = vsel %vm226, %v4151, 0
    %4155 = vmatprep.subr.mxu0 0.0
    %4156 = vmatpush1.msra.mxu0 %v315
    %4157 = vmatprep.subr.mxu0 0.0
    %4158 = vmatpush1.msra.mxu0 %v316
    %4159 = vmatprep.subr.mxu0 0.0
    %4160 = vmatpush1.msra.mxu0 0.0
    %4161 = vmatprep.subr.mxu0 0.0
    %4162 = vmatpush1.msra.mxu0 0.0
    %4163 = vmatprep.subr.mxu0 0.0
    %4164 = vmatpush1.msra.mxu0 0.0
    %4165 = vmatprep.subr.mxu0 0.0
    %4166 = vmatpush1.msra.mxu0 0.0
    %4167 = vmatprep.subr.mxu0 0.0
    %4168 = vmatpush1.msra.mxu0 0.0
    %4169 = vmatprep.subr.mxu0 0.0
    %4170 = vmatpush1.msra.mxu0 0.0
    %4171 = vmatprep.subr.mxu0 0.0
    %4172 = vmatpush1.msra.mxu0 0.0
    %4173 = vmatprep.subr.mxu0 0.0
    %4174 = vmatpush1.msra.mxu0 0.0
    %4175 = vmatprep.subr.mxu0 0.0
    %4176 = vmatpush1.msra.mxu0 0.0
    %4177 = vmatprep.subr.mxu0 0.0
    %4178 = vmatpush1.msra.mxu0 0.0
    %4179 = vmatprep.subr.mxu0 0.0
    %4180 = vmatpush1.msra.mxu0 0.0
    %4181 = vmatprep.subr.mxu0 0.0
    %4182 = vmatpush1.msra.mxu0 0.0
    %4183 = vmatprep.subr.mxu0 0.0
    %4184 = vmatpush1.msra.mxu0 0.0
    %4185 = vmatprep.subr.mxu0 0.0
    %4186 = vmatpush1.msra.mxu0 0.0
    %4187 = vmatprep.subr.mxu0 0.0
    %4188 = vmatpush1.msra.mxu0 0.0
    %4189 = vmatprep.subr.mxu0 0.0
    %4190 = vmatpush1.msra.mxu0 0.0
    %4191 = vmatprep.subr.mxu0 0.0
    %4192 = vmatpush1.msra.mxu0 0.0
    %4193 = vmatprep.subr.mxu0 0.0
    %4194 = vmatpush1.msra.mxu0 0.0
    %4195 = vmatprep.subr.mxu0 0.0
    %4196 = vmatpush1.msra.mxu0 0.0
    %4197 = vmatprep.subr.mxu0 0.0
    %4198 = vmatpush1.msra.mxu0 0.0
    %4199 = vmatprep.subr.mxu0 0.0
    %4200 = vmatpush1.msra.mxu0 0.0
    %4201 = vmatprep.subr.mxu0 0.0
    %4202 = vmatpush1.msra.mxu0 0.0
    %4203 = vmatprep.subr.mxu0 0.0
    %4204 = vmatpush1.msra.mxu0 0.0
    %4205 = vmatprep.subr.mxu0 0.0
    %4206 = vmatpush1.msra.mxu0 0.0
    %4207 = vmatprep.subr.mxu0 0.0
    %4208 = vmatpush1.msra.mxu0 0.0
    %4209 = vmatprep.subr.mxu0 0.0
    %4210 = vmatpush1.msra.mxu0 0.0
    %4211 = vmatprep.subr.mxu0 0.0
    %4212 = vmatpush1.msra.mxu0 0.0
    %4213 = vmatprep.subr.mxu0 0.0
    %4214 = vmatpush1.msra.mxu0 0.0
    %4215 = vmatprep.subr.mxu0 0.0
    %4216 = vmatpush1.msra.mxu0 0.0
    %4217 = vmatprep.subr.mxu0 0.0
    %4218 = vmatpush1.msra.mxu0 0.0
    %4219 = vmatprep.mubr.f32.mxu0 0.0
    %4220 = vmatmul.mubr.f32.gmra.mrb[0].mxu0 %v4153
    %v4221 = vpop.f32.mrb[0].mxu0
    %v4222 = vadd.f32 0.0, %v4221
    %v4223 = vpop.f32.mrb[0].mxu0
    %4224 = vdwg.mxu0
    %v4225 = vld [vmem:[#allocation4 + $0xa] sm:$0x1]
    %v4227 = vsel %vm144, %v4222, 0
    %4229 = vmatprep.subr.mxu0 0.0
    %4230 = vmatpush1.msra.mxu0 %v317
    %4231 = vmatprep.subr.mxu0 0.0
    %4232 = vmatpush1.msra.mxu0 %v318
    %4233 = vmatprep.subr.mxu0 0.0
    %4234 = vmatpush1.msra.mxu0 %v319
    %4235 = vmatprep.subr.mxu0 0.0
    %4236 = vmatpush1.msra.mxu0 %v320
    %4237 = vmatprep.subr.mxu0 0.0
    %4238 = vmatpush1.msra.mxu0 0.0
    %4239 = vmatprep.subr.mxu0 0.0
    %4240 = vmatpush1.msra.mxu0 0.0
    %4241 = vmatprep.subr.mxu0 0.0
    %4242 = vmatpush1.msra.mxu0 0.0
    %4243 = vmatprep.subr.mxu0 0.0
    %4244 = vmatpush1.msra.mxu0 0.0
    %4245 = vmatprep.subr.mxu0 0.0
    %4246 = vmatpush1.msra.mxu0 0.0
    %4247 = vmatprep.subr.mxu0 0.0
    %4248 = vmatpush1.msra.mxu0 0.0
    %4249 = vmatprep.subr.mxu0 0.0
    %4250 = vmatpush1.msra.mxu0 0.0
    %4251 = vmatprep.subr.mxu0 0.0
    %4252 = vmatpush1.msra.mxu0 0.0
    %4253 = vmatprep.subr.mxu0 0.0
    %4254 = vmatpush1.msra.mxu0 0.0
    %4255 = vmatprep.subr.mxu0 0.0
    %4256 = vmatpush1.msra.mxu0 0.0
    %4257 = vmatprep.subr.mxu0 0.0
    %4258 = vmatpush1.msra.mxu0 0.0
    %4259 = vmatprep.subr.mxu0 0.0
    %4260 = vmatpush1.msra.mxu0 0.0
    %4261 = vmatprep.subr.mxu0 0.0
    %4262 = vmatpush1.msra.mxu0 0.0
    %4263 = vmatprep.subr.mxu0 0.0
    %4264 = vmatpush1.msra.mxu0 0.0
    %4265 = vmatprep.subr.mxu0 0.0
    %4266 = vmatpush1.msra.mxu0 0.0
    %4267 = vmatprep.subr.mxu0 0.0
    %4268 = vmatpush1.msra.mxu0 0.0
    %4269 = vmatprep.subr.mxu0 0.0
    %4270 = vmatpush1.msra.mxu0 0.0
    %4271 = vmatprep.subr.mxu0 0.0
    %4272 = vmatpush1.msra.mxu0 0.0
    %4273 = vmatprep.subr.mxu0 0.0
    %4274 = vmatpush1.msra.mxu0 0.0
    %4275 = vmatprep.subr.mxu0 0.0
    %4276 = vmatpush1.msra.mxu0 0.0
    %4277 = vmatprep.subr.mxu0 0.0
    %4278 = vmatpush1.msra.mxu0 0.0
    %4279 = vmatprep.subr.mxu0 0.0
    %4280 = vmatpush1.msra.mxu0 0.0
    %4281 = vmatprep.subr.mxu0 0.0
    %4282 = vmatpush1.msra.mxu0 0.0
    %4283 = vmatprep.subr.mxu0 0.0
    %4284 = vmatpush1.msra.mxu0 0.0
    %4285 = vmatprep.subr.mxu0 0.0
    %4286 = vmatpush1.msra.mxu0 0.0
    %4287 = vmatprep.subr.mxu0 0.0
    %4288 = vmatpush1.msra.mxu0 0.0
    %4289 = vmatprep.subr.mxu0 0.0
    %4290 = vmatpush1.msra.mxu0 0.0
    %4291 = vmatprep.subr.mxu0 0.0
    %4292 = vmatpush1.msra.mxu0 0.0
    %4293 = vmatprep.mubr.f32.mxu0 0.0
    %4294 = vmatmul.mubr.f32.gmra.mrb[0].mxu0 %v4227
    %v4295 = vpop.f32.mrb[0].mxu0
    %v4296 = vadd.f32 0.0, %v4295
    %v4297 = vpop.f32.mrb[0].mxu0
    %4298 = vdwg.mxu0
    %v4299 = vadd.f32 %v4225, %v4296
    %v4300 = vmax.f32 %v4299, 0.0
    %v4302 = vsel %vm144, %v4300, 0
    %4304 = vmatprep.subr.mxu0 0.0
    %4305 = vmatpush1.msra.mxu0 %v321
    %4306 = vmatprep.subr.mxu0 0.0
    %4307 = vmatpush1.msra.mxu0 %v322
    %4308 = vmatprep.subr.mxu0 0.0
    %4309 = vmatpush1.msra.mxu0 %v323
    %4310 = vmatprep.subr.mxu0 0.0
    %4311 = vmatpush1.msra.mxu0 %v324
    %4312 = vmatprep.subr.mxu0 0.0
    %4313 = vmatpush1.msra.mxu0 0.0
    %4314 = vmatprep.subr.mxu0 0.0
    %4315 = vmatpush1.msra.mxu0 0.0
    %4316 = vmatprep.subr.mxu0 0.0
    %4317 = vmatpush1.msra.mxu0 0.0
    %4318 = vmatprep.subr.mxu0 0.0
    %4319 = vmatpush1.msra.mxu0 0.0
    %4320 = vmatprep.subr.mxu0 0.0
    %4321 = vmatpush1.msra.mxu0 0.0
    %4322 = vmatprep.subr.mxu0 0.0
    %4323 = vmatpush1.msra.mxu0 0.0
    %4324 = vmatprep.subr.mxu0 0.0
    %4325 = vmatpush1.msra.mxu0 0.0
    %4326 = vmatprep.subr.mxu0 0.0
    %4327 = vmatpush1.msra.mxu0 0.0
    %4328 = vmatprep.subr.mxu0 0.0
    %4329 = vmatpush1.msra.mxu0 0.0
    %4330 = vmatprep.subr.mxu0 0.0
    %4331 = vmatpush1.msra.mxu0 0.0
    %4332 = vmatprep.subr.mxu0 0.0
    %4333 = vmatpush1.msra.mxu0 0.0
    %4334 = vmatprep.subr.mxu0 0.0
    %4335 = vmatpush1.msra.mxu0 0.0
    %4336 = vmatprep.subr.mxu0 0.0
    %4337 = vmatpush1.msra.mxu0 0.0
    %4338 = vmatprep.subr.mxu0 0.0
    %4339 = vmatpush1.msra.mxu0 0.0
    %4340 = vmatprep.subr.mxu0 0.0
    %4341 = vmatpush1.msra.mxu0 0.0
    %4342 = vmatprep.subr.mxu0 0.0
    %4343 = vmatpush1.msra.mxu0 0.0
    %4344 = vmatprep.subr.mxu0 0.0
    %4345 = vmatpush1.msra.mxu0 0.0
    %4346 = vmatprep.subr.mxu0 0.0
    %4347 = vmatpush1.msra.mxu0 0.0
    %4348 = vmatprep.subr.mxu0 0.0
    %4349 = vmatpush1.msra.mxu0 0.0
    %4350 = vmatprep.subr.mxu0 0.0
    %4351 = vmatpush1.msra.mxu0 0.0
    %4352 = vmatprep.subr.mxu0 0.0
    %4353 = vmatpush1.msra.mxu0 0.0
    %4354 = vmatprep.subr.mxu0 0.0
    %4355 = vmatpush1.msra.mxu0 0.0
    %4356 = vmatprep.subr.mxu0 0.0
    %4357 = vmatpush1.msra.mxu0 0.0
    %4358 = vmatprep.subr.mxu0 0.0
    %4359 = vmatpush1.msra.mxu0 0.0
    %4360 = vmatprep.subr.mxu0 0.0
    %4361 = vmatpush1.msra.mxu0 0.0
    %4362 = vmatprep.subr.mxu0 0.0
    %4363 = vmatpush1.msra.mxu0 0.0
    %4364 = vmatprep.subr.mxu0 0.0
    %4365 = vmatpush1.msra.mxu0 0.0
    %4366 = vmatprep.subr.mxu0 0.0
    %4367 = vmatpush1.msra.mxu0 0.0
    %4368 = vmatprep.mubr.f32.mxu0 0.0
    %4369 = vmatmul.mubr.f32.gmra.mrb[0].mxu0 %v4302
    %v4370 = vpop.f32.mrb[0].mxu0
    %v4371 = vadd.f32 0.0, %v4370
    %v4372 = vpop.f32.mrb[0].mxu0
    %4373 = vdwg.mxu0
    %v4374 = vadd.f32 %v4371, %v4107
    %v4375 = vadd.f32 %v4374, %v333
    %v4376 = vxor.u32 %v4375, 2147483648
    %v4377 = vmul.f32 %v4376, 1.442695
    %v4378 = vpow.pop %v4377
    %v4379 = vadd.f32 %v4378, 1.0
    %v4380 = vrcp.pop %v4379
    %v4381 = vmul.f32 1.0, %v4380
    %v4382 = vadd.f32 %v4371, %v665
    %v4383 = vadd.f32 %v4107, %v670
    %4385 = vrot.lane.b32.xlu0 %v4383, 64
    %v4386 = vpop.permute.xlu0 %4385
    %v4388 = vmul.f32 %v4381, %v4386
    %4390 = vrot.lane.b32.xlu0 %v4388, 64
    %v4391 = vpop.permute.xlu0 %4390
    %v4393 = vadd.f32 %v4382, %v4391
    %v4394 = vtanh.pop %v4393
    %v4395 = vsub.f32 1.0, %v4381
    %4397 = vrot.lane.b32.xlu0 %v4394, 96
    %v4398 = vpop.permute.xlu0 %4397
    %v4400 = vmul.f32 %v4395, %v4398
    %v4401 = vmul.f32 %v4381, %v4032
    %v4402 = vadd.f32 %v4400, %v4401
    %4404 = vrot.lane.b32.xlu0 %v4402, 96
    %v4405 = vpop.permute.xlu0 %4404
    %v4406 = vsel %vm144, %v4405, 0
    %4408 = vmatprep.subr.mxu0 %v326
    %4409 = vmatpush1.msra.mxu0 %v325
    %4410 = vmatprep.subr.mxu0 %v328
    %4411 = vmatpush1.msra.mxu0 %v327
    %4412 = vmatprep.subr.mxu0 %v330
    %4413 = vmatpush1.msra.mxu0 %v329
    %4414 = vmatprep.subr.mxu0 %v332
    %4415 = vmatpush1.msra.mxu0 %v331
    %4416 = vmatprep.subr.mxu0 0.0
    %4417 = vmatpush1.msra.mxu0 0.0
    %4418 = vmatprep.subr.mxu0 0.0
    %4419 = vmatpush1.msra.mxu0 0.0
    %4420 = vmatprep.subr.mxu0 0.0
    %4421 = vmatpush1.msra.mxu0 0.0
    %4422 = vmatprep.subr.mxu0 0.0
    %4423 = vmatpush1.msra.mxu0 0.0
    %4424 = vmatprep.subr.mxu0 0.0
    %4425 = vmatpush1.msra.mxu0 0.0
    %4426 = vmatprep.subr.mxu0 0.0
    %4427 = vmatpush1.msra.mxu0 0.0
    %4428 = vmatprep.subr.mxu0 0.0
    %4429 = vmatpush1.msra.mxu0 0.0
    %4430 = vmatprep.subr.mxu0 0.0
    %4431 = vmatpush1.msra.mxu0 0.0
    %4432 = vmatprep.subr.mxu0 0.0
    %4433 = vmatpush1.msra.mxu0 0.0
    %4434 = vmatprep.subr.mxu0 0.0
    %4435 = vmatpush1.msra.mxu0 0.0
    %4436 = vmatprep.subr.mxu0 0.0
    %4437 = vmatpush1.msra.mxu0 0.0
    %4438 = vmatprep.subr.mxu0 0.0
    %4439 = vmatpush1.msra.mxu0 0.0
    %4440 = vmatprep.subr.mxu0 0.0
    %4441 = vmatpush1.msra.mxu0 0.0
    %4442 = vmatprep.subr.mxu0 0.0
    %4443 = vmatpush1.msra.mxu0 0.0
    %4444 = vmatprep.subr.mxu0 0.0
    %4445 = vmatpush1.msra.mxu0 0.0
    %4446 = vmatprep.subr.mxu0 0.0
    %4447 = vmatpush1.msra.mxu0 0.0
    %4448 = vmatprep.subr.mxu0 0.0
    %4449 = vmatpush1.msra.mxu0 0.0
    %4450 = vmatprep.subr.mxu0 0.0
    %4451 = vmatpush1.msra.mxu0 0.0
    %4452 = vmatprep.subr.mxu0 0.0
    %4453 = vmatpush1.msra.mxu0 0.0
    %4454 = vmatprep.subr.mxu0 0.0
    %4455 = vmatpush1.msra.mxu0 0.0
    %4456 = vmatprep.subr.mxu0 0.0
    %4457 = vmatpush1.msra.mxu0 0.0
    %4458 = vmatprep.subr.mxu0 0.0
    %4459 = vmatpush1.msra.mxu0 0.0
    %4460 = vmatprep.subr.mxu0 0.0
    %4461 = vmatpush1.msra.mxu0 0.0
    %4462 = vmatprep.subr.mxu0 0.0
    %4463 = vmatpush1.msra.mxu0 0.0
    %4464 = vmatprep.subr.mxu0 0.0
    %4465 = vmatpush1.msra.mxu0 0.0
    %4466 = vmatprep.subr.mxu0 0.0
    %4467 = vmatpush1.msra.mxu0 0.0
    %4468 = vmatprep.subr.mxu0 0.0
    %4469 = vmatpush1.msra.mxu0 0.0
    %4470 = vmatprep.subr.mxu0 0.0
    %4471 = vmatpush1.msra.mxu0 0.0
    %4472 = vmatprep.mubr.f32.mxu0 0.0
    %4473 = vmatmul.mubr.f32.gmra.mrb[0].mxu0 %v4406
    %v4474 = vpop.f32.mrb[0].mxu0
    %v4475 = vadd.f32 0.0, %v4474
    %v4476 = vpop.f32.mrb[0].mxu0
    %v4477 = vadd.f32 0.0, %v4476
    %4478 = vdwg.mxu0
    %v4479 = vadd.f32 %v4475, %v336
    %v4480 = vsel %vm776, %v4479, -inf
    %4481 = vmax.xlane.f32.xlu0 %v4480
    %v4482 = vpop.xlane.xlu0 %4481
    %v4483 = vsub.f32 %v4479, %v4482
    %v4484 = vmul.f32 %v4483, 1.442695
    %v4485 = vpow.pop %v4484
    %v4486 = vsel %vm776, %v4485, 0.0
    %4487 = vadd.xlane.f32.xlu0 %v4486
    %v4488 = vpop.xlane.xlu0 %4487
    %v4489 = vlog2.pop %v4488
    %v4490 = vmul.f32 %v4489, 0.6931472
    %v4491 = vsub.f32 %v4483, %v4490
    %4492 = vrot.lane.b32.xlu0 %v4402, 32
    %v4493 = vpop.permute.xlu0 %4492
    %4495 = vrot.lane.b32.xlu0 %v4151, 96
    %v4496 = vpop.permute.xlu0 %4495
    %v4498 = vsel %vm795, %v4491, %v4493
    %v4499 = vsel %vm797, %v4498, %v4496
    %v4500 = vsel %vm799, %v4499, 0.0
    %4501 = vst [vmem:[#allocation12 + $0xa] sm:$0x1] %v4500
    %v4502 = vld [vmem:[#allocation3 + $0xb] sm:$0x1]
    %4504 = vrot.lane.b32.xlu0 %v4475, 64
    %v4505 = vpop.permute.xlu0 %4504
    %v4507 = vadd.f32 %v4502, %v4505
    %v4508 = vsel %vm418, %v4507, -inf
    %4509 = vmax.xlane.f32.xlu0 %v4508
    %v4510 = vpop.xlane.xlu0 %4509
    %v4511 = vsub.f32 %v4507, %v4510
    %v4512 = vmul.f32 %v4511, 1.442695
    %v4513 = vpow.pop %v4512
    %v4514 = vsel %vm418, %v4513, 0.0
    %4515 = vadd.xlane.f32.xlu0 %v4514
    %v4516 = vpop.xlane.xlu0 %4515
    %v4517 = vrcp.pop %v4516
    %v4518 = vmul.f32 %v4516, %v4517
    %v4519 = vsub.f32 2.0, %v4518
    %v4520 = vmul.f32 %v4517, %v4519
    %v4521 = vmul.f32 %v4513, %v4520
    %v4523 = vsel %vm226, %v4521, 0
    %4525 = vmatprep.subr.mxu0 0.0
    %4526 = vmatpush1.msra.mxu0 %v315
    %4527 = vmatprep.subr.mxu0 0.0
    %4528 = vmatpush1.msra.mxu0 %v316
    %4529 = vmatprep.subr.mxu0 0.0
    %4530 = vmatpush1.msra.mxu0 0.0
    %4531 = vmatprep.subr.mxu0 0.0
    %4532 = vmatpush1.msra.mxu0 0.0
    %4533 = vmatprep.subr.mxu0 0.0
    %4534 = vmatpush1.msra.mxu0 0.0
    %4535 = vmatprep.subr.mxu0 0.0
    %4536 = vmatpush1.msra.mxu0 0.0
    %4537 = vmatprep.subr.mxu0 0.0
    %4538 = vmatpush1.msra.mxu0 0.0
    %4539 = vmatprep.subr.mxu0 0.0
    %4540 = vmatpush1.msra.mxu0 0.0
    %4541 = vmatprep.subr.mxu0 0.0
    %4542 = vmatpush1.msra.mxu0 0.0
    %4543 = vmatprep.subr.mxu0 0.0
    %4544 = vmatpush1.msra.mxu0 0.0
    %4545 = vmatprep.subr.mxu0 0.0
    %4546 = vmatpush1.msra.mxu0 0.0
    %4547 = vmatprep.subr.mxu0 0.0
    %4548 = vmatpush1.msra.mxu0 0.0
    %4549 = vmatprep.subr.mxu0 0.0
    %4550 = vmatpush1.msra.mxu0 0.0
    %4551 = vmatprep.subr.mxu0 0.0
    %4552 = vmatpush1.msra.mxu0 0.0
    %4553 = vmatprep.subr.mxu0 0.0
    %4554 = vmatpush1.msra.mxu0 0.0
    %4555 = vmatprep.subr.mxu0 0.0
    %4556 = vmatpush1.msra.mxu0 0.0
    %4557 = vmatprep.subr.mxu0 0.0
    %4558 = vmatpush1.msra.mxu0 0.0
    %4559 = vmatprep.subr.mxu0 0.0
    %4560 = vmatpush1.msra.mxu0 0.0
    %4561 = vmatprep.subr.mxu0 0.0
    %4562 = vmatpush1.msra.mxu0 0.0
    %4563 = vmatprep.subr.mxu0 0.0
    %4564 = vmatpush1.msra.mxu0 0.0
    %4565 = vmatprep.subr.mxu0 0.0
    %4566 = vmatpush1.msra.mxu0 0.0
    %4567 = vmatprep.subr.mxu0 0.0
    %4568 = vmatpush1.msra.mxu0 0.0
    %4569 = vmatprep.subr.mxu0 0.0
    %4570 = vmatpush1.msra.mxu0 0.0
    %4571 = vmatprep.subr.mxu0 0.0
    %4572 = vmatpush1.msra.mxu0 0.0
    %4573 = vmatprep.subr.mxu0 0.0
    %4574 = vmatpush1.msra.mxu0 0.0
    %4575 = vmatprep.subr.mxu0 0.0
    %4576 = vmatpush1.msra.mxu0 0.0
    %4577 = vmatprep.subr.mxu0 0.0
    %4578 = vmatpush1.msra.mxu0 0.0
    %4579 = vmatprep.subr.mxu0 0.0
    %4580 = vmatpush1.msra.mxu0 0.0
    %4581 = vmatprep.subr.mxu0 0.0
    %4582 = vmatpush1.msra.mxu0 0.0
    %4583 = vmatprep.subr.mxu0 0.0
    %4584 = vmatpush1.msra.mxu0 0.0
    %4585 = vmatprep.subr.mxu0 0.0
    %4586 = vmatpush1.msra.mxu0 0.0
    %4587 = vmatprep.subr.mxu0 0.0
    %4588 = vmatpush1.msra.mxu0 0.0
    %4589 = vmatprep.mubr.f32.mxu0 0.0
    %4590 = vmatmul.mubr.f32.gmra.mrb[0].mxu0 %v4523
    %v4591 = vpop.f32.mrb[0].mxu0
    %v4592 = vadd.f32 0.0, %v4591
    %v4593 = vpop.f32.mrb[0].mxu0
    %4594 = vdwg.mxu0
    %v4595 = vld [vmem:[#allocation4 + $0xb] sm:$0x1]
    %v4597 = vsel %vm144, %v4592, 0
    %4599 = vmatprep.subr.mxu0 0.0
    %4600 = vmatpush1.msra.mxu0 %v317
    %4601 = vmatprep.subr.mxu0 0.0
    %4602 = vmatpush1.msra.mxu0 %v318
    %4603 = vmatprep.subr.mxu0 0.0
    %4604 = vmatpush1.msra.mxu0 %v319
    %4605 = vmatprep.subr.mxu0 0.0
    %4606 = vmatpush1.msra.mxu0 %v320
    %4607 = vmatprep.subr.mxu0 0.0
    %4608 = vmatpush1.msra.mxu0 0.0
    %4609 = vmatprep.subr.mxu0 0.0
    %4610 = vmatpush1.msra.mxu0 0.0
    %4611 = vmatprep.subr.mxu0 0.0
    %4612 = vmatpush1.msra.mxu0 0.0
    %4613 = vmatprep.subr.mxu0 0.0
    %4614 = vmatpush1.msra.mxu0 0.0
    %4615 = vmatprep.subr.mxu0 0.0
    %4616 = vmatpush1.msra.mxu0 0.0
    %4617 = vmatprep.subr.mxu0 0.0
    %4618 = vmatpush1.msra.mxu0 0.0
    %4619 = vmatprep.subr.mxu0 0.0
    %4620 = vmatpush1.msra.mxu0 0.0
    %4621 = vmatprep.subr.mxu0 0.0
    %4622 = vmatpush1.msra.mxu0 0.0
    %4623 = vmatprep.subr.mxu0 0.0
    %4624 = vmatpush1.msra.mxu0 0.0
    %4625 = vmatprep.subr.mxu0 0.0
    %4626 = vmatpush1.msra.mxu0 0.0
    %4627 = vmatprep.subr.mxu0 0.0
    %4628 = vmatpush1.msra.mxu0 0.0
    %4629 = vmatprep.subr.mxu0 0.0
    %4630 = vmatpush1.msra.mxu0 0.0
    %4631 = vmatprep.subr.mxu0 0.0
    %4632 = vmatpush1.msra.mxu0 0.0
    %4633 = vmatprep.subr.mxu0 0.0
    %4634 = vmatpush1.msra.mxu0 0.0
    %4635 = vmatprep.subr.mxu0 0.0
    %4636 = vmatpush1.msra.mxu0 0.0
    %4637 = vmatprep.subr.mxu0 0.0
    %4638 = vmatpush1.msra.mxu0 0.0
    %4639 = vmatprep.subr.mxu0 0.0
    %4640 = vmatpush1.msra.mxu0 0.0
    %4641 = vmatprep.subr.mxu0 0.0
    %4642 = vmatpush1.msra.mxu0 0.0
    %4643 = vmatprep.subr.mxu0 0.0
    %4644 = vmatpush1.msra.mxu0 0.0
    %4645 = vmatprep.subr.mxu0 0.0
    %4646 = vmatpush1.msra.mxu0 0.0
    %4647 = vmatprep.subr.mxu0 0.0
    %4648 = vmatpush1.msra.mxu0 0.0
    %4649 = vmatprep.subr.mxu0 0.0
    %4650 = vmatpush1.msra.mxu0 0.0
    %4651 = vmatprep.subr.mxu0 0.0
    %4652 = vmatpush1.msra.mxu0 0.0
    %4653 = vmatprep.subr.mxu0 0.0
    %4654 = vmatpush1.msra.mxu0 0.0
    %4655 = vmatprep.subr.mxu0 0.0
    %4656 = vmatpush1.msra.mxu0 0.0
    %4657 = vmatprep.subr.mxu0 0.0
    %4658 = vmatpush1.msra.mxu0 0.0
    %4659 = vmatprep.subr.mxu0 0.0
    %4660 = vmatpush1.msra.mxu0 0.0
    %4661 = vmatprep.subr.mxu0 0.0
    %4662 = vmatpush1.msra.mxu0 0.0
    %4663 = vmatprep.mubr.f32.mxu0 0.0
    %4664 = vmatmul.mubr.f32.gmra.mrb[0].mxu0 %v4597
    %v4665 = vpop.f32.mrb[0].mxu0
    %v4666 = vadd.f32 0.0, %v4665
    %v4667 = vpop.f32.mrb[0].mxu0
    %4668 = vdwg.mxu0
    %v4669 = vadd.f32 %v4595, %v4666
    %v4670 = vmax.f32 %v4669, 0.0
    %v4672 = vsel %vm144, %v4670, 0
    %4674 = vmatprep.subr.mxu0 0.0
    %4675 = vmatpush1.msra.mxu0 %v321
    %4676 = vmatprep.subr.mxu0 0.0
    %4677 = vmatpush1.msra.mxu0 %v322
    %4678 = vmatprep.subr.mxu0 0.0
    %4679 = vmatpush1.msra.mxu0 %v323
    %4680 = vmatprep.subr.mxu0 0.0
    %4681 = vmatpush1.msra.mxu0 %v324
    %4682 = vmatprep.subr.mxu0 0.0
    %4683 = vmatpush1.msra.mxu0 0.0
    %4684 = vmatprep.subr.mxu0 0.0
    %4685 = vmatpush1.msra.mxu0 0.0
    %4686 = vmatprep.subr.mxu0 0.0
    %4687 = vmatpush1.msra.mxu0 0.0
    %4688 = vmatprep.subr.mxu0 0.0
    %4689 = vmatpush1.msra.mxu0 0.0
    %4690 = vmatprep.subr.mxu0 0.0
    %4691 = vmatpush1.msra.mxu0 0.0
    %4692 = vmatprep.subr.mxu0 0.0
    %4693 = vmatpush1.msra.mxu0 0.0
    %4694 = vmatprep.subr.mxu0 0.0
    %4695 = vmatpush1.msra.mxu0 0.0
    %4696 = vmatprep.subr.mxu0 0.0
    %4697 = vmatpush1.msra.mxu0 0.0
    %4698 = vmatprep.subr.mxu0 0.0
    %4699 = vmatpush1.msra.mxu0 0.0
    %4700 = vmatprep.subr.mxu0 0.0
    %4701 = vmatpush1.msra.mxu0 0.0
    %4702 = vmatprep.subr.mxu0 0.0
    %4703 = vmatpush1.msra.mxu0 0.0
    %4704 = vmatprep.subr.mxu0 0.0
    %4705 = vmatpush1.msra.mxu0 0.0
    %4706 = vmatprep.subr.mxu0 0.0
    %4707 = vmatpush1.msra.mxu0 0.0
    %4708 = vmatprep.subr.mxu0 0.0
    %4709 = vmatpush1.msra.mxu0 0.0
    %4710 = vmatprep.subr.mxu0 0.0
    %4711 = vmatpush1.msra.mxu0 0.0
    %4712 = vmatprep.subr.mxu0 0.0
    %4713 = vmatpush1.msra.mxu0 0.0
    %4714 = vmatprep.subr.mxu0 0.0
    %4715 = vmatpush1.msra.mxu0 0.0
    %4716 = vmatprep.subr.mxu0 0.0
    %4717 = vmatpush1.msra.mxu0 0.0
    %4718 = vmatprep.subr.mxu0 0.0
    %4719 = vmatpush1.msra.mxu0 0.0
    %4720 = vmatprep.subr.mxu0 0.0
    %4721 = vmatpush1.msra.mxu0 0.0
    %4722 = vmatprep.subr.mxu0 0.0
    %4723 = vmatpush1.msra.mxu0 0.0
    %4724 = vmatprep.subr.mxu0 0.0
    %4725 = vmatpush1.msra.mxu0 0.0
    %4726 = vmatprep.subr.mxu0 0.0
    %4727 = vmatpush1.msra.mxu0 0.0
    %4728 = vmatprep.subr.mxu0 0.0
    %4729 = vmatpush1.msra.mxu0 0.0
    %4730 = vmatprep.subr.mxu0 0.0
    %4731 = vmatpush1.msra.mxu0 0.0
    %4732 = vmatprep.subr.mxu0 0.0
    %4733 = vmatpush1.msra.mxu0 0.0
    %4734 = vmatprep.subr.mxu0 0.0
    %4735 = vmatpush1.msra.mxu0 0.0
    %4736 = vmatprep.subr.mxu0 0.0
    %4737 = vmatpush1.msra.mxu0 0.0
    %4738 = vmatprep.mubr.f32.mxu0 0.0
    %4739 = vmatmul.mubr.f32.gmra.mrb[0].mxu0 %v4672
    %v4740 = vpop.f32.mrb[0].mxu0
    %v4741 = vadd.f32 0.0, %v4740
    %v4742 = vpop.f32.mrb[0].mxu0
    %4743 = vdwg.mxu0
    %v4744 = vadd.f32 %v4741, %v4477
    %v4745 = vadd.f32 %v4744, %v333
    %v4746 = vxor.u32 %v4745, 2147483648
    %v4747 = vmul.f32 %v4746, 1.442695
    %v4748 = vpow.pop %v4747
    %v4749 = vadd.f32 %v4748, 1.0
    %v4750 = vrcp.pop %v4749
    %v4751 = vmul.f32 1.0, %v4750
    %v4752 = vadd.f32 %v4741, %v665
    %v4753 = vadd.f32 %v4477, %v670
    %4755 = vrot.lane.b32.xlu0 %v4753, 64
    %v4756 = vpop.permute.xlu0 %4755
    %v4758 = vmul.f32 %v4751, %v4756
    %4760 = vrot.lane.b32.xlu0 %v4758, 64
    %v4761 = vpop.permute.xlu0 %4760
    %v4763 = vadd.f32 %v4752, %v4761
    %v4764 = vtanh.pop %v4763
    %v4765 = vsub.f32 1.0, %v4751
    %4767 = vrot.lane.b32.xlu0 %v4764, 96
    %v4768 = vpop.permute.xlu0 %4767
    %v4770 = vmul.f32 %v4765, %v4768
    %v4771 = vmul.f32 %v4751, %v4402
    %v4772 = vadd.f32 %v4770, %v4771
    %4774 = vrot.lane.b32.xlu0 %v4772, 96
    %v4775 = vpop.permute.xlu0 %4774
    %v4776 = vsel %vm144, %v4775, 0
    %4778 = vmatprep.subr.mxu0 %v326
    %4779 = vmatpush1.msra.mxu0 %v325
    %4780 = vmatprep.subr.mxu0 %v328
    %4781 = vmatpush1.msra.mxu0 %v327
    %4782 = vmatprep.subr.mxu0 %v330
    %4783 = vmatpush1.msra.mxu0 %v329
    %4784 = vmatprep.subr.mxu0 %v332
    %4785 = vmatpush1.msra.mxu0 %v331
    %4786 = vmatprep.subr.mxu0 0.0
    %4787 = vmatpush1.msra.mxu0 0.0
    %4788 = vmatprep.subr.mxu0 0.0
    %4789 = vmatpush1.msra.mxu0 0.0
    %4790 = vmatprep.subr.mxu0 0.0
    %4791 = vmatpush1.msra.mxu0 0.0
    %4792 = vmatprep.subr.mxu0 0.0
    %4793 = vmatpush1.msra.mxu0 0.0
    %4794 = vmatprep.subr.mxu0 0.0
    %4795 = vmatpush1.msra.mxu0 0.0
    %4796 = vmatprep.subr.mxu0 0.0
    %4797 = vmatpush1.msra.mxu0 0.0
    %4798 = vmatprep.subr.mxu0 0.0
    %4799 = vmatpush1.msra.mxu0 0.0
    %4800 = vmatprep.subr.mxu0 0.0
    %4801 = vmatpush1.msra.mxu0 0.0
    %4802 = vmatprep.subr.mxu0 0.0
    %4803 = vmatpush1.msra.mxu0 0.0
    %4804 = vmatprep.subr.mxu0 0.0
    %4805 = vmatpush1.msra.mxu0 0.0
    %4806 = vmatprep.subr.mxu0 0.0
    %4807 = vmatpush1.msra.mxu0 0.0
    %4808 = vmatprep.subr.mxu0 0.0
    %4809 = vmatpush1.msra.mxu0 0.0
    %4810 = vmatprep.subr.mxu0 0.0
    %4811 = vmatpush1.msra.mxu0 0.0
    %4812 = vmatprep.subr.mxu0 0.0
    %4813 = vmatpush1.msra.mxu0 0.0
    %4814 = vmatprep.subr.mxu0 0.0
    %4815 = vmatpush1.msra.mxu0 0.0
    %4816 = vmatprep.subr.mxu0 0.0
    %4817 = vmatpush1.msra.mxu0 0.0
    %4818 = vmatprep.subr.mxu0 0.0
    %4819 = vmatpush1.msra.mxu0 0.0
    %4820 = vmatprep.subr.mxu0 0.0
    %4821 = vmatpush1.msra.mxu0 0.0
    %4822 = vmatprep.subr.mxu0 0.0
    %4823 = vmatpush1.msra.mxu0 0.0
    %4824 = vmatprep.subr.mxu0 0.0
    %4825 = vmatpush1.msra.mxu0 0.0
    %4826 = vmatprep.subr.mxu0 0.0
    %4827 = vmatpush1.msra.mxu0 0.0
    %4828 = vmatprep.subr.mxu0 0.0
    %4829 = vmatpush1.msra.mxu0 0.0
    %4830 = vmatprep.subr.mxu0 0.0
    %4831 = vmatpush1.msra.mxu0 0.0
    %4832 = vmatprep.subr.mxu0 0.0
    %4833 = vmatpush1.msra.mxu0 0.0
    %4834 = vmatprep.subr.mxu0 0.0
    %4835 = vmatpush1.msra.mxu0 0.0
    %4836 = vmatprep.subr.mxu0 0.0
    %4837 = vmatpush1.msra.mxu0 0.0
    %4838 = vmatprep.subr.mxu0 0.0
    %4839 = vmatpush1.msra.mxu0 0.0
    %4840 = vmatprep.subr.mxu0 0.0
    %4841 = vmatpush1.msra.mxu0 0.0
    %4842 = vmatprep.mubr.f32.mxu0 0.0
    %4843 = vmatmul.mubr.f32.gmra.mrb[0].mxu0 %v4776
    %v4844 = vpop.f32.mrb[0].mxu0
    %v4845 = vadd.f32 0.0, %v4844
    %v4846 = vpop.f32.mrb[0].mxu0
    %v4847 = vadd.f32 0.0, %v4846
    %4848 = vdwg.mxu0
    %v4849 = vadd.f32 %v4845, %v336
    %v4850 = vsel %vm776, %v4849, -inf
    %4851 = vmax.xlane.f32.xlu0 %v4850
    %v4852 = vpop.xlane.xlu0 %4851
    %v4853 = vsub.f32 %v4849, %v4852
    %v4854 = vmul.f32 %v4853, 1.442695
    %v4855 = vpow.pop %v4854
    %v4856 = vsel %vm776, %v4855, 0.0
    %4857 = vadd.xlane.f32.xlu0 %v4856
    %v4858 = vpop.xlane.xlu0 %4857
    %v4859 = vlog2.pop %v4858
    %v4860 = vmul.f32 %v4859, 0.6931472
    %v4861 = vsub.f32 %v4853, %v4860
    %4862 = vrot.lane.b32.xlu0 %v4772, 32
    %v4863 = vpop.permute.xlu0 %4862
    %4865 = vrot.lane.b32.xlu0 %v4521, 96
    %v4866 = vpop.permute.xlu0 %4865
    %v4868 = vsel %vm795, %v4861, %v4863
    %v4869 = vsel %vm797, %v4868, %v4866
    %v4870 = vsel %vm799, %v4869, 0.0
    %4871 = vst [vmem:[#allocation12 + $0xb] sm:$0x1] %v4870
    %v4872 = vld [vmem:[#allocation3 + $0xc] sm:$0x1]
    %4874 = vrot.lane.b32.xlu0 %v4845, 64
    %v4875 = vpop.permute.xlu0 %4874
    %v4877 = vadd.f32 %v4872, %v4875
    %v4878 = vsel %vm418, %v4877, -inf
    %4879 = vmax.xlane.f32.xlu0 %v4878
    %v4880 = vpop.xlane.xlu0 %4879
    %v4881 = vsub.f32 %v4877, %v4880
    %v4882 = vmul.f32 %v4881, 1.442695
    %v4883 = vpow.pop %v4882
    %v4884 = vsel %vm418, %v4883, 0.0
    %4885 = vadd.xlane.f32.xlu0 %v4884
    %v4886 = vpop.xlane.xlu0 %4885
    %v4887 = vrcp.pop %v4886
    %v4888 = vmul.f32 %v4886, %v4887
    %v4889 = vsub.f32 2.0, %v4888
    %v4890 = vmul.f32 %v4887, %v4889
    %v4891 = vmul.f32 %v4883, %v4890
    %v4893 = vsel %vm226, %v4891, 0
    %4895 = vmatprep.subr.mxu0 0.0
    %4896 = vmatpush1.msra.mxu0 %v315
    %4897 = vmatprep.subr.mxu0 0.0
    %4898 = vmatpush1.msra.mxu0 %v316
    %4899 = vmatprep.subr.mxu0 0.0
    %4900 = vmatpush1.msra.mxu0 0.0
    %4901 = vmatprep.subr.mxu0 0.0
    %4902 = vmatpush1.msra.mxu0 0.0
    %4903 = vmatprep.subr.mxu0 0.0
    %4904 = vmatpush1.msra.mxu0 0.0
    %4905 = vmatprep.subr.mxu0 0.0
    %4906 = vmatpush1.msra.mxu0 0.0
    %4907 = vmatprep.subr.mxu0 0.0
    %4908 = vmatpush1.msra.mxu0 0.0
    %4909 = vmatprep.subr.mxu0 0.0
    %4910 = vmatpush1.msra.mxu0 0.0
    %4911 = vmatprep.subr.mxu0 0.0
    %4912 = vmatpush1.msra.mxu0 0.0
    %4913 = vmatprep.subr.mxu0 0.0
    %4914 = vmatpush1.msra.mxu0 0.0
    %4915 = vmatprep.subr.mxu0 0.0
    %4916 = vmatpush1.msra.mxu0 0.0
    %4917 = vmatprep.subr.mxu0 0.0
    %4918 = vmatpush1.msra.mxu0 0.0
    %4919 = vmatprep.subr.mxu0 0.0
    %4920 = vmatpush1.msra.mxu0 0.0
    %4921 = vmatprep.subr.mxu0 0.0
    %4922 = vmatpush1.msra.mxu0 0.0
    %4923 = vmatprep.subr.mxu0 0.0
    %4924 = vmatpush1.msra.mxu0 0.0
    %4925 = vmatprep.subr.mxu0 0.0
    %4926 = vmatpush1.msra.mxu0 0.0
    %4927 = vmatprep.subr.mxu0 0.0
    %4928 = vmatpush1.msra.mxu0 0.0
    %4929 = vmatprep.subr.mxu0 0.0
    %4930 = vmatpush1.msra.mxu0 0.0
    %4931 = vmatprep.subr.mxu0 0.0
    %4932 = vmatpush1.msra.mxu0 0.0
    %4933 = vmatprep.subr.mxu0 0.0
    %4934 = vmatpush1.msra.mxu0 0.0
    %4935 = vmatprep.subr.mxu0 0.0
    %4936 = vmatpush1.msra.mxu0 0.0
    %4937 = vmatprep.subr.mxu0 0.0
    %4938 = vmatpush1.msra.mxu0 0.0
    %4939 = vmatprep.subr.mxu0 0.0
    %4940 = vmatpush1.msra.mxu0 0.0
    %4941 = vmatprep.subr.mxu0 0.0
    %4942 = vmatpush1.msra.mxu0 0.0
    %4943 = vmatprep.subr.mxu0 0.0
    %4944 = vmatpush1.msra.mxu0 0.0
    %4945 = vmatprep.subr.mxu0 0.0
    %4946 = vmatpush1.msra.mxu0 0.0
    %4947 = vmatprep.subr.mxu0 0.0
    %4948 = vmatpush1.msra.mxu0 0.0
    %4949 = vmatprep.subr.mxu0 0.0
    %4950 = vmatpush1.msra.mxu0 0.0
    %4951 = vmatprep.subr.mxu0 0.0
    %4952 = vmatpush1.msra.mxu0 0.0
    %4953 = vmatprep.subr.mxu0 0.0
    %4954 = vmatpush1.msra.mxu0 0.0
    %4955 = vmatprep.subr.mxu0 0.0
    %4956 = vmatpush1.msra.mxu0 0.0
    %4957 = vmatprep.subr.mxu0 0.0
    %4958 = vmatpush1.msra.mxu0 0.0
    %4959 = vmatprep.mubr.f32.mxu0 0.0
    %4960 = vmatmul.mubr.f32.gmra.mrb[0].mxu0 %v4893
    %v4961 = vpop.f32.mrb[0].mxu0
    %v4962 = vadd.f32 0.0, %v4961
    %v4963 = vpop.f32.mrb[0].mxu0
    %4964 = vdwg.mxu0
    %v4965 = vld [vmem:[#allocation4 + $0xc] sm:$0x1]
    %v4967 = vsel %vm144, %v4962, 0
    %4969 = vmatprep.subr.mxu0 0.0
    %4970 = vmatpush1.msra.mxu0 %v317
    %4971 = vmatprep.subr.mxu0 0.0
    %4972 = vmatpush1.msra.mxu0 %v318
    %4973 = vmatprep.subr.mxu0 0.0
    %4974 = vmatpush1.msra.mxu0 %v319
    %4975 = vmatprep.subr.mxu0 0.0
    %4976 = vmatpush1.msra.mxu0 %v320
    %4977 = vmatprep.subr.mxu0 0.0
    %4978 = vmatpush1.msra.mxu0 0.0
    %4979 = vmatprep.subr.mxu0 0.0
    %4980 = vmatpush1.msra.mxu0 0.0
    %4981 = vmatprep.subr.mxu0 0.0
    %4982 = vmatpush1.msra.mxu0 0.0
    %4983 = vmatprep.subr.mxu0 0.0
    %4984 = vmatpush1.msra.mxu0 0.0
    %4985 = vmatprep.subr.mxu0 0.0
    %4986 = vmatpush1.msra.mxu0 0.0
    %4987 = vmatprep.subr.mxu0 0.0
    %4988 = vmatpush1.msra.mxu0 0.0
    %4989 = vmatprep.subr.mxu0 0.0
    %4990 = vmatpush1.msra.mxu0 0.0
    %4991 = vmatprep.subr.mxu0 0.0
    %4992 = vmatpush1.msra.mxu0 0.0
    %4993 = vmatprep.subr.mxu0 0.0
    %4994 = vmatpush1.msra.mxu0 0.0
    %4995 = vmatprep.subr.mxu0 0.0
    %4996 = vmatpush1.msra.mxu0 0.0
    %4997 = vmatprep.subr.mxu0 0.0
    %4998 = vmatpush1.msra.mxu0 0.0
    %4999 = vmatprep.subr.mxu0 0.0
    %5000 = vmatpush1.msra.mxu0 0.0
    %5001 = vmatprep.subr.mxu0 0.0
    %5002 = vmatpush1.msra.mxu0 0.0
    %5003 = vmatprep.subr.mxu0 0.0
    %5004 = vmatpush1.msra.mxu0 0.0
    %5005 = vmatprep.subr.mxu0 0.0
    %5006 = vmatpush1.msra.mxu0 0.0
    %5007 = vmatprep.subr.mxu0 0.0
    %5008 = vmatpush1.msra.mxu0 0.0
    %5009 = vmatprep.subr.mxu0 0.0
    %5010 = vmatpush1.msra.mxu0 0.0
    %5011 = vmatprep.subr.mxu0 0.0
    %5012 = vmatpush1.msra.mxu0 0.0
    %5013 = vmatprep.subr.mxu0 0.0
    %5014 = vmatpush1.msra.mxu0 0.0
    %5015 = vmatprep.subr.mxu0 0.0
    %5016 = vmatpush1.msra.mxu0 0.0
    %5017 = vmatprep.subr.mxu0 0.0
    %5018 = vmatpush1.msra.mxu0 0.0
    %5019 = vmatprep.subr.mxu0 0.0
    %5020 = vmatpush1.msra.mxu0 0.0
    %5021 = vmatprep.subr.mxu0 0.0
    %5022 = vmatpush1.msra.mxu0 0.0
    %5023 = vmatprep.subr.mxu0 0.0
    %5024 = vmatpush1.msra.mxu0 0.0
    %5025 = vmatprep.subr.mxu0 0.0
    %5026 = vmatpush1.msra.mxu0 0.0
    %5027 = vmatprep.subr.mxu0 0.0
    %5028 = vmatpush1.msra.mxu0 0.0
    %5029 = vmatprep.subr.mxu0 0.0
    %5030 = vmatpush1.msra.mxu0 0.0
    %5031 = vmatprep.subr.mxu0 0.0
    %5032 = vmatpush1.msra.mxu0 0.0
    %5033 = vmatprep.mubr.f32.mxu0 0.0
    %5034 = vmatmul.mubr.f32.gmra.mrb[0].mxu0 %v4967
    %v5035 = vpop.f32.mrb[0].mxu0
    %v5036 = vadd.f32 0.0, %v5035
    %v5037 = vpop.f32.mrb[0].mxu0
    %5038 = vdwg.mxu0
    %v5039 = vadd.f32 %v4965, %v5036
    %v5040 = vmax.f32 %v5039, 0.0
    %v5042 = vsel %vm144, %v5040, 0
    %5044 = vmatprep.subr.mxu0 0.0
    %5045 = vmatpush1.msra.mxu0 %v321
    %5046 = vmatprep.subr.mxu0 0.0
    %5047 = vmatpush1.msra.mxu0 %v322
    %5048 = vmatprep.subr.mxu0 0.0
    %5049 = vmatpush1.msra.mxu0 %v323
    %5050 = vmatprep.subr.mxu0 0.0
    %5051 = vmatpush1.msra.mxu0 %v324
    %5052 = vmatprep.subr.mxu0 0.0
    %5053 = vmatpush1.msra.mxu0 0.0
    %5054 = vmatprep.subr.mxu0 0.0
    %5055 = vmatpush1.msra.mxu0 0.0
    %5056 = vmatprep.subr.mxu0 0.0
    %5057 = vmatpush1.msra.mxu0 0.0
    %5058 = vmatprep.subr.mxu0 0.0
    %5059 = vmatpush1.msra.mxu0 0.0
    %5060 = vmatprep.subr.mxu0 0.0
    %5061 = vmatpush1.msra.mxu0 0.0
    %5062 = vmatprep.subr.mxu0 0.0
    %5063 = vmatpush1.msra.mxu0 0.0
    %5064 = vmatprep.subr.mxu0 0.0
    %5065 = vmatpush1.msra.mxu0 0.0
    %5066 = vmatprep.subr.mxu0 0.0
    %5067 = vmatpush1.msra.mxu0 0.0
    %5068 = vmatprep.subr.mxu0 0.0
    %5069 = vmatpush1.msra.mxu0 0.0
    %5070 = vmatprep.subr.mxu0 0.0
    %5071 = vmatpush1.msra.mxu0 0.0
    %5072 = vmatprep.subr.mxu0 0.0
    %5073 = vmatpush1.msra.mxu0 0.0
    %5074 = vmatprep.subr.mxu0 0.0
    %5075 = vmatpush1.msra.mxu0 0.0
    %5076 = vmatprep.subr.mxu0 0.0
    %5077 = vmatpush1.msra.mxu0 0.0
    %5078 = vmatprep.subr.mxu0 0.0
    %5079 = vmatpush1.msra.mxu0 0.0
    %5080 = vmatprep.subr.mxu0 0.0
    %5081 = vmatpush1.msra.mxu0 0.0
    %5082 = vmatprep.subr.mxu0 0.0
    %5083 = vmatpush1.msra.mxu0 0.0
    %5084 = vmatprep.subr.mxu0 0.0
    %5085 = vmatpush1.msra.mxu0 0.0
    %5086 = vmatprep.subr.mxu0 0.0
    %5087 = vmatpush1.msra.mxu0 0.0
    %5088 = vmatprep.subr.mxu0 0.0
    %5089 = vmatpush1.msra.mxu0 0.0
    %5090 = vmatprep.subr.mxu0 0.0
    %5091 = vmatpush1.msra.mxu0 0.0
    %5092 = vmatprep.subr.mxu0 0.0
    %5093 = vmatpush1.msra.mxu0 0.0
    %5094 = vmatprep.subr.mxu0 0.0
    %5095 = vmatpush1.msra.mxu0 0.0
    %5096 = vmatprep.subr.mxu0 0.0
    %5097 = vmatpush1.msra.mxu0 0.0
    %5098 = vmatprep.subr.mxu0 0.0
    %5099 = vmatpush1.msra.mxu0 0.0
    %5100 = vmatprep.subr.mxu0 0.0
    %5101 = vmatpush1.msra.mxu0 0.0
    %5102 = vmatprep.subr.mxu0 0.0
    %5103 = vmatpush1.msra.mxu0 0.0
    %5104 = vmatprep.subr.mxu0 0.0
    %5105 = vmatpush1.msra.mxu0 0.0
    %5106 = vmatprep.subr.mxu0 0.0
    %5107 = vmatpush1.msra.mxu0 0.0
    %5108 = vmatprep.mubr.f32.mxu0 0.0
    %5109 = vmatmul.mubr.f32.gmra.mrb[0].mxu0 %v5042
    %v5110 = vpop.f32.mrb[0].mxu0
    %v5111 = vadd.f32 0.0, %v5110
    %v5112 = vpop.f32.mrb[0].mxu0
    %5113 = vdwg.mxu0
    %v5114 = vadd.f32 %v5111, %v4847
    %v5115 = vadd.f32 %v5114, %v333
    %v5116 = vxor.u32 %v5115, 2147483648
    %v5117 = vmul.f32 %v5116, 1.442695
    %v5118 = vpow.pop %v5117
    %v5119 = vadd.f32 %v5118, 1.0
    %v5120 = vrcp.pop %v5119
    %v5121 = vmul.f32 1.0, %v5120
    %v5122 = vadd.f32 %v5111, %v665
    %v5123 = vadd.f32 %v4847, %v670
    %5125 = vrot.lane.b32.xlu0 %v5123, 64
    %v5126 = vpop.permute.xlu0 %5125
    %v5128 = vmul.f32 %v5121, %v5126
    %5130 = vrot.lane.b32.xlu0 %v5128, 64
    %v5131 = vpop.permute.xlu0 %5130
    %v5133 = vadd.f32 %v5122, %v5131
    %v5134 = vtanh.pop %v5133
    %v5135 = vsub.f32 1.0, %v5121
    %5137 = vrot.lane.b32.xlu0 %v5134, 96
    %v5138 = vpop.permute.xlu0 %5137
    %v5140 = vmul.f32 %v5135, %v5138
    %v5141 = vmul.f32 %v5121, %v4772
    %v5142 = vadd.f32 %v5140, %v5141
    %5144 = vrot.lane.b32.xlu0 %v5142, 96
    %v5145 = vpop.permute.xlu0 %5144
    %v5146 = vsel %vm144, %v5145, 0
    %5148 = vmatprep.subr.mxu0 %v326
    %5149 = vmatpush1.msra.mxu0 %v325
    %5150 = vmatprep.subr.mxu0 %v328
    %5151 = vmatpush1.msra.mxu0 %v327
    %5152 = vmatprep.subr.mxu0 %v330
    %5153 = vmatpush1.msra.mxu0 %v329
    %5154 = vmatprep.subr.mxu0 %v332
    %5155 = vmatpush1.msra.mxu0 %v331
    %5156 = vmatprep.subr.mxu0 0.0
    %5157 = vmatpush1.msra.mxu0 0.0
    %5158 = vmatprep.subr.mxu0 0.0
    %5159 = vmatpush1.msra.mxu0 0.0
    %5160 = vmatprep.subr.mxu0 0.0
    %5161 = vmatpush1.msra.mxu0 0.0
    %5162 = vmatprep.subr.mxu0 0.0
    %5163 = vmatpush1.msra.mxu0 0.0
    %5164 = vmatprep.subr.mxu0 0.0
    %5165 = vmatpush1.msra.mxu0 0.0
    %5166 = vmatprep.subr.mxu0 0.0
    %5167 = vmatpush1.msra.mxu0 0.0
    %5168 = vmatprep.subr.mxu0 0.0
    %5169 = vmatpush1.msra.mxu0 0.0
    %5170 = vmatprep.subr.mxu0 0.0
    %5171 = vmatpush1.msra.mxu0 0.0
    %5172 = vmatprep.subr.mxu0 0.0
    %5173 = vmatpush1.msra.mxu0 0.0
    %5174 = vmatprep.subr.mxu0 0.0
    %5175 = vmatpush1.msra.mxu0 0.0
    %5176 = vmatprep.subr.mxu0 0.0
    %5177 = vmatpush1.msra.mxu0 0.0
    %5178 = vmatprep.subr.mxu0 0.0
    %5179 = vmatpush1.msra.mxu0 0.0
    %5180 = vmatprep.subr.mxu0 0.0
    %5181 = vmatpush1.msra.mxu0 0.0
    %5182 = vmatprep.subr.mxu0 0.0
    %5183 = vmatpush1.msra.mxu0 0.0
    %5184 = vmatprep.subr.mxu0 0.0
    %5185 = vmatpush1.msra.mxu0 0.0
    %5186 = vmatprep.subr.mxu0 0.0
    %5187 = vmatpush1.msra.mxu0 0.0
    %5188 = vmatprep.subr.mxu0 0.0
    %5189 = vmatpush1.msra.mxu0 0.0
    %5190 = vmatprep.subr.mxu0 0.0
    %5191 = vmatpush1.msra.mxu0 0.0
    %5192 = vmatprep.subr.mxu0 0.0
    %5193 = vmatpush1.msra.mxu0 0.0
    %5194 = vmatprep.subr.mxu0 0.0
    %5195 = vmatpush1.msra.mxu0 0.0
    %5196 = vmatprep.subr.mxu0 0.0
    %5197 = vmatpush1.msra.mxu0 0.0
    %5198 = vmatprep.subr.mxu0 0.0
    %5199 = vmatpush1.msra.mxu0 0.0
    %5200 = vmatprep.subr.mxu0 0.0
    %5201 = vmatpush1.msra.mxu0 0.0
    %5202 = vmatprep.subr.mxu0 0.0
    %5203 = vmatpush1.msra.mxu0 0.0
    %5204 = vmatprep.subr.mxu0 0.0
    %5205 = vmatpush1.msra.mxu0 0.0
    %5206 = vmatprep.subr.mxu0 0.0
    %5207 = vmatpush1.msra.mxu0 0.0
    %5208 = vmatprep.subr.mxu0 0.0
    %5209 = vmatpush1.msra.mxu0 0.0
    %5210 = vmatprep.subr.mxu0 0.0
    %5211 = vmatpush1.msra.mxu0 0.0
    %5212 = vmatprep.mubr.f32.mxu0 0.0
    %5213 = vmatmul.mubr.f32.gmra.mrb[0].mxu0 %v5146
    %v5214 = vpop.f32.mrb[0].mxu0
    %v5215 = vadd.f32 0.0, %v5214
    %v5216 = vpop.f32.mrb[0].mxu0
    %v5217 = vadd.f32 0.0, %v5216
    %5218 = vdwg.mxu0
    %v5219 = vadd.f32 %v5215, %v336
    %v5220 = vsel %vm776, %v5219, -inf
    %5221 = vmax.xlane.f32.xlu0 %v5220
    %v5222 = vpop.xlane.xlu0 %5221
    %v5223 = vsub.f32 %v5219, %v5222
    %v5224 = vmul.f32 %v5223, 1.442695
    %v5225 = vpow.pop %v5224
    %v5226 = vsel %vm776, %v5225, 0.0
    %5227 = vadd.xlane.f32.xlu0 %v5226
    %v5228 = vpop.xlane.xlu0 %5227
    %v5229 = vlog2.pop %v5228
    %v5230 = vmul.f32 %v5229, 0.6931472
    %v5231 = vsub.f32 %v5223, %v5230
    %5232 = vrot.lane.b32.xlu0 %v5142, 32
    %v5233 = vpop.permute.xlu0 %5232
    %5235 = vrot.lane.b32.xlu0 %v4891, 96
    %v5236 = vpop.permute.xlu0 %5235
    %v5238 = vsel %vm795, %v5231, %v5233
    %v5239 = vsel %vm797, %v5238, %v5236
    %v5240 = vsel %vm799, %v5239, 0.0
    %5241 = vst [vmem:[#allocation12 + $0xc] sm:$0x1] %v5240
    %v5242 = vld [vmem:[#allocation3 + $0xd] sm:$0x1]
    %5244 = vrot.lane.b32.xlu0 %v5215, 64
    %v5245 = vpop.permute.xlu0 %5244
    %v5247 = vadd.f32 %v5242, %v5245
    %v5248 = vsel %vm418, %v5247, -inf
    %5249 = vmax.xlane.f32.xlu0 %v5248
    %v5250 = vpop.xlane.xlu0 %5249
    %v5251 = vsub.f32 %v5247, %v5250
    %v5252 = vmul.f32 %v5251, 1.442695
    %v5253 = vpow.pop %v5252
    %v5254 = vsel %vm418, %v5253, 0.0
    %5255 = vadd.xlane.f32.xlu0 %v5254
    %v5256 = vpop.xlane.xlu0 %5255
    %v5257 = vrcp.pop %v5256
    %v5258 = vmul.f32 %v5256, %v5257
    %v5259 = vsub.f32 2.0, %v5258
    %v5260 = vmul.f32 %v5257, %v5259
    %v5261 = vmul.f32 %v5253, %v5260
    %v5263 = vsel %vm226, %v5261, 0
    %5265 = vmatprep.subr.mxu0 0.0
    %5266 = vmatpush1.msra.mxu0 %v315
    %5267 = vmatprep.subr.mxu0 0.0
    %5268 = vmatpush1.msra.mxu0 %v316
    %5269 = vmatprep.subr.mxu0 0.0
    %5270 = vmatpush1.msra.mxu0 0.0
    %5271 = vmatprep.subr.mxu0 0.0
    %5272 = vmatpush1.msra.mxu0 0.0
    %5273 = vmatprep.subr.mxu0 0.0
    %5274 = vmatpush1.msra.mxu0 0.0
    %5275 = vmatprep.subr.mxu0 0.0
    %5276 = vmatpush1.msra.mxu0 0.0
    %5277 = vmatprep.subr.mxu0 0.0
    %5278 = vmatpush1.msra.mxu0 0.0
    %5279 = vmatprep.subr.mxu0 0.0
    %5280 = vmatpush1.msra.mxu0 0.0
    %5281 = vmatprep.subr.mxu0 0.0
    %5282 = vmatpush1.msra.mxu0 0.0
    %5283 = vmatprep.subr.mxu0 0.0
    %5284 = vmatpush1.msra.mxu0 0.0
    %5285 = vmatprep.subr.mxu0 0.0
    %5286 = vmatpush1.msra.mxu0 0.0
    %5287 = vmatprep.subr.mxu0 0.0
    %5288 = vmatpush1.msra.mxu0 0.0
    %5289 = vmatprep.subr.mxu0 0.0
    %5290 = vmatpush1.msra.mxu0 0.0
    %5291 = vmatprep.subr.mxu0 0.0
    %5292 = vmatpush1.msra.mxu0 0.0
    %5293 = vmatprep.subr.mxu0 0.0
    %5294 = vmatpush1.msra.mxu0 0.0
    %5295 = vmatprep.subr.mxu0 0.0
    %5296 = vmatpush1.msra.mxu0 0.0
    %5297 = vmatprep.subr.mxu0 0.0
    %5298 = vmatpush1.msra.mxu0 0.0
    %5299 = vmatprep.subr.mxu0 0.0
    %5300 = vmatpush1.msra.mxu0 0.0
    %5301 = vmatprep.subr.mxu0 0.0
    %5302 = vmatpush1.msra.mxu0 0.0
    %5303 = vmatprep.subr.mxu0 0.0
    %5304 = vmatpush1.msra.mxu0 0.0
    %5305 = vmatprep.subr.mxu0 0.0
    %5306 = vmatpush1.msra.mxu0 0.0
    %5307 = vmatprep.subr.mxu0 0.0
    %5308 = vmatpush1.msra.mxu0 0.0
    %5309 = vmatprep.subr.mxu0 0.0
    %5310 = vmatpush1.msra.mxu0 0.0
    %5311 = vmatprep.subr.mxu0 0.0
    %5312 = vmatpush1.msra.mxu0 0.0
    %5313 = vmatprep.subr.mxu0 0.0
    %5314 = vmatpush1.msra.mxu0 0.0
    %5315 = vmatprep.subr.mxu0 0.0
    %5316 = vmatpush1.msra.mxu0 0.0
    %5317 = vmatprep.subr.mxu0 0.0
    %5318 = vmatpush1.msra.mxu0 0.0
    %5319 = vmatprep.subr.mxu0 0.0
    %5320 = vmatpush1.msra.mxu0 0.0
    %5321 = vmatprep.subr.mxu0 0.0
    %5322 = vmatpush1.msra.mxu0 0.0
    %5323 = vmatprep.subr.mxu0 0.0
    %5324 = vmatpush1.msra.mxu0 0.0
    %5325 = vmatprep.subr.mxu0 0.0
    %5326 = vmatpush1.msra.mxu0 0.0
    %5327 = vmatprep.subr.mxu0 0.0
    %5328 = vmatpush1.msra.mxu0 0.0
    %5329 = vmatprep.mubr.f32.mxu0 0.0
    %5330 = vmatmul.mubr.f32.gmra.mrb[0].mxu0 %v5263
    %v5331 = vpop.f32.mrb[0].mxu0
    %v5332 = vadd.f32 0.0, %v5331
    %v5333 = vpop.f32.mrb[0].mxu0
    %5334 = vdwg.mxu0
    %v5335 = vld [vmem:[#allocation4 + $0xd] sm:$0x1]
    %v5337 = vsel %vm144, %v5332, 0
    %5339 = vmatprep.subr.mxu0 0.0
    %5340 = vmatpush1.msra.mxu0 %v317
    %5341 = vmatprep.subr.mxu0 0.0
    %5342 = vmatpush1.msra.mxu0 %v318
    %5343 = vmatprep.subr.mxu0 0.0
    %5344 = vmatpush1.msra.mxu0 %v319
    %5345 = vmatprep.subr.mxu0 0.0
    %5346 = vmatpush1.msra.mxu0 %v320
    %5347 = vmatprep.subr.mxu0 0.0
    %5348 = vmatpush1.msra.mxu0 0.0
    %5349 = vmatprep.subr.mxu0 0.0
    %5350 = vmatpush1.msra.mxu0 0.0
    %5351 = vmatprep.subr.mxu0 0.0
    %5352 = vmatpush1.msra.mxu0 0.0
    %5353 = vmatprep.subr.mxu0 0.0
    %5354 = vmatpush1.msra.mxu0 0.0
    %5355 = vmatprep.subr.mxu0 0.0
    %5356 = vmatpush1.msra.mxu0 0.0
    %5357 = vmatprep.subr.mxu0 0.0
    %5358 = vmatpush1.msra.mxu0 0.0
    %5359 = vmatprep.subr.mxu0 0.0
    %5360 = vmatpush1.msra.mxu0 0.0
    %5361 = vmatprep.subr.mxu0 0.0
    %5362 = vmatpush1.msra.mxu0 0.0
    %5363 = vmatprep.subr.mxu0 0.0
    %5364 = vmatpush1.msra.mxu0 0.0
    %5365 = vmatprep.subr.mxu0 0.0
    %5366 = vmatpush1.msra.mxu0 0.0
    %5367 = vmatprep.subr.mxu0 0.0
    %5368 = vmatpush1.msra.mxu0 0.0
    %5369 = vmatprep.subr.mxu0 0.0
    %5370 = vmatpush1.msra.mxu0 0.0
    %5371 = vmatprep.subr.mxu0 0.0
    %5372 = vmatpush1.msra.mxu0 0.0
    %5373 = vmatprep.subr.mxu0 0.0
    %5374 = vmatpush1.msra.mxu0 0.0
    %5375 = vmatprep.subr.mxu0 0.0
    %5376 = vmatpush1.msra.mxu0 0.0
    %5377 = vmatprep.subr.mxu0 0.0
    %5378 = vmatpush1.msra.mxu0 0.0
    %5379 = vmatprep.subr.mxu0 0.0
    %5380 = vmatpush1.msra.mxu0 0.0
    %5381 = vmatprep.subr.mxu0 0.0
    %5382 = vmatpush1.msra.mxu0 0.0
    %5383 = vmatprep.subr.mxu0 0.0
    %5384 = vmatpush1.msra.mxu0 0.0
    %5385 = vmatprep.subr.mxu0 0.0
    %5386 = vmatpush1.msra.mxu0 0.0
    %5387 = vmatprep.subr.mxu0 0.0
    %5388 = vmatpush1.msra.mxu0 0.0
    %5389 = vmatprep.subr.mxu0 0.0
    %5390 = vmatpush1.msra.mxu0 0.0
    %5391 = vmatprep.subr.mxu0 0.0
    %5392 = vmatpush1.msra.mxu0 0.0
    %5393 = vmatprep.subr.mxu0 0.0
    %5394 = vmatpush1.msra.mxu0 0.0
    %5395 = vmatprep.subr.mxu0 0.0
    %5396 = vmatpush1.msra.mxu0 0.0
    %5397 = vmatprep.subr.mxu0 0.0
    %5398 = vmatpush1.msra.mxu0 0.0
    %5399 = vmatprep.subr.mxu0 0.0
    %5400 = vmatpush1.msra.mxu0 0.0
    %5401 = vmatprep.subr.mxu0 0.0
    %5402 = vmatpush1.msra.mxu0 0.0
    %5403 = vmatprep.mubr.f32.mxu0 0.0
    %5404 = vmatmul.mubr.f32.gmra.mrb[0].mxu0 %v5337
    %v5405 = vpop.f32.mrb[0].mxu0
    %v5406 = vadd.f32 0.0, %v5405
    %v5407 = vpop.f32.mrb[0].mxu0
    %5408 = vdwg.mxu0
    %v5409 = vadd.f32 %v5335, %v5406
    %v5410 = vmax.f32 %v5409, 0.0
    %v5412 = vsel %vm144, %v5410, 0
    %5414 = vmatprep.subr.mxu0 0.0
    %5415 = vmatpush1.msra.mxu0 %v321
    %5416 = vmatprep.subr.mxu0 0.0
    %5417 = vmatpush1.msra.mxu0 %v322
    %5418 = vmatprep.subr.mxu0 0.0
    %5419 = vmatpush1.msra.mxu0 %v323
    %5420 = vmatprep.subr.mxu0 0.0
    %5421 = vmatpush1.msra.mxu0 %v324
    %5422 = vmatprep.subr.mxu0 0.0
    %5423 = vmatpush1.msra.mxu0 0.0
    %5424 = vmatprep.subr.mxu0 0.0
    %5425 = vmatpush1.msra.mxu0 0.0
    %5426 = vmatprep.subr.mxu0 0.0
    %5427 = vmatpush1.msra.mxu0 0.0
    %5428 = vmatprep.subr.mxu0 0.0
    %5429 = vmatpush1.msra.mxu0 0.0
    %5430 = vmatprep.subr.mxu0 0.0
    %5431 = vmatpush1.msra.mxu0 0.0
    %5432 = vmatprep.subr.mxu0 0.0
    %5433 = vmatpush1.msra.mxu0 0.0
    %5434 = vmatprep.subr.mxu0 0.0
    %5435 = vmatpush1.msra.mxu0 0.0
    %5436 = vmatprep.subr.mxu0 0.0
    %5437 = vmatpush1.msra.mxu0 0.0
    %5438 = vmatprep.subr.mxu0 0.0
    %5439 = vmatpush1.msra.mxu0 0.0
    %5440 = vmatprep.subr.mxu0 0.0
    %5441 = vmatpush1.msra.mxu0 0.0
    %5442 = vmatprep.subr.mxu0 0.0
    %5443 = vmatpush1.msra.mxu0 0.0
    %5444 = vmatprep.subr.mxu0 0.0
    %5445 = vmatpush1.msra.mxu0 0.0
    %5446 = vmatprep.subr.mxu0 0.0
    %5447 = vmatpush1.msra.mxu0 0.0
    %5448 = vmatprep.subr.mxu0 0.0
    %5449 = vmatpush1.msra.mxu0 0.0
    %5450 = vmatprep.subr.mxu0 0.0
    %5451 = vmatpush1.msra.mxu0 0.0
    %5452 = vmatprep.subr.mxu0 0.0
    %5453 = vmatpush1.msra.mxu0 0.0
    %5454 = vmatprep.subr.mxu0 0.0
    %5455 = vmatpush1.msra.mxu0 0.0
    %5456 = vmatprep.subr.mxu0 0.0
    %5457 = vmatpush1.msra.mxu0 0.0
    %5458 = vmatprep.subr.mxu0 0.0
    %5459 = vmatpush1.msra.mxu0 0.0
    %5460 = vmatprep.subr.mxu0 0.0
    %5461 = vmatpush1.msra.mxu0 0.0
    %5462 = vmatprep.subr.mxu0 0.0
    %5463 = vmatpush1.msra.mxu0 0.0
    %5464 = vmatprep.subr.mxu0 0.0
    %5465 = vmatpush1.msra.mxu0 0.0
    %5466 = vmatprep.subr.mxu0 0.0
    %5467 = vmatpush1.msra.mxu0 0.0
    %5468 = vmatprep.subr.mxu0 0.0
    %5469 = vmatpush1.msra.mxu0 0.0
    %5470 = vmatprep.subr.mxu0 0.0
    %5471 = vmatpush1.msra.mxu0 0.0
    %5472 = vmatprep.subr.mxu0 0.0
    %5473 = vmatpush1.msra.mxu0 0.0
    %5474 = vmatprep.subr.mxu0 0.0
    %5475 = vmatpush1.msra.mxu0 0.0
    %5476 = vmatprep.subr.mxu0 0.0
    %5477 = vmatpush1.msra.mxu0 0.0
    %5478 = vmatprep.mubr.f32.mxu0 0.0
    %5479 = vmatmul.mubr.f32.gmra.mrb[0].mxu0 %v5412
    %v5480 = vpop.f32.mrb[0].mxu0
    %v5481 = vadd.f32 0.0, %v5480
    %v5482 = vpop.f32.mrb[0].mxu0
    %5483 = vdwg.mxu0
    %v5484 = vadd.f32 %v5481, %v5217
    %v5485 = vadd.f32 %v5484, %v333
    %v5486 = vxor.u32 %v5485, 2147483648
    %v5487 = vmul.f32 %v5486, 1.442695
    %v5488 = vpow.pop %v5487
    %v5489 = vadd.f32 %v5488, 1.0
    %v5490 = vrcp.pop %v5489
    %v5491 = vmul.f32 1.0, %v5490
    %v5492 = vadd.f32 %v5481, %v665
    %v5493 = vadd.f32 %v5217, %v670
    %5495 = vrot.lane.b32.xlu0 %v5493, 64
    %v5496 = vpop.permute.xlu0 %5495
    %v5498 = vmul.f32 %v5491, %v5496
    %5500 = vrot.lane.b32.xlu0 %v5498, 64
    %v5501 = vpop.permute.xlu0 %5500
    %v5503 = vadd.f32 %v5492, %v5501
    %v5504 = vtanh.pop %v5503
    %v5505 = vsub.f32 1.0, %v5491
    %5507 = vrot.lane.b32.xlu0 %v5504, 96
    %v5508 = vpop.permute.xlu0 %5507
    %v5510 = vmul.f32 %v5505, %v5508
    %v5511 = vmul.f32 %v5491, %v5142
    %v5512 = vadd.f32 %v5510, %v5511
    %5514 = vrot.lane.b32.xlu0 %v5512, 96
    %v5515 = vpop.permute.xlu0 %5514
    %v5516 = vsel %vm144, %v5515, 0
    %5518 = vmatprep.subr.mxu0 %v326
    %5519 = vmatpush1.msra.mxu0 %v325
    %5520 = vmatprep.subr.mxu0 %v328
    %5521 = vmatpush1.msra.mxu0 %v327
    %5522 = vmatprep.subr.mxu0 %v330
    %5523 = vmatpush1.msra.mxu0 %v329
    %5524 = vmatprep.subr.mxu0 %v332
    %5525 = vmatpush1.msra.mxu0 %v331
    %5526 = vmatprep.subr.mxu0 0.0
    %5527 = vmatpush1.msra.mxu0 0.0
    %5528 = vmatprep.subr.mxu0 0.0
    %5529 = vmatpush1.msra.mxu0 0.0
    %5530 = vmatprep.subr.mxu0 0.0
    %5531 = vmatpush1.msra.mxu0 0.0
    %5532 = vmatprep.subr.mxu0 0.0
    %5533 = vmatpush1.msra.mxu0 0.0
    %5534 = vmatprep.subr.mxu0 0.0
    %5535 = vmatpush1.msra.mxu0 0.0
    %5536 = vmatprep.subr.mxu0 0.0
    %5537 = vmatpush1.msra.mxu0 0.0
    %5538 = vmatprep.subr.mxu0 0.0
    %5539 = vmatpush1.msra.mxu0 0.0
    %5540 = vmatprep.subr.mxu0 0.0
    %5541 = vmatpush1.msra.mxu0 0.0
    %5542 = vmatprep.subr.mxu0 0.0
    %5543 = vmatpush1.msra.mxu0 0.0
    %5544 = vmatprep.subr.mxu0 0.0
    %5545 = vmatpush1.msra.mxu0 0.0
    %5546 = vmatprep.subr.mxu0 0.0
    %5547 = vmatpush1.msra.mxu0 0.0
    %5548 = vmatprep.subr.mxu0 0.0
    %5549 = vmatpush1.msra.mxu0 0.0
    %5550 = vmatprep.subr.mxu0 0.0
    %5551 = vmatpush1.msra.mxu0 0.0
    %5552 = vmatprep.subr.mxu0 0.0
    %5553 = vmatpush1.msra.mxu0 0.0
    %5554 = vmatprep.subr.mxu0 0.0
    %5555 = vmatpush1.msra.mxu0 0.0
    %5556 = vmatprep.subr.mxu0 0.0
    %5557 = vmatpush1.msra.mxu0 0.0
    %5558 = vmatprep.subr.mxu0 0.0
    %5559 = vmatpush1.msra.mxu0 0.0
    %5560 = vmatprep.subr.mxu0 0.0
    %5561 = vmatpush1.msra.mxu0 0.0
    %5562 = vmatprep.subr.mxu0 0.0
    %5563 = vmatpush1.msra.mxu0 0.0
    %5564 = vmatprep.subr.mxu0 0.0
    %5565 = vmatpush1.msra.mxu0 0.0
    %5566 = vmatprep.subr.mxu0 0.0
    %5567 = vmatpush1.msra.mxu0 0.0
    %5568 = vmatprep.subr.mxu0 0.0
    %5569 = vmatpush1.msra.mxu0 0.0
    %5570 = vmatprep.subr.mxu0 0.0
    %5571 = vmatpush1.msra.mxu0 0.0
    %5572 = vmatprep.subr.mxu0 0.0
    %5573 = vmatpush1.msra.mxu0 0.0
    %5574 = vmatprep.subr.mxu0 0.0
    %5575 = vmatpush1.msra.mxu0 0.0
    %5576 = vmatprep.subr.mxu0 0.0
    %5577 = vmatpush1.msra.mxu0 0.0
    %5578 = vmatprep.subr.mxu0 0.0
    %5579 = vmatpush1.msra.mxu0 0.0
    %5580 = vmatprep.subr.mxu0 0.0
    %5581 = vmatpush1.msra.mxu0 0.0
    %5582 = vmatprep.mubr.f32.mxu0 0.0
    %5583 = vmatmul.mubr.f32.gmra.mrb[0].mxu0 %v5516
    %v5584 = vpop.f32.mrb[0].mxu0
    %v5585 = vadd.f32 0.0, %v5584
    %v5586 = vpop.f32.mrb[0].mxu0
    %v5587 = vadd.f32 0.0, %v5586
    %5588 = vdwg.mxu0
    %v5589 = vadd.f32 %v5585, %v336
    %v5590 = vsel %vm776, %v5589, -inf
    %5591 = vmax.xlane.f32.xlu0 %v5590
    %v5592 = vpop.xlane.xlu0 %5591
    %v5593 = vsub.f32 %v5589, %v5592
    %v5594 = vmul.f32 %v5593, 1.442695
    %v5595 = vpow.pop %v5594
    %v5596 = vsel %vm776, %v5595, 0.0
    %5597 = vadd.xlane.f32.xlu0 %v5596
    %v5598 = vpop.xlane.xlu0 %5597
    %v5599 = vlog2.pop %v5598
    %v5600 = vmul.f32 %v5599, 0.6931472
    %v5601 = vsub.f32 %v5593, %v5600
    %5602 = vrot.lane.b32.xlu0 %v5512, 32
    %v5603 = vpop.permute.xlu0 %5602
    %5605 = vrot.lane.b32.xlu0 %v5261, 96
    %v5606 = vpop.permute.xlu0 %5605
    %v5608 = vsel %vm795, %v5601, %v5603
    %v5609 = vsel %vm797, %v5608, %v5606
    %v5610 = vsel %vm799, %v5609, 0.0
    %5611 = vst [vmem:[#allocation12 + $0xd] sm:$0x1] %v5610
    %v5612 = vld [vmem:[#allocation3 + $0xe] sm:$0x1]
    %5614 = vrot.lane.b32.xlu0 %v5585, 64
    %v5615 = vpop.permute.xlu0 %5614
    %v5617 = vadd.f32 %v5612, %v5615
    %v5618 = vsel %vm418, %v5617, -inf
    %5619 = vmax.xlane.f32.xlu0 %v5618
    %v5620 = vpop.xlane.xlu0 %5619
    %v5621 = vsub.f32 %v5617, %v5620
    %v5622 = vmul.f32 %v5621, 1.442695
    %v5623 = vpow.pop %v5622
    %v5624 = vsel %vm418, %v5623, 0.0
    %5625 = vadd.xlane.f32.xlu0 %v5624
    %v5626 = vpop.xlane.xlu0 %5625
    %v5627 = vrcp.pop %v5626
    %v5628 = vmul.f32 %v5626, %v5627
    %v5629 = vsub.f32 2.0, %v5628
    %v5630 = vmul.f32 %v5627, %v5629
    %v5631 = vmul.f32 %v5623, %v5630
    %v5633 = vsel %vm226, %v5631, 0
    %5635 = vmatprep.subr.mxu0 0.0
    %5636 = vmatpush1.msra.mxu0 %v315
    %5637 = vmatprep.subr.mxu0 0.0
    %5638 = vmatpush1.msra.mxu0 %v316
    %5639 = vmatprep.subr.mxu0 0.0
    %5640 = vmatpush1.msra.mxu0 0.0
    %5641 = vmatprep.subr.mxu0 0.0
    %5642 = vmatpush1.msra.mxu0 0.0
    %5643 = vmatprep.subr.mxu0 0.0
    %5644 = vmatpush1.msra.mxu0 0.0
    %5645 = vmatprep.subr.mxu0 0.0
    %5646 = vmatpush1.msra.mxu0 0.0
    %5647 = vmatprep.subr.mxu0 0.0
    %5648 = vmatpush1.msra.mxu0 0.0
    %5649 = vmatprep.subr.mxu0 0.0
    %5650 = vmatpush1.msra.mxu0 0.0
    %5651 = vmatprep.subr.mxu0 0.0
    %5652 = vmatpush1.msra.mxu0 0.0
    %5653 = vmatprep.subr.mxu0 0.0
    %5654 = vmatpush1.msra.mxu0 0.0
    %5655 = vmatprep.subr.mxu0 0.0
    %5656 = vmatpush1.msra.mxu0 0.0
    %5657 = vmatprep.subr.mxu0 0.0
    %5658 = vmatpush1.msra.mxu0 0.0
    %5659 = vmatprep.subr.mxu0 0.0
    %5660 = vmatpush1.msra.mxu0 0.0
    %5661 = vmatprep.subr.mxu0 0.0
    %5662 = vmatpush1.msra.mxu0 0.0
    %5663 = vmatprep.subr.mxu0 0.0
    %5664 = vmatpush1.msra.mxu0 0.0
    %5665 = vmatprep.subr.mxu0 0.0
    %5666 = vmatpush1.msra.mxu0 0.0
    %5667 = vmatprep.subr.mxu0 0.0
    %5668 = vmatpush1.msra.mxu0 0.0
    %5669 = vmatprep.subr.mxu0 0.0
    %5670 = vmatpush1.msra.mxu0 0.0
    %5671 = vmatprep.subr.mxu0 0.0
    %5672 = vmatpush1.msra.mxu0 0.0
    %5673 = vmatprep.subr.mxu0 0.0
    %5674 = vmatpush1.msra.mxu0 0.0
    %5675 = vmatprep.subr.mxu0 0.0
    %5676 = vmatpush1.msra.mxu0 0.0
    %5677 = vmatprep.subr.mxu0 0.0
    %5678 = vmatpush1.msra.mxu0 0.0
    %5679 = vmatprep.subr.mxu0 0.0
    %5680 = vmatpush1.msra.mxu0 0.0
    %5681 = vmatprep.subr.mxu0 0.0
    %5682 = vmatpush1.msra.mxu0 0.0
    %5683 = vmatprep.subr.mxu0 0.0
    %5684 = vmatpush1.msra.mxu0 0.0
    %5685 = vmatprep.subr.mxu0 0.0
    %5686 = vmatpush1.msra.mxu0 0.0
    %5687 = vmatprep.subr.mxu0 0.0
    %5688 = vmatpush1.msra.mxu0 0.0
    %5689 = vmatprep.subr.mxu0 0.0
    %5690 = vmatpush1.msra.mxu0 0.0
    %5691 = vmatprep.subr.mxu0 0.0
    %5692 = vmatpush1.msra.mxu0 0.0
    %5693 = vmatprep.subr.mxu0 0.0
    %5694 = vmatpush1.msra.mxu0 0.0
    %5695 = vmatprep.subr.mxu0 0.0
    %5696 = vmatpush1.msra.mxu0 0.0
    %5697 = vmatprep.subr.mxu0 0.0
    %5698 = vmatpush1.msra.mxu0 0.0
    %5699 = vmatprep.mubr.f32.mxu0 0.0
    %5700 = vmatmul.mubr.f32.gmra.mrb[0].mxu0 %v5633
    %v5701 = vpop.f32.mrb[0].mxu0
    %v5702 = vadd.f32 0.0, %v5701
    %v5703 = vpop.f32.mrb[0].mxu0
    %5704 = vdwg.mxu0
    %v5705 = vld [vmem:[#allocation4 + $0xe] sm:$0x1]
    %v5707 = vsel %vm144, %v5702, 0
    %5709 = vmatprep.subr.mxu0 0.0
    %5710 = vmatpush1.msra.mxu0 %v317
    %5711 = vmatprep.subr.mxu0 0.0
    %5712 = vmatpush1.msra.mxu0 %v318
    %5713 = vmatprep.subr.mxu0 0.0
    %5714 = vmatpush1.msra.mxu0 %v319
    %5715 = vmatprep.subr.mxu0 0.0
    %5716 = vmatpush1.msra.mxu0 %v320
    %5717 = vmatprep.subr.mxu0 0.0
    %5718 = vmatpush1.msra.mxu0 0.0
    %5719 = vmatprep.subr.mxu0 0.0
    %5720 = vmatpush1.msra.mxu0 0.0
    %5721 = vmatprep.subr.mxu0 0.0
    %5722 = vmatpush1.msra.mxu0 0.0
    %5723 = vmatprep.subr.mxu0 0.0
    %5724 = vmatpush1.msra.mxu0 0.0
    %5725 = vmatprep.subr.mxu0 0.0
    %5726 = vmatpush1.msra.mxu0 0.0
    %5727 = vmatprep.subr.mxu0 0.0
    %5728 = vmatpush1.msra.mxu0 0.0
    %5729 = vmatprep.subr.mxu0 0.0
    %5730 = vmatpush1.msra.mxu0 0.0
    %5731 = vmatprep.subr.mxu0 0.0
    %5732 = vmatpush1.msra.mxu0 0.0
    %5733 = vmatprep.subr.mxu0 0.0
    %5734 = vmatpush1.msra.mxu0 0.0
    %5735 = vmatprep.subr.mxu0 0.0
    %5736 = vmatpush1.msra.mxu0 0.0
    %5737 = vmatprep.subr.mxu0 0.0
    %5738 = vmatpush1.msra.mxu0 0.0
    %5739 = vmatprep.subr.mxu0 0.0
    %5740 = vmatpush1.msra.mxu0 0.0
    %5741 = vmatprep.subr.mxu0 0.0
    %5742 = vmatpush1.msra.mxu0 0.0
    %5743 = vmatprep.subr.mxu0 0.0
    %5744 = vmatpush1.msra.mxu0 0.0
    %5745 = vmatprep.subr.mxu0 0.0
    %5746 = vmatpush1.msra.mxu0 0.0
    %5747 = vmatprep.subr.mxu0 0.0
    %5748 = vmatpush1.msra.mxu0 0.0
    %5749 = vmatprep.subr.mxu0 0.0
    %5750 = vmatpush1.msra.mxu0 0.0
    %5751 = vmatprep.subr.mxu0 0.0
    %5752 = vmatpush1.msra.mxu0 0.0
    %5753 = vmatprep.subr.mxu0 0.0
    %5754 = vmatpush1.msra.mxu0 0.0
    %5755 = vmatprep.subr.mxu0 0.0
    %5756 = vmatpush1.msra.mxu0 0.0
    %5757 = vmatprep.subr.mxu0 0.0
    %5758 = vmatpush1.msra.mxu0 0.0
    %5759 = vmatprep.subr.mxu0 0.0
    %5760 = vmatpush1.msra.mxu0 0.0
    %5761 = vmatprep.subr.mxu0 0.0
    %5762 = vmatpush1.msra.mxu0 0.0
    %5763 = vmatprep.subr.mxu0 0.0
    %5764 = vmatpush1.msra.mxu0 0.0
    %5765 = vmatprep.subr.mxu0 0.0
    %5766 = vmatpush1.msra.mxu0 0.0
    %5767 = vmatprep.subr.mxu0 0.0
    %5768 = vmatpush1.msra.mxu0 0.0
    %5769 = vmatprep.subr.mxu0 0.0
    %5770 = vmatpush1.msra.mxu0 0.0
    %5771 = vmatprep.subr.mxu0 0.0
    %5772 = vmatpush1.msra.mxu0 0.0
    %5773 = vmatprep.mubr.f32.mxu0 0.0
    %5774 = vmatmul.mubr.f32.gmra.mrb[0].mxu0 %v5707
    %v5775 = vpop.f32.mrb[0].mxu0
    %v5776 = vadd.f32 0.0, %v5775
    %v5777 = vpop.f32.mrb[0].mxu0
    %5778 = vdwg.mxu0
    %v5779 = vadd.f32 %v5705, %v5776
    %v5780 = vmax.f32 %v5779, 0.0
    %v5782 = vsel %vm144, %v5780, 0
    %5784 = vmatprep.subr.mxu0 0.0
    %5785 = vmatpush1.msra.mxu0 %v321
    %5786 = vmatprep.subr.mxu0 0.0
    %5787 = vmatpush1.msra.mxu0 %v322
    %5788 = vmatprep.subr.mxu0 0.0
    %5789 = vmatpush1.msra.mxu0 %v323
    %5790 = vmatprep.subr.mxu0 0.0
    %5791 = vmatpush1.msra.mxu0 %v324
    %5792 = vmatprep.subr.mxu0 0.0
    %5793 = vmatpush1.msra.mxu0 0.0
    %5794 = vmatprep.subr.mxu0 0.0
    %5795 = vmatpush1.msra.mxu0 0.0
    %5796 = vmatprep.subr.mxu0 0.0
    %5797 = vmatpush1.msra.mxu0 0.0
    %5798 = vmatprep.subr.mxu0 0.0
    %5799 = vmatpush1.msra.mxu0 0.0
    %5800 = vmatprep.subr.mxu0 0.0
    %5801 = vmatpush1.msra.mxu0 0.0
    %5802 = vmatprep.subr.mxu0 0.0
    %5803 = vmatpush1.msra.mxu0 0.0
    %5804 = vmatprep.subr.mxu0 0.0
    %5805 = vmatpush1.msra.mxu0 0.0
    %5806 = vmatprep.subr.mxu0 0.0
    %5807 = vmatpush1.msra.mxu0 0.0
    %5808 = vmatprep.subr.mxu0 0.0
    %5809 = vmatpush1.msra.mxu0 0.0
    %5810 = vmatprep.subr.mxu0 0.0
    %5811 = vmatpush1.msra.mxu0 0.0
    %5812 = vmatprep.subr.mxu0 0.0
    %5813 = vmatpush1.msra.mxu0 0.0
    %5814 = vmatprep.subr.mxu0 0.0
    %5815 = vmatpush1.msra.mxu0 0.0
    %5816 = vmatprep.subr.mxu0 0.0
    %5817 = vmatpush1.msra.mxu0 0.0
    %5818 = vmatprep.subr.mxu0 0.0
    %5819 = vmatpush1.msra.mxu0 0.0
    %5820 = vmatprep.subr.mxu0 0.0
    %5821 = vmatpush1.msra.mxu0 0.0
    %5822 = vmatprep.subr.mxu0 0.0
    %5823 = vmatpush1.msra.mxu0 0.0
    %5824 = vmatprep.subr.mxu0 0.0
    %5825 = vmatpush1.msra.mxu0 0.0
    %5826 = vmatprep.subr.mxu0 0.0
    %5827 = vmatpush1.msra.mxu0 0.0
    %5828 = vmatprep.subr.mxu0 0.0
    %5829 = vmatpush1.msra.mxu0 0.0
    %5830 = vmatprep.subr.mxu0 0.0
    %5831 = vmatpush1.msra.mxu0 0.0
    %5832 = vmatprep.subr.mxu0 0.0
    %5833 = vmatpush1.msra.mxu0 0.0
    %5834 = vmatprep.subr.mxu0 0.0
    %5835 = vmatpush1.msra.mxu0 0.0
    %5836 = vmatprep.subr.mxu0 0.0
    %5837 = vmatpush1.msra.mxu0 0.0
    %5838 = vmatprep.subr.mxu0 0.0
    %5839 = vmatpush1.msra.mxu0 0.0
    %5840 = vmatprep.subr.mxu0 0.0
    %5841 = vmatpush1.msra.mxu0 0.0
    %5842 = vmatprep.subr.mxu0 0.0
    %5843 = vmatpush1.msra.mxu0 0.0
    %5844 = vmatprep.subr.mxu0 0.0
    %5845 = vmatpush1.msra.mxu0 0.0
    %5846 = vmatprep.subr.mxu0 0.0
    %5847 = vmatpush1.msra.mxu0 0.0
    %5848 = vmatprep.mubr.f32.mxu0 0.0
    %5849 = vmatmul.mubr.f32.gmra.mrb[0].mxu0 %v5782
    %v5850 = vpop.f32.mrb[0].mxu0
    %v5851 = vadd.f32 0.0, %v5850
    %v5852 = vpop.f32.mrb[0].mxu0
    %5853 = vdwg.mxu0
    %v5854 = vadd.f32 %v5851, %v5587
    %v5855 = vadd.f32 %v5854, %v333
    %v5856 = vxor.u32 %v5855, 2147483648
    %v5857 = vmul.f32 %v5856, 1.442695
    %v5858 = vpow.pop %v5857
    %v5859 = vadd.f32 %v5858, 1.0
    %v5860 = vrcp.pop %v5859
    %v5861 = vmul.f32 1.0, %v5860
    %v5862 = vadd.f32 %v5851, %v665
    %v5863 = vadd.f32 %v5587, %v670
    %5865 = vrot.lane.b32.xlu0 %v5863, 64
    %v5866 = vpop.permute.xlu0 %5865
    %v5868 = vmul.f32 %v5861, %v5866
    %5870 = vrot.lane.b32.xlu0 %v5868, 64
    %v5871 = vpop.permute.xlu0 %5870
    %v5873 = vadd.f32 %v5862, %v5871
    %v5874 = vtanh.pop %v5873
    %v5875 = vsub.f32 1.0, %v5861
    %5877 = vrot.lane.b32.xlu0 %v5874, 96
    %v5878 = vpop.permute.xlu0 %5877
    %v5880 = vmul.f32 %v5875, %v5878
    %v5881 = vmul.f32 %v5861, %v5512
    %v5882 = vadd.f32 %v5880, %v5881
    %5884 = vrot.lane.b32.xlu0 %v5882, 96
    %v5885 = vpop.permute.xlu0 %5884
    %v5886 = vsel %vm144, %v5885, 0
    %5888 = vmatprep.subr.mxu0 %v326
    %5889 = vmatpush1.msra.mxu0 %v325
    %5890 = vmatprep.subr.mxu0 %v328
    %5891 = vmatpush1.msra.mxu0 %v327
    %5892 = vmatprep.subr.mxu0 %v330
    %5893 = vmatpush1.msra.mxu0 %v329
    %5894 = vmatprep.subr.mxu0 %v332
    %5895 = vmatpush1.msra.mxu0 %v331
    %5896 = vmatprep.subr.mxu0 0.0
    %5897 = vmatpush1.msra.mxu0 0.0
    %5898 = vmatprep.subr.mxu0 0.0
    %5899 = vmatpush1.msra.mxu0 0.0
    %5900 = vmatprep.subr.mxu0 0.0
    %5901 = vmatpush1.msra.mxu0 0.0
    %5902 = vmatprep.subr.mxu0 0.0
    %5903 = vmatpush1.msra.mxu0 0.0
    %5904 = vmatprep.subr.mxu0 0.0
    %5905 = vmatpush1.msra.mxu0 0.0
    %5906 = vmatprep.subr.mxu0 0.0
    %5907 = vmatpush1.msra.mxu0 0.0
    %5908 = vmatprep.subr.mxu0 0.0
    %5909 = vmatpush1.msra.mxu0 0.0
    %5910 = vmatprep.subr.mxu0 0.0
    %5911 = vmatpush1.msra.mxu0 0.0
    %5912 = vmatprep.subr.mxu0 0.0
    %5913 = vmatpush1.msra.mxu0 0.0
    %5914 = vmatprep.subr.mxu0 0.0
    %5915 = vmatpush1.msra.mxu0 0.0
    %5916 = vmatprep.subr.mxu0 0.0
    %5917 = vmatpush1.msra.mxu0 0.0
    %5918 = vmatprep.subr.mxu0 0.0
    %5919 = vmatpush1.msra.mxu0 0.0
    %5920 = vmatprep.subr.mxu0 0.0
    %5921 = vmatpush1.msra.mxu0 0.0
    %5922 = vmatprep.subr.mxu0 0.0
    %5923 = vmatpush1.msra.mxu0 0.0
    %5924 = vmatprep.subr.mxu0 0.0
    %5925 = vmatpush1.msra.mxu0 0.0
    %5926 = vmatprep.subr.mxu0 0.0
    %5927 = vmatpush1.msra.mxu0 0.0
    %5928 = vmatprep.subr.mxu0 0.0
    %5929 = vmatpush1.msra.mxu0 0.0
    %5930 = vmatprep.subr.mxu0 0.0
    %5931 = vmatpush1.msra.mxu0 0.0
    %5932 = vmatprep.subr.mxu0 0.0
    %5933 = vmatpush1.msra.mxu0 0.0
    %5934 = vmatprep.subr.mxu0 0.0
    %5935 = vmatpush1.msra.mxu0 0.0
    %5936 = vmatprep.subr.mxu0 0.0
    %5937 = vmatpush1.msra.mxu0 0.0
    %5938 = vmatprep.subr.mxu0 0.0
    %5939 = vmatpush1.msra.mxu0 0.0
    %5940 = vmatprep.subr.mxu0 0.0
    %5941 = vmatpush1.msra.mxu0 0.0
    %5942 = vmatprep.subr.mxu0 0.0
    %5943 = vmatpush1.msra.mxu0 0.0
    %5944 = vmatprep.subr.mxu0 0.0
    %5945 = vmatpush1.msra.mxu0 0.0
    %5946 = vmatprep.subr.mxu0 0.0
    %5947 = vmatpush1.msra.mxu0 0.0
    %5948 = vmatprep.subr.mxu0 0.0
    %5949 = vmatpush1.msra.mxu0 0.0
    %5950 = vmatprep.subr.mxu0 0.0
    %5951 = vmatpush1.msra.mxu0 0.0
    %5952 = vmatprep.mubr.f32.mxu0 0.0
    %5953 = vmatmul.mubr.f32.gmra.mrb[0].mxu0 %v5886
    %v5954 = vpop.f32.mrb[0].mxu0
    %v5955 = vadd.f32 0.0, %v5954
    %v5956 = vpop.f32.mrb[0].mxu0
    %v5957 = vadd.f32 0.0, %v5956
    %5958 = vdwg.mxu0
    %v5959 = vadd.f32 %v5955, %v336
    %v5960 = vsel %vm776, %v5959, -inf
    %5961 = vmax.xlane.f32.xlu0 %v5960
    %v5962 = vpop.xlane.xlu0 %5961
    %v5963 = vsub.f32 %v5959, %v5962
    %v5964 = vmul.f32 %v5963, 1.442695
    %v5965 = vpow.pop %v5964
    %v5966 = vsel %vm776, %v5965, 0.0
    %5967 = vadd.xlane.f32.xlu0 %v5966
    %v5968 = vpop.xlane.xlu0 %5967
    %v5969 = vlog2.pop %v5968
    %v5970 = vmul.f32 %v5969, 0.6931472
    %v5971 = vsub.f32 %v5963, %v5970
    %5972 = vrot.lane.b32.xlu0 %v5882, 32
    %v5973 = vpop.permute.xlu0 %5972
    %5975 = vrot.lane.b32.xlu0 %v5631, 96
    %v5976 = vpop.permute.xlu0 %5975
    %v5978 = vsel %vm795, %v5971, %v5973
    %v5979 = vsel %vm797, %v5978, %v5976
    %v5980 = vsel %vm799, %v5979, 0.0
    %5981 = vst [vmem:[#allocation12 + $0xe] sm:$0x1] %v5980
    %v5982 = vld [vmem:[#allocation3 + $0xf] sm:$0x1]
    %5984 = vrot.lane.b32.xlu0 %v5955, 64
    %v5985 = vpop.permute.xlu0 %5984
    %v5987 = vadd.f32 %v5982, %v5985
    %v5988 = vsel %vm418, %v5987, -inf
    %5989 = vmax.xlane.f32.xlu0 %v5988
    %v5990 = vpop.xlane.xlu0 %5989
    %v5991 = vsub.f32 %v5987, %v5990
    %v5992 = vmul.f32 %v5991, 1.442695
    %v5993 = vpow.pop %v5992
    %v5994 = vsel %vm418, %v5993, 0.0
    %5995 = vadd.xlane.f32.xlu0 %v5994
    %v5996 = vpop.xlane.xlu0 %5995
    %v5997 = vrcp.pop %v5996
    %v5998 = vmul.f32 %v5996, %v5997
    %v5999 = vsub.f32 2.0, %v5998
    %v6000 = vmul.f32 %v5997, %v5999
    %v6001 = vmul.f32 %v5993, %v6000
    %v6003 = vsel %vm226, %v6001, 0
    %6005 = vmatprep.subr.mxu0 0.0
    %6006 = vmatpush1.msra.mxu0 %v315
    %6007 = vmatprep.subr.mxu0 0.0
    %6008 = vmatpush1.msra.mxu0 %v316
    %6009 = vmatprep.subr.mxu0 0.0
    %6010 = vmatpush1.msra.mxu0 0.0
    %6011 = vmatprep.subr.mxu0 0.0
    %6012 = vmatpush1.msra.mxu0 0.0
    %6013 = vmatprep.subr.mxu0 0.0
    %6014 = vmatpush1.msra.mxu0 0.0
    %6015 = vmatprep.subr.mxu0 0.0
    %6016 = vmatpush1.msra.mxu0 0.0
    %6017 = vmatprep.subr.mxu0 0.0
    %6018 = vmatpush1.msra.mxu0 0.0
    %6019 = vmatprep.subr.mxu0 0.0
    %6020 = vmatpush1.msra.mxu0 0.0
    %6021 = vmatprep.subr.mxu0 0.0
    %6022 = vmatpush1.msra.mxu0 0.0
    %6023 = vmatprep.subr.mxu0 0.0
    %6024 = vmatpush1.msra.mxu0 0.0
    %6025 = vmatprep.subr.mxu0 0.0
    %6026 = vmatpush1.msra.mxu0 0.0
    %6027 = vmatprep.subr.mxu0 0.0
    %6028 = vmatpush1.msra.mxu0 0.0
    %6029 = vmatprep.subr.mxu0 0.0
    %6030 = vmatpush1.msra.mxu0 0.0
    %6031 = vmatprep.subr.mxu0 0.0
    %6032 = vmatpush1.msra.mxu0 0.0
    %6033 = vmatprep.subr.mxu0 0.0
    %6034 = vmatpush1.msra.mxu0 0.0
    %6035 = vmatprep.subr.mxu0 0.0
    %6036 = vmatpush1.msra.mxu0 0.0
    %6037 = vmatprep.subr.mxu0 0.0
    %6038 = vmatpush1.msra.mxu0 0.0
    %6039 = vmatprep.subr.mxu0 0.0
    %6040 = vmatpush1.msra.mxu0 0.0
    %6041 = vmatprep.subr.mxu0 0.0
    %6042 = vmatpush1.msra.mxu0 0.0
    %6043 = vmatprep.subr.mxu0 0.0
    %6044 = vmatpush1.msra.mxu0 0.0
    %6045 = vmatprep.subr.mxu0 0.0
    %6046 = vmatpush1.msra.mxu0 0.0
    %6047 = vmatprep.subr.mxu0 0.0
    %6048 = vmatpush1.msra.mxu0 0.0
    %6049 = vmatprep.subr.mxu0 0.0
    %6050 = vmatpush1.msra.mxu0 0.0
    %6051 = vmatprep.subr.mxu0 0.0
    %6052 = vmatpush1.msra.mxu0 0.0
    %6053 = vmatprep.subr.mxu0 0.0
    %6054 = vmatpush1.msra.mxu0 0.0
    %6055 = vmatprep.subr.mxu0 0.0
    %6056 = vmatpush1.msra.mxu0 0.0
    %6057 = vmatprep.subr.mxu0 0.0
    %6058 = vmatpush1.msra.mxu0 0.0
    %6059 = vmatprep.subr.mxu0 0.0
    %6060 = vmatpush1.msra.mxu0 0.0
    %6061 = vmatprep.subr.mxu0 0.0
    %6062 = vmatpush1.msra.mxu0 0.0
    %6063 = vmatprep.subr.mxu0 0.0
    %6064 = vmatpush1.msra.mxu0 0.0
    %6065 = vmatprep.subr.mxu0 0.0
    %6066 = vmatpush1.msra.mxu0 0.0
    %6067 = vmatprep.subr.mxu0 0.0
    %6068 = vmatpush1.msra.mxu0 0.0
    %6069 = vmatprep.mubr.f32.mxu0 0.0
    %6070 = vmatmul.mubr.f32.gmra.mrb[0].mxu0 %v6003
    %v6071 = vpop.f32.mrb[0].mxu0
    %v6072 = vadd.f32 0.0, %v6071
    %v6073 = vpop.f32.mrb[0].mxu0
    %6074 = vdwg.mxu0
    %v6075 = vld [vmem:[#allocation4 + $0xf] sm:$0x1]
    %v6077 = vsel %vm144, %v6072, 0
    %6079 = vmatprep.subr.mxu0 0.0
    %6080 = vmatpush1.msra.mxu0 %v317
    %6081 = vmatprep.subr.mxu0 0.0
    %6082 = vmatpush1.msra.mxu0 %v318
    %6083 = vmatprep.subr.mxu0 0.0
    %6084 = vmatpush1.msra.mxu0 %v319
    %6085 = vmatprep.subr.mxu0 0.0
    %6086 = vmatpush1.msra.mxu0 %v320
    %6087 = vmatprep.subr.mxu0 0.0
    %6088 = vmatpush1.msra.mxu0 0.0
    %6089 = vmatprep.subr.mxu0 0.0
    %6090 = vmatpush1.msra.mxu0 0.0
    %6091 = vmatprep.subr.mxu0 0.0
    %6092 = vmatpush1.msra.mxu0 0.0
    %6093 = vmatprep.subr.mxu0 0.0
    %6094 = vmatpush1.msra.mxu0 0.0
    %6095 = vmatprep.subr.mxu0 0.0
    %6096 = vmatpush1.msra.mxu0 0.0
    %6097 = vmatprep.subr.mxu0 0.0
    %6098 = vmatpush1.msra.mxu0 0.0
    %6099 = vmatprep.subr.mxu0 0.0
    %6100 = vmatpush1.msra.mxu0 0.0
    %6101 = vmatprep.subr.mxu0 0.0
    %6102 = vmatpush1.msra.mxu0 0.0
    %6103 = vmatprep.subr.mxu0 0.0
    %6104 = vmatpush1.msra.mxu0 0.0
    %6105 = vmatprep.subr.mxu0 0.0
    %6106 = vmatpush1.msra.mxu0 0.0
    %6107 = vmatprep.subr.mxu0 0.0
    %6108 = vmatpush1.msra.mxu0 0.0
    %6109 = vmatprep.subr.mxu0 0.0
    %6110 = vmatpush1.msra.mxu0 0.0
    %6111 = vmatprep.subr.mxu0 0.0
    %6112 = vmatpush1.msra.mxu0 0.0
    %6113 = vmatprep.subr.mxu0 0.0
    %6114 = vmatpush1.msra.mxu0 0.0
    %6115 = vmatprep.subr.mxu0 0.0
    %6116 = vmatpush1.msra.mxu0 0.0
    %6117 = vmatprep.subr.mxu0 0.0
    %6118 = vmatpush1.msra.mxu0 0.0
    %6119 = vmatprep.subr.mxu0 0.0
    %6120 = vmatpush1.msra.mxu0 0.0
    %6121 = vmatprep.subr.mxu0 0.0
    %6122 = vmatpush1.msra.mxu0 0.0
    %6123 = vmatprep.subr.mxu0 0.0
    %6124 = vmatpush1.msra.mxu0 0.0
    %6125 = vmatprep.subr.mxu0 0.0
    %6126 = vmatpush1.msra.mxu0 0.0
    %6127 = vmatprep.subr.mxu0 0.0
    %6128 = vmatpush1.msra.mxu0 0.0
    %6129 = vmatprep.subr.mxu0 0.0
    %6130 = vmatpush1.msra.mxu0 0.0
    %6131 = vmatprep.subr.mxu0 0.0
    %6132 = vmatpush1.msra.mxu0 0.0
    %6133 = vmatprep.subr.mxu0 0.0
    %6134 = vmatpush1.msra.mxu0 0.0
    %6135 = vmatprep.subr.mxu0 0.0
    %6136 = vmatpush1.msra.mxu0 0.0
    %6137 = vmatprep.subr.mxu0 0.0
    %6138 = vmatpush1.msra.mxu0 0.0
    %6139 = vmatprep.subr.mxu0 0.0
    %6140 = vmatpush1.msra.mxu0 0.0
    %6141 = vmatprep.subr.mxu0 0.0
    %6142 = vmatpush1.msra.mxu0 0.0
    %6143 = vmatprep.mubr.f32.mxu0 0.0
    %6144 = vmatmul.mubr.f32.gmra.mrb[0].mxu0 %v6077
    %v6145 = vpop.f32.mrb[0].mxu0
    %v6146 = vadd.f32 0.0, %v6145
    %v6147 = vpop.f32.mrb[0].mxu0
    %6148 = vdwg.mxu0
    %v6149 = vadd.f32 %v6075, %v6146
    %v6150 = vmax.f32 %v6149, 0.0
    %v6152 = vsel %vm144, %v6150, 0
    %6154 = vmatprep.subr.mxu0 0.0
    %6155 = vmatpush1.msra.mxu0 %v321
    %6156 = vmatprep.subr.mxu0 0.0
    %6157 = vmatpush1.msra.mxu0 %v322
    %6158 = vmatprep.subr.mxu0 0.0
    %6159 = vmatpush1.msra.mxu0 %v323
    %6160 = vmatprep.subr.mxu0 0.0
    %6161 = vmatpush1.msra.mxu0 %v324
    %6162 = vmatprep.subr.mxu0 0.0
    %6163 = vmatpush1.msra.mxu0 0.0
    %6164 = vmatprep.subr.mxu0 0.0
    %6165 = vmatpush1.msra.mxu0 0.0
    %6166 = vmatprep.subr.mxu0 0.0
    %6167 = vmatpush1.msra.mxu0 0.0
    %6168 = vmatprep.subr.mxu0 0.0
    %6169 = vmatpush1.msra.mxu0 0.0
    %6170 = vmatprep.subr.mxu0 0.0
    %6171 = vmatpush1.msra.mxu0 0.0
    %6172 = vmatprep.subr.mxu0 0.0
    %6173 = vmatpush1.msra.mxu0 0.0
    %6174 = vmatprep.subr.mxu0 0.0
    %6175 = vmatpush1.msra.mxu0 0.0
    %6176 = vmatprep.subr.mxu0 0.0
    %6177 = vmatpush1.msra.mxu0 0.0
    %6178 = vmatprep.subr.mxu0 0.0
    %6179 = vmatpush1.msra.mxu0 0.0
    %6180 = vmatprep.subr.mxu0 0.0
    %6181 = vmatpush1.msra.mxu0 0.0
    %6182 = vmatprep.subr.mxu0 0.0
    %6183 = vmatpush1.msra.mxu0 0.0
    %6184 = vmatprep.subr.mxu0 0.0
    %6185 = vmatpush1.msra.mxu0 0.0
    %6186 = vmatprep.subr.mxu0 0.0
    %6187 = vmatpush1.msra.mxu0 0.0
    %6188 = vmatprep.subr.mxu0 0.0
    %6189 = vmatpush1.msra.mxu0 0.0
    %6190 = vmatprep.subr.mxu0 0.0
    %6191 = vmatpush1.msra.mxu0 0.0
    %6192 = vmatprep.subr.mxu0 0.0
    %6193 = vmatpush1.msra.mxu0 0.0
    %6194 = vmatprep.subr.mxu0 0.0
    %6195 = vmatpush1.msra.mxu0 0.0
    %6196 = vmatprep.subr.mxu0 0.0
    %6197 = vmatpush1.msra.mxu0 0.0
    %6198 = vmatprep.subr.mxu0 0.0
    %6199 = vmatpush1.msra.mxu0 0.0
    %6200 = vmatprep.subr.mxu0 0.0
    %6201 = vmatpush1.msra.mxu0 0.0
    %6202 = vmatprep.subr.mxu0 0.0
    %6203 = vmatpush1.msra.mxu0 0.0
    %6204 = vmatprep.subr.mxu0 0.0
    %6205 = vmatpush1.msra.mxu0 0.0
    %6206 = vmatprep.subr.mxu0 0.0
    %6207 = vmatpush1.msra.mxu0 0.0
    %6208 = vmatprep.subr.mxu0 0.0
    %6209 = vmatpush1.msra.mxu0 0.0
    %6210 = vmatprep.subr.mxu0 0.0
    %6211 = vmatpush1.msra.mxu0 0.0
    %6212 = vmatprep.subr.mxu0 0.0
    %6213 = vmatpush1.msra.mxu0 0.0
    %6214 = vmatprep.subr.mxu0 0.0
    %6215 = vmatpush1.msra.mxu0 0.0
    %6216 = vmatprep.subr.mxu0 0.0
    %6217 = vmatpush1.msra.mxu0 0.0
    %6218 = vmatprep.mubr.f32.mxu0 0.0
    %6219 = vmatmul.mubr.f32.gmra.mrb[0].mxu0 %v6152
    %v6220 = vpop.f32.mrb[0].mxu0
    %v6221 = vadd.f32 0.0, %v6220
    %v6222 = vpop.f32.mrb[0].mxu0
    %6223 = vdwg.mxu0
    %v6224 = vadd.f32 %v6221, %v5957
    %v6225 = vadd.f32 %v6224, %v333
    %v6226 = vxor.u32 %v6225, 2147483648
    %v6227 = vmul.f32 %v6226, 1.442695
    %v6228 = vpow.pop %v6227
    %v6229 = vadd.f32 %v6228, 1.0
    %v6230 = vrcp.pop %v6229
    %v6231 = vmul.f32 1.0, %v6230
    %v6232 = vadd.f32 %v6221, %v665
    %v6233 = vadd.f32 %v5957, %v670
    %6235 = vrot.lane.b32.xlu0 %v6233, 64
    %v6236 = vpop.permute.xlu0 %6235
    %v6238 = vmul.f32 %v6231, %v6236
    %6240 = vrot.lane.b32.xlu0 %v6238, 64
    %v6241 = vpop.permute.xlu0 %6240
    %v6243 = vadd.f32 %v6232, %v6241
    %v6244 = vtanh.pop %v6243
    %v6245 = vsub.f32 1.0, %v6231
    %6247 = vrot.lane.b32.xlu0 %v6244, 96
    %v6248 = vpop.permute.xlu0 %6247
    %v6250 = vmul.f32 %v6245, %v6248
    %v6251 = vmul.f32 %v6231, %v5882
    %v6252 = vadd.f32 %v6250, %v6251
    %6254 = vrot.lane.b32.xlu0 %v6252, 96
    %v6255 = vpop.permute.xlu0 %6254
    %v6256 = vsel %vm144, %v6255, 0
    %6258 = vmatprep.subr.mxu0 %v326
    %6259 = vmatpush1.msra.mxu0 %v325
    %6260 = vmatprep.subr.mxu0 %v328
    %6261 = vmatpush1.msra.mxu0 %v327
    %6262 = vmatprep.subr.mxu0 %v330
    %6263 = vmatpush1.msra.mxu0 %v329
    %6264 = vmatprep.subr.mxu0 %v332
    %6265 = vmatpush1.msra.mxu0 %v331
    %6266 = vmatprep.subr.mxu0 0.0
    %6267 = vmatpush1.msra.mxu0 0.0
    %6268 = vmatprep.subr.mxu0 0.0
    %6269 = vmatpush1.msra.mxu0 0.0
    %6270 = vmatprep.subr.mxu0 0.0
    %6271 = vmatpush1.msra.mxu0 0.0
    %6272 = vmatprep.subr.mxu0 0.0
    %6273 = vmatpush1.msra.mxu0 0.0
    %6274 = vmatprep.subr.mxu0 0.0
    %6275 = vmatpush1.msra.mxu0 0.0
    %6276 = vmatprep.subr.mxu0 0.0
    %6277 = vmatpush1.msra.mxu0 0.0
    %6278 = vmatprep.subr.mxu0 0.0
    %6279 = vmatpush1.msra.mxu0 0.0
    %6280 = vmatprep.subr.mxu0 0.0
    %6281 = vmatpush1.msra.mxu0 0.0
    %6282 = vmatprep.subr.mxu0 0.0
    %6283 = vmatpush1.msra.mxu0 0.0
    %6284 = vmatprep.subr.mxu0 0.0
    %6285 = vmatpush1.msra.mxu0 0.0
    %6286 = vmatprep.subr.mxu0 0.0
    %6287 = vmatpush1.msra.mxu0 0.0
    %6288 = vmatprep.subr.mxu0 0.0
    %6289 = vmatpush1.msra.mxu0 0.0
    %6290 = vmatprep.subr.mxu0 0.0
    %6291 = vmatpush1.msra.mxu0 0.0
    %6292 = vmatprep.subr.mxu0 0.0
    %6293 = vmatpush1.msra.mxu0 0.0
    %6294 = vmatprep.subr.mxu0 0.0
    %6295 = vmatpush1.msra.mxu0 0.0
    %6296 = vmatprep.subr.mxu0 0.0
    %6297 = vmatpush1.msra.mxu0 0.0
    %6298 = vmatprep.subr.mxu0 0.0
    %6299 = vmatpush1.msra.mxu0 0.0
    %6300 = vmatprep.subr.mxu0 0.0
    %6301 = vmatpush1.msra.mxu0 0.0
    %6302 = vmatprep.subr.mxu0 0.0
    %6303 = vmatpush1.msra.mxu0 0.0
    %6304 = vmatprep.subr.mxu0 0.0
    %6305 = vmatpush1.msra.mxu0 0.0
    %6306 = vmatprep.subr.mxu0 0.0
    %6307 = vmatpush1.msra.mxu0 0.0
    %6308 = vmatprep.subr.mxu0 0.0
    %6309 = vmatpush1.msra.mxu0 0.0
    %6310 = vmatprep.subr.mxu0 0.0
    %6311 = vmatpush1.msra.mxu0 0.0
    %6312 = vmatprep.subr.mxu0 0.0
    %6313 = vmatpush1.msra.mxu0 0.0
    %6314 = vmatprep.subr.mxu0 0.0
    %6315 = vmatpush1.msra.mxu0 0.0
    %6316 = vmatprep.subr.mxu0 0.0
    %6317 = vmatpush1.msra.mxu0 0.0
    %6318 = vmatprep.subr.mxu0 0.0
    %6319 = vmatpush1.msra.mxu0 0.0
    %6320 = vmatprep.subr.mxu0 0.0
    %6321 = vmatpush1.msra.mxu0 0.0
    %6322 = vmatprep.mubr.f32.mxu0 0.0
    %6323 = vmatmul.mubr.f32.gmra.mrb[0].mxu0 %v6256
    %v6324 = vpop.f32.mrb[0].mxu0
    %v6325 = vadd.f32 0.0, %v6324
    %v6326 = vpop.f32.mrb[0].mxu0
    %6327 = vdwg.mxu0
    %v6328 = vadd.f32 %v6325, %v336
    %v6329 = vsel %vm776, %v6328, -inf
    %6330 = vmax.xlane.f32.xlu0 %v6329
    %v6331 = vpop.xlane.xlu0 %6330
    %v6332 = vsub.f32 %v6328, %v6331
    %v6333 = vmul.f32 %v6332, 1.442695
    %v6334 = vpow.pop %v6333
    %v6335 = vsel %vm776, %v6334, 0.0
    %6336 = vadd.xlane.f32.xlu0 %v6335
    %v6337 = vpop.xlane.xlu0 %6336
    %v6338 = vlog2.pop %v6337
    %v6339 = vmul.f32 %v6338, 0.6931472
    %v6340 = vsub.f32 %v6332, %v6339
    %6341 = vrot.lane.b32.xlu0 %v6252, 32
    %v6342 = vpop.permute.xlu0 %6341
    %6344 = vrot.lane.b32.xlu0 %v6001, 96
    %v6345 = vpop.permute.xlu0 %6344
    %v6347 = vsel %vm795, %v6340, %v6342
    %v6348 = vsel %vm797, %v6347, %v6345
    %v6349 = vsel %vm799, %v6348, 0.0
    %6350 = vst [vmem:[#allocation12 + $0xf] sm:$0x1] %v6349
    // Predicated region
    $region46: #{tpu_custom_call.1} parent=1 // pred_check
      _
    $region47: #{tpu_custom_call.1} parent=1 // pred_check_branch
      %6352 = sbr.rel (0) target = $region49
    $region48: #{tpu_custom_call.1} parent=1 // pred_region
      %s6354 = ssub.s32 256, 256
      %6355 = vsyncadd [#allocation9], %s6354
      %s6356 = sshll.u32 [#allocation12], 4
      %s6357 = int_to_ptr.vmem [resolvable:$true] %s6356
      %6362 = dma.vmem_to_hbm [thread:$0]  %s6357, 256, %s10, [#allocation9], 128, 128, 8
    $region49: #{tpu_custom_call.1} parent=1 // pred_fallthru
      _
    // Predicated region
    $region50: #{tpu_custom_call.1} parent=1 // pred_check
      _
    $region51: #{tpu_custom_call.1} parent=1 // pred_check_branch
      %6364 = sbr.rel (0) target = $region53
    $region52: #{tpu_custom_call.1} parent=1 // pred_region
      %6365 = dma.done [#allocation9], 256
    $region53: #{tpu_custom_call.1} parent=1 // pred_fallthru
      _
    %6366 = vsyncpa [#allocation8], 1
    %6367 = vsyncpa [#allocation11], 1
    %6368 = vsyncpa [#allocation9], 1

</llo_original>
